<compile_context>
chip_gen: v5e
topology: v5e:2x2
jax: 0.10.0
libtpu: 0.0.40
codegen_flags: <defaults>
</compile_context>

<pallas_src>
import functools

import jax
import jax.numpy as jnp
from jax.experimental import pallas as pl
from jax.experimental.pallas import tpu as pltpu

_RB = 8     # image rows per MXU chunk  (RB * W = 128 pixels per matmul at W=16)
_COL = 8    # canvas interior column offset (multiple of 8 -> aligned f32 stores)


def _zero_halo_ring(c_ref, H, W):
    """Zero only the halo ring (plus its aligned padding bands) of a canvas."""
    can_w = c_ref.shape[1]
    C = c_ref.shape[2]
    dt = c_ref.dtype
    c_ref[0:1, :, :] = jnp.zeros((1, can_w, C), dt)               # top halo row
    c_ref[H + 1:H + 2, :, :] = jnp.zeros((1, can_w, C), dt)       # bottom halo row
    c_ref[1:H + 1, 0:_COL, :] = jnp.zeros((H, _COL, C), dt)       # left band (incl. col _COL-1)
    c_ref[1:H + 1, _COL + W:, :] = jnp.zeros((H, can_w - _COL - W, C), dt)  # right band


def _ec_fused_kernel(x_ref, w1_ref, b1_ref, w2_ref, b2_ref, w3_ref, b3_ref,
                     o_ref, c1_ref, c2_ref, *, H, W):
    """Fused conv1+ReLU, conv2+ReLU, conv3+tanh for one batch element.

    x_ref : (1, H+2, W+2, 49) bf16   pre-padded input block (NHWC)
    w1_ref: (3, 3, 49, 48) bf16  / b1_ref: (1, 48) f32
    w2_ref: (3, 3, 48, 24) bf16  / b2_ref: (1, 24) f32
    w3_ref: (3, 3, 24)     f32   / b3_ref: (1, 1)  f32
    o_ref : (1, H//RB, RB*W) f32     lane-dense output slab
    c1_ref: (H+2, _COL+W+8, 48) bf16 padded relu(conv1) canvas
    c2_ref: (H+2, _COL+W+8, 24) f32  padded relu(conv2) canvas
    """
    n_chunks = H // _RB

    # ---- zero only the halo ring, every step (see header note re v7x) ----
    _zero_halo_ring(c1_ref, H, W)
    _zero_halo_ring(c2_ref, H, W)

    # ---- hoist loop-invariant weight / bias loads out of the chunk loops ----
    w1 = [[w1_ref[dy, dx] for dx in range(3)] for dy in range(3)]   # (49,48) bf16
    w2 = [[w2_ref[dy, dx] for dx in range(3)] for dy in range(3)]   # (48,24) bf16
    w3 = w3_ref[...]                                                # (3,3,24) f32
    b1 = b1_ref[...]
    b2 = b2_ref[...]
    b3 = b3_ref[...]

    def conv_chunk(band_fn, w_taps, cin, cout, hb):
        """3x3 conv (one RB-row chunk) on the MXU, dx-outer band loads."""
        acc = jnp.zeros((_RB * W, cout), jnp.float32)
        for dx in range(3):
            band = band_fn(hb, dx)                       # (RB+2, W, cin)
            for dy in range(3):                          # leading-dim slices: free
                patch = band[dy:dy + _RB].reshape(_RB * W, cin)
                acc = acc + jnp.dot(patch, w_taps[dy][dx],
                                    preferred_element_type=jnp.float32)
        return acc

    # Band readers: rows hb*RB .. hb*RB+RB+1 (halo included); one sublane
    # (column) shift per dx.  x is pre-padded so its column base is 0.
    def band_from_x(hb, dx):
        return x_ref[0, hb * _RB:hb * _RB + _RB + 2, dx:dx + W, :]

    def band_from_c1(hb, dx):
        return c1_ref[hb * _RB:hb * _RB + _RB + 2,
                      _COL - 1 + dx:_COL - 1 + dx + W, :]

    def band_from_c2(hb, dx):
        return c2_ref[hb * _RB:hb * _RB + _RB + 2,
                      _COL - 1 + dx:_COL - 1 + dx + W, :]

    # ---- conv1 + ReLU (49 -> 48), bf16 x bf16 -> f32 accumulate ----
    for hb in range(n_chunks):
        act = jnp.maximum(conv_chunk(band_from_x, w1, 49, 48, hb) + b1, 0.0)
        c1_ref[1 + hb * _RB:1 + hb * _RB + _RB, _COL:_COL + W, :] = (
            act.reshape(_RB, W, 48).astype(c1_ref.dtype))          # cast once

    # ---- conv2 + ReLU (48 -> 24) ----
    for hb in range(n_chunks):
        act = jnp.maximum(conv_chunk(band_from_c1, w2, 48, 24, hb) + b2, 0.0)
        c2_ref[1 + hb * _RB:1 + hb * _RB + _RB, _COL:_COL + W, :] = (
            act.reshape(_RB, W, 24))

    # ---- conv3 + tanh (24 -> 1) on the VPU ----
    # Accumulate all 9 taps into (RB, W, 24); ONE cross-lane sum per chunk.
    for hb in range(n_chunks):
        acc3 = jnp.zeros((_RB, W, 24), jnp.float32)
        for dx in range(3):
            band = band_from_c2(hb, dx)                  # (RB+2, W, 24) f32
            for dy in range(3):
                acc3 = acc3 + band[dy:dy + _RB] * w3[dy, dx]
        out = jnp.tanh(jnp.sum(acc3, axis=-1) + b3)      # (RB, W)
        # lane-dense store: exactly one full 128-lane row per chunk
        o_ref[0, hb, :] = out.reshape(_RB * W).astype(o_ref.dtype)


def ec_forward(x_nchw, params):
    """EC.forward: NCHW in, NCHW out. Single fused Pallas kernel over the batch."""
    B, Cin, H, W = x_nchw.shape
    assert Cin == 49 and H % _RB == 0 and W % 8 == 0

    # NCHW -> NHWC, apply conv1's pad=1 once here (removes the input canvas),
    # and cast the conv1 operand to bf16 once (MXU input dtype).
    x = jnp.transpose(x_nchw, (0, 2, 3, 1)).astype(jnp.float32)
    xpad = jnp.pad(x, ((0, 0), (1, 1), (1, 1), (0, 0))).astype(jnp.bfloat16)

    w1 = params["conv1_w"].astype(jnp.bfloat16)           # (3,3,49,48) HWIO
    w2 = params["conv2_w"].astype(jnp.bfloat16)           # (3,3,48,24)
    w3 = params["conv3_w"][:, :, :, 0]                    # (3,3,24) f32 (Cout squeezed)
    b1 = params["conv1_b"].reshape(1, -1)
    b2 = params["conv2_b"].reshape(1, -1)
    b3 = params["conv3_b"].reshape(1, -1)

    n_chunks = H // _RB
    can_h, can_w = H + 2, _COL + W + 8

    kern = functools.partial(_ec_fused_kernel, H=H, W=W)
    out = pl.pallas_call(
        kern,
        out_shape=jax.ShapeDtypeStruct((B, n_chunks, _RB * W), jnp.float32),
        grid=(B,),
        in_specs=[
            pl.BlockSpec((1, H + 2, W + 2, Cin), lambda b: (b, 0, 0, 0)),
            pl.BlockSpec((3, 3, 49, 48), lambda b: (0, 0, 0, 0)),
            pl.BlockSpec((1, 48), lambda b: (0, 0)),
            pl.BlockSpec((3, 3, 48, 24), lambda b: (0, 0, 0, 0)),
            pl.BlockSpec((1, 24), lambda b: (0, 0)),
            pl.BlockSpec((3, 3, 24), lambda b: (0, 0, 0)),
            pl.BlockSpec((1, 1), lambda b: (0, 0)),
        ],
        out_specs=pl.BlockSpec((1, n_chunks, _RB * W), lambda b: (b, 0, 0)),
        scratch_shapes=[
            pltpu.VMEM((can_h, can_w, 48), jnp.bfloat16),   # padded relu(conv1)
            pltpu.VMEM((can_h, can_w, 24), jnp.float32),    # padded relu(conv2)
        ],
        compiler_params=pltpu.CompilerParams(
            dimension_semantics=("parallel",)),
    )(xpad, w1, b1, w2, b2, w3, b3)

    return out.reshape(B, 1, H, W)


def init_ec_params(key):
    """Deterministic init matching PyTorch Conv2d defaults (U(-k, k), k=1/sqrt(fan_in))."""
    specs = [("conv1", 49, 48), ("conv2", 48, 24), ("conv3", 24, 1)]
    params = {}
    for name, cin, cout in specs:
        key, kw, kb = jax.random.split(key, 3)
        bound = 1.0 / jnp.sqrt(cin * 3.0 * 3.0)
        params[name + "_w"] = jax.random.uniform(
            kw, (3, 3, cin, cout), jnp.float32, -bound, bound)   # HWIO
        params[name + "_b"] = jax.random.uniform(
            kb, (cout,), jnp.float32, -bound, bound)
    return params


def _ref_forward(x_nchw, params):
    """Pure-JAX (XLA) reference of EC.forward for correctness checking."""
    x = jnp.transpose(x_nchw, (0, 2, 3, 1))

    def conv(z, w, b):
        y = jax.lax.conv_general_dilated(
            z, w, window_strides=(1, 1), padding=((1, 1), (1, 1)),
            dimension_numbers=("NHWC", "HWIO", "NHWC"),
            precision=jax.lax.Precision.HIGHEST)
        return y + b.reshape(1, 1, 1, -1)

    y = jax.nn.relu(conv(x, params["conv1_w"], params["conv1_b"]))
    y = jax.nn.relu(conv(y, params["conv2_w"], params["conv2_b"]))
    y = jnp.tanh(conv(y, params["conv3_w"], params["conv3_b"]))
    return jnp.transpose(y, (0, 3, 1, 2))


if __name__ == "__main__":
    key = jax.random.PRNGKey(0)
    kparam, kx = jax.random.split(key)
    params = init_ec_params(kparam)

    # Small input consistent with the module: 49 input channels, 16x16 spatial.
    x = jax.random.normal(kx, (2, 49, 16, 16), jnp.float32)

    out = jax.block_until_ready(jax.jit(ec_forward)(x, params))

    assert out.shape == (2, 1, 16, 16), out.shape
    assert bool(jnp.all(jnp.isfinite(out)))
    assert bool(jnp.all(jnp.abs(out) <= 1.0))   # tanh range

    ref = _ref_forward(x, params)
    max_err = float(jnp.max(jnp.abs(out - ref)))
    assert max_err < 5e-2, f"max abs err vs reference: {max_err}"

    print("KERNEL_OK")
</pallas_src>

<mosaic_0001>
module attributes {stable_mosaic.version = 11 : i64} {
  func.func @_ec_fused_kernel(%arg0: i32, %arg1: memref<1x18x18x49xbf16, #tpu.memory_space<vmem>>, %arg2: memref<3x3x49x48xbf16, #tpu.memory_space<vmem>>, %arg3: memref<1x48xf32, #tpu.memory_space<vmem>>, %arg4: memref<3x3x48x24xbf16, #tpu.memory_space<vmem>>, %arg5: memref<1x24xf32, #tpu.memory_space<vmem>>, %arg6: memref<3x3x24xf32, #tpu.memory_space<vmem>>, %arg7: memref<1x1xf32, #tpu.memory_space<vmem>>, %arg8: memref<1x2x128xf32, #tpu.memory_space<vmem>>, %arg9: memref<18x32x48xbf16, #tpu.memory_space<vmem>>, %arg10: memref<18x32x24xf32, #tpu.memory_space<vmem>>) attributes {dimension_semantics = [#tpu.dimension_semantics<parallel>], iteration_bounds = array<i64: 2>, scalar_prefetch = 0 : i64, scratch_operands = 2 : i64, tpu.core_type = #tpu.core_type<tc>, window_params = [{transform_indices = @transform_0, window_bounds = array<i64: 1, 18, 18, 49>}, {pipeline_mode = #tpu.pipeline_mode<synchronous>, transform_indices = @transform_1, window_bounds = array<i64: 3, 3, 49, 48>}, {pipeline_mode = #tpu.pipeline_mode<synchronous>, transform_indices = @transform_2, window_bounds = array<i64: 1, 48>}, {pipeline_mode = #tpu.pipeline_mode<synchronous>, transform_indices = @transform_3, window_bounds = array<i64: 3, 3, 48, 24>}, {pipeline_mode = #tpu.pipeline_mode<synchronous>, transform_indices = @transform_4, window_bounds = array<i64: 1, 24>}, {pipeline_mode = #tpu.pipeline_mode<synchronous>, transform_indices = @transform_5, window_bounds = array<i64: 3, 3, 24>}, {pipeline_mode = #tpu.pipeline_mode<synchronous>, transform_indices = @transform_6, window_bounds = array<i64: 1, 1>}, {transform_indices = @transform_7, window_bounds = array<i64: 1, 2, 128>}]} {
    %cst = arith.constant 0.000000e+00 : bf16
    %0 = vector.broadcast %cst : bf16 to vector<1x32x48xbf16>
    %c0 = arith.constant 0 : index
    %c0_0 = arith.constant 0 : index
    %c0_1 = arith.constant 0 : index
    %1 = vector.load %arg9[%c0, %c0_0, %c0_1] : memref<18x32x48xbf16, #tpu.memory_space<vmem>>, vector<1x32x48xbf16>
    tpu.vector_store %arg9[%c0, %c0_0, %c0_1], %0 {strides = array<i32>} : memref<18x32x48xbf16, #tpu.memory_space<vmem>>, vector<1x32x48xbf16>,
    %cst_2 = arith.constant 0.000000e+00 : bf16
    %2 = vector.broadcast %cst_2 : bf16 to vector<1x32x48xbf16>
    %c17 = arith.constant 17 : index
    %c0_3 = arith.constant 0 : index
    %c0_4 = arith.constant 0 : index
    %3 = vector.load %arg9[%c17, %c0_3, %c0_4] : memref<18x32x48xbf16, #tpu.memory_space<vmem>>, vector<1x32x48xbf16>
    tpu.vector_store %arg9[%c17, %c0_3, %c0_4], %2 {strides = array<i32>} : memref<18x32x48xbf16, #tpu.memory_space<vmem>>, vector<1x32x48xbf16>,
    %cst_5 = arith.constant 0.000000e+00 : bf16
    %4 = vector.broadcast %cst_5 : bf16 to vector<16x8x48xbf16>
    %c1 = arith.constant 1 : index
    %c0_6 = arith.constant 0 : index
    %c0_7 = arith.constant 0 : index
    %5 = vector.load %arg9[%c1, %c0_6, %c0_7] : memref<18x32x48xbf16, #tpu.memory_space<vmem>>, vector<16x8x48xbf16>
    tpu.vector_store %arg9[%c1, %c0_6, %c0_7], %4 {strides = array<i32>} : memref<18x32x48xbf16, #tpu.memory_space<vmem>>, vector<16x8x48xbf16>,
    %cst_8 = arith.constant 0.000000e+00 : bf16
    %6 = vector.broadcast %cst_8 : bf16 to vector<16x8x48xbf16>
    %c1_9 = arith.constant 1 : index
    %c24 = arith.constant 24 : index
    %c0_10 = arith.constant 0 : index
    %7 = vector.load %arg9[%c1_9, %c24, %c0_10] : memref<18x32x48xbf16, #tpu.memory_space<vmem>>, vector<16x8x48xbf16>
    tpu.vector_store %arg9[%c1_9, %c24, %c0_10], %6 {strides = array<i32>} : memref<18x32x48xbf16, #tpu.memory_space<vmem>>, vector<16x8x48xbf16>,
    %cst_11 = arith.constant 0.000000e+00 : f32
    %8 = vector.broadcast %cst_11 : f32 to vector<1x32x24xf32>
    %c0_12 = arith.constant 0 : index
    %c0_13 = arith.constant 0 : index
    %c0_14 = arith.constant 0 : index
    %9 = vector.load %arg10[%c0_12, %c0_13, %c0_14] : memref<18x32x24xf32, #tpu.memory_space<vmem>>, vector<1x32x24xf32>
    tpu.vector_store %arg10[%c0_12, %c0_13, %c0_14], %8 {strides = array<i32>} : memref<18x32x24xf32, #tpu.memory_space<vmem>>, vector<1x32x24xf32>,
    %cst_15 = arith.constant 0.000000e+00 : f32
    %10 = vector.broadcast %cst_15 : f32 to vector<1x32x24xf32>
    %c17_16 = arith.constant 17 : index
    %c0_17 = arith.constant 0 : index
    %c0_18 = arith.constant 0 : index
    %11 = vector.load %arg10[%c17_16, %c0_17, %c0_18] : memref<18x32x24xf32, #tpu.memory_space<vmem>>, vector<1x32x24xf32>
    tpu.vector_store %arg10[%c17_16, %c0_17, %c0_18], %10 {strides = array<i32>} : memref<18x32x24xf32, #tpu.memory_space<vmem>>, vector<1x32x24xf32>,
    %cst_19 = arith.constant 0.000000e+00 : f32
    %12 = vector.broadcast %cst_19 : f32 to vector<16x8x24xf32>
    %c1_20 = arith.constant 1 : index
    %c0_21 = arith.constant 0 : index
    %c0_22 = arith.constant 0 : index
    %13 = vector.load %arg10[%c1_20, %c0_21, %c0_22] : memref<18x32x24xf32, #tpu.memory_space<vmem>>, vector<16x8x24xf32>
    tpu.vector_store %arg10[%c1_20, %c0_21, %c0_22], %12 {strides = array<i32>} : memref<18x32x24xf32, #tpu.memory_space<vmem>>, vector<16x8x24xf32>,
    %cst_23 = arith.constant 0.000000e+00 : f32
    %14 = vector.broadcast %cst_23 : f32 to vector<16x8x24xf32>
    %c1_24 = arith.constant 1 : index
    %c24_25 = arith.constant 24 : index
    %c0_26 = arith.constant 0 : index
    %15 = vector.load %arg10[%c1_24, %c24_25, %c0_26] : memref<18x32x24xf32, #tpu.memory_space<vmem>>, vector<16x8x24xf32>
    tpu.vector_store %arg10[%c1_24, %c24_25, %c0_26], %14 {strides = array<i32>} : memref<18x32x24xf32, #tpu.memory_space<vmem>>, vector<16x8x24xf32>,
    %c0_27 = arith.constant 0 : index
    %c0_28 = arith.constant 0 : index
    %c0_29 = arith.constant 0 : index
    %c0_30 = arith.constant 0 : index
    %16 = vector.load %arg2[%c0_27, %c0_28, %c0_29, %c0_30] : memref<3x3x49x48xbf16, #tpu.memory_space<vmem>>, vector<1x1x49x48xbf16>
    %17 = vector.shape_cast %16 : vector<1x1x49x48xbf16> to vector<49x48xbf16>
    %c0_31 = arith.constant 0 : index
    %c1_32 = arith.constant 1 : index
    %c0_33 = arith.constant 0 : index
    %c0_34 = arith.constant 0 : index
    %18 = vector.load %arg2[%c0_31, %c1_32, %c0_33, %c0_34] : memref<3x3x49x48xbf16, #tpu.memory_space<vmem>>, vector<1x1x49x48xbf16>
    %19 = vector.shape_cast %18 : vector<1x1x49x48xbf16> to vector<49x48xbf16>
    %c0_35 = arith.constant 0 : index
    %c2 = arith.constant 2 : index
    %c0_36 = arith.constant 0 : index
    %c0_37 = arith.constant 0 : index
    %20 = vector.load %arg2[%c0_35, %c2, %c0_36, %c0_37] : memref<3x3x49x48xbf16, #tpu.memory_space<vmem>>, vector<1x1x49x48xbf16>
    %21 = vector.shape_cast %20 : vector<1x1x49x48xbf16> to vector<49x48xbf16>
    %c1_38 = arith.constant 1 : index
    %c0_39 = arith.constant 0 : index
    %c0_40 = arith.constant 0 : index
    %c0_41 = arith.constant 0 : index
    %22 = vector.load %arg2[%c1_38, %c0_39, %c0_40, %c0_41] : memref<3x3x49x48xbf16, #tpu.memory_space<vmem>>, vector<1x1x49x48xbf16>
    %23 = vector.shape_cast %22 : vector<1x1x49x48xbf16> to vector<49x48xbf16>
    %c1_42 = arith.constant 1 : index
    %c1_43 = arith.constant 1 : index
    %c0_44 = arith.constant 0 : index
    %c0_45 = arith.constant 0 : index
    %24 = vector.load %arg2[%c1_42, %c1_43, %c0_44, %c0_45] : memref<3x3x49x48xbf16, #tpu.memory_space<vmem>>, vector<1x1x49x48xbf16>
    %25 = vector.shape_cast %24 : vector<1x1x49x48xbf16> to vector<49x48xbf16>
    %c1_46 = arith.constant 1 : index
    %c2_47 = arith.constant 2 : index
    %c0_48 = arith.constant 0 : index
    %c0_49 = arith.constant 0 : index
    %26 = vector.load %arg2[%c1_46, %c2_47, %c0_48, %c0_49] : memref<3x3x49x48xbf16, #tpu.memory_space<vmem>>, vector<1x1x49x48xbf16>
    %27 = vector.shape_cast %26 : vector<1x1x49x48xbf16> to vector<49x48xbf16>
    %c2_50 = arith.constant 2 : index
    %c0_51 = arith.constant 0 : index
    %c0_52 = arith.constant 0 : index
    %c0_53 = arith.constant 0 : index
    %28 = vector.load %arg2[%c2_50, %c0_51, %c0_52, %c0_53] : memref<3x3x49x48xbf16, #tpu.memory_space<vmem>>, vector<1x1x49x48xbf16>
    %29 = vector.shape_cast %28 : vector<1x1x49x48xbf16> to vector<49x48xbf16>
    %c2_54 = arith.constant 2 : index
    %c1_55 = arith.constant 1 : index
    %c0_56 = arith.constant 0 : index
    %c0_57 = arith.constant 0 : index
    %30 = vector.load %arg2[%c2_54, %c1_55, %c0_56, %c0_57] : memref<3x3x49x48xbf16, #tpu.memory_space<vmem>>, vector<1x1x49x48xbf16>
    %31 = vector.shape_cast %30 : vector<1x1x49x48xbf16> to vector<49x48xbf16>
    %c2_58 = arith.constant 2 : index
    %c2_59 = arith.constant 2 : index
    %c0_60 = arith.constant 0 : index
    %c0_61 = arith.constant 0 : index
    %32 = vector.load %arg2[%c2_58, %c2_59, %c0_60, %c0_61] : memref<3x3x49x48xbf16, #tpu.memory_space<vmem>>, vector<1x1x49x48xbf16>
    %33 = vector.shape_cast %32 : vector<1x1x49x48xbf16> to vector<49x48xbf16>
    %c0_62 = arith.constant 0 : index
    %c0_63 = arith.constant 0 : index
    %c0_64 = arith.constant 0 : index
    %c0_65 = arith.constant 0 : index
    %34 = vector.load %arg4[%c0_62, %c0_63, %c0_64, %c0_65] : memref<3x3x48x24xbf16, #tpu.memory_space<vmem>>, vector<1x1x48x24xbf16>
    %35 = vector.shape_cast %34 : vector<1x1x48x24xbf16> to vector<48x24xbf16>
    %c0_66 = arith.constant 0 : index
    %c1_67 = arith.constant 1 : index
    %c0_68 = arith.constant 0 : index
    %c0_69 = arith.constant 0 : index
    %36 = vector.load %arg4[%c0_66, %c1_67, %c0_68, %c0_69] : memref<3x3x48x24xbf16, #tpu.memory_space<vmem>>, vector<1x1x48x24xbf16>
    %37 = vector.shape_cast %36 : vector<1x1x48x24xbf16> to vector<48x24xbf16>
    %c0_70 = arith.constant 0 : index
    %c2_71 = arith.constant 2 : index
    %c0_72 = arith.constant 0 : index
    %c0_73 = arith.constant 0 : index
    %38 = vector.load %arg4[%c0_70, %c2_71, %c0_72, %c0_73] : memref<3x3x48x24xbf16, #tpu.memory_space<vmem>>, vector<1x1x48x24xbf16>
    %39 = vector.shape_cast %38 : vector<1x1x48x24xbf16> to vector<48x24xbf16>
    %c1_74 = arith.constant 1 : index
    %c0_75 = arith.constant 0 : index
    %c0_76 = arith.constant 0 : index
    %c0_77 = arith.constant 0 : index
    %40 = vector.load %arg4[%c1_74, %c0_75, %c0_76, %c0_77] : memref<3x3x48x24xbf16, #tpu.memory_space<vmem>>, vector<1x1x48x24xbf16>
    %41 = vector.shape_cast %40 : vector<1x1x48x24xbf16> to vector<48x24xbf16>
    %c1_78 = arith.constant 1 : index
    %c1_79 = arith.constant 1 : index
    %c0_80 = arith.constant 0 : index
    %c0_81 = arith.constant 0 : index
    %42 = vector.load %arg4[%c1_78, %c1_79, %c0_80, %c0_81] : memref<3x3x48x24xbf16, #tpu.memory_space<vmem>>, vector<1x1x48x24xbf16>
    %43 = vector.shape_cast %42 : vector<1x1x48x24xbf16> to vector<48x24xbf16>
    %c1_82 = arith.constant 1 : index
    %c2_83 = arith.constant 2 : index
    %c0_84 = arith.constant 0 : index
    %c0_85 = arith.constant 0 : index
    %44 = vector.load %arg4[%c1_82, %c2_83, %c0_84, %c0_85] : memref<3x3x48x24xbf16, #tpu.memory_space<vmem>>, vector<1x1x48x24xbf16>
    %45 = vector.shape_cast %44 : vector<1x1x48x24xbf16> to vector<48x24xbf16>
    %c2_86 = arith.constant 2 : index
    %c0_87 = arith.constant 0 : index
    %c0_88 = arith.constant 0 : index
    %c0_89 = arith.constant 0 : index
    %46 = vector.load %arg4[%c2_86, %c0_87, %c0_88, %c0_89] : memref<3x3x48x24xbf16, #tpu.memory_space<vmem>>, vector<1x1x48x24xbf16>
    %47 = vector.shape_cast %46 : vector<1x1x48x24xbf16> to vector<48x24xbf16>
    %c2_90 = arith.constant 2 : index
    %c1_91 = arith.constant 1 : index
    %c0_92 = arith.constant 0 : index
    %c0_93 = arith.constant 0 : index
    %48 = vector.load %arg4[%c2_90, %c1_91, %c0_92, %c0_93] : memref<3x3x48x24xbf16, #tpu.memory_space<vmem>>, vector<1x1x48x24xbf16>
    %49 = vector.shape_cast %48 : vector<1x1x48x24xbf16> to vector<48x24xbf16>
    %c2_94 = arith.constant 2 : index
    %c2_95 = arith.constant 2 : index
    %c0_96 = arith.constant 0 : index
    %c0_97 = arith.constant 0 : index
    %50 = vector.load %arg4[%c2_94, %c2_95, %c0_96, %c0_97] : memref<3x3x48x24xbf16, #tpu.memory_space<vmem>>, vector<1x1x48x24xbf16>
    %51 = vector.shape_cast %50 : vector<1x1x48x24xbf16> to vector<48x24xbf16>
    %c0_98 = arith.constant 0 : index
    %c0_99 = arith.constant 0 : index
    %c0_100 = arith.constant 0 : index
    %52 = vector.load %arg6[%c0_98, %c0_99, %c0_100] : memref<3x3x24xf32, #tpu.memory_space<vmem>>, vector<3x3x24xf32>
    %c0_101 = arith.constant 0 : index
    %c0_102 = arith.constant 0 : index
    %53 = vector.load %arg3[%c0_101, %c0_102] : memref<1x48xf32, #tpu.memory_space<vmem>>, vector<1x48xf32>
    %c0_103 = arith.constant 0 : index
    %c0_104 = arith.constant 0 : index
    %54 = vector.load %arg5[%c0_103, %c0_104] : memref<1x24xf32, #tpu.memory_space<vmem>>, vector<1x24xf32>
    %c0_105 = arith.constant 0 : index
    %c0_106 = arith.constant 0 : index
    %55 = vector.load %arg7[%c0_105, %c0_106] : memref<1x1xf32, #tpu.memory_space<vmem>>, vector<1x1xf32>
    %cst_107 = arith.constant 0.000000e+00 : f32
    %56 = vector.broadcast %cst_107 : f32 to vector<128x48xf32>
    %c0_108 = arith.constant 0 : index
    %c0_109 = arith.constant 0 : index
    %c0_110 = arith.constant 0 : index
    %c0_111 = arith.constant 0 : index
    %57 = vector.load %arg1[%c0_108, %c0_109, %c0_110, %c0_111] : memref<1x18x18x49xbf16, #tpu.memory_space<vmem>>, vector<1x10x16x49xbf16>
    %58 = vector.shape_cast %57 : vector<1x10x16x49xbf16> to vector<10x16x49xbf16>
    %59 = vector.extract_strided_slice %58 {offsets = [0, 0, 0], sizes = [8, 16, 49], strides = [1, 1, 1]} : vector<10x16x49xbf16> to vector<8x16x49xbf16>
    %60 = vector.shape_cast %59 : vector<8x16x49xbf16> to vector<128x49xbf16>
    %cst_112 = arith.constant dense<0.000000e+00> : vector<128x48xf32>
    %61 = tpu.matmul %60, %17, %cst_112 {dimension_numbers = #tpu.dot_dimension_numbers<[1], [0], [0], [1], [0, 0, 1, 1], [], []>} : vector<128x49xbf16>, vector<49x48xbf16>, vector<128x48xf32> -> vector<128x48xf32>
    %62 = arith.addf %56, %61 : vector<128x48xf32>
    %63 = vector.extract_strided_slice %58 {offsets = [1, 0, 0], sizes = [8, 16, 49], strides = [1, 1, 1]} : vector<10x16x49xbf16> to vector<8x16x49xbf16>
    %64 = vector.shape_cast %63 : vector<8x16x49xbf16> to vector<128x49xbf16>
    %cst_113 = arith.constant dense<0.000000e+00> : vector<128x48xf32>
    %65 = tpu.matmul %64, %23, %cst_113 {dimension_numbers = #tpu.dot_dimension_numbers<[1], [0], [0], [1], [0, 0, 1, 1], [], []>} : vector<128x49xbf16>, vector<49x48xbf16>, vector<128x48xf32> -> vector<128x48xf32>
    %66 = arith.addf %62, %65 : vector<128x48xf32>
    %67 = vector.extract_strided_slice %58 {offsets = [2, 0, 0], sizes = [8, 16, 49], strides = [1, 1, 1]} : vector<10x16x49xbf16> to vector<8x16x49xbf16>
    %68 = vector.shape_cast %67 : vector<8x16x49xbf16> to vector<128x49xbf16>
    %cst_114 = arith.constant dense<0.000000e+00> : vector<128x48xf32>
    %69 = tpu.matmul %68, %29, %cst_114 {dimension_numbers = #tpu.dot_dimension_numbers<[1], [0], [0], [1], [0, 0, 1, 1], [], []>} : vector<128x49xbf16>, vector<49x48xbf16>, vector<128x48xf32> -> vector<128x48xf32>
    %70 = arith.addf %66, %69 : vector<128x48xf32>
    %c0_115 = arith.constant 0 : index
    %c0_116 = arith.constant 0 : index
    %c1_117 = arith.constant 1 : index
    %c0_118 = arith.constant 0 : index
    %71 = vector.load %arg1[%c0_115, %c0_116, %c1_117, %c0_118] : memref<1x18x18x49xbf16, #tpu.memory_space<vmem>>, vector<1x10x16x49xbf16>
    %72 = vector.shape_cast %71 : vector<1x10x16x49xbf16> to vector<10x16x49xbf16>
    %73 = vector.extract_strided_slice %72 {offsets = [0, 0, 0], sizes = [8, 16, 49], strides = [1, 1, 1]} : vector<10x16x49xbf16> to vector<8x16x49xbf16>
    %74 = vector.shape_cast %73 : vector<8x16x49xbf16> to vector<128x49xbf16>
    %cst_119 = arith.constant dense<0.000000e+00> : vector<128x48xf32>
    %75 = tpu.matmul %74, %19, %cst_119 {dimension_numbers = #tpu.dot_dimension_numbers<[1], [0], [0], [1], [0, 0, 1, 1], [], []>} : vector<128x49xbf16>, vector<49x48xbf16>, vector<128x48xf32> -> vector<128x48xf32>
    %76 = arith.addf %70, %75 : vector<128x48xf32>
    %77 = vector.extract_strided_slice %72 {offsets = [1, 0, 0], sizes = [8, 16, 49], strides = [1, 1, 1]} : vector<10x16x49xbf16> to vector<8x16x49xbf16>
    %78 = vector.shape_cast %77 : vector<8x16x49xbf16> to vector<128x49xbf16>
    %cst_120 = arith.constant dense<0.000000e+00> : vector<128x48xf32>
    %79 = tpu.matmul %78, %25, %cst_120 {dimension_numbers = #tpu.dot_dimension_numbers<[1], [0], [0], [1], [0, 0, 1, 1], [], []>} : vector<128x49xbf16>, vector<49x48xbf16>, vector<128x48xf32> -> vector<128x48xf32>
    %80 = arith.addf %76, %79 : vector<128x48xf32>
    %81 = vector.extract_strided_slice %72 {offsets = [2, 0, 0], sizes = [8, 16, 49], strides = [1, 1, 1]} : vector<10x16x49xbf16> to vector<8x16x49xbf16>
    %82 = vector.shape_cast %81 : vector<8x16x49xbf16> to vector<128x49xbf16>
    %cst_121 = arith.constant dense<0.000000e+00> : vector<128x48xf32>
    %83 = tpu.matmul %82, %31, %cst_121 {dimension_numbers = #tpu.dot_dimension_numbers<[1], [0], [0], [1], [0, 0, 1, 1], [], []>} : vector<128x49xbf16>, vector<49x48xbf16>, vector<128x48xf32> -> vector<128x48xf32>
    %84 = arith.addf %80, %83 : vector<128x48xf32>
    %c0_122 = arith.constant 0 : index
    %c0_123 = arith.constant 0 : index
    %c2_124 = arith.constant 2 : index
    %c0_125 = arith.constant 0 : index
    %85 = vector.load %arg1[%c0_122, %c0_123, %c2_124, %c0_125] : memref<1x18x18x49xbf16, #tpu.memory_space<vmem>>, vector<1x10x16x49xbf16>
    %86 = vector.shape_cast %85 : vector<1x10x16x49xbf16> to vector<10x16x49xbf16>
    %87 = vector.extract_strided_slice %86 {offsets = [0, 0, 0], sizes = [8, 16, 49], strides = [1, 1, 1]} : vector<10x16x49xbf16> to vector<8x16x49xbf16>
    %88 = vector.shape_cast %87 : vector<8x16x49xbf16> to vector<128x49xbf16>
    %cst_126 = arith.constant dense<0.000000e+00> : vector<128x48xf32>
    %89 = tpu.matmul %88, %21, %cst_126 {dimension_numbers = #tpu.dot_dimension_numbers<[1], [0], [0], [1], [0, 0, 1, 1], [], []>} : vector<128x49xbf16>, vector<49x48xbf16>, vector<128x48xf32> -> vector<128x48xf32>
    %90 = arith.addf %84, %89 : vector<128x48xf32>
    %91 = vector.extract_strided_slice %86 {offsets = [1, 0, 0], sizes = [8, 16, 49], strides = [1, 1, 1]} : vector<10x16x49xbf16> to vector<8x16x49xbf16>
    %92 = vector.shape_cast %91 : vector<8x16x49xbf16> to vector<128x49xbf16>
    %cst_127 = arith.constant dense<0.000000e+00> : vector<128x48xf32>
    %93 = tpu.matmul %92, %27, %cst_127 {dimension_numbers = #tpu.dot_dimension_numbers<[1], [0], [0], [1], [0, 0, 1, 1], [], []>} : vector<128x49xbf16>, vector<49x48xbf16>, vector<128x48xf32> -> vector<128x48xf32>
    %94 = arith.addf %90, %93 : vector<128x48xf32>
    %95 = vector.extract_strided_slice %86 {offsets = [2, 0, 0], sizes = [8, 16, 49], strides = [1, 1, 1]} : vector<10x16x49xbf16> to vector<8x16x49xbf16>
    %96 = vector.shape_cast %95 : vector<8x16x49xbf16> to vector<128x49xbf16>
    %cst_128 = arith.constant dense<0.000000e+00> : vector<128x48xf32>
    %97 = tpu.matmul %96, %33, %cst_128 {dimension_numbers = #tpu.dot_dimension_numbers<[1], [0], [0], [1], [0, 0, 1, 1], [], []>} : vector<128x49xbf16>, vector<49x48xbf16>, vector<128x48xf32> -> vector<128x48xf32>
    %98 = arith.addf %94, %97 : vector<128x48xf32>
    %99 = vector.broadcast %53 : vector<1x48xf32> to vector<128x48xf32>
    %100 = arith.addf %98, %99 : vector<128x48xf32>
    %cst_129 = arith.constant 0.000000e+00 : f32
    %101 = vector.broadcast %cst_129 : f32 to vector<128x48xf32>
    %102 = arith.maximumf %100, %101 : vector<128x48xf32>
    %103 = vector.shape_cast %102 : vector<128x48xf32> to vector<8x16x48xf32>
    %104 = arith.truncf %103 : vector<8x16x48xf32> to vector<8x16x48xbf16>
    %c1_130 = arith.constant 1 : index
    %c8 = arith.constant 8 : index
    %c0_131 = arith.constant 0 : index
    %105 = vector.load %arg9[%c1_130, %c8, %c0_131] : memref<18x32x48xbf16, #tpu.memory_space<vmem>>, vector<8x16x48xbf16>
    tpu.vector_store %arg9[%c1_130, %c8, %c0_131], %104 {strides = array<i32>} : memref<18x32x48xbf16, #tpu.memory_space<vmem>>, vector<8x16x48xbf16>,
    %cst_132 = arith.constant 0.000000e+00 : f32
    %106 = vector.broadcast %cst_132 : f32 to vector<128x48xf32>
    %c0_133 = arith.constant 0 : index
    %c8_134 = arith.constant 8 : index
    %c0_135 = arith.constant 0 : index
    %c0_136 = arith.constant 0 : index
    %107 = vector.load %arg1[%c0_133, %c8_134, %c0_135, %c0_136] : memref<1x18x18x49xbf16, #tpu.memory_space<vmem>>, vector<1x10x16x49xbf16>
    %108 = vector.shape_cast %107 : vector<1x10x16x49xbf16> to vector<10x16x49xbf16>
    %109 = vector.extract_strided_slice %108 {offsets = [0, 0, 0], sizes = [8, 16, 49], strides = [1, 1, 1]} : vector<10x16x49xbf16> to vector<8x16x49xbf16>
    %110 = vector.shape_cast %109 : vector<8x16x49xbf16> to vector<128x49xbf16>
    %cst_137 = arith.constant dense<0.000000e+00> : vector<128x48xf32>
    %111 = tpu.matmul %110, %17, %cst_137 {dimension_numbers = #tpu.dot_dimension_numbers<[1], [0], [0], [1], [0, 0, 1, 1], [], []>} : vector<128x49xbf16>, vector<49x48xbf16>, vector<128x48xf32> -> vector<128x48xf32>
    %112 = arith.addf %106, %111 : vector<128x48xf32>
    %113 = vector.extract_strided_slice %108 {offsets = [1, 0, 0], sizes = [8, 16, 49], strides = [1, 1, 1]} : vector<10x16x49xbf16> to vector<8x16x49xbf16>
    %114 = vector.shape_cast %113 : vector<8x16x49xbf16> to vector<128x49xbf16>
    %cst_138 = arith.constant dense<0.000000e+00> : vector<128x48xf32>
    %115 = tpu.matmul %114, %23, %cst_138 {dimension_numbers = #tpu.dot_dimension_numbers<[1], [0], [0], [1], [0, 0, 1, 1], [], []>} : vector<128x49xbf16>, vector<49x48xbf16>, vector<128x48xf32> -> vector<128x48xf32>
    %116 = arith.addf %112, %115 : vector<128x48xf32>
    %117 = vector.extract_strided_slice %108 {offsets = [2, 0, 0], sizes = [8, 16, 49], strides = [1, 1, 1]} : vector<10x16x49xbf16> to vector<8x16x49xbf16>
    %118 = vector.shape_cast %117 : vector<8x16x49xbf16> to vector<128x49xbf16>
    %cst_139 = arith.constant dense<0.000000e+00> : vector<128x48xf32>
    %119 = tpu.matmul %118, %29, %cst_139 {dimension_numbers = #tpu.dot_dimension_numbers<[1], [0], [0], [1], [0, 0, 1, 1], [], []>} : vector<128x49xbf16>, vector<49x48xbf16>, vector<128x48xf32> -> vector<128x48xf32>
    %120 = arith.addf %116, %119 : vector<128x48xf32>
    %c0_140 = arith.constant 0 : index
    %c8_141 = arith.constant 8 : index
    %c1_142 = arith.constant 1 : index
    %c0_143 = arith.constant 0 : index
    %121 = vector.load %arg1[%c0_140, %c8_141, %c1_142, %c0_143] : memref<1x18x18x49xbf16, #tpu.memory_space<vmem>>, vector<1x10x16x49xbf16>
    %122 = vector.shape_cast %121 : vector<1x10x16x49xbf16> to vector<10x16x49xbf16>
    %123 = vector.extract_strided_slice %122 {offsets = [0, 0, 0], sizes = [8, 16, 49], strides = [1, 1, 1]} : vector<10x16x49xbf16> to vector<8x16x49xbf16>
    %124 = vector.shape_cast %123 : vector<8x16x49xbf16> to vector<128x49xbf16>
    %cst_144 = arith.constant dense<0.000000e+00> : vector<128x48xf32>
    %125 = tpu.matmul %124, %19, %cst_144 {dimension_numbers = #tpu.dot_dimension_numbers<[1], [0], [0], [1], [0, 0, 1, 1], [], []>} : vector<128x49xbf16>, vector<49x48xbf16>, vector<128x48xf32> -> vector<128x48xf32>
    %126 = arith.addf %120, %125 : vector<128x48xf32>
    %127 = vector.extract_strided_slice %122 {offsets = [1, 0, 0], sizes = [8, 16, 49], strides = [1, 1, 1]} : vector<10x16x49xbf16> to vector<8x16x49xbf16>
    %128 = vector.shape_cast %127 : vector<8x16x49xbf16> to vector<128x49xbf16>
    %cst_145 = arith.constant dense<0.000000e+00> : vector<128x48xf32>
    %129 = tpu.matmul %128, %25, %cst_145 {dimension_numbers = #tpu.dot_dimension_numbers<[1], [0], [0], [1], [0, 0, 1, 1], [], []>} : vector<128x49xbf16>, vector<49x48xbf16>, vector<128x48xf32> -> vector<128x48xf32>
    %130 = arith.addf %126, %129 : vector<128x48xf32>
    %131 = vector.extract_strided_slice %122 {offsets = [2, 0, 0], sizes = [8, 16, 49], strides = [1, 1, 1]} : vector<10x16x49xbf16> to vector<8x16x49xbf16>
    %132 = vector.shape_cast %131 : vector<8x16x49xbf16> to vector<128x49xbf16>
    %cst_146 = arith.constant dense<0.000000e+00> : vector<128x48xf32>
    %133 = tpu.matmul %132, %31, %cst_146 {dimension_numbers = #tpu.dot_dimension_numbers<[1], [0], [0], [1], [0, 0, 1, 1], [], []>} : vector<128x49xbf16>, vector<49x48xbf16>, vector<128x48xf32> -> vector<128x48xf32>
    %134 = arith.addf %130, %133 : vector<128x48xf32>
    %c0_147 = arith.constant 0 : index
    %c8_148 = arith.constant 8 : index
    %c2_149 = arith.constant 2 : index
    %c0_150 = arith.constant 0 : index
    %135 = vector.load %arg1[%c0_147, %c8_148, %c2_149, %c0_150] : memref<1x18x18x49xbf16, #tpu.memory_space<vmem>>, vector<1x10x16x49xbf16>
    %136 = vector.shape_cast %135 : vector<1x10x16x49xbf16> to vector<10x16x49xbf16>
    %137 = vector.extract_strided_slice %136 {offsets = [0, 0, 0], sizes = [8, 16, 49], strides = [1, 1, 1]} : vector<10x16x49xbf16> to vector<8x16x49xbf16>
    %138 = vector.shape_cast %137 : vector<8x16x49xbf16> to vector<128x49xbf16>
    %cst_151 = arith.constant dense<0.000000e+00> : vector<128x48xf32>
    %139 = tpu.matmul %138, %21, %cst_151 {dimension_numbers = #tpu.dot_dimension_numbers<[1], [0], [0], [1], [0, 0, 1, 1], [], []>} : vector<128x49xbf16>, vector<49x48xbf16>, vector<128x48xf32> -> vector<128x48xf32>
    %140 = arith.addf %134, %139 : vector<128x48xf32>
    %141 = vector.extract_strided_slice %136 {offsets = [1, 0, 0], sizes = [8, 16, 49], strides = [1, 1, 1]} : vector<10x16x49xbf16> to vector<8x16x49xbf16>
    %142 = vector.shape_cast %141 : vector<8x16x49xbf16> to vector<128x49xbf16>
    %cst_152 = arith.constant dense<0.000000e+00> : vector<128x48xf32>
    %143 = tpu.matmul %142, %27, %cst_152 {dimension_numbers = #tpu.dot_dimension_numbers<[1], [0], [0], [1], [0, 0, 1, 1], [], []>} : vector<128x49xbf16>, vector<49x48xbf16>, vector<128x48xf32> -> vector<128x48xf32>
    %144 = arith.addf %140, %143 : vector<128x48xf32>
    %145 = vector.extract_strided_slice %136 {offsets = [2, 0, 0], sizes = [8, 16, 49], strides = [1, 1, 1]} : vector<10x16x49xbf16> to vector<8x16x49xbf16>
    %146 = vector.shape_cast %145 : vector<8x16x49xbf16> to vector<128x49xbf16>
    %cst_153 = arith.constant dense<0.000000e+00> : vector<128x48xf32>
    %147 = tpu.matmul %146, %33, %cst_153 {dimension_numbers = #tpu.dot_dimension_numbers<[1], [0], [0], [1], [0, 0, 1, 1], [], []>} : vector<128x49xbf16>, vector<49x48xbf16>, vector<128x48xf32> -> vector<128x48xf32>
    %148 = arith.addf %144, %147 : vector<128x48xf32>
    %149 = vector.broadcast %53 : vector<1x48xf32> to vector<128x48xf32>
    %150 = arith.addf %148, %149 : vector<128x48xf32>
    %cst_154 = arith.constant 0.000000e+00 : f32
    %151 = vector.broadcast %cst_154 : f32 to vector<128x48xf32>
    %152 = arith.maximumf %150, %151 : vector<128x48xf32>
    %153 = vector.shape_cast %152 : vector<128x48xf32> to vector<8x16x48xf32>
    %154 = arith.truncf %153 : vector<8x16x48xf32> to vector<8x16x48xbf16>
    %c9 = arith.constant 9 : index
    %c8_155 = arith.constant 8 : index
    %c0_156 = arith.constant 0 : index
    %155 = vector.load %arg9[%c9, %c8_155, %c0_156] : memref<18x32x48xbf16, #tpu.memory_space<vmem>>, vector<8x16x48xbf16>
    tpu.vector_store %arg9[%c9, %c8_155, %c0_156], %154 {strides = array<i32>} : memref<18x32x48xbf16, #tpu.memory_space<vmem>>, vector<8x16x48xbf16>,
    %cst_157 = arith.constant 0.000000e+00 : f32
    %156 = vector.broadcast %cst_157 : f32 to vector<128x24xf32>
    %c0_158 = arith.constant 0 : index
    %c7 = arith.constant 7 : index
    %c0_159 = arith.constant 0 : index
    %157 = vector.load %arg9[%c0_158, %c7, %c0_159] : memref<18x32x48xbf16, #tpu.memory_space<vmem>>, vector<10x16x48xbf16>
    %158 = vector.extract_strided_slice %157 {offsets = [0, 0, 0], sizes = [8, 16, 48], strides = [1, 1, 1]} : vector<10x16x48xbf16> to vector<8x16x48xbf16>
    %159 = vector.shape_cast %158 : vector<8x16x48xbf16> to vector<128x48xbf16>
    %cst_160 = arith.constant dense<0.000000e+00> : vector<128x24xf32>
    %160 = tpu.matmul %159, %35, %cst_160 {dimension_numbers = #tpu.dot_dimension_numbers<[1], [0], [0], [1], [0, 0, 1, 1], [], []>} : vector<128x48xbf16>, vector<48x24xbf16>, vector<128x24xf32> -> vector<128x24xf32>
    %161 = arith.addf %156, %160 : vector<128x24xf32>
    %162 = vector.extract_strided_slice %157 {offsets = [1, 0, 0], sizes = [8, 16, 48], strides = [1, 1, 1]} : vector<10x16x48xbf16> to vector<8x16x48xbf16>
    %163 = vector.shape_cast %162 : vector<8x16x48xbf16> to vector<128x48xbf16>
    %cst_161 = arith.constant dense<0.000000e+00> : vector<128x24xf32>
    %164 = tpu.matmul %163, %41, %cst_161 {dimension_numbers = #tpu.dot_dimension_numbers<[1], [0], [0], [1], [0, 0, 1, 1], [], []>} : vector<128x48xbf16>, vector<48x24xbf16>, vector<128x24xf32> -> vector<128x24xf32>
    %165 = arith.addf %161, %164 : vector<128x24xf32>
    %166 = vector.extract_strided_slice %157 {offsets = [2, 0, 0], sizes = [8, 16, 48], strides = [1, 1, 1]} : vector<10x16x48xbf16> to vector<8x16x48xbf16>
    %167 = vector.shape_cast %166 : vector<8x16x48xbf16> to vector<128x48xbf16>
    %cst_162 = arith.constant dense<0.000000e+00> : vector<128x24xf32>
    %168 = tpu.matmul %167, %47, %cst_162 {dimension_numbers = #tpu.dot_dimension_numbers<[1], [0], [0], [1], [0, 0, 1, 1], [], []>} : vector<128x48xbf16>, vector<48x24xbf16>, vector<128x24xf32> -> vector<128x24xf32>
    %169 = arith.addf %165, %168 : vector<128x24xf32>
    %c0_163 = arith.constant 0 : index
    %c8_164 = arith.constant 8 : index
    %c0_165 = arith.constant 0 : index
    %170 = vector.load %arg9[%c0_163, %c8_164, %c0_165] : memref<18x32x48xbf16, #tpu.memory_space<vmem>>, vector<10x16x48xbf16>
    %171 = vector.extract_strided_slice %170 {offsets = [0, 0, 0], sizes = [8, 16, 48], strides = [1, 1, 1]} : vector<10x16x48xbf16> to vector<8x16x48xbf16>
    %172 = vector.shape_cast %171 : vector<8x16x48xbf16> to vector<128x48xbf16>
    %cst_166 = arith.constant dense<0.000000e+00> : vector<128x24xf32>
    %173 = tpu.matmul %172, %37, %cst_166 {dimension_numbers = #tpu.dot_dimension_numbers<[1], [0], [0], [1], [0, 0, 1, 1], [], []>} : vector<128x48xbf16>, vector<48x24xbf16>, vector<128x24xf32> -> vector<128x24xf32>
    %174 = arith.addf %169, %173 : vector<128x24xf32>
    %175 = vector.extract_strided_slice %170 {offsets = [1, 0, 0], sizes = [8, 16, 48], strides = [1, 1, 1]} : vector<10x16x48xbf16> to vector<8x16x48xbf16>
    %176 = vector.shape_cast %175 : vector<8x16x48xbf16> to vector<128x48xbf16>
    %cst_167 = arith.constant dense<0.000000e+00> : vector<128x24xf32>
    %177 = tpu.matmul %176, %43, %cst_167 {dimension_numbers = #tpu.dot_dimension_numbers<[1], [0], [0], [1], [0, 0, 1, 1], [], []>} : vector<128x48xbf16>, vector<48x24xbf16>, vector<128x24xf32> -> vector<128x24xf32>
    %178 = arith.addf %174, %177 : vector<128x24xf32>
    %179 = vector.extract_strided_slice %170 {offsets = [2, 0, 0], sizes = [8, 16, 48], strides = [1, 1, 1]} : vector<10x16x48xbf16> to vector<8x16x48xbf16>
    %180 = vector.shape_cast %179 : vector<8x16x48xbf16> to vector<128x48xbf16>
    %cst_168 = arith.constant dense<0.000000e+00> : vector<128x24xf32>
    %181 = tpu.matmul %180, %49, %cst_168 {dimension_numbers = #tpu.dot_dimension_numbers<[1], [0], [0], [1], [0, 0, 1, 1], [], []>} : vector<128x48xbf16>, vector<48x24xbf16>, vector<128x24xf32> -> vector<128x24xf32>
    %182 = arith.addf %178, %181 : vector<128x24xf32>
    %c0_169 = arith.constant 0 : index
    %c9_170 = arith.constant 9 : index
    %c0_171 = arith.constant 0 : index
    %183 = vector.load %arg9[%c0_169, %c9_170, %c0_171] : memref<18x32x48xbf16, #tpu.memory_space<vmem>>, vector<10x16x48xbf16>
    %184 = vector.extract_strided_slice %183 {offsets = [0, 0, 0], sizes = [8, 16, 48], strides = [1, 1, 1]} : vector<10x16x48xbf16> to vector<8x16x48xbf16>
    %185 = vector.shape_cast %184 : vector<8x16x48xbf16> to vector<128x48xbf16>
    %cst_172 = arith.constant dense<0.000000e+00> : vector<128x24xf32>
    %186 = tpu.matmul %185, %39, %cst_172 {dimension_numbers = #tpu.dot_dimension_numbers<[1], [0], [0], [1], [0, 0, 1, 1], [], []>} : vector<128x48xbf16>, vector<48x24xbf16>, vector<128x24xf32> -> vector<128x24xf32>
    %187 = arith.addf %182, %186 : vector<128x24xf32>
    %188 = vector.extract_strided_slice %183 {offsets = [1, 0, 0], sizes = [8, 16, 48], strides = [1, 1, 1]} : vector<10x16x48xbf16> to vector<8x16x48xbf16>
    %189 = vector.shape_cast %188 : vector<8x16x48xbf16> to vector<128x48xbf16>
    %cst_173 = arith.constant dense<0.000000e+00> : vector<128x24xf32>
    %190 = tpu.matmul %189, %45, %cst_173 {dimension_numbers = #tpu.dot_dimension_numbers<[1], [0], [0], [1], [0, 0, 1, 1], [], []>} : vector<128x48xbf16>, vector<48x24xbf16>, vector<128x24xf32> -> vector<128x24xf32>
    %191 = arith.addf %187, %190 : vector<128x24xf32>
    %192 = vector.extract_strided_slice %183 {offsets = [2, 0, 0], sizes = [8, 16, 48], strides = [1, 1, 1]} : vector<10x16x48xbf16> to vector<8x16x48xbf16>
    %193 = vector.shape_cast %192 : vector<8x16x48xbf16> to vector<128x48xbf16>
    %cst_174 = arith.constant dense<0.000000e+00> : vector<128x24xf32>
    %194 = tpu.matmul %193, %51, %cst_174 {dimension_numbers = #tpu.dot_dimension_numbers<[1], [0], [0], [1], [0, 0, 1, 1], [], []>} : vector<128x48xbf16>, vector<48x24xbf16>, vector<128x24xf32> -> vector<128x24xf32>
    %195 = arith.addf %191, %194 : vector<128x24xf32>
    %196 = vector.broadcast %54 : vector<1x24xf32> to vector<128x24xf32>
    %197 = arith.addf %195, %196 : vector<128x24xf32>
    %cst_175 = arith.constant 0.000000e+00 : f32
    %198 = vector.broadcast %cst_175 : f32 to vector<128x24xf32>
    %199 = arith.maximumf %197, %198 : vector<128x24xf32>
    %200 = vector.shape_cast %199 : vector<128x24xf32> to vector<8x16x24xf32>
    %c1_176 = arith.constant 1 : index
    %c8_177 = arith.constant 8 : index
    %c0_178 = arith.constant 0 : index
    %201 = vector.load %arg10[%c1_176, %c8_177, %c0_178] : memref<18x32x24xf32, #tpu.memory_space<vmem>>, vector<8x16x24xf32>
    tpu.vector_store %arg10[%c1_176, %c8_177, %c0_178], %200 {strides = array<i32>} : memref<18x32x24xf32, #tpu.memory_space<vmem>>, vector<8x16x24xf32>,
    %cst_179 = arith.constant 0.000000e+00 : f32
    %202 = vector.broadcast %cst_179 : f32 to vector<128x24xf32>
    %c8_180 = arith.constant 8 : index
    %c7_181 = arith.constant 7 : index
    %c0_182 = arith.constant 0 : index
    %203 = vector.load %arg9[%c8_180, %c7_181, %c0_182] : memref<18x32x48xbf16, #tpu.memory_space<vmem>>, vector<10x16x48xbf16>
    %204 = vector.extract_strided_slice %203 {offsets = [0, 0, 0], sizes = [8, 16, 48], strides = [1, 1, 1]} : vector<10x16x48xbf16> to vector<8x16x48xbf16>
    %205 = vector.shape_cast %204 : vector<8x16x48xbf16> to vector<128x48xbf16>
    %cst_183 = arith.constant dense<0.000000e+00> : vector<128x24xf32>
    %206 = tpu.matmul %205, %35, %cst_183 {dimension_numbers = #tpu.dot_dimension_numbers<[1], [0], [0], [1], [0, 0, 1, 1], [], []>} : vector<128x48xbf16>, vector<48x24xbf16>, vector<128x24xf32> -> vector<128x24xf32>
    %207 = arith.addf %202, %206 : vector<128x24xf32>
    %208 = vector.extract_strided_slice %203 {offsets = [1, 0, 0], sizes = [8, 16, 48], strides = [1, 1, 1]} : vector<10x16x48xbf16> to vector<8x16x48xbf16>
    %209 = vector.shape_cast %208 : vector<8x16x48xbf16> to vector<128x48xbf16>
    %cst_184 = arith.constant dense<0.000000e+00> : vector<128x24xf32>
    %210 = tpu.matmul %209, %41, %cst_184 {dimension_numbers = #tpu.dot_dimension_numbers<[1], [0], [0], [1], [0, 0, 1, 1], [], []>} : vector<128x48xbf16>, vector<48x24xbf16>, vector<128x24xf32> -> vector<128x24xf32>
    %211 = arith.addf %207, %210 : vector<128x24xf32>
    %212 = vector.extract_strided_slice %203 {offsets = [2, 0, 0], sizes = [8, 16, 48], strides = [1, 1, 1]} : vector<10x16x48xbf16> to vector<8x16x48xbf16>
    %213 = vector.shape_cast %212 : vector<8x16x48xbf16> to vector<128x48xbf16>
    %cst_185 = arith.constant dense<0.000000e+00> : vector<128x24xf32>
    %214 = tpu.matmul %213, %47, %cst_185 {dimension_numbers = #tpu.dot_dimension_numbers<[1], [0], [0], [1], [0, 0, 1, 1], [], []>} : vector<128x48xbf16>, vector<48x24xbf16>, vector<128x24xf32> -> vector<128x24xf32>
    %215 = arith.addf %211, %214 : vector<128x24xf32>
    %c8_186 = arith.constant 8 : index
    %c8_187 = arith.constant 8 : index
    %c0_188 = arith.constant 0 : index
    %216 = vector.load %arg9[%c8_186, %c8_187, %c0_188] : memref<18x32x48xbf16, #tpu.memory_space<vmem>>, vector<10x16x48xbf16>
    %217 = vector.extract_strided_slice %216 {offsets = [0, 0, 0], sizes = [8, 16, 48], strides = [1, 1, 1]} : vector<10x16x48xbf16> to vector<8x16x48xbf16>
    %218 = vector.shape_cast %217 : vector<8x16x48xbf16> to vector<128x48xbf16>
    %cst_189 = arith.constant dense<0.000000e+00> : vector<128x24xf32>
    %219 = tpu.matmul %218, %37, %cst_189 {dimension_numbers = #tpu.dot_dimension_numbers<[1], [0], [0], [1], [0, 0, 1, 1], [], []>} : vector<128x48xbf16>, vector<48x24xbf16>, vector<128x24xf32> -> vector<128x24xf32>
    %220 = arith.addf %215, %219 : vector<128x24xf32>
    %221 = vector.extract_strided_slice %216 {offsets = [1, 0, 0], sizes = [8, 16, 48], strides = [1, 1, 1]} : vector<10x16x48xbf16> to vector<8x16x48xbf16>
    %222 = vector.shape_cast %221 : vector<8x16x48xbf16> to vector<128x48xbf16>
    %cst_190 = arith.constant dense<0.000000e+00> : vector<128x24xf32>
    %223 = tpu.matmul %222, %43, %cst_190 {dimension_numbers = #tpu.dot_dimension_numbers<[1], [0], [0], [1], [0, 0, 1, 1], [], []>} : vector<128x48xbf16>, vector<48x24xbf16>, vector<128x24xf32> -> vector<128x24xf32>
    %224 = arith.addf %220, %223 : vector<128x24xf32>
    %225 = vector.extract_strided_slice %216 {offsets = [2, 0, 0], sizes = [8, 16, 48], strides = [1, 1, 1]} : vector<10x16x48xbf16> to vector<8x16x48xbf16>
    %226 = vector.shape_cast %225 : vector<8x16x48xbf16> to vector<128x48xbf16>
    %cst_191 = arith.constant dense<0.000000e+00> : vector<128x24xf32>
    %227 = tpu.matmul %226, %49, %cst_191 {dimension_numbers = #tpu.dot_dimension_numbers<[1], [0], [0], [1], [0, 0, 1, 1], [], []>} : vector<128x48xbf16>, vector<48x24xbf16>, vector<128x24xf32> -> vector<128x24xf32>
    %228 = arith.addf %224, %227 : vector<128x24xf32>
    %c8_192 = arith.constant 8 : index
    %c9_193 = arith.constant 9 : index
    %c0_194 = arith.constant 0 : index
    %229 = vector.load %arg9[%c8_192, %c9_193, %c0_194] : memref<18x32x48xbf16, #tpu.memory_space<vmem>>, vector<10x16x48xbf16>
    %230 = vector.extract_strided_slice %229 {offsets = [0, 0, 0], sizes = [8, 16, 48], strides = [1, 1, 1]} : vector<10x16x48xbf16> to vector<8x16x48xbf16>
    %231 = vector.shape_cast %230 : vector<8x16x48xbf16> to vector<128x48xbf16>
    %cst_195 = arith.constant dense<0.000000e+00> : vector<128x24xf32>
    %232 = tpu.matmul %231, %39, %cst_195 {dimension_numbers = #tpu.dot_dimension_numbers<[1], [0], [0], [1], [0, 0, 1, 1], [], []>} : vector<128x48xbf16>, vector<48x24xbf16>, vector<128x24xf32> -> vector<128x24xf32>
    %233 = arith.addf %228, %232 : vector<128x24xf32>
    %234 = vector.extract_strided_slice %229 {offsets = [1, 0, 0], sizes = [8, 16, 48], strides = [1, 1, 1]} : vector<10x16x48xbf16> to vector<8x16x48xbf16>
    %235 = vector.shape_cast %234 : vector<8x16x48xbf16> to vector<128x48xbf16>
    %cst_196 = arith.constant dense<0.000000e+00> : vector<128x24xf32>
    %236 = tpu.matmul %235, %45, %cst_196 {dimension_numbers = #tpu.dot_dimension_numbers<[1], [0], [0], [1], [0, 0, 1, 1], [], []>} : vector<128x48xbf16>, vector<48x24xbf16>, vector<128x24xf32> -> vector<128x24xf32>
    %237 = arith.addf %233, %236 : vector<128x24xf32>
    %238 = vector.extract_strided_slice %229 {offsets = [2, 0, 0], sizes = [8, 16, 48], strides = [1, 1, 1]} : vector<10x16x48xbf16> to vector<8x16x48xbf16>
    %239 = vector.shape_cast %238 : vector<8x16x48xbf16> to vector<128x48xbf16>
    %cst_197 = arith.constant dense<0.000000e+00> : vector<128x24xf32>
    %240 = tpu.matmul %239, %51, %cst_197 {dimension_numbers = #tpu.dot_dimension_numbers<[1], [0], [0], [1], [0, 0, 1, 1], [], []>} : vector<128x48xbf16>, vector<48x24xbf16>, vector<128x24xf32> -> vector<128x24xf32>
    %241 = arith.addf %237, %240 : vector<128x24xf32>
    %242 = vector.broadcast %54 : vector<1x24xf32> to vector<128x24xf32>
    %243 = arith.addf %241, %242 : vector<128x24xf32>
    %cst_198 = arith.constant 0.000000e+00 : f32
    %244 = vector.broadcast %cst_198 : f32 to vector<128x24xf32>
    %245 = arith.maximumf %243, %244 : vector<128x24xf32>
    %246 = vector.shape_cast %245 : vector<128x24xf32> to vector<8x16x24xf32>
    %c9_199 = arith.constant 9 : index
    %c8_200 = arith.constant 8 : index
    %c0_201 = arith.constant 0 : index
    %247 = vector.load %arg10[%c9_199, %c8_200, %c0_201] : memref<18x32x24xf32, #tpu.memory_space<vmem>>, vector<8x16x24xf32>
    tpu.vector_store %arg10[%c9_199, %c8_200, %c0_201], %246 {strides = array<i32>} : memref<18x32x24xf32, #tpu.memory_space<vmem>>, vector<8x16x24xf32>,
    %cst_202 = arith.constant 0.000000e+00 : f32
    %248 = vector.broadcast %cst_202 : f32 to vector<8x16x24xf32>
    %c0_203 = arith.constant 0 : index
    %c7_204 = arith.constant 7 : index
    %c0_205 = arith.constant 0 : index
    %249 = vector.load %arg10[%c0_203, %c7_204, %c0_205] : memref<18x32x24xf32, #tpu.memory_space<vmem>>, vector<10x16x24xf32>
    %250 = vector.extract_strided_slice %249 {offsets = [0, 0, 0], sizes = [8, 16, 24], strides = [1, 1, 1]} : vector<10x16x24xf32> to vector<8x16x24xf32>
    %251 = vector.extract_strided_slice %52 {offsets = [0, 0, 0], sizes = [1, 1, 24], strides = [1, 1, 1]} : vector<3x3x24xf32> to vector<1x1x24xf32>
    %252 = vector.shape_cast %251 : vector<1x1x24xf32> to vector<24xf32>
    %253 = vector.shape_cast %252 : vector<24xf32> to vector<1x1x24xf32>
    %254 = vector.broadcast %253 : vector<1x1x24xf32> to vector<8x16x24xf32>
    %255 = arith.mulf %250, %254 : vector<8x16x24xf32>
    %256 = arith.addf %248, %255 : vector<8x16x24xf32>
    %257 = vector.extract_strided_slice %249 {offsets = [1, 0, 0], sizes = [8, 16, 24], strides = [1, 1, 1]} : vector<10x16x24xf32> to vector<8x16x24xf32>
    %258 = vector.extract_strided_slice %52 {offsets = [1, 0, 0], sizes = [1, 1, 24], strides = [1, 1, 1]} : vector<3x3x24xf32> to vector<1x1x24xf32>
    %259 = vector.shape_cast %258 : vector<1x1x24xf32> to vector<24xf32>
    %260 = vector.shape_cast %259 : vector<24xf32> to vector<1x1x24xf32>
    %261 = vector.broadcast %260 : vector<1x1x24xf32> to vector<8x16x24xf32>
    %262 = arith.mulf %257, %261 : vector<8x16x24xf32>
    %263 = arith.addf %256, %262 : vector<8x16x24xf32>
    %264 = vector.extract_strided_slice %249 {offsets = [2, 0, 0], sizes = [8, 16, 24], strides = [1, 1, 1]} : vector<10x16x24xf32> to vector<8x16x24xf32>
    %265 = vector.extract_strided_slice %52 {offsets = [2, 0, 0], sizes = [1, 1, 24], strides = [1, 1, 1]} : vector<3x3x24xf32> to vector<1x1x24xf32>
    %266 = vector.shape_cast %265 : vector<1x1x24xf32> to vector<24xf32>
    %267 = vector.shape_cast %266 : vector<24xf32> to vector<1x1x24xf32>
    %268 = vector.broadcast %267 : vector<1x1x24xf32> to vector<8x16x24xf32>
    %269 = arith.mulf %264, %268 : vector<8x16x24xf32>
    %270 = arith.addf %263, %269 : vector<8x16x24xf32>
    %c0_206 = arith.constant 0 : index
    %c8_207 = arith.constant 8 : index
    %c0_208 = arith.constant 0 : index
    %271 = vector.load %arg10[%c0_206, %c8_207, %c0_208] : memref<18x32x24xf32, #tpu.memory_space<vmem>>, vector<10x16x24xf32>
    %272 = vector.extract_strided_slice %271 {offsets = [0, 0, 0], sizes = [8, 16, 24], strides = [1, 1, 1]} : vector<10x16x24xf32> to vector<8x16x24xf32>
    %273 = vector.extract_strided_slice %52 {offsets = [0, 1, 0], sizes = [1, 1, 24], strides = [1, 1, 1]} : vector<3x3x24xf32> to vector<1x1x24xf32>
    %274 = vector.shape_cast %273 : vector<1x1x24xf32> to vector<24xf32>
    %275 = vector.shape_cast %274 : vector<24xf32> to vector<1x1x24xf32>
    %276 = vector.broadcast %275 : vector<1x1x24xf32> to vector<8x16x24xf32>
    %277 = arith.mulf %272, %276 : vector<8x16x24xf32>
    %278 = arith.addf %270, %277 : vector<8x16x24xf32>
    %279 = vector.extract_strided_slice %271 {offsets = [1, 0, 0], sizes = [8, 16, 24], strides = [1, 1, 1]} : vector<10x16x24xf32> to vector<8x16x24xf32>
    %280 = vector.extract_strided_slice %52 {offsets = [1, 1, 0], sizes = [1, 1, 24], strides = [1, 1, 1]} : vector<3x3x24xf32> to vector<1x1x24xf32>
    %281 = vector.shape_cast %280 : vector<1x1x24xf32> to vector<24xf32>
    %282 = vector.shape_cast %281 : vector<24xf32> to vector<1x1x24xf32>
    %283 = vector.broadcast %282 : vector<1x1x24xf32> to vector<8x16x24xf32>
    %284 = arith.mulf %279, %283 : vector<8x16x24xf32>
    %285 = arith.addf %278, %284 : vector<8x16x24xf32>
    %286 = vector.extract_strided_slice %271 {offsets = [2, 0, 0], sizes = [8, 16, 24], strides = [1, 1, 1]} : vector<10x16x24xf32> to vector<8x16x24xf32>
    %287 = vector.extract_strided_slice %52 {offsets = [2, 1, 0], sizes = [1, 1, 24], strides = [1, 1, 1]} : vector<3x3x24xf32> to vector<1x1x24xf32>
    %288 = vector.shape_cast %287 : vector<1x1x24xf32> to vector<24xf32>
    %289 = vector.shape_cast %288 : vector<24xf32> to vector<1x1x24xf32>
    %290 = vector.broadcast %289 : vector<1x1x24xf32> to vector<8x16x24xf32>
    %291 = arith.mulf %286, %290 : vector<8x16x24xf32>
    %292 = arith.addf %285, %291 : vector<8x16x24xf32>
    %c0_209 = arith.constant 0 : index
    %c9_210 = arith.constant 9 : index
    %c0_211 = arith.constant 0 : index
    %293 = vector.load %arg10[%c0_209, %c9_210, %c0_211] : memref<18x32x24xf32, #tpu.memory_space<vmem>>, vector<10x16x24xf32>
    %294 = vector.extract_strided_slice %293 {offsets = [0, 0, 0], sizes = [8, 16, 24], strides = [1, 1, 1]} : vector<10x16x24xf32> to vector<8x16x24xf32>
    %295 = vector.extract_strided_slice %52 {offsets = [0, 2, 0], sizes = [1, 1, 24], strides = [1, 1, 1]} : vector<3x3x24xf32> to vector<1x1x24xf32>
    %296 = vector.shape_cast %295 : vector<1x1x24xf32> to vector<24xf32>
    %297 = vector.shape_cast %296 : vector<24xf32> to vector<1x1x24xf32>
    %298 = vector.broadcast %297 : vector<1x1x24xf32> to vector<8x16x24xf32>
    %299 = arith.mulf %294, %298 : vector<8x16x24xf32>
    %300 = arith.addf %292, %299 : vector<8x16x24xf32>
    %301 = vector.extract_strided_slice %293 {offsets = [1, 0, 0], sizes = [8, 16, 24], strides = [1, 1, 1]} : vector<10x16x24xf32> to vector<8x16x24xf32>
    %302 = vector.extract_strided_slice %52 {offsets = [1, 2, 0], sizes = [1, 1, 24], strides = [1, 1, 1]} : vector<3x3x24xf32> to vector<1x1x24xf32>
    %303 = vector.shape_cast %302 : vector<1x1x24xf32> to vector<24xf32>
    %304 = vector.shape_cast %303 : vector<24xf32> to vector<1x1x24xf32>
    %305 = vector.broadcast %304 : vector<1x1x24xf32> to vector<8x16x24xf32>
    %306 = arith.mulf %301, %305 : vector<8x16x24xf32>
    %307 = arith.addf %300, %306 : vector<8x16x24xf32>
    %308 = vector.extract_strided_slice %293 {offsets = [2, 0, 0], sizes = [8, 16, 24], strides = [1, 1, 1]} : vector<10x16x24xf32> to vector<8x16x24xf32>
    %309 = vector.extract_strided_slice %52 {offsets = [2, 2, 0], sizes = [1, 1, 24], strides = [1, 1, 1]} : vector<3x3x24xf32> to vector<1x1x24xf32>
    %310 = vector.shape_cast %309 : vector<1x1x24xf32> to vector<24xf32>
    %311 = vector.shape_cast %310 : vector<24xf32> to vector<1x1x24xf32>
    %312 = vector.broadcast %311 : vector<1x1x24xf32> to vector<8x16x24xf32>
    %313 = arith.mulf %308, %312 : vector<8x16x24xf32>
    %314 = arith.addf %307, %313 : vector<8x16x24xf32>
    %cst_212 = arith.constant dense<0.000000e+00> : vector<8x16xf32>
    %315 = vector.multi_reduction <add>, %314, %cst_212 [2] : vector<8x16x24xf32> to vector<8x16xf32>
    %316 = vector.broadcast %55 : vector<1x1xf32> to vector<8x16xf32>
    %317 = arith.addf %315, %316 : vector<8x16xf32>
    %318 = math.tanh %317 : vector<8x16xf32>
    %319 = vector.shape_cast %318 : vector<8x16xf32> to vector<128xf32>
    %c0_213 = arith.constant 0 : index
    %c0_214 = arith.constant 0 : index
    %c0_215 = arith.constant 0 : index
    %320 = vector.load %arg8[%c0_213, %c0_214, %c0_215] : memref<1x2x128xf32, #tpu.memory_space<vmem>>, vector<1x1x128xf32>
    %321 = vector.shape_cast %320 : vector<1x1x128xf32> to vector<128xf32>
    %322 = vector.shape_cast %319 : vector<128xf32> to vector<1x1x128xf32>
    tpu.vector_store %arg8[%c0_213, %c0_214, %c0_215], %322 {strides = array<i32>} : memref<1x2x128xf32, #tpu.memory_space<vmem>>, vector<1x1x128xf32>,
    %cst_216 = arith.constant 0.000000e+00 : f32
    %323 = vector.broadcast %cst_216 : f32 to vector<8x16x24xf32>
    %c8_217 = arith.constant 8 : index
    %c7_218 = arith.constant 7 : index
    %c0_219 = arith.constant 0 : index
    %324 = vector.load %arg10[%c8_217, %c7_218, %c0_219] : memref<18x32x24xf32, #tpu.memory_space<vmem>>, vector<10x16x24xf32>
    %325 = vector.extract_strided_slice %324 {offsets = [0, 0, 0], sizes = [8, 16, 24], strides = [1, 1, 1]} : vector<10x16x24xf32> to vector<8x16x24xf32>
    %326 = vector.extract_strided_slice %52 {offsets = [0, 0, 0], sizes = [1, 1, 24], strides = [1, 1, 1]} : vector<3x3x24xf32> to vector<1x1x24xf32>
    %327 = vector.shape_cast %326 : vector<1x1x24xf32> to vector<24xf32>
    %328 = vector.shape_cast %327 : vector<24xf32> to vector<1x1x24xf32>
    %329 = vector.broadcast %328 : vector<1x1x24xf32> to vector<8x16x24xf32>
    %330 = arith.mulf %325, %329 : vector<8x16x24xf32>
    %331 = arith.addf %323, %330 : vector<8x16x24xf32>
    %332 = vector.extract_strided_slice %324 {offsets = [1, 0, 0], sizes = [8, 16, 24], strides = [1, 1, 1]} : vector<10x16x24xf32> to vector<8x16x24xf32>
    %333 = vector.extract_strided_slice %52 {offsets = [1, 0, 0], sizes = [1, 1, 24], strides = [1, 1, 1]} : vector<3x3x24xf32> to vector<1x1x24xf32>
    %334 = vector.shape_cast %333 : vector<1x1x24xf32> to vector<24xf32>
    %335 = vector.shape_cast %334 : vector<24xf32> to vector<1x1x24xf32>
    %336 = vector.broadcast %335 : vector<1x1x24xf32> to vector<8x16x24xf32>
    %337 = arith.mulf %332, %336 : vector<8x16x24xf32>
    %338 = arith.addf %331, %337 : vector<8x16x24xf32>
    %339 = vector.extract_strided_slice %324 {offsets = [2, 0, 0], sizes = [8, 16, 24], strides = [1, 1, 1]} : vector<10x16x24xf32> to vector<8x16x24xf32>
    %340 = vector.extract_strided_slice %52 {offsets = [2, 0, 0], sizes = [1, 1, 24], strides = [1, 1, 1]} : vector<3x3x24xf32> to vector<1x1x24xf32>
    %341 = vector.shape_cast %340 : vector<1x1x24xf32> to vector<24xf32>
    %342 = vector.shape_cast %341 : vector<24xf32> to vector<1x1x24xf32>
    %343 = vector.broadcast %342 : vector<1x1x24xf32> to vector<8x16x24xf32>
    %344 = arith.mulf %339, %343 : vector<8x16x24xf32>
    %345 = arith.addf %338, %344 : vector<8x16x24xf32>
    %c8_220 = arith.constant 8 : index
    %c8_221 = arith.constant 8 : index
    %c0_222 = arith.constant 0 : index
    %346 = vector.load %arg10[%c8_220, %c8_221, %c0_222] : memref<18x32x24xf32, #tpu.memory_space<vmem>>, vector<10x16x24xf32>
    %347 = vector.extract_strided_slice %346 {offsets = [0, 0, 0], sizes = [8, 16, 24], strides = [1, 1, 1]} : vector<10x16x24xf32> to vector<8x16x24xf32>
    %348 = vector.extract_strided_slice %52 {offsets = [0, 1, 0], sizes = [1, 1, 24], strides = [1, 1, 1]} : vector<3x3x24xf32> to vector<1x1x24xf32>
    %349 = vector.shape_cast %348 : vector<1x1x24xf32> to vector<24xf32>
    %350 = vector.shape_cast %349 : vector<24xf32> to vector<1x1x24xf32>
    %351 = vector.broadcast %350 : vector<1x1x24xf32> to vector<8x16x24xf32>
    %352 = arith.mulf %347, %351 : vector<8x16x24xf32>
    %353 = arith.addf %345, %352 : vector<8x16x24xf32>
    %354 = vector.extract_strided_slice %346 {offsets = [1, 0, 0], sizes = [8, 16, 24], strides = [1, 1, 1]} : vector<10x16x24xf32> to vector<8x16x24xf32>
    %355 = vector.extract_strided_slice %52 {offsets = [1, 1, 0], sizes = [1, 1, 24], strides = [1, 1, 1]} : vector<3x3x24xf32> to vector<1x1x24xf32>
    %356 = vector.shape_cast %355 : vector<1x1x24xf32> to vector<24xf32>
    %357 = vector.shape_cast %356 : vector<24xf32> to vector<1x1x24xf32>
    %358 = vector.broadcast %357 : vector<1x1x24xf32> to vector<8x16x24xf32>
    %359 = arith.mulf %354, %358 : vector<8x16x24xf32>
    %360 = arith.addf %353, %359 : vector<8x16x24xf32>
    %361 = vector.extract_strided_slice %346 {offsets = [2, 0, 0], sizes = [8, 16, 24], strides = [1, 1, 1]} : vector<10x16x24xf32> to vector<8x16x24xf32>
    %362 = vector.extract_strided_slice %52 {offsets = [2, 1, 0], sizes = [1, 1, 24], strides = [1, 1, 1]} : vector<3x3x24xf32> to vector<1x1x24xf32>
    %363 = vector.shape_cast %362 : vector<1x1x24xf32> to vector<24xf32>
    %364 = vector.shape_cast %363 : vector<24xf32> to vector<1x1x24xf32>
    %365 = vector.broadcast %364 : vector<1x1x24xf32> to vector<8x16x24xf32>
    %366 = arith.mulf %361, %365 : vector<8x16x24xf32>
    %367 = arith.addf %360, %366 : vector<8x16x24xf32>
    %c8_223 = arith.constant 8 : index
    %c9_224 = arith.constant 9 : index
    %c0_225 = arith.constant 0 : index
    %368 = vector.load %arg10[%c8_223, %c9_224, %c0_225] : memref<18x32x24xf32, #tpu.memory_space<vmem>>, vector<10x16x24xf32>
    %369 = vector.extract_strided_slice %368 {offsets = [0, 0, 0], sizes = [8, 16, 24], strides = [1, 1, 1]} : vector<10x16x24xf32> to vector<8x16x24xf32>
    %370 = vector.extract_strided_slice %52 {offsets = [0, 2, 0], sizes = [1, 1, 24], strides = [1, 1, 1]} : vector<3x3x24xf32> to vector<1x1x24xf32>
    %371 = vector.shape_cast %370 : vector<1x1x24xf32> to vector<24xf32>
    %372 = vector.shape_cast %371 : vector<24xf32> to vector<1x1x24xf32>
    %373 = vector.broadcast %372 : vector<1x1x24xf32> to vector<8x16x24xf32>
    %374 = arith.mulf %369, %373 : vector<8x16x24xf32>
    %375 = arith.addf %367, %374 : vector<8x16x24xf32>
    %376 = vector.extract_strided_slice %368 {offsets = [1, 0, 0], sizes = [8, 16, 24], strides = [1, 1, 1]} : vector<10x16x24xf32> to vector<8x16x24xf32>
    %377 = vector.extract_strided_slice %52 {offsets = [1, 2, 0], sizes = [1, 1, 24], strides = [1, 1, 1]} : vector<3x3x24xf32> to vector<1x1x24xf32>
    %378 = vector.shape_cast %377 : vector<1x1x24xf32> to vector<24xf32>
    %379 = vector.shape_cast %378 : vector<24xf32> to vector<1x1x24xf32>
    %380 = vector.broadcast %379 : vector<1x1x24xf32> to vector<8x16x24xf32>
    %381 = arith.mulf %376, %380 : vector<8x16x24xf32>
    %382 = arith.addf %375, %381 : vector<8x16x24xf32>
    %383 = vector.extract_strided_slice %368 {offsets = [2, 0, 0], sizes = [8, 16, 24], strides = [1, 1, 1]} : vector<10x16x24xf32> to vector<8x16x24xf32>
    %384 = vector.extract_strided_slice %52 {offsets = [2, 2, 0], sizes = [1, 1, 24], strides = [1, 1, 1]} : vector<3x3x24xf32> to vector<1x1x24xf32>
    %385 = vector.shape_cast %384 : vector<1x1x24xf32> to vector<24xf32>
    %386 = vector.shape_cast %385 : vector<24xf32> to vector<1x1x24xf32>
    %387 = vector.broadcast %386 : vector<1x1x24xf32> to vector<8x16x24xf32>
    %388 = arith.mulf %383, %387 : vector<8x16x24xf32>
    %389 = arith.addf %382, %388 : vector<8x16x24xf32>
    %cst_226 = arith.constant dense<0.000000e+00> : vector<8x16xf32>
    %390 = vector.multi_reduction <add>, %389, %cst_226 [2] : vector<8x16x24xf32> to vector<8x16xf32>
    %391 = vector.broadcast %55 : vector<1x1xf32> to vector<8x16xf32>
    %392 = arith.addf %390, %391 : vector<8x16xf32>
    %393 = math.tanh %392 : vector<8x16xf32>
    %394 = vector.shape_cast %393 : vector<8x16xf32> to vector<128xf32>
    %c0_227 = arith.constant 0 : index
    %c1_228 = arith.constant 1 : index
    %c0_229 = arith.constant 0 : index
    %395 = vector.load %arg8[%c0_227, %c1_228, %c0_229] : memref<1x2x128xf32, #tpu.memory_space<vmem>>, vector<1x1x128xf32>
    %396 = vector.shape_cast %395 : vector<1x1x128xf32> to vector<128xf32>
    %397 = vector.shape_cast %394 : vector<128xf32> to vector<1x1x128xf32>
    tpu.vector_store %arg8[%c0_227, %c1_228, %c0_229], %397 {strides = array<i32>} : memref<1x2x128xf32, #tpu.memory_space<vmem>>, vector<1x1x128xf32>,
    return
  }
  func.func @transform_0(%arg0: i32) -> (i32, i32, i32, i32) {
    %c0_i32 = arith.constant 0 : i32
    %c0_i32_0 = arith.constant 0 : i32
    %c0_i32_1 = arith.constant 0 : i32
    %c0_i32_2 = arith.constant 0 : i32
    return %arg0, %c0_i32, %c0_i32_0, %c0_i32_1 : i32, i32, i32, i32
  }
  func.func @transform_1(%arg0: i32) -> (i32, i32, i32, i32) {
    %c0_i32 = arith.constant 0 : i32
    %c0_i32_0 = arith.constant 0 : i32
    %c0_i32_1 = arith.constant 0 : i32
    %c0_i32_2 = arith.constant 0 : i32
    %c0_i32_3 = arith.constant 0 : i32
    return %c0_i32, %c0_i32_0, %c0_i32_1, %c0_i32_2 : i32, i32, i32, i32
  }
  func.func @transform_2(%arg0: i32) -> (i32, i32) {
    %c0_i32 = arith.constant 0 : i32
    %c0_i32_0 = arith.constant 0 : i32
    %c0_i32_1 = arith.constant 0 : i32
    return %c0_i32, %c0_i32_0 : i32, i32
  }
  func.func @transform_3(%arg0: i32) -> (i32, i32, i32, i32) {
    %c0_i32 = arith.constant 0 : i32
    %c0_i32_0 = arith.constant 0 : i32
    %c0_i32_1 = arith.constant 0 : i32
    %c0_i32_2 = arith.constant 0 : i32
    %c0_i32_3 = arith.constant 0 : i32
    return %c0_i32, %c0_i32_0, %c0_i32_1, %c0_i32_2 : i32, i32, i32, i32
  }
  func.func @transform_4(%arg0: i32) -> (i32, i32) {
    %c0_i32 = arith.constant 0 : i32
    %c0_i32_0 = arith.constant 0 : i32
    %c0_i32_1 = arith.constant 0 : i32
    return %c0_i32, %c0_i32_0 : i32, i32
  }
  func.func @transform_5(%arg0: i32) -> (i32, i32, i32) {
    %c0_i32 = arith.constant 0 : i32
    %c0_i32_0 = arith.constant 0 : i32
    %c0_i32_1 = arith.constant 0 : i32
    %c0_i32_2 = arith.constant 0 : i32
    return %c0_i32, %c0_i32_0, %c0_i32_1 : i32, i32, i32
  }
  func.func @transform_6(%arg0: i32) -> (i32, i32) {
    %c0_i32 = arith.constant 0 : i32
    %c0_i32_0 = arith.constant 0 : i32
    %c0_i32_1 = arith.constant 0 : i32
    return %c0_i32, %c0_i32_0 : i32, i32
  }
  func.func @transform_7(%arg0: i32) -> (i32, i32, i32) {
    %c0_i32 = arith.constant 0 : i32
    %c0_i32_0 = arith.constant 0 : i32
    %c0_i32_1 = arith.constant 0 : i32
    return %arg0, %c0_i32, %c0_i32_0 : i32, i32, i32
  }
}

</mosaic_0001>

<llo_original>
// kernel: ec_forward.1
$region0: #{ec_forward.1}
  #allocation0 [shape = 'u32[]', space=smem, size = 0x4, offset = 0x4, fixed_abs, tag = 'smem constant byte address 0x4 - core index']
  #allocation1 [shape = 'u32[72,128]{1,0:T(1,128)}', space=vmem, size = 0x9000, scoped, tag = 'internal scratch']
  #allocation2 [shape = 'bf16[18,32,48]{2,1,0:T(8,128)(2,1)}', space=vmem, size = 0x24000, scoped, tag = 'scratch operand']
  #allocation3 [shape = 'f32[18,32,24]{2,1,0:T(8,128)}', space=vmem, size = 0x48000, scoped, tag = 'scratch operand']
  #allocation4 [shape = 'f32[1,1]{1,0:T(1,128)S(1)}', space=vmem, size = 0x200, scoped, tag = 'scoped memory for ec_forward.1']
  %s0 = inlined_call_operand.vmem [shape: bf16[2,18,18,49], index: 0, kind: input, shape index: {}]
  %s1 = inlined_call_operand.vmem [shape: bf16[3,3,49,48], index: 1, kind: input, shape index: {}]
  %s2 = inlined_call_operand.vmem [shape: f32[1,48], index: 2, kind: input, shape index: {}]
  %s3 = inlined_call_operand.vmem [shape: bf16[3,3,48,24], index: 3, kind: input, shape index: {}]
  %s4 = inlined_call_operand.vmem [shape: f32[1,24], index: 4, kind: input, shape index: {}]
  %s5 = inlined_call_operand.vmem [shape: f32[3,3,24], index: 5, kind: input, shape index: {}]
  %s6 = inlined_call_operand.<no memory space> [shape: f32[1,1], index: 6, kind: input, shape index: {}]
  %s7 = inlined_call_operand.vmem [shape: f32[2,2,128], index: 7, kind: output, shape index: {}]
  %s8 = sld [smem:[#allocation0]]
  $region61: #{ec_forward.1} parent=0
    _
  %s10 = ssub.s32 1, %s8
  %s11 = scalar_select 0, %s10, %s8
  %v12 = vstv %s6
  %13 = vst [vmem:[#allocation4] sm:$0x1] %v12
  loop: start=0, step=1, limit=4
  $region2: #{ec_forward.1} parent=0 // loop_pre_header
    _
  $region3: #{ec_forward.1} parent=0 // loop_header
    %s15 = sphi 0, %s19
    %p16 = scmp.ge.s32.totalorder %s15, 4
    %s25 = sphi 0, %s27
    %s28 = sphi 0, %s25
    %s29 = sphi 0, %s28
    %s45 = sphi 0, %s29
    %s49 = sphi 0, %s49
    %s51 = sphi 0, %s49
    %s52 = sphi 0, %s51
    %s66 = sphi 0, %s52
    %s70 = sphi 0, %s70
    %s72 = sphi 0, %s70
    %s73 = sphi 0, %s72
    %s87 = sphi 0, %s73
    %s91 = sphi 0, %s91
    %s93 = sphi 0, %s91
    %s94 = sphi 0, %s93
    %s108 = sphi 0, %s94
    %s112 = sphi 0, %s112
    %s114 = sphi 0, %s112
    %s115 = sphi 0, %s114
    %s129 = sphi 0, %s115
    %s133 = sphi 0, %s133
    %s135 = sphi 0, %s133
    %s136 = sphi 0, %s135
    %s150 = sphi 0, %s136
    %s154 = sphi 0, %s154
    %s156 = sphi 0, %s154
    %s157 = sphi 0, %s156
    %s171 = sphi 0, %s157
    %s177 = sphi 0, %s179
    %s180 = sphi 0, %s177
    %s181 = sphi 0, %s180
    %s197 = sphi 0, %s181
  $region4: #{ec_forward.1} parent=0 // loop_header_branch
    %18 = sbr.rel (%p16) target = $region8
  $region5: #{ec_forward.1} parent=0 // loop_body
    %s20 = ssub.s32 %s15, 1
    %s21 = ssub.s32 %s15, 2
    %s22 = sadd.s32 %s15, 1
    %s23 = ssub.s32 %s15, %s22
    %p24 = scmp.eq.s32.totalorder %s23, 0
    %s26 = sadd.s32 %s25, 1
    %s27 = scalar_select %p24, %s25, %s26
    %p30 = pneg %p24
    %p31 = scmp.eq.s32.totalorder %s15, 1
    %p32 = por %p30, %p31
    %p33 = scmp.ne.s32.totalorder %s25, %s28
    %p34 = scmp.eq.s32.totalorder %s15, 0
    %p35 = por %p33, %p34
    %p36 = scmp.ne.s32.totalorder %s25, %s28
    %p37 = scmp.eq.s32.totalorder %s20, 1
    %p38 = por %p36, %p37
    %p39 = scmp.ne.s32.totalorder %s28, %s29
    %p40 = scmp.eq.s32.totalorder %s20, 0
    %p41 = por %p39, %p40
    %p42 = scmp.ne.s32.totalorder %s28, %s29
    %p43 = scmp.eq.s32.totalorder %s21, 1
    %p44 = por %p42, %p43
    %p46 = scmp.ne.s32.totalorder %s29, %s45
    %p47 = scmp.eq.s32.totalorder %s21, 0
    %p48 = por %p46, %p47
    %s50 = sadd.s32 %s49, 1
    %p53 = scmp.eq.s32.totalorder %s15, 1
    %p54 = scmp.ne.s32.totalorder %s49, %s51
    %p55 = scmp.eq.s32.totalorder %s15, 0
    %p56 = por %p54, %p55
    %p57 = scmp.ne.s32.totalorder %s49, %s51
    %p58 = scmp.eq.s32.totalorder %s20, 1
    %p59 = por %p57, %p58
    %p60 = scmp.ne.s32.totalorder %s51, %s52
    %p61 = scmp.eq.s32.totalorder %s20, 0
    %p62 = por %p60, %p61
    %p63 = scmp.ne.s32.totalorder %s51, %s52
    %p64 = scmp.eq.s32.totalorder %s21, 1
    %p65 = por %p63, %p64
    %p67 = scmp.ne.s32.totalorder %s52, %s66
    %p68 = scmp.eq.s32.totalorder %s21, 0
    %p69 = por %p67, %p68
    %s71 = sadd.s32 %s70, 1
    %p74 = scmp.eq.s32.totalorder %s15, 1
    %p75 = scmp.ne.s32.totalorder %s70, %s72
    %p76 = scmp.eq.s32.totalorder %s15, 0
    %p77 = por %p75, %p76
    %p78 = scmp.ne.s32.totalorder %s70, %s72
    %p79 = scmp.eq.s32.totalorder %s20, 1
    %p80 = por %p78, %p79
    %p81 = scmp.ne.s32.totalorder %s72, %s73
    %p82 = scmp.eq.s32.totalorder %s20, 0
    %p83 = por %p81, %p82
    %p84 = scmp.ne.s32.totalorder %s72, %s73
    %p85 = scmp.eq.s32.totalorder %s21, 1
    %p86 = por %p84, %p85
    %p88 = scmp.ne.s32.totalorder %s73, %s87
    %p89 = scmp.eq.s32.totalorder %s21, 0
    %p90 = por %p88, %p89
    %s92 = sadd.s32 %s91, 1
    %p95 = scmp.eq.s32.totalorder %s15, 1
    %p96 = scmp.ne.s32.totalorder %s91, %s93
    %p97 = scmp.eq.s32.totalorder %s15, 0
    %p98 = por %p96, %p97
    %p99 = scmp.ne.s32.totalorder %s91, %s93
    %p100 = scmp.eq.s32.totalorder %s20, 1
    %p101 = por %p99, %p100
    %p102 = scmp.ne.s32.totalorder %s93, %s94
    %p103 = scmp.eq.s32.totalorder %s20, 0
    %p104 = por %p102, %p103
    %p105 = scmp.ne.s32.totalorder %s93, %s94
    %p106 = scmp.eq.s32.totalorder %s21, 1
    %p107 = por %p105, %p106
    %p109 = scmp.ne.s32.totalorder %s94, %s108
    %p110 = scmp.eq.s32.totalorder %s21, 0
    %p111 = por %p109, %p110
    %s113 = sadd.s32 %s112, 1
    %p116 = scmp.eq.s32.totalorder %s15, 1
    %p117 = scmp.ne.s32.totalorder %s112, %s114
    %p118 = scmp.eq.s32.totalorder %s15, 0
    %p119 = por %p117, %p118
    %p120 = scmp.ne.s32.totalorder %s112, %s114
    %p121 = scmp.eq.s32.totalorder %s20, 1
    %p122 = por %p120, %p121
    %p123 = scmp.ne.s32.totalorder %s114, %s115
    %p124 = scmp.eq.s32.totalorder %s20, 0
    %p125 = por %p123, %p124
    %p126 = scmp.ne.s32.totalorder %s114, %s115
    %p127 = scmp.eq.s32.totalorder %s21, 1
    %p128 = por %p126, %p127
    %p130 = scmp.ne.s32.totalorder %s115, %s129
    %p131 = scmp.eq.s32.totalorder %s21, 0
    %p132 = por %p130, %p131
    %s134 = sadd.s32 %s133, 1
    %p137 = scmp.eq.s32.totalorder %s15, 1
    %p138 = scmp.ne.s32.totalorder %s133, %s135
    %p139 = scmp.eq.s32.totalorder %s15, 0
    %p140 = por %p138, %p139
    %p141 = scmp.ne.s32.totalorder %s133, %s135
    %p142 = scmp.eq.s32.totalorder %s20, 1
    %p143 = por %p141, %p142
    %p144 = scmp.ne.s32.totalorder %s135, %s136
    %p145 = scmp.eq.s32.totalorder %s20, 0
    %p146 = por %p144, %p145
    %p147 = scmp.ne.s32.totalorder %s135, %s136
    %p148 = scmp.eq.s32.totalorder %s21, 1
    %p149 = por %p147, %p148
    %p151 = scmp.ne.s32.totalorder %s136, %s150
    %p152 = scmp.eq.s32.totalorder %s21, 0
    %p153 = por %p151, %p152
    %s155 = sadd.s32 %s154, 1
    %p158 = scmp.eq.s32.totalorder %s15, 1
    %p159 = scmp.ne.s32.totalorder %s154, %s156
    %p160 = scmp.eq.s32.totalorder %s15, 0
    %p161 = por %p159, %p160
    %p162 = scmp.ne.s32.totalorder %s154, %s156
    %p163 = scmp.eq.s32.totalorder %s20, 1
    %p164 = por %p162, %p163
    %p165 = scmp.ne.s32.totalorder %s156, %s157
    %p166 = scmp.eq.s32.totalorder %s20, 0
    %p167 = por %p165, %p166
    %p168 = scmp.ne.s32.totalorder %s156, %s157
    %p169 = scmp.eq.s32.totalorder %s21, 1
    %p170 = por %p168, %p169
    %p172 = scmp.ne.s32.totalorder %s157, %s171
    %p173 = scmp.eq.s32.totalorder %s21, 0
    %p174 = por %p172, %p173
    %s175 = ssub.s32 %s15, %s22
    %p176 = scmp.eq.s32.totalorder %s175, 0
    %s178 = sadd.s32 %s177, 1
    %s179 = scalar_select %p176, %s177, %s178
    %p182 = pneg %p176
    %p183 = scmp.eq.s32.totalorder %s15, 1
    %p184 = por %p182, %p183
    %p185 = scmp.ne.s32.totalorder %s177, %s180
    %p186 = scmp.eq.s32.totalorder %s15, 0
    %p187 = por %p185, %p186
    %p188 = scmp.ne.s32.totalorder %s177, %s180
    %p189 = scmp.eq.s32.totalorder %s20, 1
    %p190 = por %p188, %p189
    %p191 = scmp.ne.s32.totalorder %s180, %s181
    %p192 = scmp.eq.s32.totalorder %s20, 0
    %p193 = por %p191, %p192
    %p194 = scmp.ne.s32.totalorder %s180, %s181
    %p195 = scmp.eq.s32.totalorder %s21, 1
    %p196 = por %p194, %p195
    %p198 = scmp.ne.s32.totalorder %s181, %s197
    %p199 = scmp.eq.s32.totalorder %s21, 0
    %p200 = por %p198, %p199
    %p201 = scmp.le.s32.totalorder 1, %s15
    %p202 = scmp.lt.s32.totalorder %s15, 3
    %p203 = pnand %p201, %p202
    %p204 = pneg %p203
    // Predicated region
    $region9: #{ec_forward.1} parent=5 // pred_check
      _
    $region10: #{ec_forward.1} parent=5 // pred_check_branch
      %206 = sbr.rel (%p203) target = $region12
    $region11: #{ec_forward.1} parent=5 // pred_region
      %s207 = ssub.s32 %s15, 1
      // Predicated region
      $region13: #{ec_forward.1} parent=11 // pred_check
        %p208 = pneg %p62
      $region14: #{ec_forward.1} parent=11 // pred_check_branch
        %210 = sbr.rel (%p208) target = $region16
      $region15: #{ec_forward.1} parent=11 // pred_region
        _
      $region16: #{ec_forward.1} parent=11 // pred_fallthru
        _
      // Predicated region
      $region17: #{ec_forward.1} parent=11 // pred_check
        %p211 = pneg %p83
      $region18: #{ec_forward.1} parent=11 // pred_check_branch
        %213 = sbr.rel (%p211) target = $region20
      $region19: #{ec_forward.1} parent=11 // pred_region
        _
      $region20: #{ec_forward.1} parent=11 // pred_fallthru
        _
      // Predicated region
      $region21: #{ec_forward.1} parent=11 // pred_check
        %p214 = pneg %p104
      $region22: #{ec_forward.1} parent=11 // pred_check_branch
        %216 = sbr.rel (%p214) target = $region24
      $region23: #{ec_forward.1} parent=11 // pred_region
        _
      $region24: #{ec_forward.1} parent=11 // pred_fallthru
        _
      // Predicated region
      $region25: #{ec_forward.1} parent=11 // pred_check
        %p217 = pneg %p125
      $region26: #{ec_forward.1} parent=11 // pred_check_branch
        %219 = sbr.rel (%p217) target = $region28
      $region27: #{ec_forward.1} parent=11 // pred_region
        _
      $region28: #{ec_forward.1} parent=11 // pred_fallthru
        _
      // Predicated region
      $region29: #{ec_forward.1} parent=11 // pred_check
        %p220 = pneg %p146
      $region30: #{ec_forward.1} parent=11 // pred_check_branch
        %222 = sbr.rel (%p220) target = $region32
      $region31: #{ec_forward.1} parent=11 // pred_region
        _
      $region32: #{ec_forward.1} parent=11 // pred_fallthru
        _
      // Predicated region
      $region33: #{ec_forward.1} parent=11 // pred_check
        %p223 = pneg %p167
      $region34: #{ec_forward.1} parent=11 // pred_check_branch
        %225 = sbr.rel (%p223) target = $region36
      $region35: #{ec_forward.1} parent=11 // pred_region
        _
      $region36: #{ec_forward.1} parent=11 // pred_fallthru
        _
    $region12: #{ec_forward.1} parent=5 // pred_fallthru
      _
    %p226 = scmp.lt.s32.totalorder %s15, 2
    // Predicated region
    $region37: #{ec_forward.1} parent=5 // pred_check
      %p227 = pneg %p226
    $region38: #{ec_forward.1} parent=5 // pred_check_branch
      %229 = sbr.rel (%p227) target = $region40
    $region39: #{ec_forward.1} parent=5 // pred_region
      // Predicated region
      $region41: #{ec_forward.1} parent=39 // pred_check
        %p230 = pneg %p35
      $region42: #{ec_forward.1} parent=39 // pred_check_branch
        %232 = sbr.rel (%p230) target = $region44
      $region43: #{ec_forward.1} parent=39 // pred_region
        %p233 = scmp.lt.s32.totalorder %s15, 1
        %s234 = scalar_select %p233, %s15, 1
        %s235 = smul.addr %s234, 54
        %s236 = smul.addr %s235, 4
        %s237 = scalar_lea.vmem %s0, %s236
      $region44: #{ec_forward.1} parent=39 // pred_fallthru
        _
    $region40: #{ec_forward.1} parent=5 // pred_fallthru
      _
    %p238 = scmp.le.s32.totalorder 1, %s15
    %p239 = scmp.lt.s32.totalorder %s15, 3
    %p240 = pnand %p238, %p239
    %p241 = pneg %p240
    // Predicated region
    $region45: #{ec_forward.1} parent=5 // pred_check
      _
    $region46: #{ec_forward.1} parent=5 // pred_check_branch
      %243 = sbr.rel (%p240) target = $region48
    $region47: #{ec_forward.1} parent=5 // pred_region
      %s244 = ssub.s32 %s15, 1
      %p245 = scmp.lt.s32.totalorder %s20, 1
      %s246 = scalar_select %p245, %s20, 1
      %s247 = smul.addr %s246, 54
      %s248 = smul.addr %s247, 4
      %s249 = scalar_lea.vmem %s0, %s248
      %p250 = pneg %p41
      %p251 = pneg %p38
      %p252 = pneg %p62
      %p253 = pneg %p59
      %p254 = pneg %p83
      %p255 = pneg %p80
      %p256 = pneg %p104
      %p257 = pneg %p101
      %p258 = pneg %p125
      %p259 = pneg %p122
      %p260 = pneg %p146
      %p261 = pneg %p143
      %p262 = pneg %p167
      %p263 = pneg %p164
      %p264 = pneg %p193
      %p265 = pneg %p190
      %p266 = scmp.lt.s32.totalorder %s20, 1
      %s267 = scalar_select %p266, %s20, 1
      %s268 = smul.addr %s267, 2
      %s269 = scalar_lea.vmem %s7, %s268
      %p270 = scmp.lt.s32.totalorder %s20, 1
      %s271 = scalar_select %p270, %s20, 1
      %s272 = smul.addr %s271, 54
      %s273 = smul.addr %s272, 4
      %s274 = scalar_lea.vmem %s0, %s273
      %p275 = scmp.lt.s32.totalorder %s20, 1
      %s276 = scalar_select %p275, %s20, 1
      %s277 = smul.addr %s276, 2
      %s278 = scalar_lea.vmem %s7, %s277
      %vm280 = vcmask 388096
      %281 = vst.msk [vmem:[#allocation2] sm:$0xf] %vm280, 0
      %282 = vst.msk [vmem:[#allocation2 + $0x4] sm:$0xf] %vm280, 0
      %283 = vst.msk [vmem:[#allocation2 + $0x8] sm:$0xf] %vm280, 0
      %284 = vst.msk [vmem:[#allocation2 + $0xc] sm:$0xf] %vm280, 0
      %s285 = scalar_lea.vmem [#allocation2], 272
      %286 = vst.msk [vmem:[%s285] sm:$0xf] %vm280, 0
      %287 = vst.msk [vmem:[%s285 + $0x4] sm:$0xf] %vm280, 0
      %288 = vst.msk [vmem:[%s285 + $0x8] sm:$0xf] %vm280, 0
      %289 = vst.msk [vmem:[%s285 + $0xc] sm:$0xf] %vm280, 0
      %s290 = scalar_lea.vmem [#allocation2], 16
      %291 = vst.msk [vmem:[%s290] sm:$0xf] %vm280, 0
      %292 = vst.msk [vmem:[%s290 + $0x10] sm:$0xf] %vm280, 0
      %293 = vst.msk [vmem:[%s290 + $0x20] sm:$0xf] %vm280, 0
      %294 = vst.msk [vmem:[%s290 + $0x30] sm:$0xf] %vm280, 0
      %295 = vst.msk [vmem:[%s290 + $0x40] sm:$0xf] %vm280, 0
      %296 = vst.msk [vmem:[%s290 + $0x50] sm:$0xf] %vm280, 0
      %297 = vst.msk [vmem:[%s290 + $0x60] sm:$0xf] %vm280, 0
      %298 = vst.msk [vmem:[%s290 + $0x70] sm:$0xf] %vm280, 0
      %299 = vst.msk [vmem:[%s290 + $0x80] sm:$0xf] %vm280, 0
      %300 = vst.msk [vmem:[%s290 + $0x90] sm:$0xf] %vm280, 0
      %301 = vst.msk [vmem:[%s290 + $0xa0] sm:$0xf] %vm280, 0
      %302 = vst.msk [vmem:[%s290 + $0xb0] sm:$0xf] %vm280, 0
      %303 = vst.msk [vmem:[%s290 + $0xc0] sm:$0xf] %vm280, 0
      %304 = vst.msk [vmem:[%s290 + $0xd0] sm:$0xf] %vm280, 0
      %305 = vst.msk [vmem:[%s290 + $0xe0] sm:$0xf] %vm280, 0
      %306 = vst.msk [vmem:[%s290 + $0xf0] sm:$0xf] %vm280, 0
      %307 = vst.msk [vmem:[%s290 + $0xc] sm:$0xf] %vm280, 0
      %308 = vst.msk [vmem:[%s290 + $0x1c] sm:$0xf] %vm280, 0
      %309 = vst.msk [vmem:[%s290 + $0x2c] sm:$0xf] %vm280, 0
      %310 = vst.msk [vmem:[%s290 + $0x3c] sm:$0xf] %vm280, 0
      %311 = vst.msk [vmem:[%s290 + $0x4c] sm:$0xf] %vm280, 0
      %312 = vst.msk [vmem:[%s290 + $0x5c] sm:$0xf] %vm280, 0
      %313 = vst.msk [vmem:[%s290 + $0x6c] sm:$0xf] %vm280, 0
      %314 = vst.msk [vmem:[%s290 + $0x7c] sm:$0xf] %vm280, 0
      %315 = vst.msk [vmem:[%s290 + $0x8c] sm:$0xf] %vm280, 0
      %316 = vst.msk [vmem:[%s290 + $0x9c] sm:$0xf] %vm280, 0
      %317 = vst.msk [vmem:[%s290 + $0xac] sm:$0xf] %vm280, 0
      %318 = vst.msk [vmem:[%s290 + $0xbc] sm:$0xf] %vm280, 0
      %319 = vst.msk [vmem:[%s290 + $0xcc] sm:$0xf] %vm280, 0
      %320 = vst.msk [vmem:[%s290 + $0xdc] sm:$0xf] %vm280, 0
      %321 = vst.msk [vmem:[%s290 + $0xec] sm:$0xf] %vm280, 0
      %322 = vst.msk [vmem:[%s290 + $0xfc] sm:$0xf] %vm280, 0
      %vm323 = vcmask 195584
      %324 = vst.msk [vmem:[#allocation3] sm:$0xff] %vm323, 0.0
      %325 = vst.msk [vmem:[#allocation3 + $0x8] sm:$0xff] %vm323, 0.0
      %326 = vst.msk [vmem:[#allocation3 + $0x10] sm:$0xff] %vm323, 0.0
      %327 = vst.msk [vmem:[#allocation3 + $0x18] sm:$0xff] %vm323, 0.0
      %s328 = scalar_lea.vmem [#allocation3], 544
      %329 = vst.msk [vmem:[%s328] sm:$0xff] %vm323, 0.0
      %330 = vst.msk [vmem:[%s328 + $0x8] sm:$0xff] %vm323, 0.0
      %331 = vst.msk [vmem:[%s328 + $0x10] sm:$0xff] %vm323, 0.0
      %332 = vst.msk [vmem:[%s328 + $0x18] sm:$0xff] %vm323, 0.0
      %s333 = scalar_lea.vmem [#allocation3], 32
      %334 = vst.msk [vmem:[%s333] sm:$0xff] %vm323, 0.0
      %335 = vst.msk [vmem:[%s333 + $0x20] sm:$0xff] %vm323, 0.0
      %336 = vst.msk [vmem:[%s333 + $0x40] sm:$0xff] %vm323, 0.0
      %337 = vst.msk [vmem:[%s333 + $0x60] sm:$0xff] %vm323, 0.0
      %338 = vst.msk [vmem:[%s333 + $0x80] sm:$0xff] %vm323, 0.0
      %339 = vst.msk [vmem:[%s333 + $0xa0] sm:$0xff] %vm323, 0.0
      %340 = vst.msk [vmem:[%s333 + $0xc0] sm:$0xff] %vm323, 0.0
      %341 = vst.msk [vmem:[%s333 + $0xe0] sm:$0xff] %vm323, 0.0
      %342 = vst.msk [vmem:[%s333 + $0x100] sm:$0xff] %vm323, 0.0
      %343 = vst.msk [vmem:[%s333 + $0x120] sm:$0xff] %vm323, 0.0
      %344 = vst.msk [vmem:[%s333 + $0x140] sm:$0xff] %vm323, 0.0
      %345 = vst.msk [vmem:[%s333 + $0x160] sm:$0xff] %vm323, 0.0
      %346 = vst.msk [vmem:[%s333 + $0x180] sm:$0xff] %vm323, 0.0
      %347 = vst.msk [vmem:[%s333 + $0x1a0] sm:$0xff] %vm323, 0.0
      %348 = vst.msk [vmem:[%s333 + $0x1c0] sm:$0xff] %vm323, 0.0
      %349 = vst.msk [vmem:[%s333 + $0x1e0] sm:$0xff] %vm323, 0.0
      %350 = vst.msk [vmem:[%s333 + $0x18] sm:$0xff] %vm323, 0.0
      %351 = vst.msk [vmem:[%s333 + $0x38] sm:$0xff] %vm323, 0.0
      %352 = vst.msk [vmem:[%s333 + $0x58] sm:$0xff] %vm323, 0.0
      %353 = vst.msk [vmem:[%s333 + $0x78] sm:$0xff] %vm323, 0.0
      %354 = vst.msk [vmem:[%s333 + $0x98] sm:$0xff] %vm323, 0.0
      %355 = vst.msk [vmem:[%s333 + $0xb8] sm:$0xff] %vm323, 0.0
      %356 = vst.msk [vmem:[%s333 + $0xd8] sm:$0xff] %vm323, 0.0
      %357 = vst.msk [vmem:[%s333 + $0xf8] sm:$0xff] %vm323, 0.0
      %358 = vst.msk [vmem:[%s333 + $0x118] sm:$0xff] %vm323, 0.0
      %359 = vst.msk [vmem:[%s333 + $0x138] sm:$0xff] %vm323, 0.0
      %360 = vst.msk [vmem:[%s333 + $0x158] sm:$0xff] %vm323, 0.0
      %361 = vst.msk [vmem:[%s333 + $0x178] sm:$0xff] %vm323, 0.0
      %362 = vst.msk [vmem:[%s333 + $0x198] sm:$0xff] %vm323, 0.0
      %363 = vst.msk [vmem:[%s333 + $0x1b8] sm:$0xff] %vm323, 0.0
      %364 = vst.msk [vmem:[%s333 + $0x1d8] sm:$0xff] %vm323, 0.0
      %365 = vst.msk [vmem:[%s333 + $0x1f8] sm:$0xff] %vm323, 0.0
      %v366 = vld [vmem:[%s1] sm:$0xf]
      %v367 = vld [vmem:[%s1 + $0x4] sm:$0xf]
      %v368 = vld [vmem:[%s1 + $0x8] sm:$0xf]
      %v369 = vld [vmem:[%s1 + $0xc] sm:$0xf]
      %v370 = vld [vmem:[%s1 + $0x10] sm:$0xf]
      %v371 = vld [vmem:[%s1 + $0x14] sm:$0xf]
      %v372 = vld [vmem:[%s1 + $0x18] sm:$0x1]
      %s373 = scalar_lea.vmem %s1, 28
      %v374 = vld [vmem:[%s373] sm:$0xf]
      %v375 = vld [vmem:[%s373 + $0x4] sm:$0xf]
      %v376 = vld [vmem:[%s373 + $0x8] sm:$0xf]
      %v377 = vld [vmem:[%s373 + $0xc] sm:$0xf]
      %v378 = vld [vmem:[%s373 + $0x10] sm:$0xf]
      %v379 = vld [vmem:[%s373 + $0x14] sm:$0xf]
      %v380 = vld [vmem:[%s373 + $0x18] sm:$0x1]
      %s381 = scalar_lea.vmem %s1, 56
      %v382 = vld [vmem:[%s381] sm:$0xf]
      %v383 = vld [vmem:[%s381 + $0x4] sm:$0xf]
      %v384 = vld [vmem:[%s381 + $0x8] sm:$0xf]
      %v385 = vld [vmem:[%s381 + $0xc] sm:$0xf]
      %v386 = vld [vmem:[%s381 + $0x10] sm:$0xf]
      %v387 = vld [vmem:[%s381 + $0x14] sm:$0xf]
      %v388 = vld [vmem:[%s381 + $0x18] sm:$0x1]
      %s389 = scalar_lea.vmem %s1, 84
      %v390 = vld [vmem:[%s389] sm:$0xf]
      %v391 = vld [vmem:[%s389 + $0x4] sm:$0xf]
      %v392 = vld [vmem:[%s389 + $0x8] sm:$0xf]
      %v393 = vld [vmem:[%s389 + $0xc] sm:$0xf]
      %v394 = vld [vmem:[%s389 + $0x10] sm:$0xf]
      %v395 = vld [vmem:[%s389 + $0x14] sm:$0xf]
      %v396 = vld [vmem:[%s389 + $0x18] sm:$0x1]
      %s397 = scalar_lea.vmem %s1, 112
      %v398 = vld [vmem:[%s397] sm:$0xf]
      %v399 = vld [vmem:[%s397 + $0x4] sm:$0xf]
      %v400 = vld [vmem:[%s397 + $0x8] sm:$0xf]
      %v401 = vld [vmem:[%s397 + $0xc] sm:$0xf]
      %v402 = vld [vmem:[%s397 + $0x10] sm:$0xf]
      %v403 = vld [vmem:[%s397 + $0x14] sm:$0xf]
      %v404 = vld [vmem:[%s397 + $0x18] sm:$0x1]
      %s405 = scalar_lea.vmem %s1, 140
      %v406 = vld [vmem:[%s405] sm:$0xf]
      %v407 = vld [vmem:[%s405 + $0x4] sm:$0xf]
      %v408 = vld [vmem:[%s405 + $0x8] sm:$0xf]
      %v409 = vld [vmem:[%s405 + $0xc] sm:$0xf]
      %v410 = vld [vmem:[%s405 + $0x10] sm:$0xf]
      %v411 = vld [vmem:[%s405 + $0x14] sm:$0xf]
      %v412 = vld [vmem:[%s405 + $0x18] sm:$0x1]
      %s413 = scalar_lea.vmem %s1, 168
      %v414 = vld [vmem:[%s413] sm:$0xf]
      %v415 = vld [vmem:[%s413 + $0x4] sm:$0xf]
      %v416 = vld [vmem:[%s413 + $0x8] sm:$0xf]
      %v417 = vld [vmem:[%s413 + $0xc] sm:$0xf]
      %v418 = vld [vmem:[%s413 + $0x10] sm:$0xf]
      %v419 = vld [vmem:[%s413 + $0x14] sm:$0xf]
      %v420 = vld [vmem:[%s413 + $0x18] sm:$0x1]
      %s421 = scalar_lea.vmem %s1, 196
      %v422 = vld [vmem:[%s421] sm:$0xf]
      %v423 = vld [vmem:[%s421 + $0x4] sm:$0xf]
      %v424 = vld [vmem:[%s421 + $0x8] sm:$0xf]
      %v425 = vld [vmem:[%s421 + $0xc] sm:$0xf]
      %v426 = vld [vmem:[%s421 + $0x10] sm:$0xf]
      %v427 = vld [vmem:[%s421 + $0x14] sm:$0xf]
      %v428 = vld [vmem:[%s421 + $0x18] sm:$0x1]
      %s429 = scalar_lea.vmem %s1, 224
      %v430 = vld [vmem:[%s429] sm:$0xf]
      %v431 = vld [vmem:[%s429 + $0x4] sm:$0xf]
      %v432 = vld [vmem:[%s429 + $0x8] sm:$0xf]
      %v433 = vld [vmem:[%s429 + $0xc] sm:$0xf]
      %v434 = vld [vmem:[%s429 + $0x10] sm:$0xf]
      %v435 = vld [vmem:[%s429 + $0x14] sm:$0xf]
      %v436 = vld [vmem:[%s429 + $0x18] sm:$0x1]
      %v437 = vld [vmem:[%s3] sm:$0xf]
      %v438 = vld [vmem:[%s3 + $0x4] sm:$0xf]
      %v439 = vld [vmem:[%s3 + $0x8] sm:$0xf]
      %v440 = vld [vmem:[%s3 + $0xc] sm:$0xf]
      %v441 = vld [vmem:[%s3 + $0x10] sm:$0xf]
      %v442 = vld [vmem:[%s3 + $0x14] sm:$0xf]
      %s443 = scalar_lea.vmem %s3, 24
      %v444 = vld [vmem:[%s443] sm:$0xf]
      %v445 = vld [vmem:[%s443 + $0x4] sm:$0xf]
      %v446 = vld [vmem:[%s443 + $0x8] sm:$0xf]
      %v447 = vld [vmem:[%s443 + $0xc] sm:$0xf]
      %v448 = vld [vmem:[%s443 + $0x10] sm:$0xf]
      %v449 = vld [vmem:[%s443 + $0x14] sm:$0xf]
      %s450 = scalar_lea.vmem %s3, 48
      %v451 = vld [vmem:[%s450] sm:$0xf]
      %v452 = vld [vmem:[%s450 + $0x4] sm:$0xf]
      %v453 = vld [vmem:[%s450 + $0x8] sm:$0xf]
      %v454 = vld [vmem:[%s450 + $0xc] sm:$0xf]
      %v455 = vld [vmem:[%s450 + $0x10] sm:$0xf]
      %v456 = vld [vmem:[%s450 + $0x14] sm:$0xf]
      %s457 = scalar_lea.vmem %s3, 72
      %v458 = vld [vmem:[%s457] sm:$0xf]
      %v459 = vld [vmem:[%s457 + $0x4] sm:$0xf]
      %v460 = vld [vmem:[%s457 + $0x8] sm:$0xf]
      %v461 = vld [vmem:[%s457 + $0xc] sm:$0xf]
      %v462 = vld [vmem:[%s457 + $0x10] sm:$0xf]
      %v463 = vld [vmem:[%s457 + $0x14] sm:$0xf]
      %s464 = scalar_lea.vmem %s3, 96
      %v465 = vld [vmem:[%s464] sm:$0xf]
      %v466 = vld [vmem:[%s464 + $0x4] sm:$0xf]
      %v467 = vld [vmem:[%s464 + $0x8] sm:$0xf]
      %v468 = vld [vmem:[%s464 + $0xc] sm:$0xf]
      %v469 = vld [vmem:[%s464 + $0x10] sm:$0xf]
      %v470 = vld [vmem:[%s464 + $0x14] sm:$0xf]
      %s471 = scalar_lea.vmem %s3, 120
      %v472 = vld [vmem:[%s471] sm:$0xf]
      %v473 = vld [vmem:[%s471 + $0x4] sm:$0xf]
      %v474 = vld [vmem:[%s471 + $0x8] sm:$0xf]
      %v475 = vld [vmem:[%s471 + $0xc] sm:$0xf]
      %v476 = vld [vmem:[%s471 + $0x10] sm:$0xf]
      %v477 = vld [vmem:[%s471 + $0x14] sm:$0xf]
      %s478 = scalar_lea.vmem %s3, 144
      %v479 = vld [vmem:[%s478] sm:$0xf]
      %v480 = vld [vmem:[%s478 + $0x4] sm:$0xf]
      %v481 = vld [vmem:[%s478 + $0x8] sm:$0xf]
      %v482 = vld [vmem:[%s478 + $0xc] sm:$0xf]
      %v483 = vld [vmem:[%s478 + $0x10] sm:$0xf]
      %v484 = vld [vmem:[%s478 + $0x14] sm:$0xf]
      %s485 = scalar_lea.vmem %s3, 168
      %v486 = vld [vmem:[%s485] sm:$0xf]
      %v487 = vld [vmem:[%s485 + $0x4] sm:$0xf]
      %v488 = vld [vmem:[%s485 + $0x8] sm:$0xf]
      %v489 = vld [vmem:[%s485 + $0xc] sm:$0xf]
      %v490 = vld [vmem:[%s485 + $0x10] sm:$0xf]
      %v491 = vld [vmem:[%s485 + $0x14] sm:$0xf]
      %s492 = scalar_lea.vmem %s3, 192
      %v493 = vld [vmem:[%s492] sm:$0xf]
      %v494 = vld [vmem:[%s492 + $0x4] sm:$0xf]
      %v495 = vld [vmem:[%s492 + $0x8] sm:$0xf]
      %v496 = vld [vmem:[%s492 + $0xc] sm:$0xf]
      %v497 = vld [vmem:[%s492 + $0x10] sm:$0xf]
      %v498 = vld [vmem:[%s492 + $0x14] sm:$0xf]
      %v499 = vld [vmem:[%s5] sm:$0x7]
      %v500 = vld [vmem:[%s5 + $0x4] sm:$0x7]
      %v501 = vld [vmem:[%s5 + $0x8] sm:$0x7]
      %v502 = vld [vmem:[%s2] sm:$0x1]
      %v503 = vld [vmem:[%s4] sm:$0x1]
      %v504 = vld [vmem:[#allocation4] sm:$0x1]
      %v505 = vld [vmem:[%s274] sm:$0xf]
      %v506 = vld [vmem:[%s274 + $0x4] sm:$0xf]
      %v507 = vld [vmem:[%s274 + $0xc] sm:$0xf]
      %v508 = vld [vmem:[%s274 + $0x10] sm:$0xf]
      %v509 = vld [vmem:[%s274 + $0x18] sm:$0xf]
      %v510 = vld [vmem:[%s274 + $0x1c] sm:$0xf]
      %v511 = vld [vmem:[%s274 + $0x24] sm:$0xf]
      %v512 = vld [vmem:[%s274 + $0x28] sm:$0xf]
      %v513 = vld [vmem:[%s274 + $0x30] sm:$0xf]
      %v514 = vld [vmem:[%s274 + $0x34] sm:$0xf]
      %v515 = vld [vmem:[%s274 + $0x3c] sm:$0xf]
      %v516 = vld [vmem:[%s274 + $0x40] sm:$0xf]
      %v517 = vld [vmem:[%s274 + $0x48] sm:$0xf]
      %v518 = vld [vmem:[%s274 + $0x4c] sm:$0xf]
      %v519 = vld [vmem:[%s274 + $0x54] sm:$0xf]
      %v520 = vld [vmem:[%s274 + $0x58] sm:$0xf]
      %v521 = vld [vmem:[%s274 + $0x60] sm:$0xf]
      %v522 = vld [vmem:[%s274 + $0x64] sm:$0xf]
      %v523 = vld [vmem:[%s274 + $0x6c] sm:$0xf]
      %v524 = vld [vmem:[%s274 + $0x70] sm:$0xf]
      %v541 = vunpack.c.l.b16 %v507
      %v542 = vunpack.c.l.b16 %v508
      %v543 = vunpack.c.l.b16 %v509
      %v544 = vunpack.c.l.b16 %v510
      %v545 = vunpack.c.l.b16 %v511
      %v546 = vunpack.c.l.b16 %v512
      %v547 = vunpack.c.l.b16 %v513
      %v548 = vunpack.c.l.b16 %v514
      %v549 = vunpack.c.l.b16 %v515
      %v550 = vunpack.c.l.b16 %v516
      %v551 = vunpack.c.l.b16 %v517
      %v552 = vunpack.c.l.b16 %v518
      %v553 = vunpack.c.l.b16 %v519
      %v554 = vunpack.c.l.b16 %v520
      %v555 = vunpack.c.l.b16 %v521
      %v556 = vunpack.c.l.b16 %v522
      %v557 = vpack.c.b16 %v542, %v541
      %v558 = vpack.c.b16 %v544, %v543
      %v559 = vpack.c.b16 %v546, %v545
      %v560 = vpack.c.b16 %v548, %v547
      %v561 = vpack.c.b16 %v550, %v549
      %v562 = vpack.c.b16 %v552, %v551
      %v563 = vpack.c.b16 %v554, %v553
      %v564 = vpack.c.b16 %v556, %v555
      %v572 = vunpack.c.l.b16 %v390
      %v573 = vunpack.c.l.b16 %v391
      %v574 = vunpack.c.l.b16 %v392
      %v575 = vunpack.c.l.b16 %v393
      %v576 = vunpack.c.l.b16 %v394
      %v577 = vunpack.c.l.b16 %v395
      %v578 = vunpack.c.l.b16 %v396
      %v579 = vpack.c.b16 %v573, %v572
      %v580 = vpack.c.b16 %v575, %v574
      %v581 = vpack.c.b16 %v577, %v576
      %v582 = vpack.c.b16 %v578, %v578
      %vm586 = vcmask 400384
      %v588 = vsel %vm586, %v557, 0
      %v591 = vsel %vm586, %v558, 0
      %v594 = vsel %vm586, %v559, 0
      %v597 = vsel %vm586, %v560, 0
      %v600 = vsel %vm586, %v561, 0
      %v603 = vsel %vm586, %v562, 0
      %v606 = vsel %vm586, %v563, 0
      %v609 = vsel %vm586, %v564, 0
      %vm611 = vcmask 1040384
      %v612 = vsel 0, 4294967295, 65535
      %v613 = vsel %vm611, %v612, 0
      %v615 = vand.u32 %v582, %v613
      %617 = vmatpush.bf16.msra.mxu0 0
      %618 = vmatpush.bf16.msra.mxu0 0
      %619 = vmatpush.bf16.msra.mxu0 0
      %620 = vmatpush.bf16.msra.mxu0 0
      %621 = vmatpush.bf16.msra.mxu0 %v615
      %622 = vmatpush.bf16.msra.mxu0 %v581
      %623 = vmatpush.bf16.msra.mxu0 %v580
      %624 = vmatpush.bf16.msra.mxu0 %v579
      %625 = vmatmul.bf16.gmra.mxu0 %v588
      %v626 = vpop.f32.mrf.mxu0
      %v627 = vadd.f32 0.0, %v626
      %v628 = vpop.f32.mrf.mxu0
      %v629 = vadd.f32 0.0, %v628
      %630 = vmatmul.bf16.gmra.mxu0 %v591
      %v631 = vpop.f32.mrf.mxu0
      %v632 = vadd.f32 0.0, %v631
      %v633 = vpop.f32.mrf.mxu0
      %v634 = vadd.f32 0.0, %v633
      %635 = vmatmul.bf16.gmra.mxu0 %v594
      %v636 = vpop.f32.mrf.mxu0
      %v637 = vadd.f32 0.0, %v636
      %v638 = vpop.f32.mrf.mxu0
      %v639 = vadd.f32 0.0, %v638
      %640 = vmatmul.bf16.gmra.mxu0 %v597
      %v641 = vpop.f32.mrf.mxu0
      %v642 = vadd.f32 0.0, %v641
      %v643 = vpop.f32.mrf.mxu0
      %v644 = vadd.f32 0.0, %v643
      %645 = vmatmul.bf16.gmra.mxu0 %v600
      %v646 = vpop.f32.mrf.mxu0
      %v647 = vadd.f32 0.0, %v646
      %v648 = vpop.f32.mrf.mxu0
      %v649 = vadd.f32 0.0, %v648
      %650 = vmatmul.bf16.gmra.mxu0 %v603
      %v651 = vpop.f32.mrf.mxu0
      %v652 = vadd.f32 0.0, %v651
      %v653 = vpop.f32.mrf.mxu0
      %v654 = vadd.f32 0.0, %v653
      %655 = vmatmul.bf16.gmra.mxu0 %v606
      %v656 = vpop.f32.mrf.mxu0
      %v657 = vadd.f32 0.0, %v656
      %v658 = vpop.f32.mrf.mxu0
      %v659 = vadd.f32 0.0, %v658
      %660 = vmatmul.bf16.gmra.mxu0 %v609
      %v661 = vpop.f32.mrf.mxu0
      %v662 = vadd.f32 0.0, %v661
      %v663 = vpop.f32.mrf.mxu0
      %v664 = vadd.f32 0.0, %v663
      %665 = vdwg.mxu0
      %v668 = vunpack.c.l.b16 %v505
      %v669 = vunpack.c.l.b16 %v506
      %v670 = vpack.c.b16 %v669, %v668
      %v678 = vunpack.c.l.b16 %v366
      %v679 = vunpack.c.l.b16 %v367
      %v680 = vunpack.c.l.b16 %v368
      %v681 = vunpack.c.l.b16 %v369
      %v682 = vunpack.c.l.b16 %v370
      %v683 = vunpack.c.l.b16 %v371
      %v684 = vunpack.c.l.b16 %v372
      %v685 = vpack.c.b16 %v679, %v678
      %v686 = vpack.c.b16 %v681, %v680
      %v687 = vpack.c.b16 %v683, %v682
      %v688 = vpack.c.b16 %v684, %v684
      %v693 = vsel %vm586, %v670, 0
      %v696 = vand.u32 %v688, %v613
      %698 = vmatpush.bf16.msra.mxu0 0
      %699 = vmatpush.bf16.msra.mxu0 0
      %700 = vmatpush.bf16.msra.mxu0 0
      %701 = vmatpush.bf16.msra.mxu0 0
      %702 = vmatpush.bf16.msra.mxu0 %v696
      %703 = vmatpush.bf16.msra.mxu0 %v687
      %704 = vmatpush.bf16.msra.mxu0 %v686
      %705 = vmatpush.bf16.msra.mxu0 %v685
      %706 = vmatmul.bf16.gmra.mxu0 %v693
      %v707 = vpop.f32.mrf.mxu0
      %v708 = vadd.f32 %v627, %v707
      %v709 = vpop.f32.mrf.mxu0
      %v710 = vadd.f32 %v629, %v709
      %711 = vmatmul.bf16.gmra.mxu0 %v588
      %v712 = vpop.f32.mrf.mxu0
      %v713 = vadd.f32 %v632, %v712
      %v714 = vpop.f32.mrf.mxu0
      %v715 = vadd.f32 %v634, %v714
      %716 = vmatmul.bf16.gmra.mxu0 %v591
      %v717 = vpop.f32.mrf.mxu0
      %v718 = vadd.f32 %v637, %v717
      %v719 = vpop.f32.mrf.mxu0
      %v720 = vadd.f32 %v639, %v719
      %721 = vmatmul.bf16.gmra.mxu0 %v594
      %v722 = vpop.f32.mrf.mxu0
      %v723 = vadd.f32 %v642, %v722
      %v724 = vpop.f32.mrf.mxu0
      %v725 = vadd.f32 %v644, %v724
      %726 = vmatmul.bf16.gmra.mxu0 %v597
      %v727 = vpop.f32.mrf.mxu0
      %v728 = vadd.f32 %v647, %v727
      %v729 = vpop.f32.mrf.mxu0
      %v730 = vadd.f32 %v649, %v729
      %731 = vmatmul.bf16.gmra.mxu0 %v600
      %v732 = vpop.f32.mrf.mxu0
      %v733 = vadd.f32 %v652, %v732
      %v734 = vpop.f32.mrf.mxu0
      %v735 = vadd.f32 %v654, %v734
      %736 = vmatmul.bf16.gmra.mxu0 %v603
      %v737 = vpop.f32.mrf.mxu0
      %v738 = vadd.f32 %v657, %v737
      %v739 = vpop.f32.mrf.mxu0
      %v740 = vadd.f32 %v659, %v739
      %741 = vmatmul.bf16.gmra.mxu0 %v606
      %v742 = vpop.f32.mrf.mxu0
      %v743 = vadd.f32 %v662, %v742
      %v744 = vpop.f32.mrf.mxu0
      %v745 = vadd.f32 %v664, %v744
      %746 = vdwg.mxu0
      %v749 = vunpack.c.l.b16 %v523
      %v750 = vunpack.c.l.b16 %v524
      %v751 = vpack.c.b16 %v750, %v749
      %v759 = vunpack.c.l.b16 %v414
      %v760 = vunpack.c.l.b16 %v415
      %v761 = vunpack.c.l.b16 %v416
      %v762 = vunpack.c.l.b16 %v417
      %v763 = vunpack.c.l.b16 %v418
      %v764 = vunpack.c.l.b16 %v419
      %v765 = vunpack.c.l.b16 %v420
      %v766 = vpack.c.b16 %v760, %v759
      %v767 = vpack.c.b16 %v762, %v761
      %v768 = vpack.c.b16 %v764, %v763
      %v769 = vpack.c.b16 %v765, %v765
      %v774 = vsel %vm586, %v751, 0
      %v777 = vand.u32 %v769, %v613
      %779 = vmatpush.bf16.msra.mxu0 0
      %780 = vmatpush.bf16.msra.mxu0 0
      %781 = vmatpush.bf16.msra.mxu0 0
      %782 = vmatpush.bf16.msra.mxu0 0
      %783 = vmatpush.bf16.msra.mxu0 %v777
      %784 = vmatpush.bf16.msra.mxu0 %v768
      %785 = vmatpush.bf16.msra.mxu0 %v767
      %786 = vmatpush.bf16.msra.mxu0 %v766
      %787 = vmatmul.bf16.gmra.mxu0 %v591
      %v788 = vpop.f32.mrf.mxu0
      %v789 = vadd.f32 0.0, %v788
      %v790 = vpop.f32.mrf.mxu0
      %v791 = vadd.f32 0.0, %v790
      %792 = vmatmul.bf16.gmra.mxu0 %v594
      %v793 = vpop.f32.mrf.mxu0
      %v794 = vadd.f32 0.0, %v793
      %v795 = vpop.f32.mrf.mxu0
      %v796 = vadd.f32 0.0, %v795
      %797 = vmatmul.bf16.gmra.mxu0 %v597
      %v798 = vpop.f32.mrf.mxu0
      %v799 = vadd.f32 0.0, %v798
      %v800 = vpop.f32.mrf.mxu0
      %v801 = vadd.f32 0.0, %v800
      %802 = vmatmul.bf16.gmra.mxu0 %v600
      %v803 = vpop.f32.mrf.mxu0
      %v804 = vadd.f32 0.0, %v803
      %v805 = vpop.f32.mrf.mxu0
      %v806 = vadd.f32 0.0, %v805
      %807 = vmatmul.bf16.gmra.mxu0 %v603
      %v808 = vpop.f32.mrf.mxu0
      %v809 = vadd.f32 0.0, %v808
      %v810 = vpop.f32.mrf.mxu0
      %v811 = vadd.f32 0.0, %v810
      %812 = vmatmul.bf16.gmra.mxu0 %v606
      %v813 = vpop.f32.mrf.mxu0
      %v814 = vadd.f32 0.0, %v813
      %v815 = vpop.f32.mrf.mxu0
      %v816 = vadd.f32 0.0, %v815
      %817 = vmatmul.bf16.gmra.mxu0 %v609
      %v818 = vpop.f32.mrf.mxu0
      %v819 = vadd.f32 0.0, %v818
      %v820 = vpop.f32.mrf.mxu0
      %v821 = vadd.f32 0.0, %v820
      %822 = vmatmul.bf16.gmra.mxu0 %v774
      %v823 = vpop.f32.mrf.mxu0
      %v824 = vadd.f32 0.0, %v823
      %v825 = vpop.f32.mrf.mxu0
      %v826 = vadd.f32 0.0, %v825
      %827 = vdwg.mxu0
      %v828 = vadd.f32 %v708, %v789
      %v829 = vadd.f32 %v710, %v791
      %v830 = vadd.f32 %v713, %v794
      %v831 = vadd.f32 %v715, %v796
      %v832 = vadd.f32 %v718, %v799
      %v833 = vadd.f32 %v720, %v801
      %v834 = vadd.f32 %v723, %v804
      %v835 = vadd.f32 %v725, %v806
      %v836 = vadd.f32 %v728, %v809
      %v837 = vadd.f32 %v730, %v811
      %v838 = vadd.f32 %v733, %v814
      %v839 = vadd.f32 %v735, %v816
      %v840 = vadd.f32 %v738, %v819
      %v841 = vadd.f32 %v740, %v821
      %v842 = vadd.f32 %v743, %v824
      %v843 = vadd.f32 %v745, %v826
      %v844 = vld [vmem:[%s274] sm:$0xf]
      %v845 = vld [vmem:[%s274 + $0x4] sm:$0xf]
      %v846 = vld [vmem:[%s274 + $0x8] sm:$0x1]
      %v847 = vld [vmem:[%s274 + $0xc] sm:$0xf]
      %v848 = vld [vmem:[%s274 + $0x10] sm:$0xf]
      %v849 = vld [vmem:[%s274 + $0x14] sm:$0x1]
      %v850 = vld [vmem:[%s274 + $0x18] sm:$0xf]
      %v851 = vld [vmem:[%s274 + $0x1c] sm:$0xf]
      %v852 = vld [vmem:[%s274 + $0x20] sm:$0x1]
      %v853 = vld [vmem:[%s274 + $0x24] sm:$0xf]
      %v854 = vld [vmem:[%s274 + $0x28] sm:$0xf]
      %v855 = vld [vmem:[%s274 + $0x2c] sm:$0x1]
      %v856 = vld [vmem:[%s274 + $0x30] sm:$0xf]
      %v857 = vld [vmem:[%s274 + $0x34] sm:$0xf]
      %v858 = vld [vmem:[%s274 + $0x38] sm:$0x1]
      %v859 = vld [vmem:[%s274 + $0x3c] sm:$0xf]
      %v860 = vld [vmem:[%s274 + $0x40] sm:$0xf]
      %v861 = vld [vmem:[%s274 + $0x44] sm:$0x1]
      %v862 = vld [vmem:[%s274 + $0x48] sm:$0xf]
      %v863 = vld [vmem:[%s274 + $0x4c] sm:$0xf]
      %v864 = vld [vmem:[%s274 + $0x50] sm:$0x1]
      %v865 = vld [vmem:[%s274 + $0x54] sm:$0xf]
      %v866 = vld [vmem:[%s274 + $0x58] sm:$0xf]
      %v867 = vld [vmem:[%s274 + $0x5c] sm:$0x1]
      %v868 = vld [vmem:[%s274 + $0x60] sm:$0xf]
      %v869 = vld [vmem:[%s274 + $0x64] sm:$0xf]
      %v870 = vld [vmem:[%s274 + $0x68] sm:$0x1]
      %v871 = vld [vmem:[%s274 + $0x6c] sm:$0xf]
      %v872 = vld [vmem:[%s274 + $0x70] sm:$0xf]
      %v873 = vld [vmem:[%s274 + $0x74] sm:$0x1]
      %vm874 = vsmask.f32 3328
      %vm875 = vsmask.f32 7440
      %vm876 = vmor %vm874, %vm875
      %v878 = vshrl.u32 %v844, 16
      %v880 = vrot.slane %v878, 4
      %v881 = vshll.u32 %v844, 16
      %v883 = vrot.slane %v881, 5
      %v884 = vor.u32 %v880, %v883
      %v885 = vrot.slane %v884, 4
      %v887 = vshll.u32 %v845, 16
      %v889 = vrot.slane %v887, 5
      %v890 = vsel %vm876, %v885, %v889
      %v891 = vshrl.u32 %v845, 16
      %v893 = vrot.slane %v891, 4
      %v894 = vor.u32 %v893, %v889
      %v895 = vrot.slane %v894, 4
      %v897 = vshll.u32 %v846, 16
      %v899 = vrot.slane %v897, 5
      %v900 = vsel %vm876, %v895, %v899
      %v902 = vshrl.u32 %v847, 16
      %v904 = vrot.slane %v902, 4
      %v905 = vshll.u32 %v847, 16
      %v907 = vrot.slane %v905, 5
      %v908 = vor.u32 %v904, %v907
      %v909 = vrot.slane %v908, 4
      %v911 = vshll.u32 %v848, 16
      %v913 = vrot.slane %v911, 5
      %v914 = vsel %vm876, %v909, %v913
      %v915 = vshrl.u32 %v848, 16
      %v917 = vrot.slane %v915, 4
      %v918 = vor.u32 %v917, %v913
      %v919 = vrot.slane %v918, 4
      %v921 = vshll.u32 %v849, 16
      %v923 = vrot.slane %v921, 5
      %v924 = vsel %vm876, %v919, %v923
      %v926 = vshrl.u32 %v850, 16
      %v928 = vrot.slane %v926, 4
      %v929 = vshll.u32 %v850, 16
      %v931 = vrot.slane %v929, 5
      %v932 = vor.u32 %v928, %v931
      %v933 = vrot.slane %v932, 4
      %v935 = vshll.u32 %v851, 16
      %v937 = vrot.slane %v935, 5
      %v938 = vsel %vm876, %v933, %v937
      %v939 = vshrl.u32 %v851, 16
      %v941 = vrot.slane %v939, 4
      %v942 = vor.u32 %v941, %v937
      %v943 = vrot.slane %v942, 4
      %v945 = vshll.u32 %v852, 16
      %v947 = vrot.slane %v945, 5
      %v948 = vsel %vm876, %v943, %v947
      %v950 = vshrl.u32 %v853, 16
      %v952 = vrot.slane %v950, 4
      %v953 = vshll.u32 %v853, 16
      %v955 = vrot.slane %v953, 5
      %v956 = vor.u32 %v952, %v955
      %v957 = vrot.slane %v956, 4
      %v959 = vshll.u32 %v854, 16
      %v961 = vrot.slane %v959, 5
      %v962 = vsel %vm876, %v957, %v961
      %v963 = vshrl.u32 %v854, 16
      %v965 = vrot.slane %v963, 4
      %v966 = vor.u32 %v965, %v961
      %v967 = vrot.slane %v966, 4
      %v969 = vshll.u32 %v855, 16
      %v971 = vrot.slane %v969, 5
      %v972 = vsel %vm876, %v967, %v971
      %v974 = vshrl.u32 %v856, 16
      %v976 = vrot.slane %v974, 4
      %v977 = vshll.u32 %v856, 16
      %v979 = vrot.slane %v977, 5
      %v980 = vor.u32 %v976, %v979
      %v981 = vrot.slane %v980, 4
      %v983 = vshll.u32 %v857, 16
      %v985 = vrot.slane %v983, 5
      %v986 = vsel %vm876, %v981, %v985
      %v987 = vshrl.u32 %v857, 16
      %v989 = vrot.slane %v987, 4
      %v990 = vor.u32 %v989, %v985
      %v991 = vrot.slane %v990, 4
      %v993 = vshll.u32 %v858, 16
      %v995 = vrot.slane %v993, 5
      %v996 = vsel %vm876, %v991, %v995
      %v998 = vshrl.u32 %v859, 16
      %v1000 = vrot.slane %v998, 4
      %v1001 = vshll.u32 %v859, 16
      %v1003 = vrot.slane %v1001, 5
      %v1004 = vor.u32 %v1000, %v1003
      %v1005 = vrot.slane %v1004, 4
      %v1007 = vshll.u32 %v860, 16
      %v1009 = vrot.slane %v1007, 5
      %v1010 = vsel %vm876, %v1005, %v1009
      %v1011 = vshrl.u32 %v860, 16
      %v1013 = vrot.slane %v1011, 4
      %v1014 = vor.u32 %v1013, %v1009
      %v1015 = vrot.slane %v1014, 4
      %v1017 = vshll.u32 %v861, 16
      %v1019 = vrot.slane %v1017, 5
      %v1020 = vsel %vm876, %v1015, %v1019
      %v1022 = vshrl.u32 %v862, 16
      %v1024 = vrot.slane %v1022, 4
      %v1025 = vshll.u32 %v862, 16
      %v1027 = vrot.slane %v1025, 5
      %v1028 = vor.u32 %v1024, %v1027
      %v1029 = vrot.slane %v1028, 4
      %v1031 = vshll.u32 %v863, 16
      %v1033 = vrot.slane %v1031, 5
      %v1034 = vsel %vm876, %v1029, %v1033
      %v1035 = vshrl.u32 %v863, 16
      %v1037 = vrot.slane %v1035, 4
      %v1038 = vor.u32 %v1037, %v1033
      %v1039 = vrot.slane %v1038, 4
      %v1041 = vshll.u32 %v864, 16
      %v1043 = vrot.slane %v1041, 5
      %v1044 = vsel %vm876, %v1039, %v1043
      %v1046 = vshrl.u32 %v865, 16
      %v1048 = vrot.slane %v1046, 4
      %v1049 = vshll.u32 %v865, 16
      %v1051 = vrot.slane %v1049, 5
      %v1052 = vor.u32 %v1048, %v1051
      %v1053 = vrot.slane %v1052, 4
      %v1055 = vshll.u32 %v866, 16
      %v1057 = vrot.slane %v1055, 5
      %v1058 = vsel %vm876, %v1053, %v1057
      %v1059 = vshrl.u32 %v866, 16
      %v1061 = vrot.slane %v1059, 4
      %v1062 = vor.u32 %v1061, %v1057
      %v1063 = vrot.slane %v1062, 4
      %v1065 = vshll.u32 %v867, 16
      %v1067 = vrot.slane %v1065, 5
      %v1068 = vsel %vm876, %v1063, %v1067
      %v1069 = vunpack.c.l.b16 %v890
      %v1070 = vunpack.c.l.b16 %v900
      %v1071 = vunpack.c.l.b16 %v914
      %v1072 = vunpack.c.l.b16 %v924
      %v1073 = vunpack.c.l.b16 %v938
      %v1074 = vunpack.c.l.b16 %v948
      %v1075 = vunpack.c.l.b16 %v962
      %v1076 = vunpack.c.l.b16 %v972
      %v1077 = vunpack.c.l.b16 %v986
      %v1078 = vunpack.c.l.b16 %v996
      %v1079 = vunpack.c.l.b16 %v1010
      %v1080 = vunpack.c.l.b16 %v1020
      %v1081 = vunpack.c.l.b16 %v1034
      %v1082 = vunpack.c.l.b16 %v1044
      %v1083 = vunpack.c.l.b16 %v1058
      %v1084 = vunpack.c.l.b16 %v1068
      %v1085 = vpack.c.b16 %v1070, %v1069
      %v1086 = vpack.c.b16 %v1072, %v1071
      %v1087 = vpack.c.b16 %v1074, %v1073
      %v1088 = vpack.c.b16 %v1076, %v1075
      %v1089 = vpack.c.b16 %v1078, %v1077
      %v1090 = vpack.c.b16 %v1080, %v1079
      %v1091 = vpack.c.b16 %v1082, %v1081
      %v1092 = vpack.c.b16 %v1084, %v1083
      %v1100 = vunpack.c.l.b16 %v374
      %v1101 = vunpack.c.l.b16 %v375
      %v1102 = vunpack.c.l.b16 %v376
      %v1103 = vunpack.c.l.b16 %v377
      %v1104 = vunpack.c.l.b16 %v378
      %v1105 = vunpack.c.l.b16 %v379
      %v1106 = vunpack.c.l.b16 %v380
      %v1107 = vpack.c.b16 %v1101, %v1100
      %v1108 = vpack.c.b16 %v1103, %v1102
      %v1109 = vpack.c.b16 %v1105, %v1104
      %v1110 = vpack.c.b16 %v1106, %v1106
      %v1115 = vsel %vm586, %v1085, 0
      %v1118 = vsel %vm586, %v1086, 0
      %v1121 = vsel %vm586, %v1087, 0
      %v1124 = vsel %vm586, %v1088, 0
      %v1127 = vsel %vm586, %v1089, 0
      %v1130 = vsel %vm586, %v1090, 0
      %v1133 = vsel %vm586, %v1091, 0
      %v1136 = vsel %vm586, %v1092, 0
      %v1139 = vand.u32 %v1110, %v613
      %1141 = vmatpush.bf16.msra.mxu0 0
      %1142 = vmatpush.bf16.msra.mxu0 0
      %1143 = vmatpush.bf16.msra.mxu0 0
      %1144 = vmatpush.bf16.msra.mxu0 0
      %1145 = vmatpush.bf16.msra.mxu0 %v1139
      %1146 = vmatpush.bf16.msra.mxu0 %v1109
      %1147 = vmatpush.bf16.msra.mxu0 %v1108
      %1148 = vmatpush.bf16.msra.mxu0 %v1107
      %1149 = vmatmul.bf16.gmra.mxu0 %v1115
      %v1150 = vpop.f32.mrf.mxu0
      %v1151 = vadd.f32 0.0, %v1150
      %v1152 = vpop.f32.mrf.mxu0
      %v1153 = vadd.f32 0.0, %v1152
      %1154 = vmatmul.bf16.gmra.mxu0 %v1118
      %v1155 = vpop.f32.mrf.mxu0
      %v1156 = vadd.f32 0.0, %v1155
      %v1157 = vpop.f32.mrf.mxu0
      %v1158 = vadd.f32 0.0, %v1157
      %1159 = vmatmul.bf16.gmra.mxu0 %v1121
      %v1160 = vpop.f32.mrf.mxu0
      %v1161 = vadd.f32 0.0, %v1160
      %v1162 = vpop.f32.mrf.mxu0
      %v1163 = vadd.f32 0.0, %v1162
      %1164 = vmatmul.bf16.gmra.mxu0 %v1124
      %v1165 = vpop.f32.mrf.mxu0
      %v1166 = vadd.f32 0.0, %v1165
      %v1167 = vpop.f32.mrf.mxu0
      %v1168 = vadd.f32 0.0, %v1167
      %1169 = vmatmul.bf16.gmra.mxu0 %v1127
      %v1170 = vpop.f32.mrf.mxu0
      %v1171 = vadd.f32 0.0, %v1170
      %v1172 = vpop.f32.mrf.mxu0
      %v1173 = vadd.f32 0.0, %v1172
      %1174 = vmatmul.bf16.gmra.mxu0 %v1130
      %v1175 = vpop.f32.mrf.mxu0
      %v1176 = vadd.f32 0.0, %v1175
      %v1177 = vpop.f32.mrf.mxu0
      %v1178 = vadd.f32 0.0, %v1177
      %1179 = vmatmul.bf16.gmra.mxu0 %v1133
      %v1180 = vpop.f32.mrf.mxu0
      %v1181 = vadd.f32 0.0, %v1180
      %v1182 = vpop.f32.mrf.mxu0
      %v1183 = vadd.f32 0.0, %v1182
      %1184 = vmatmul.bf16.gmra.mxu0 %v1136
      %v1185 = vpop.f32.mrf.mxu0
      %v1186 = vadd.f32 0.0, %v1185
      %v1187 = vpop.f32.mrf.mxu0
      %v1188 = vadd.f32 0.0, %v1187
      %1189 = vdwg.mxu0
      %v1190 = vadd.f32 %v828, %v1151
      %v1191 = vadd.f32 %v829, %v1153
      %v1192 = vadd.f32 %v830, %v1156
      %v1193 = vadd.f32 %v831, %v1158
      %v1194 = vadd.f32 %v832, %v1161
      %v1195 = vadd.f32 %v833, %v1163
      %v1196 = vadd.f32 %v834, %v1166
      %v1197 = vadd.f32 %v835, %v1168
      %v1198 = vadd.f32 %v836, %v1171
      %v1199 = vadd.f32 %v837, %v1173
      %v1200 = vadd.f32 %v838, %v1176
      %v1201 = vadd.f32 %v839, %v1178
      %v1202 = vadd.f32 %v840, %v1181
      %v1203 = vadd.f32 %v841, %v1183
      %v1204 = vadd.f32 %v842, %v1186
      %v1205 = vadd.f32 %v843, %v1188
      %v1207 = vshrl.u32 %v868, 16
      %v1209 = vrot.slane %v1207, 4
      %v1210 = vshll.u32 %v868, 16
      %v1212 = vrot.slane %v1210, 5
      %v1213 = vor.u32 %v1209, %v1212
      %v1214 = vrot.slane %v1213, 4
      %v1216 = vshll.u32 %v869, 16
      %v1218 = vrot.slane %v1216, 5
      %v1219 = vsel %vm876, %v1214, %v1218
      %v1220 = vshrl.u32 %v869, 16
      %v1222 = vrot.slane %v1220, 4
      %v1223 = vor.u32 %v1222, %v1218
      %v1224 = vrot.slane %v1223, 4
      %v1226 = vshll.u32 %v870, 16
      %v1228 = vrot.slane %v1226, 5
      %v1229 = vsel %vm876, %v1224, %v1228
      %v1230 = vunpack.c.l.b16 %v1219
      %v1231 = vunpack.c.l.b16 %v1229
      %v1232 = vpack.c.b16 %v1231, %v1230
      %v1240 = vunpack.c.l.b16 %v398
      %v1241 = vunpack.c.l.b16 %v399
      %v1242 = vunpack.c.l.b16 %v400
      %v1243 = vunpack.c.l.b16 %v401
      %v1244 = vunpack.c.l.b16 %v402
      %v1245 = vunpack.c.l.b16 %v403
      %v1246 = vunpack.c.l.b16 %v404
      %v1247 = vpack.c.b16 %v1241, %v1240
      %v1248 = vpack.c.b16 %v1243, %v1242
      %v1249 = vpack.c.b16 %v1245, %v1244
      %v1250 = vpack.c.b16 %v1246, %v1246
      %v1255 = vsel %vm586, %v1232, 0
      %v1258 = vand.u32 %v1250, %v613
      %1260 = vmatpush.bf16.msra.mxu0 0
      %1261 = vmatpush.bf16.msra.mxu0 0
      %1262 = vmatpush.bf16.msra.mxu0 0
      %1263 = vmatpush.bf16.msra.mxu0 0
      %1264 = vmatpush.bf16.msra.mxu0 %v1258
      %1265 = vmatpush.bf16.msra.mxu0 %v1249
      %1266 = vmatpush.bf16.msra.mxu0 %v1248
      %1267 = vmatpush.bf16.msra.mxu0 %v1247
      %1268 = vmatmul.bf16.gmra.mxu0 %v1118
      %v1269 = vpop.f32.mrf.mxu0
      %v1270 = vadd.f32 0.0, %v1269
      %v1271 = vpop.f32.mrf.mxu0
      %v1272 = vadd.f32 0.0, %v1271
      %1273 = vmatmul.bf16.gmra.mxu0 %v1121
      %v1274 = vpop.f32.mrf.mxu0
      %v1275 = vadd.f32 0.0, %v1274
      %v1276 = vpop.f32.mrf.mxu0
      %v1277 = vadd.f32 0.0, %v1276
      %1278 = vmatmul.bf16.gmra.mxu0 %v1124
      %v1279 = vpop.f32.mrf.mxu0
      %v1280 = vadd.f32 0.0, %v1279
      %v1281 = vpop.f32.mrf.mxu0
      %v1282 = vadd.f32 0.0, %v1281
      %1283 = vmatmul.bf16.gmra.mxu0 %v1127
      %v1284 = vpop.f32.mrf.mxu0
      %v1285 = vadd.f32 0.0, %v1284
      %v1286 = vpop.f32.mrf.mxu0
      %v1287 = vadd.f32 0.0, %v1286
      %1288 = vmatmul.bf16.gmra.mxu0 %v1130
      %v1289 = vpop.f32.mrf.mxu0
      %v1290 = vadd.f32 0.0, %v1289
      %v1291 = vpop.f32.mrf.mxu0
      %v1292 = vadd.f32 0.0, %v1291
      %1293 = vmatmul.bf16.gmra.mxu0 %v1133
      %v1294 = vpop.f32.mrf.mxu0
      %v1295 = vadd.f32 0.0, %v1294
      %v1296 = vpop.f32.mrf.mxu0
      %v1297 = vadd.f32 0.0, %v1296
      %1298 = vmatmul.bf16.gmra.mxu0 %v1136
      %v1299 = vpop.f32.mrf.mxu0
      %v1300 = vadd.f32 0.0, %v1299
      %v1301 = vpop.f32.mrf.mxu0
      %v1302 = vadd.f32 0.0, %v1301
      %1303 = vmatmul.bf16.gmra.mxu0 %v1255
      %v1304 = vpop.f32.mrf.mxu0
      %v1305 = vadd.f32 0.0, %v1304
      %v1306 = vpop.f32.mrf.mxu0
      %v1307 = vadd.f32 0.0, %v1306
      %1308 = vdwg.mxu0
      %v1309 = vadd.f32 %v1190, %v1270
      %v1310 = vadd.f32 %v1191, %v1272
      %v1311 = vadd.f32 %v1192, %v1275
      %v1312 = vadd.f32 %v1193, %v1277
      %v1313 = vadd.f32 %v1194, %v1280
      %v1314 = vadd.f32 %v1195, %v1282
      %v1315 = vadd.f32 %v1196, %v1285
      %v1316 = vadd.f32 %v1197, %v1287
      %v1317 = vadd.f32 %v1198, %v1290
      %v1318 = vadd.f32 %v1199, %v1292
      %v1319 = vadd.f32 %v1200, %v1295
      %v1320 = vadd.f32 %v1201, %v1297
      %v1321 = vadd.f32 %v1202, %v1300
      %v1322 = vadd.f32 %v1203, %v1302
      %v1323 = vadd.f32 %v1204, %v1305
      %v1324 = vadd.f32 %v1205, %v1307
      %v1326 = vshrl.u32 %v871, 16
      %v1328 = vrot.slane %v1326, 4
      %v1329 = vshll.u32 %v871, 16
      %v1331 = vrot.slane %v1329, 5
      %v1332 = vor.u32 %v1328, %v1331
      %v1333 = vrot.slane %v1332, 4
      %v1335 = vshll.u32 %v872, 16
      %v1337 = vrot.slane %v1335, 5
      %v1338 = vsel %vm876, %v1333, %v1337
      %v1339 = vshrl.u32 %v872, 16
      %v1341 = vrot.slane %v1339, 4
      %v1342 = vor.u32 %v1341, %v1337
      %v1343 = vrot.slane %v1342, 4
      %v1345 = vshll.u32 %v873, 16
      %v1347 = vrot.slane %v1345, 5
      %v1348 = vsel %vm876, %v1343, %v1347
      %v1349 = vunpack.c.l.b16 %v1338
      %v1350 = vunpack.c.l.b16 %v1348
      %v1351 = vpack.c.b16 %v1350, %v1349
      %v1359 = vunpack.c.l.b16 %v422
      %v1360 = vunpack.c.l.b16 %v423
      %v1361 = vunpack.c.l.b16 %v424
      %v1362 = vunpack.c.l.b16 %v425
      %v1363 = vunpack.c.l.b16 %v426
      %v1364 = vunpack.c.l.b16 %v427
      %v1365 = vunpack.c.l.b16 %v428
      %v1366 = vpack.c.b16 %v1360, %v1359
      %v1367 = vpack.c.b16 %v1362, %v1361
      %v1368 = vpack.c.b16 %v1364, %v1363
      %v1369 = vpack.c.b16 %v1365, %v1365
      %v1374 = vsel %vm586, %v1351, 0
      %v1377 = vand.u32 %v1369, %v613
      %1379 = vmatpush.bf16.msra.mxu0 0
      %1380 = vmatpush.bf16.msra.mxu0 0
      %1381 = vmatpush.bf16.msra.mxu0 0
      %1382 = vmatpush.bf16.msra.mxu0 0
      %1383 = vmatpush.bf16.msra.mxu0 %v1377
      %1384 = vmatpush.bf16.msra.mxu0 %v1368
      %1385 = vmatpush.bf16.msra.mxu0 %v1367
      %1386 = vmatpush.bf16.msra.mxu0 %v1366
      %1387 = vmatmul.bf16.gmra.mxu0 %v1121
      %v1388 = vpop.f32.mrf.mxu0
      %v1389 = vadd.f32 0.0, %v1388
      %v1390 = vpop.f32.mrf.mxu0
      %v1391 = vadd.f32 0.0, %v1390
      %1392 = vmatmul.bf16.gmra.mxu0 %v1124
      %v1393 = vpop.f32.mrf.mxu0
      %v1394 = vadd.f32 0.0, %v1393
      %v1395 = vpop.f32.mrf.mxu0
      %v1396 = vadd.f32 0.0, %v1395
      %1397 = vmatmul.bf16.gmra.mxu0 %v1127
      %v1398 = vpop.f32.mrf.mxu0
      %v1399 = vadd.f32 0.0, %v1398
      %v1400 = vpop.f32.mrf.mxu0
      %v1401 = vadd.f32 0.0, %v1400
      %1402 = vmatmul.bf16.gmra.mxu0 %v1130
      %v1403 = vpop.f32.mrf.mxu0
      %v1404 = vadd.f32 0.0, %v1403
      %v1405 = vpop.f32.mrf.mxu0
      %v1406 = vadd.f32 0.0, %v1405
      %1407 = vmatmul.bf16.gmra.mxu0 %v1133
      %v1408 = vpop.f32.mrf.mxu0
      %v1409 = vadd.f32 0.0, %v1408
      %v1410 = vpop.f32.mrf.mxu0
      %v1411 = vadd.f32 0.0, %v1410
      %1412 = vmatmul.bf16.gmra.mxu0 %v1136
      %v1413 = vpop.f32.mrf.mxu0
      %v1414 = vadd.f32 0.0, %v1413
      %v1415 = vpop.f32.mrf.mxu0
      %v1416 = vadd.f32 0.0, %v1415
      %1417 = vmatmul.bf16.gmra.mxu0 %v1255
      %v1418 = vpop.f32.mrf.mxu0
      %v1419 = vadd.f32 0.0, %v1418
      %v1420 = vpop.f32.mrf.mxu0
      %v1421 = vadd.f32 0.0, %v1420
      %1422 = vmatmul.bf16.gmra.mxu0 %v1374
      %v1423 = vpop.f32.mrf.mxu0
      %v1424 = vadd.f32 0.0, %v1423
      %v1425 = vpop.f32.mrf.mxu0
      %v1426 = vadd.f32 0.0, %v1425
      %1427 = vdwg.mxu0
      %v1428 = vadd.f32 %v1309, %v1389
      %v1429 = vadd.f32 %v1310, %v1391
      %v1430 = vadd.f32 %v1311, %v1394
      %v1431 = vadd.f32 %v1312, %v1396
      %v1432 = vadd.f32 %v1313, %v1399
      %v1433 = vadd.f32 %v1314, %v1401
      %v1434 = vadd.f32 %v1315, %v1404
      %v1435 = vadd.f32 %v1316, %v1406
      %v1436 = vadd.f32 %v1317, %v1409
      %v1437 = vadd.f32 %v1318, %v1411
      %v1438 = vadd.f32 %v1319, %v1414
      %v1439 = vadd.f32 %v1320, %v1416
      %v1440 = vadd.f32 %v1321, %v1419
      %v1441 = vadd.f32 %v1322, %v1421
      %v1442 = vadd.f32 %v1323, %v1424
      %v1443 = vadd.f32 %v1324, %v1426
      %v1444 = vld [vmem:[%s274] sm:$0xe]
      %v1445 = vld [vmem:[%s274 + $0xc] sm:$0xe]
      %v1446 = vld [vmem:[%s274 + $0x18] sm:$0xe]
      %v1447 = vld [vmem:[%s274 + $0x24] sm:$0xe]
      %v1448 = vld [vmem:[%s274 + $0x30] sm:$0xe]
      %v1449 = vld [vmem:[%s274 + $0x3c] sm:$0xe]
      %v1450 = vld [vmem:[%s274 + $0x48] sm:$0xe]
      %v1451 = vld [vmem:[%s274 + $0x54] sm:$0xe]
      %v1452 = vld [vmem:[%s274 + $0x60] sm:$0xe]
      %v1453 = vld [vmem:[%s274 + $0x6c] sm:$0xe]
      %vm1478 = vcmask 1042432
      %vm1479 = vcmask 1046532
      %vm1480 = vmor %vm1478, %vm1479
      %v1481 = vrot.slane %v1444, 5
      %v1482 = vrot.slane %v1481, 4
      %v1483 = vrot.slane %v845, 5
      %v1484 = vsel %vm1480, %v1482, %v1483
      %v1485 = vrot.slane %v1483, 4
      %v1486 = vrot.slane %v846, 5
      %v1487 = vsel %vm1480, %v1485, %v1486
      %v1488 = vrot.slane %v1445, 5
      %v1489 = vrot.slane %v1488, 4
      %v1490 = vrot.slane %v848, 5
      %v1491 = vsel %vm1480, %v1489, %v1490
      %v1492 = vrot.slane %v1490, 4
      %v1493 = vrot.slane %v849, 5
      %v1494 = vsel %vm1480, %v1492, %v1493
      %v1495 = vrot.slane %v1446, 5
      %v1496 = vrot.slane %v1495, 4
      %v1497 = vrot.slane %v851, 5
      %v1498 = vsel %vm1480, %v1496, %v1497
      %v1499 = vrot.slane %v1497, 4
      %v1500 = vrot.slane %v852, 5
      %v1501 = vsel %vm1480, %v1499, %v1500
      %v1502 = vrot.slane %v1447, 5
      %v1503 = vrot.slane %v1502, 4
      %v1504 = vrot.slane %v854, 5
      %v1505 = vsel %vm1480, %v1503, %v1504
      %v1506 = vrot.slane %v1504, 4
      %v1507 = vrot.slane %v855, 5
      %v1508 = vsel %vm1480, %v1506, %v1507
      %v1509 = vrot.slane %v1448, 5
      %v1510 = vrot.slane %v1509, 4
      %v1511 = vrot.slane %v857, 5
      %v1512 = vsel %vm1480, %v1510, %v1511
      %v1513 = vrot.slane %v1511, 4
      %v1514 = vrot.slane %v858, 5
      %v1515 = vsel %vm1480, %v1513, %v1514
      %v1516 = vrot.slane %v1449, 5
      %v1517 = vrot.slane %v1516, 4
      %v1518 = vrot.slane %v860, 5
      %v1519 = vsel %vm1480, %v1517, %v1518
      %v1520 = vrot.slane %v1518, 4
      %v1521 = vrot.slane %v861, 5
      %v1522 = vsel %vm1480, %v1520, %v1521
      %v1523 = vrot.slane %v1450, 5
      %v1524 = vrot.slane %v1523, 4
      %v1525 = vrot.slane %v863, 5
      %v1526 = vsel %vm1480, %v1524, %v1525
      %v1527 = vrot.slane %v1525, 4
      %v1528 = vrot.slane %v864, 5
      %v1529 = vsel %vm1480, %v1527, %v1528
      %v1530 = vrot.slane %v1451, 5
      %v1531 = vrot.slane %v1530, 4
      %v1532 = vrot.slane %v866, 5
      %v1533 = vsel %vm1480, %v1531, %v1532
      %v1534 = vrot.slane %v1532, 4
      %v1535 = vrot.slane %v867, 5
      %v1536 = vsel %vm1480, %v1534, %v1535
      %v1537 = vunpack.c.l.b16 %v1484
      %v1538 = vunpack.c.l.b16 %v1487
      %v1539 = vunpack.c.l.b16 %v1491
      %v1540 = vunpack.c.l.b16 %v1494
      %v1541 = vunpack.c.l.b16 %v1498
      %v1542 = vunpack.c.l.b16 %v1501
      %v1543 = vunpack.c.l.b16 %v1505
      %v1544 = vunpack.c.l.b16 %v1508
      %v1545 = vunpack.c.l.b16 %v1512
      %v1546 = vunpack.c.l.b16 %v1515
      %v1547 = vunpack.c.l.b16 %v1519
      %v1548 = vunpack.c.l.b16 %v1522
      %v1549 = vunpack.c.l.b16 %v1526
      %v1550 = vunpack.c.l.b16 %v1529
      %v1551 = vunpack.c.l.b16 %v1533
      %v1552 = vunpack.c.l.b16 %v1536
      %v1553 = vpack.c.b16 %v1538, %v1537
      %v1554 = vpack.c.b16 %v1540, %v1539
      %v1555 = vpack.c.b16 %v1542, %v1541
      %v1556 = vpack.c.b16 %v1544, %v1543
      %v1557 = vpack.c.b16 %v1546, %v1545
      %v1558 = vpack.c.b16 %v1548, %v1547
      %v1559 = vpack.c.b16 %v1550, %v1549
      %v1560 = vpack.c.b16 %v1552, %v1551
      %v1568 = vunpack.c.l.b16 %v382
      %v1569 = vunpack.c.l.b16 %v383
      %v1570 = vunpack.c.l.b16 %v384
      %v1571 = vunpack.c.l.b16 %v385
      %v1572 = vunpack.c.l.b16 %v386
      %v1573 = vunpack.c.l.b16 %v387
      %v1574 = vunpack.c.l.b16 %v388
      %v1575 = vpack.c.b16 %v1569, %v1568
      %v1576 = vpack.c.b16 %v1571, %v1570
      %v1577 = vpack.c.b16 %v1573, %v1572
      %v1578 = vpack.c.b16 %v1574, %v1574
      %v1583 = vsel %vm586, %v1553, 0
      %v1586 = vsel %vm586, %v1554, 0
      %v1589 = vsel %vm586, %v1555, 0
      %v1592 = vsel %vm586, %v1556, 0
      %v1595 = vsel %vm586, %v1557, 0
      %v1598 = vsel %vm586, %v1558, 0
      %v1601 = vsel %vm586, %v1559, 0
      %v1604 = vsel %vm586, %v1560, 0
      %v1607 = vand.u32 %v1578, %v613
      %1609 = vmatpush.bf16.msra.mxu0 0
      %1610 = vmatpush.bf16.msra.mxu0 0
      %1611 = vmatpush.bf16.msra.mxu0 0
      %1612 = vmatpush.bf16.msra.mxu0 0
      %1613 = vmatpush.bf16.msra.mxu0 %v1607
      %1614 = vmatpush.bf16.msra.mxu0 %v1577
      %1615 = vmatpush.bf16.msra.mxu0 %v1576
      %1616 = vmatpush.bf16.msra.mxu0 %v1575
      %1617 = vmatmul.bf16.gmra.mxu0 %v1583
      %v1618 = vpop.f32.mrf.mxu0
      %v1619 = vadd.f32 0.0, %v1618
      %v1620 = vpop.f32.mrf.mxu0
      %v1621 = vadd.f32 0.0, %v1620
      %1622 = vmatmul.bf16.gmra.mxu0 %v1586
      %v1623 = vpop.f32.mrf.mxu0
      %v1624 = vadd.f32 0.0, %v1623
      %v1625 = vpop.f32.mrf.mxu0
      %v1626 = vadd.f32 0.0, %v1625
      %1627 = vmatmul.bf16.gmra.mxu0 %v1589
      %v1628 = vpop.f32.mrf.mxu0
      %v1629 = vadd.f32 0.0, %v1628
      %v1630 = vpop.f32.mrf.mxu0
      %v1631 = vadd.f32 0.0, %v1630
      %1632 = vmatmul.bf16.gmra.mxu0 %v1592
      %v1633 = vpop.f32.mrf.mxu0
      %v1634 = vadd.f32 0.0, %v1633
      %v1635 = vpop.f32.mrf.mxu0
      %v1636 = vadd.f32 0.0, %v1635
      %1637 = vmatmul.bf16.gmra.mxu0 %v1595
      %v1638 = vpop.f32.mrf.mxu0
      %v1639 = vadd.f32 0.0, %v1638
      %v1640 = vpop.f32.mrf.mxu0
      %v1641 = vadd.f32 0.0, %v1640
      %1642 = vmatmul.bf16.gmra.mxu0 %v1598
      %v1643 = vpop.f32.mrf.mxu0
      %v1644 = vadd.f32 0.0, %v1643
      %v1645 = vpop.f32.mrf.mxu0
      %v1646 = vadd.f32 0.0, %v1645
      %1647 = vmatmul.bf16.gmra.mxu0 %v1601
      %v1648 = vpop.f32.mrf.mxu0
      %v1649 = vadd.f32 0.0, %v1648
      %v1650 = vpop.f32.mrf.mxu0
      %v1651 = vadd.f32 0.0, %v1650
      %1652 = vmatmul.bf16.gmra.mxu0 %v1604
      %v1653 = vpop.f32.mrf.mxu0
      %v1654 = vadd.f32 0.0, %v1653
      %v1655 = vpop.f32.mrf.mxu0
      %v1656 = vadd.f32 0.0, %v1655
      %1657 = vdwg.mxu0
      %v1658 = vadd.f32 %v1428, %v1619
      %v1659 = vadd.f32 %v1429, %v1621
      %v1660 = vadd.f32 %v1430, %v1624
      %v1661 = vadd.f32 %v1431, %v1626
      %v1662 = vadd.f32 %v1432, %v1629
      %v1663 = vadd.f32 %v1433, %v1631
      %v1664 = vadd.f32 %v1434, %v1634
      %v1665 = vadd.f32 %v1435, %v1636
      %v1666 = vadd.f32 %v1436, %v1639
      %v1667 = vadd.f32 %v1437, %v1641
      %v1668 = vadd.f32 %v1438, %v1644
      %v1669 = vadd.f32 %v1439, %v1646
      %v1670 = vadd.f32 %v1440, %v1649
      %v1671 = vadd.f32 %v1441, %v1651
      %v1672 = vadd.f32 %v1442, %v1654
      %v1673 = vadd.f32 %v1443, %v1656
      %v1677 = vrot.slane %v1452, 5
      %v1678 = vrot.slane %v1677, 4
      %v1679 = vrot.slane %v869, 5
      %v1680 = vsel %vm1480, %v1678, %v1679
      %v1681 = vrot.slane %v1679, 4
      %v1682 = vrot.slane %v870, 5
      %v1683 = vsel %vm1480, %v1681, %v1682
      %v1684 = vunpack.c.l.b16 %v1680
      %v1685 = vunpack.c.l.b16 %v1683
      %v1686 = vpack.c.b16 %v1685, %v1684
      %v1694 = vunpack.c.l.b16 %v406
      %v1695 = vunpack.c.l.b16 %v407
      %v1696 = vunpack.c.l.b16 %v408
      %v1697 = vunpack.c.l.b16 %v409
      %v1698 = vunpack.c.l.b16 %v410
      %v1699 = vunpack.c.l.b16 %v411
      %v1700 = vunpack.c.l.b16 %v412
      %v1701 = vpack.c.b16 %v1695, %v1694
      %v1702 = vpack.c.b16 %v1697, %v1696
      %v1703 = vpack.c.b16 %v1699, %v1698
      %v1704 = vpack.c.b16 %v1700, %v1700
      %v1709 = vsel %vm586, %v1686, 0
      %v1712 = vand.u32 %v1704, %v613
      %1714 = vmatpush.bf16.msra.mxu0 0
      %1715 = vmatpush.bf16.msra.mxu0 0
      %1716 = vmatpush.bf16.msra.mxu0 0
      %1717 = vmatpush.bf16.msra.mxu0 0
      %1718 = vmatpush.bf16.msra.mxu0 %v1712
      %1719 = vmatpush.bf16.msra.mxu0 %v1703
      %1720 = vmatpush.bf16.msra.mxu0 %v1702
      %1721 = vmatpush.bf16.msra.mxu0 %v1701
      %1722 = vmatmul.bf16.gmra.mxu0 %v1586
      %v1723 = vpop.f32.mrf.mxu0
      %v1724 = vadd.f32 0.0, %v1723
      %v1725 = vpop.f32.mrf.mxu0
      %v1726 = vadd.f32 0.0, %v1725
      %1727 = vmatmul.bf16.gmra.mxu0 %v1589
      %v1728 = vpop.f32.mrf.mxu0
      %v1729 = vadd.f32 0.0, %v1728
      %v1730 = vpop.f32.mrf.mxu0
      %v1731 = vadd.f32 0.0, %v1730
      %1732 = vmatmul.bf16.gmra.mxu0 %v1592
      %v1733 = vpop.f32.mrf.mxu0
      %v1734 = vadd.f32 0.0, %v1733
      %v1735 = vpop.f32.mrf.mxu0
      %v1736 = vadd.f32 0.0, %v1735
      %1737 = vmatmul.bf16.gmra.mxu0 %v1595
      %v1738 = vpop.f32.mrf.mxu0
      %v1739 = vadd.f32 0.0, %v1738
      %v1740 = vpop.f32.mrf.mxu0
      %v1741 = vadd.f32 0.0, %v1740
      %1742 = vmatmul.bf16.gmra.mxu0 %v1598
      %v1743 = vpop.f32.mrf.mxu0
      %v1744 = vadd.f32 0.0, %v1743
      %v1745 = vpop.f32.mrf.mxu0
      %v1746 = vadd.f32 0.0, %v1745
      %1747 = vmatmul.bf16.gmra.mxu0 %v1601
      %v1748 = vpop.f32.mrf.mxu0
      %v1749 = vadd.f32 0.0, %v1748
      %v1750 = vpop.f32.mrf.mxu0
      %v1751 = vadd.f32 0.0, %v1750
      %1752 = vmatmul.bf16.gmra.mxu0 %v1604
      %v1753 = vpop.f32.mrf.mxu0
      %v1754 = vadd.f32 0.0, %v1753
      %v1755 = vpop.f32.mrf.mxu0
      %v1756 = vadd.f32 0.0, %v1755
      %1757 = vmatmul.bf16.gmra.mxu0 %v1709
      %v1758 = vpop.f32.mrf.mxu0
      %v1759 = vadd.f32 0.0, %v1758
      %v1760 = vpop.f32.mrf.mxu0
      %v1761 = vadd.f32 0.0, %v1760
      %1762 = vdwg.mxu0
      %v1763 = vadd.f32 %v1658, %v1724
      %v1764 = vadd.f32 %v1659, %v1726
      %v1765 = vadd.f32 %v1660, %v1729
      %v1766 = vadd.f32 %v1661, %v1731
      %v1767 = vadd.f32 %v1662, %v1734
      %v1768 = vadd.f32 %v1663, %v1736
      %v1769 = vadd.f32 %v1664, %v1739
      %v1770 = vadd.f32 %v1665, %v1741
      %v1771 = vadd.f32 %v1666, %v1744
      %v1772 = vadd.f32 %v1667, %v1746
      %v1773 = vadd.f32 %v1668, %v1749
      %v1774 = vadd.f32 %v1669, %v1751
      %v1775 = vadd.f32 %v1670, %v1754
      %v1776 = vadd.f32 %v1671, %v1756
      %v1777 = vadd.f32 %v1672, %v1759
      %v1778 = vadd.f32 %v1673, %v1761
      %v1782 = vrot.slane %v1453, 5
      %v1783 = vrot.slane %v1782, 4
      %v1784 = vrot.slane %v872, 5
      %v1785 = vsel %vm1480, %v1783, %v1784
      %v1786 = vrot.slane %v1784, 4
      %v1787 = vrot.slane %v873, 5
      %v1788 = vsel %vm1480, %v1786, %v1787
      %v1789 = vunpack.c.l.b16 %v1785
      %v1790 = vunpack.c.l.b16 %v1788
      %v1791 = vpack.c.b16 %v1790, %v1789
      %v1799 = vunpack.c.l.b16 %v430
      %v1800 = vunpack.c.l.b16 %v431
      %v1801 = vunpack.c.l.b16 %v432
      %v1802 = vunpack.c.l.b16 %v433
      %v1803 = vunpack.c.l.b16 %v434
      %v1804 = vunpack.c.l.b16 %v435
      %v1805 = vunpack.c.l.b16 %v436
      %v1806 = vpack.c.b16 %v1800, %v1799
      %v1807 = vpack.c.b16 %v1802, %v1801
      %v1808 = vpack.c.b16 %v1804, %v1803
      %v1809 = vpack.c.b16 %v1805, %v1805
      %v1814 = vsel %vm586, %v1791, 0
      %v1817 = vand.u32 %v1809, %v613
      %1819 = vmatpush.bf16.msra.mxu0 0
      %1820 = vmatpush.bf16.msra.mxu0 0
      %1821 = vmatpush.bf16.msra.mxu0 0
      %1822 = vmatpush.bf16.msra.mxu0 0
      %1823 = vmatpush.bf16.msra.mxu0 %v1817
      %1824 = vmatpush.bf16.msra.mxu0 %v1808
      %1825 = vmatpush.bf16.msra.mxu0 %v1807
      %1826 = vmatpush.bf16.msra.mxu0 %v1806
      %1827 = vmatmul.bf16.gmra.mxu0 %v1589
      %v1828 = vpop.f32.mrf.mxu0
      %v1829 = vadd.f32 0.0, %v1828
      %v1830 = vpop.f32.mrf.mxu0
      %v1831 = vadd.f32 0.0, %v1830
      %1832 = vmatmul.bf16.gmra.mxu0 %v1592
      %v1833 = vpop.f32.mrf.mxu0
      %v1834 = vadd.f32 0.0, %v1833
      %v1835 = vpop.f32.mrf.mxu0
      %v1836 = vadd.f32 0.0, %v1835
      %1837 = vmatmul.bf16.gmra.mxu0 %v1595
      %v1838 = vpop.f32.mrf.mxu0
      %v1839 = vadd.f32 0.0, %v1838
      %v1840 = vpop.f32.mrf.mxu0
      %v1841 = vadd.f32 0.0, %v1840
      %1842 = vmatmul.bf16.gmra.mxu0 %v1598
      %v1843 = vpop.f32.mrf.mxu0
      %v1844 = vadd.f32 0.0, %v1843
      %v1845 = vpop.f32.mrf.mxu0
      %v1846 = vadd.f32 0.0, %v1845
      %1847 = vmatmul.bf16.gmra.mxu0 %v1601
      %v1848 = vpop.f32.mrf.mxu0
      %v1849 = vadd.f32 0.0, %v1848
      %v1850 = vpop.f32.mrf.mxu0
      %v1851 = vadd.f32 0.0, %v1850
      %1852 = vmatmul.bf16.gmra.mxu0 %v1604
      %v1853 = vpop.f32.mrf.mxu0
      %v1854 = vadd.f32 0.0, %v1853
      %v1855 = vpop.f32.mrf.mxu0
      %v1856 = vadd.f32 0.0, %v1855
      %1857 = vmatmul.bf16.gmra.mxu0 %v1709
      %v1858 = vpop.f32.mrf.mxu0
      %v1859 = vadd.f32 0.0, %v1858
      %v1860 = vpop.f32.mrf.mxu0
      %v1861 = vadd.f32 0.0, %v1860
      %1862 = vmatmul.bf16.gmra.mxu0 %v1814
      %v1863 = vpop.f32.mrf.mxu0
      %v1864 = vadd.f32 0.0, %v1863
      %v1865 = vpop.f32.mrf.mxu0
      %v1866 = vadd.f32 0.0, %v1865
      %1867 = vdwg.mxu0
      %v1868 = vadd.f32 %v1763, %v1829
      %v1869 = vadd.f32 %v1764, %v1831
      %v1870 = vadd.f32 %v1765, %v1834
      %v1871 = vadd.f32 %v1766, %v1836
      %v1872 = vadd.f32 %v1767, %v1839
      %v1873 = vadd.f32 %v1768, %v1841
      %v1874 = vadd.f32 %v1769, %v1844
      %v1875 = vadd.f32 %v1770, %v1846
      %v1876 = vadd.f32 %v1771, %v1849
      %v1877 = vadd.f32 %v1772, %v1851
      %v1878 = vadd.f32 %v1773, %v1854
      %v1879 = vadd.f32 %v1774, %v1856
      %v1880 = vadd.f32 %v1775, %v1859
      %v1881 = vadd.f32 %v1776, %v1861
      %v1882 = vadd.f32 %v1777, %v1864
      %v1883 = vadd.f32 %v1778, %v1866
      %v1885 = vperm.slane %v502, 0
      %v1887 = vadd.f32 %v1868, %v1885
      %v1888 = vadd.f32 %v1869, %v1885
      %v1889 = vadd.f32 %v1870, %v1885
      %v1890 = vadd.f32 %v1871, %v1885
      %v1891 = vadd.f32 %v1872, %v1885
      %v1892 = vadd.f32 %v1873, %v1885
      %v1893 = vadd.f32 %v1874, %v1885
      %v1894 = vadd.f32 %v1875, %v1885
      %v1895 = vadd.f32 %v1876, %v1885
      %v1896 = vadd.f32 %v1877, %v1885
      %v1897 = vadd.f32 %v1878, %v1885
      %v1898 = vadd.f32 %v1879, %v1885
      %v1899 = vadd.f32 %v1880, %v1885
      %v1900 = vadd.f32 %v1881, %v1885
      %v1901 = vadd.f32 %v1882, %v1885
      %v1902 = vadd.f32 %v1883, %v1885
      %v1903 = vmax.f32 %v1887, 0.0
      %v1904 = vmax.f32 %v1888, 0.0
      %v1905 = vmax.f32 %v1889, 0.0
      %v1906 = vmax.f32 %v1890, 0.0
      %v1907 = vmax.f32 %v1891, 0.0
      %v1908 = vmax.f32 %v1892, 0.0
      %v1909 = vmax.f32 %v1893, 0.0
      %v1910 = vmax.f32 %v1894, 0.0
      %v1911 = vmax.f32 %v1895, 0.0
      %v1912 = vmax.f32 %v1896, 0.0
      %v1913 = vmax.f32 %v1897, 0.0
      %v1914 = vmax.f32 %v1898, 0.0
      %v1915 = vmax.f32 %v1899, 0.0
      %v1916 = vmax.f32 %v1900, 0.0
      %v1917 = vmax.f32 %v1901, 0.0
      %v1918 = vmax.f32 %v1902, 0.0
      %v1919 = vpack.c.bf16 %v1903, %v1903
      %v1920 = vpack.c.bf16 %v1904, %v1904
      %v1921 = vpack.c.bf16 %v1905, %v1905
      %v1922 = vpack.c.bf16 %v1906, %v1906
      %v1923 = vpack.c.bf16 %v1907, %v1907
      %v1924 = vpack.c.bf16 %v1908, %v1908
      %v1925 = vpack.c.bf16 %v1909, %v1909
      %v1926 = vpack.c.bf16 %v1910, %v1910
      %v1927 = vpack.c.bf16 %v1911, %v1911
      %v1928 = vpack.c.bf16 %v1912, %v1912
      %v1929 = vpack.c.bf16 %v1913, %v1913
      %v1930 = vpack.c.bf16 %v1914, %v1914
      %v1931 = vpack.c.bf16 %v1915, %v1915
      %v1932 = vpack.c.bf16 %v1916, %v1916
      %v1933 = vpack.c.bf16 %v1917, %v1917
      %v1934 = vpack.c.bf16 %v1918, %v1918
      %1935 = vst.msk [vmem:[%s290 + $0x4] sm:$0xf] %vm280, %v1919
      %1936 = vst.msk [vmem:[%s290 + $0x8] sm:$0xf] %vm280, %v1920
      %1937 = vst.msk [vmem:[%s290 + $0x14] sm:$0xf] %vm280, %v1921
      %1938 = vst.msk [vmem:[%s290 + $0x18] sm:$0xf] %vm280, %v1922
      %1939 = vst.msk [vmem:[%s290 + $0x24] sm:$0xf] %vm280, %v1923
      %1940 = vst.msk [vmem:[%s290 + $0x28] sm:$0xf] %vm280, %v1924
      %1941 = vst.msk [vmem:[%s290 + $0x34] sm:$0xf] %vm280, %v1925
      %1942 = vst.msk [vmem:[%s290 + $0x38] sm:$0xf] %vm280, %v1926
      %1943 = vst.msk [vmem:[%s290 + $0x44] sm:$0xf] %vm280, %v1927
      %1944 = vst.msk [vmem:[%s290 + $0x48] sm:$0xf] %vm280, %v1928
      %1945 = vst.msk [vmem:[%s290 + $0x54] sm:$0xf] %vm280, %v1929
      %1946 = vst.msk [vmem:[%s290 + $0x58] sm:$0xf] %vm280, %v1930
      %1947 = vst.msk [vmem:[%s290 + $0x64] sm:$0xf] %vm280, %v1931
      %1948 = vst.msk [vmem:[%s290 + $0x68] sm:$0xf] %vm280, %v1932
      %1949 = vst.msk [vmem:[%s290 + $0x74] sm:$0xf] %vm280, %v1933
      %1950 = vst.msk [vmem:[%s290 + $0x78] sm:$0xf] %vm280, %v1934
      %s1951 = scalar_lea.vmem %s274, 96
      %v1952 = vld [vmem:[%s1951] sm:$0xf]
      %v1953 = vld [vmem:[%s1951 + $0x4] sm:$0xf]
      %v1954 = vld [vmem:[%s1951 + $0xc] sm:$0xf]
      %v1955 = vld [vmem:[%s1951 + $0x10] sm:$0xf]
      %v1956 = vld [vmem:[%s1951 + $0x18] sm:$0xf]
      %v1957 = vld [vmem:[%s1951 + $0x1c] sm:$0xf]
      %v1958 = vld [vmem:[%s1951 + $0x24] sm:$0xf]
      %v1959 = vld [vmem:[%s1951 + $0x28] sm:$0xf]
      %v1960 = vld [vmem:[%s1951 + $0x30] sm:$0xf]
      %v1961 = vld [vmem:[%s1951 + $0x34] sm:$0xf]
      %v1962 = vld [vmem:[%s1951 + $0x3c] sm:$0xf]
      %v1963 = vld [vmem:[%s1951 + $0x40] sm:$0xf]
      %v1964 = vld [vmem:[%s1951 + $0x48] sm:$0xf]
      %v1965 = vld [vmem:[%s1951 + $0x4c] sm:$0xf]
      %v1966 = vld [vmem:[%s1951 + $0x54] sm:$0xf]
      %v1967 = vld [vmem:[%s1951 + $0x58] sm:$0xf]
      %v1968 = vld [vmem:[%s1951 + $0x60] sm:$0xf]
      %v1969 = vld [vmem:[%s1951 + $0x64] sm:$0xf]
      %v1970 = vld [vmem:[%s1951 + $0x6c] sm:$0xf]
      %v1971 = vld [vmem:[%s1951 + $0x70] sm:$0xf]
      %v1988 = vunpack.c.l.b16 %v1954
      %v1989 = vunpack.c.l.b16 %v1955
      %v1990 = vunpack.c.l.b16 %v1956
      %v1991 = vunpack.c.l.b16 %v1957
      %v1992 = vunpack.c.l.b16 %v1958
      %v1993 = vunpack.c.l.b16 %v1959
      %v1994 = vunpack.c.l.b16 %v1960
      %v1995 = vunpack.c.l.b16 %v1961
      %v1996 = vunpack.c.l.b16 %v1962
      %v1997 = vunpack.c.l.b16 %v1963
      %v1998 = vunpack.c.l.b16 %v1964
      %v1999 = vunpack.c.l.b16 %v1965
      %v2000 = vunpack.c.l.b16 %v1966
      %v2001 = vunpack.c.l.b16 %v1967
      %v2002 = vunpack.c.l.b16 %v1968
      %v2003 = vunpack.c.l.b16 %v1969
      %v2004 = vpack.c.b16 %v1989, %v1988
      %v2005 = vpack.c.b16 %v1991, %v1990
      %v2006 = vpack.c.b16 %v1993, %v1992
      %v2007 = vpack.c.b16 %v1995, %v1994
      %v2008 = vpack.c.b16 %v1997, %v1996
      %v2009 = vpack.c.b16 %v1999, %v1998
      %v2010 = vpack.c.b16 %v2001, %v2000
      %v2011 = vpack.c.b16 %v2003, %v2002
      %v2013 = vsel %vm586, %v2004, 0
      %v2016 = vsel %vm586, %v2005, 0
      %v2019 = vsel %vm586, %v2006, 0
      %v2022 = vsel %vm586, %v2007, 0
      %v2025 = vsel %vm586, %v2008, 0
      %v2028 = vsel %vm586, %v2009, 0
      %v2031 = vsel %vm586, %v2010, 0
      %v2034 = vsel %vm586, %v2011, 0
      %2036 = vmatpush.bf16.msra.mxu0 0
      %2037 = vmatpush.bf16.msra.mxu0 0
      %2038 = vmatpush.bf16.msra.mxu0 0
      %2039 = vmatpush.bf16.msra.mxu0 0
      %2040 = vmatpush.bf16.msra.mxu0 %v615
      %2041 = vmatpush.bf16.msra.mxu0 %v581
      %2042 = vmatpush.bf16.msra.mxu0 %v580
      %2043 = vmatpush.bf16.msra.mxu0 %v579
      %2044 = vmatmul.bf16.gmra.mxu0 %v2013
      %v2045 = vpop.f32.mrf.mxu0
      %v2046 = vadd.f32 0.0, %v2045
      %v2047 = vpop.f32.mrf.mxu0
      %v2048 = vadd.f32 0.0, %v2047
      %2049 = vmatmul.bf16.gmra.mxu0 %v2016
      %v2050 = vpop.f32.mrf.mxu0
      %v2051 = vadd.f32 0.0, %v2050
      %v2052 = vpop.f32.mrf.mxu0
      %v2053 = vadd.f32 0.0, %v2052
      %2054 = vmatmul.bf16.gmra.mxu0 %v2019
      %v2055 = vpop.f32.mrf.mxu0
      %v2056 = vadd.f32 0.0, %v2055
      %v2057 = vpop.f32.mrf.mxu0
      %v2058 = vadd.f32 0.0, %v2057
      %2059 = vmatmul.bf16.gmra.mxu0 %v2022
      %v2060 = vpop.f32.mrf.mxu0
      %v2061 = vadd.f32 0.0, %v2060
      %v2062 = vpop.f32.mrf.mxu0
      %v2063 = vadd.f32 0.0, %v2062
      %2064 = vmatmul.bf16.gmra.mxu0 %v2025
      %v2065 = vpop.f32.mrf.mxu0
      %v2066 = vadd.f32 0.0, %v2065
      %v2067 = vpop.f32.mrf.mxu0
      %v2068 = vadd.f32 0.0, %v2067
      %2069 = vmatmul.bf16.gmra.mxu0 %v2028
      %v2070 = vpop.f32.mrf.mxu0
      %v2071 = vadd.f32 0.0, %v2070
      %v2072 = vpop.f32.mrf.mxu0
      %v2073 = vadd.f32 0.0, %v2072
      %2074 = vmatmul.bf16.gmra.mxu0 %v2031
      %v2075 = vpop.f32.mrf.mxu0
      %v2076 = vadd.f32 0.0, %v2075
      %v2077 = vpop.f32.mrf.mxu0
      %v2078 = vadd.f32 0.0, %v2077
      %2079 = vmatmul.bf16.gmra.mxu0 %v2034
      %v2080 = vpop.f32.mrf.mxu0
      %v2081 = vadd.f32 0.0, %v2080
      %v2082 = vpop.f32.mrf.mxu0
      %v2083 = vadd.f32 0.0, %v2082
      %2084 = vdwg.mxu0
      %v2087 = vunpack.c.l.b16 %v1952
      %v2088 = vunpack.c.l.b16 %v1953
      %v2089 = vpack.c.b16 %v2088, %v2087
      %v2091 = vsel %vm586, %v2089, 0
      %2093 = vmatpush.bf16.msra.mxu0 0
      %2094 = vmatpush.bf16.msra.mxu0 0
      %2095 = vmatpush.bf16.msra.mxu0 0
      %2096 = vmatpush.bf16.msra.mxu0 0
      %2097 = vmatpush.bf16.msra.mxu0 %v696
      %2098 = vmatpush.bf16.msra.mxu0 %v687
      %2099 = vmatpush.bf16.msra.mxu0 %v686
      %2100 = vmatpush.bf16.msra.mxu0 %v685
      %2101 = vmatmul.bf16.gmra.mxu0 %v2091
      %v2102 = vpop.f32.mrf.mxu0
      %v2103 = vadd.f32 %v2046, %v2102
      %v2104 = vpop.f32.mrf.mxu0
      %v2105 = vadd.f32 %v2048, %v2104
      %2106 = vmatmul.bf16.gmra.mxu0 %v2013
      %v2107 = vpop.f32.mrf.mxu0
      %v2108 = vadd.f32 %v2051, %v2107
      %v2109 = vpop.f32.mrf.mxu0
      %v2110 = vadd.f32 %v2053, %v2109
      %2111 = vmatmul.bf16.gmra.mxu0 %v2016
      %v2112 = vpop.f32.mrf.mxu0
      %v2113 = vadd.f32 %v2056, %v2112
      %v2114 = vpop.f32.mrf.mxu0
      %v2115 = vadd.f32 %v2058, %v2114
      %2116 = vmatmul.bf16.gmra.mxu0 %v2019
      %v2117 = vpop.f32.mrf.mxu0
      %v2118 = vadd.f32 %v2061, %v2117
      %v2119 = vpop.f32.mrf.mxu0
      %v2120 = vadd.f32 %v2063, %v2119
      %2121 = vmatmul.bf16.gmra.mxu0 %v2022
      %v2122 = vpop.f32.mrf.mxu0
      %v2123 = vadd.f32 %v2066, %v2122
      %v2124 = vpop.f32.mrf.mxu0
      %v2125 = vadd.f32 %v2068, %v2124
      %2126 = vmatmul.bf16.gmra.mxu0 %v2025
      %v2127 = vpop.f32.mrf.mxu0
      %v2128 = vadd.f32 %v2071, %v2127
      %v2129 = vpop.f32.mrf.mxu0
      %v2130 = vadd.f32 %v2073, %v2129
      %2131 = vmatmul.bf16.gmra.mxu0 %v2028
      %v2132 = vpop.f32.mrf.mxu0
      %v2133 = vadd.f32 %v2076, %v2132
      %v2134 = vpop.f32.mrf.mxu0
      %v2135 = vadd.f32 %v2078, %v2134
      %2136 = vmatmul.bf16.gmra.mxu0 %v2031
      %v2137 = vpop.f32.mrf.mxu0
      %v2138 = vadd.f32 %v2081, %v2137
      %v2139 = vpop.f32.mrf.mxu0
      %v2140 = vadd.f32 %v2083, %v2139
      %2141 = vdwg.mxu0
      %v2144 = vunpack.c.l.b16 %v1970
      %v2145 = vunpack.c.l.b16 %v1971
      %v2146 = vpack.c.b16 %v2145, %v2144
      %v2148 = vsel %vm586, %v2146, 0
      %2150 = vmatpush.bf16.msra.mxu0 0
      %2151 = vmatpush.bf16.msra.mxu0 0
      %2152 = vmatpush.bf16.msra.mxu0 0
      %2153 = vmatpush.bf16.msra.mxu0 0
      %2154 = vmatpush.bf16.msra.mxu0 %v777
      %2155 = vmatpush.bf16.msra.mxu0 %v768
      %2156 = vmatpush.bf16.msra.mxu0 %v767
      %2157 = vmatpush.bf16.msra.mxu0 %v766
      %2158 = vmatmul.bf16.gmra.mxu0 %v2016
      %v2159 = vpop.f32.mrf.mxu0
      %v2160 = vadd.f32 0.0, %v2159
      %v2161 = vpop.f32.mrf.mxu0
      %v2162 = vadd.f32 0.0, %v2161
      %2163 = vmatmul.bf16.gmra.mxu0 %v2019
      %v2164 = vpop.f32.mrf.mxu0
      %v2165 = vadd.f32 0.0, %v2164
      %v2166 = vpop.f32.mrf.mxu0
      %v2167 = vadd.f32 0.0, %v2166
      %2168 = vmatmul.bf16.gmra.mxu0 %v2022
      %v2169 = vpop.f32.mrf.mxu0
      %v2170 = vadd.f32 0.0, %v2169
      %v2171 = vpop.f32.mrf.mxu0
      %v2172 = vadd.f32 0.0, %v2171
      %2173 = vmatmul.bf16.gmra.mxu0 %v2025
      %v2174 = vpop.f32.mrf.mxu0
      %v2175 = vadd.f32 0.0, %v2174
      %v2176 = vpop.f32.mrf.mxu0
      %v2177 = vadd.f32 0.0, %v2176
      %2178 = vmatmul.bf16.gmra.mxu0 %v2028
      %v2179 = vpop.f32.mrf.mxu0
      %v2180 = vadd.f32 0.0, %v2179
      %v2181 = vpop.f32.mrf.mxu0
      %v2182 = vadd.f32 0.0, %v2181
      %2183 = vmatmul.bf16.gmra.mxu0 %v2031
      %v2184 = vpop.f32.mrf.mxu0
      %v2185 = vadd.f32 0.0, %v2184
      %v2186 = vpop.f32.mrf.mxu0
      %v2187 = vadd.f32 0.0, %v2186
      %2188 = vmatmul.bf16.gmra.mxu0 %v2034
      %v2189 = vpop.f32.mrf.mxu0
      %v2190 = vadd.f32 0.0, %v2189
      %v2191 = vpop.f32.mrf.mxu0
      %v2192 = vadd.f32 0.0, %v2191
      %2193 = vmatmul.bf16.gmra.mxu0 %v2148
      %v2194 = vpop.f32.mrf.mxu0
      %v2195 = vadd.f32 0.0, %v2194
      %v2196 = vpop.f32.mrf.mxu0
      %v2197 = vadd.f32 0.0, %v2196
      %2198 = vdwg.mxu0
      %v2199 = vadd.f32 %v2103, %v2160
      %v2200 = vadd.f32 %v2105, %v2162
      %v2201 = vadd.f32 %v2108, %v2165
      %v2202 = vadd.f32 %v2110, %v2167
      %v2203 = vadd.f32 %v2113, %v2170
      %v2204 = vadd.f32 %v2115, %v2172
      %v2205 = vadd.f32 %v2118, %v2175
      %v2206 = vadd.f32 %v2120, %v2177
      %v2207 = vadd.f32 %v2123, %v2180
      %v2208 = vadd.f32 %v2125, %v2182
      %v2209 = vadd.f32 %v2128, %v2185
      %v2210 = vadd.f32 %v2130, %v2187
      %v2211 = vadd.f32 %v2133, %v2190
      %v2212 = vadd.f32 %v2135, %v2192
      %v2213 = vadd.f32 %v2138, %v2195
      %v2214 = vadd.f32 %v2140, %v2197
      %v2215 = vld [vmem:[%s1951] sm:$0xf]
      %v2216 = vld [vmem:[%s1951 + $0x4] sm:$0xf]
      %v2217 = vld [vmem:[%s1951 + $0x8] sm:$0x1]
      %v2218 = vld [vmem:[%s1951 + $0xc] sm:$0xf]
      %v2219 = vld [vmem:[%s1951 + $0x10] sm:$0xf]
      %v2220 = vld [vmem:[%s1951 + $0x14] sm:$0x1]
      %v2221 = vld [vmem:[%s1951 + $0x18] sm:$0xf]
      %v2222 = vld [vmem:[%s1951 + $0x1c] sm:$0xf]
      %v2223 = vld [vmem:[%s1951 + $0x20] sm:$0x1]
      %v2224 = vld [vmem:[%s1951 + $0x24] sm:$0xf]
      %v2225 = vld [vmem:[%s1951 + $0x28] sm:$0xf]
      %v2226 = vld [vmem:[%s1951 + $0x2c] sm:$0x1]
      %v2227 = vld [vmem:[%s1951 + $0x30] sm:$0xf]
      %v2228 = vld [vmem:[%s1951 + $0x34] sm:$0xf]
      %v2229 = vld [vmem:[%s1951 + $0x38] sm:$0x1]
      %v2230 = vld [vmem:[%s1951 + $0x3c] sm:$0xf]
      %v2231 = vld [vmem:[%s1951 + $0x40] sm:$0xf]
      %v2232 = vld [vmem:[%s1951 + $0x44] sm:$0x1]
      %v2233 = vld [vmem:[%s1951 + $0x48] sm:$0xf]
      %v2234 = vld [vmem:[%s1951 + $0x4c] sm:$0xf]
      %v2235 = vld [vmem:[%s1951 + $0x50] sm:$0x1]
      %v2236 = vld [vmem:[%s1951 + $0x54] sm:$0xf]
      %v2237 = vld [vmem:[%s1951 + $0x58] sm:$0xf]
      %v2238 = vld [vmem:[%s1951 + $0x5c] sm:$0x1]
      %v2239 = vld [vmem:[%s1951 + $0x60] sm:$0xf]
      %v2240 = vld [vmem:[%s1951 + $0x64] sm:$0xf]
      %v2241 = vld [vmem:[%s1951 + $0x68] sm:$0x1]
      %v2242 = vld [vmem:[%s1951 + $0x6c] sm:$0xf]
      %v2243 = vld [vmem:[%s1951 + $0x70] sm:$0xf]
      %v2244 = vld [vmem:[%s1951 + $0x74] sm:$0x1]
      %v2246 = vshrl.u32 %v2215, 16
      %v2248 = vrot.slane %v2246, 4
      %v2249 = vshll.u32 %v2215, 16
      %v2251 = vrot.slane %v2249, 5
      %v2252 = vor.u32 %v2248, %v2251
      %v2253 = vrot.slane %v2252, 4
      %v2255 = vshll.u32 %v2216, 16
      %v2257 = vrot.slane %v2255, 5
      %v2258 = vsel %vm876, %v2253, %v2257
      %v2259 = vshrl.u32 %v2216, 16
      %v2261 = vrot.slane %v2259, 4
      %v2262 = vor.u32 %v2261, %v2257
      %v2263 = vrot.slane %v2262, 4
      %v2265 = vshll.u32 %v2217, 16
      %v2267 = vrot.slane %v2265, 5
      %v2268 = vsel %vm876, %v2263, %v2267
      %v2270 = vshrl.u32 %v2218, 16
      %v2272 = vrot.slane %v2270, 4
      %v2273 = vshll.u32 %v2218, 16
      %v2275 = vrot.slane %v2273, 5
      %v2276 = vor.u32 %v2272, %v2275
      %v2277 = vrot.slane %v2276, 4
      %v2279 = vshll.u32 %v2219, 16
      %v2281 = vrot.slane %v2279, 5
      %v2282 = vsel %vm876, %v2277, %v2281
      %v2283 = vshrl.u32 %v2219, 16
      %v2285 = vrot.slane %v2283, 4
      %v2286 = vor.u32 %v2285, %v2281
      %v2287 = vrot.slane %v2286, 4
      %v2289 = vshll.u32 %v2220, 16
      %v2291 = vrot.slane %v2289, 5
      %v2292 = vsel %vm876, %v2287, %v2291
      %v2294 = vshrl.u32 %v2221, 16
      %v2296 = vrot.slane %v2294, 4
      %v2297 = vshll.u32 %v2221, 16
      %v2299 = vrot.slane %v2297, 5
      %v2300 = vor.u32 %v2296, %v2299
      %v2301 = vrot.slane %v2300, 4
      %v2303 = vshll.u32 %v2222, 16
      %v2305 = vrot.slane %v2303, 5
      %v2306 = vsel %vm876, %v2301, %v2305
      %v2307 = vshrl.u32 %v2222, 16
      %v2309 = vrot.slane %v2307, 4
      %v2310 = vor.u32 %v2309, %v2305
      %v2311 = vrot.slane %v2310, 4
      %v2313 = vshll.u32 %v2223, 16
      %v2315 = vrot.slane %v2313, 5
      %v2316 = vsel %vm876, %v2311, %v2315
      %v2318 = vshrl.u32 %v2224, 16
      %v2320 = vrot.slane %v2318, 4
      %v2321 = vshll.u32 %v2224, 16
      %v2323 = vrot.slane %v2321, 5
      %v2324 = vor.u32 %v2320, %v2323
      %v2325 = vrot.slane %v2324, 4
      %v2327 = vshll.u32 %v2225, 16
      %v2329 = vrot.slane %v2327, 5
      %v2330 = vsel %vm876, %v2325, %v2329
      %v2331 = vshrl.u32 %v2225, 16
      %v2333 = vrot.slane %v2331, 4
      %v2334 = vor.u32 %v2333, %v2329
      %v2335 = vrot.slane %v2334, 4
      %v2337 = vshll.u32 %v2226, 16
      %v2339 = vrot.slane %v2337, 5
      %v2340 = vsel %vm876, %v2335, %v2339
      %v2342 = vshrl.u32 %v2227, 16
      %v2344 = vrot.slane %v2342, 4
      %v2345 = vshll.u32 %v2227, 16
      %v2347 = vrot.slane %v2345, 5
      %v2348 = vor.u32 %v2344, %v2347
      %v2349 = vrot.slane %v2348, 4
      %v2351 = vshll.u32 %v2228, 16
      %v2353 = vrot.slane %v2351, 5
      %v2354 = vsel %vm876, %v2349, %v2353
      %v2355 = vshrl.u32 %v2228, 16
      %v2357 = vrot.slane %v2355, 4
      %v2358 = vor.u32 %v2357, %v2353
      %v2359 = vrot.slane %v2358, 4
      %v2361 = vshll.u32 %v2229, 16
      %v2363 = vrot.slane %v2361, 5
      %v2364 = vsel %vm876, %v2359, %v2363
      %v2366 = vshrl.u32 %v2230, 16
      %v2368 = vrot.slane %v2366, 4
      %v2369 = vshll.u32 %v2230, 16
      %v2371 = vrot.slane %v2369, 5
      %v2372 = vor.u32 %v2368, %v2371
      %v2373 = vrot.slane %v2372, 4
      %v2375 = vshll.u32 %v2231, 16
      %v2377 = vrot.slane %v2375, 5
      %v2378 = vsel %vm876, %v2373, %v2377
      %v2379 = vshrl.u32 %v2231, 16
      %v2381 = vrot.slane %v2379, 4
      %v2382 = vor.u32 %v2381, %v2377
      %v2383 = vrot.slane %v2382, 4
      %v2385 = vshll.u32 %v2232, 16
      %v2387 = vrot.slane %v2385, 5
      %v2388 = vsel %vm876, %v2383, %v2387
      %v2390 = vshrl.u32 %v2233, 16
      %v2392 = vrot.slane %v2390, 4
      %v2393 = vshll.u32 %v2233, 16
      %v2395 = vrot.slane %v2393, 5
      %v2396 = vor.u32 %v2392, %v2395
      %v2397 = vrot.slane %v2396, 4
      %v2399 = vshll.u32 %v2234, 16
      %v2401 = vrot.slane %v2399, 5
      %v2402 = vsel %vm876, %v2397, %v2401
      %v2403 = vshrl.u32 %v2234, 16
      %v2405 = vrot.slane %v2403, 4
      %v2406 = vor.u32 %v2405, %v2401
      %v2407 = vrot.slane %v2406, 4
      %v2409 = vshll.u32 %v2235, 16
      %v2411 = vrot.slane %v2409, 5
      %v2412 = vsel %vm876, %v2407, %v2411
      %v2414 = vshrl.u32 %v2236, 16
      %v2416 = vrot.slane %v2414, 4
      %v2417 = vshll.u32 %v2236, 16
      %v2419 = vrot.slane %v2417, 5
      %v2420 = vor.u32 %v2416, %v2419
      %v2421 = vrot.slane %v2420, 4
      %v2423 = vshll.u32 %v2237, 16
      %v2425 = vrot.slane %v2423, 5
      %v2426 = vsel %vm876, %v2421, %v2425
      %v2427 = vshrl.u32 %v2237, 16
      %v2429 = vrot.slane %v2427, 4
      %v2430 = vor.u32 %v2429, %v2425
      %v2431 = vrot.slane %v2430, 4
      %v2433 = vshll.u32 %v2238, 16
      %v2435 = vrot.slane %v2433, 5
      %v2436 = vsel %vm876, %v2431, %v2435
      %v2437 = vunpack.c.l.b16 %v2258
      %v2438 = vunpack.c.l.b16 %v2268
      %v2439 = vunpack.c.l.b16 %v2282
      %v2440 = vunpack.c.l.b16 %v2292
      %v2441 = vunpack.c.l.b16 %v2306
      %v2442 = vunpack.c.l.b16 %v2316
      %v2443 = vunpack.c.l.b16 %v2330
      %v2444 = vunpack.c.l.b16 %v2340
      %v2445 = vunpack.c.l.b16 %v2354
      %v2446 = vunpack.c.l.b16 %v2364
      %v2447 = vunpack.c.l.b16 %v2378
      %v2448 = vunpack.c.l.b16 %v2388
      %v2449 = vunpack.c.l.b16 %v2402
      %v2450 = vunpack.c.l.b16 %v2412
      %v2451 = vunpack.c.l.b16 %v2426
      %v2452 = vunpack.c.l.b16 %v2436
      %v2453 = vpack.c.b16 %v2438, %v2437
      %v2454 = vpack.c.b16 %v2440, %v2439
      %v2455 = vpack.c.b16 %v2442, %v2441
      %v2456 = vpack.c.b16 %v2444, %v2443
      %v2457 = vpack.c.b16 %v2446, %v2445
      %v2458 = vpack.c.b16 %v2448, %v2447
      %v2459 = vpack.c.b16 %v2450, %v2449
      %v2460 = vpack.c.b16 %v2452, %v2451
      %v2462 = vsel %vm586, %v2453, 0
      %v2465 = vsel %vm586, %v2454, 0
      %v2468 = vsel %vm586, %v2455, 0
      %v2471 = vsel %vm586, %v2456, 0
      %v2474 = vsel %vm586, %v2457, 0
      %v2477 = vsel %vm586, %v2458, 0
      %v2480 = vsel %vm586, %v2459, 0
      %v2483 = vsel %vm586, %v2460, 0
      %2485 = vmatpush.bf16.msra.mxu0 0
      %2486 = vmatpush.bf16.msra.mxu0 0
      %2487 = vmatpush.bf16.msra.mxu0 0
      %2488 = vmatpush.bf16.msra.mxu0 0
      %2489 = vmatpush.bf16.msra.mxu0 %v1139
      %2490 = vmatpush.bf16.msra.mxu0 %v1109
      %2491 = vmatpush.bf16.msra.mxu0 %v1108
      %2492 = vmatpush.bf16.msra.mxu0 %v1107
      %2493 = vmatmul.bf16.gmra.mxu0 %v2462
      %v2494 = vpop.f32.mrf.mxu0
      %v2495 = vadd.f32 0.0, %v2494
      %v2496 = vpop.f32.mrf.mxu0
      %v2497 = vadd.f32 0.0, %v2496
      %2498 = vmatmul.bf16.gmra.mxu0 %v2465
      %v2499 = vpop.f32.mrf.mxu0
      %v2500 = vadd.f32 0.0, %v2499
      %v2501 = vpop.f32.mrf.mxu0
      %v2502 = vadd.f32 0.0, %v2501
      %2503 = vmatmul.bf16.gmra.mxu0 %v2468
      %v2504 = vpop.f32.mrf.mxu0
      %v2505 = vadd.f32 0.0, %v2504
      %v2506 = vpop.f32.mrf.mxu0
      %v2507 = vadd.f32 0.0, %v2506
      %2508 = vmatmul.bf16.gmra.mxu0 %v2471
      %v2509 = vpop.f32.mrf.mxu0
      %v2510 = vadd.f32 0.0, %v2509
      %v2511 = vpop.f32.mrf.mxu0
      %v2512 = vadd.f32 0.0, %v2511
      %2513 = vmatmul.bf16.gmra.mxu0 %v2474
      %v2514 = vpop.f32.mrf.mxu0
      %v2515 = vadd.f32 0.0, %v2514
      %v2516 = vpop.f32.mrf.mxu0
      %v2517 = vadd.f32 0.0, %v2516
      %2518 = vmatmul.bf16.gmra.mxu0 %v2477
      %v2519 = vpop.f32.mrf.mxu0
      %v2520 = vadd.f32 0.0, %v2519
      %v2521 = vpop.f32.mrf.mxu0
      %v2522 = vadd.f32 0.0, %v2521
      %2523 = vmatmul.bf16.gmra.mxu0 %v2480
      %v2524 = vpop.f32.mrf.mxu0
      %v2525 = vadd.f32 0.0, %v2524
      %v2526 = vpop.f32.mrf.mxu0
      %v2527 = vadd.f32 0.0, %v2526
      %2528 = vmatmul.bf16.gmra.mxu0 %v2483
      %v2529 = vpop.f32.mrf.mxu0
      %v2530 = vadd.f32 0.0, %v2529
      %v2531 = vpop.f32.mrf.mxu0
      %v2532 = vadd.f32 0.0, %v2531
      %2533 = vdwg.mxu0
      %v2534 = vadd.f32 %v2199, %v2495
      %v2535 = vadd.f32 %v2200, %v2497
      %v2536 = vadd.f32 %v2201, %v2500
      %v2537 = vadd.f32 %v2202, %v2502
      %v2538 = vadd.f32 %v2203, %v2505
      %v2539 = vadd.f32 %v2204, %v2507
      %v2540 = vadd.f32 %v2205, %v2510
      %v2541 = vadd.f32 %v2206, %v2512
      %v2542 = vadd.f32 %v2207, %v2515
      %v2543 = vadd.f32 %v2208, %v2517
      %v2544 = vadd.f32 %v2209, %v2520
      %v2545 = vadd.f32 %v2210, %v2522
      %v2546 = vadd.f32 %v2211, %v2525
      %v2547 = vadd.f32 %v2212, %v2527
      %v2548 = vadd.f32 %v2213, %v2530
      %v2549 = vadd.f32 %v2214, %v2532
      %v2551 = vshrl.u32 %v2239, 16
      %v2553 = vrot.slane %v2551, 4
      %v2554 = vshll.u32 %v2239, 16
      %v2556 = vrot.slane %v2554, 5
      %v2557 = vor.u32 %v2553, %v2556
      %v2558 = vrot.slane %v2557, 4
      %v2560 = vshll.u32 %v2240, 16
      %v2562 = vrot.slane %v2560, 5
      %v2563 = vsel %vm876, %v2558, %v2562
      %v2564 = vshrl.u32 %v2240, 16
      %v2566 = vrot.slane %v2564, 4
      %v2567 = vor.u32 %v2566, %v2562
      %v2568 = vrot.slane %v2567, 4
      %v2570 = vshll.u32 %v2241, 16
      %v2572 = vrot.slane %v2570, 5
      %v2573 = vsel %vm876, %v2568, %v2572
      %v2574 = vunpack.c.l.b16 %v2563
      %v2575 = vunpack.c.l.b16 %v2573
      %v2576 = vpack.c.b16 %v2575, %v2574
      %v2578 = vsel %vm586, %v2576, 0
      %2580 = vmatpush.bf16.msra.mxu0 0
      %2581 = vmatpush.bf16.msra.mxu0 0
      %2582 = vmatpush.bf16.msra.mxu0 0
      %2583 = vmatpush.bf16.msra.mxu0 0
      %2584 = vmatpush.bf16.msra.mxu0 %v1258
      %2585 = vmatpush.bf16.msra.mxu0 %v1249
      %2586 = vmatpush.bf16.msra.mxu0 %v1248
      %2587 = vmatpush.bf16.msra.mxu0 %v1247
      %2588 = vmatmul.bf16.gmra.mxu0 %v2465
      %v2589 = vpop.f32.mrf.mxu0
      %v2590 = vadd.f32 0.0, %v2589
      %v2591 = vpop.f32.mrf.mxu0
      %v2592 = vadd.f32 0.0, %v2591
      %2593 = vmatmul.bf16.gmra.mxu0 %v2468
      %v2594 = vpop.f32.mrf.mxu0
      %v2595 = vadd.f32 0.0, %v2594
      %v2596 = vpop.f32.mrf.mxu0
      %v2597 = vadd.f32 0.0, %v2596
      %2598 = vmatmul.bf16.gmra.mxu0 %v2471
      %v2599 = vpop.f32.mrf.mxu0
      %v2600 = vadd.f32 0.0, %v2599
      %v2601 = vpop.f32.mrf.mxu0
      %v2602 = vadd.f32 0.0, %v2601
      %2603 = vmatmul.bf16.gmra.mxu0 %v2474
      %v2604 = vpop.f32.mrf.mxu0
      %v2605 = vadd.f32 0.0, %v2604
      %v2606 = vpop.f32.mrf.mxu0
      %v2607 = vadd.f32 0.0, %v2606
      %2608 = vmatmul.bf16.gmra.mxu0 %v2477
      %v2609 = vpop.f32.mrf.mxu0
      %v2610 = vadd.f32 0.0, %v2609
      %v2611 = vpop.f32.mrf.mxu0
      %v2612 = vadd.f32 0.0, %v2611
      %2613 = vmatmul.bf16.gmra.mxu0 %v2480
      %v2614 = vpop.f32.mrf.mxu0
      %v2615 = vadd.f32 0.0, %v2614
      %v2616 = vpop.f32.mrf.mxu0
      %v2617 = vadd.f32 0.0, %v2616
      %2618 = vmatmul.bf16.gmra.mxu0 %v2483
      %v2619 = vpop.f32.mrf.mxu0
      %v2620 = vadd.f32 0.0, %v2619
      %v2621 = vpop.f32.mrf.mxu0
      %v2622 = vadd.f32 0.0, %v2621
      %2623 = vmatmul.bf16.gmra.mxu0 %v2578
      %v2624 = vpop.f32.mrf.mxu0
      %v2625 = vadd.f32 0.0, %v2624
      %v2626 = vpop.f32.mrf.mxu0
      %v2627 = vadd.f32 0.0, %v2626
      %2628 = vdwg.mxu0
      %v2629 = vadd.f32 %v2534, %v2590
      %v2630 = vadd.f32 %v2535, %v2592
      %v2631 = vadd.f32 %v2536, %v2595
      %v2632 = vadd.f32 %v2537, %v2597
      %v2633 = vadd.f32 %v2538, %v2600
      %v2634 = vadd.f32 %v2539, %v2602
      %v2635 = vadd.f32 %v2540, %v2605
      %v2636 = vadd.f32 %v2541, %v2607
      %v2637 = vadd.f32 %v2542, %v2610
      %v2638 = vadd.f32 %v2543, %v2612
      %v2639 = vadd.f32 %v2544, %v2615
      %v2640 = vadd.f32 %v2545, %v2617
      %v2641 = vadd.f32 %v2546, %v2620
      %v2642 = vadd.f32 %v2547, %v2622
      %v2643 = vadd.f32 %v2548, %v2625
      %v2644 = vadd.f32 %v2549, %v2627
      %v2646 = vshrl.u32 %v2242, 16
      %v2648 = vrot.slane %v2646, 4
      %v2649 = vshll.u32 %v2242, 16
      %v2651 = vrot.slane %v2649, 5
      %v2652 = vor.u32 %v2648, %v2651
      %v2653 = vrot.slane %v2652, 4
      %v2655 = vshll.u32 %v2243, 16
      %v2657 = vrot.slane %v2655, 5
      %v2658 = vsel %vm876, %v2653, %v2657
      %v2659 = vshrl.u32 %v2243, 16
      %v2661 = vrot.slane %v2659, 4
      %v2662 = vor.u32 %v2661, %v2657
      %v2663 = vrot.slane %v2662, 4
      %v2665 = vshll.u32 %v2244, 16
      %v2667 = vrot.slane %v2665, 5
      %v2668 = vsel %vm876, %v2663, %v2667
      %v2669 = vunpack.c.l.b16 %v2658
      %v2670 = vunpack.c.l.b16 %v2668
      %v2671 = vpack.c.b16 %v2670, %v2669
      %v2673 = vsel %vm586, %v2671, 0
      %2675 = vmatpush.bf16.msra.mxu0 0
      %2676 = vmatpush.bf16.msra.mxu0 0
      %2677 = vmatpush.bf16.msra.mxu0 0
      %2678 = vmatpush.bf16.msra.mxu0 0
      %2679 = vmatpush.bf16.msra.mxu0 %v1377
      %2680 = vmatpush.bf16.msra.mxu0 %v1368
      %2681 = vmatpush.bf16.msra.mxu0 %v1367
      %2682 = vmatpush.bf16.msra.mxu0 %v1366
      %2683 = vmatmul.bf16.gmra.mxu0 %v2468
      %v2684 = vpop.f32.mrf.mxu0
      %v2685 = vadd.f32 0.0, %v2684
      %v2686 = vpop.f32.mrf.mxu0
      %v2687 = vadd.f32 0.0, %v2686
      %2688 = vmatmul.bf16.gmra.mxu0 %v2471
      %v2689 = vpop.f32.mrf.mxu0
      %v2690 = vadd.f32 0.0, %v2689
      %v2691 = vpop.f32.mrf.mxu0
      %v2692 = vadd.f32 0.0, %v2691
      %2693 = vmatmul.bf16.gmra.mxu0 %v2474
      %v2694 = vpop.f32.mrf.mxu0
      %v2695 = vadd.f32 0.0, %v2694
      %v2696 = vpop.f32.mrf.mxu0
      %v2697 = vadd.f32 0.0, %v2696
      %2698 = vmatmul.bf16.gmra.mxu0 %v2477
      %v2699 = vpop.f32.mrf.mxu0
      %v2700 = vadd.f32 0.0, %v2699
      %v2701 = vpop.f32.mrf.mxu0
      %v2702 = vadd.f32 0.0, %v2701
      %2703 = vmatmul.bf16.gmra.mxu0 %v2480
      %v2704 = vpop.f32.mrf.mxu0
      %v2705 = vadd.f32 0.0, %v2704
      %v2706 = vpop.f32.mrf.mxu0
      %v2707 = vadd.f32 0.0, %v2706
      %2708 = vmatmul.bf16.gmra.mxu0 %v2483
      %v2709 = vpop.f32.mrf.mxu0
      %v2710 = vadd.f32 0.0, %v2709
      %v2711 = vpop.f32.mrf.mxu0
      %v2712 = vadd.f32 0.0, %v2711
      %2713 = vmatmul.bf16.gmra.mxu0 %v2578
      %v2714 = vpop.f32.mrf.mxu0
      %v2715 = vadd.f32 0.0, %v2714
      %v2716 = vpop.f32.mrf.mxu0
      %v2717 = vadd.f32 0.0, %v2716
      %2718 = vmatmul.bf16.gmra.mxu0 %v2673
      %v2719 = vpop.f32.mrf.mxu0
      %v2720 = vadd.f32 0.0, %v2719
      %v2721 = vpop.f32.mrf.mxu0
      %v2722 = vadd.f32 0.0, %v2721
      %2723 = vdwg.mxu0
      %v2724 = vadd.f32 %v2629, %v2685
      %v2725 = vadd.f32 %v2630, %v2687
      %v2726 = vadd.f32 %v2631, %v2690
      %v2727 = vadd.f32 %v2632, %v2692
      %v2728 = vadd.f32 %v2633, %v2695
      %v2729 = vadd.f32 %v2634, %v2697
      %v2730 = vadd.f32 %v2635, %v2700
      %v2731 = vadd.f32 %v2636, %v2702
      %v2732 = vadd.f32 %v2637, %v2705
      %v2733 = vadd.f32 %v2638, %v2707
      %v2734 = vadd.f32 %v2639, %v2710
      %v2735 = vadd.f32 %v2640, %v2712
      %v2736 = vadd.f32 %v2641, %v2715
      %v2737 = vadd.f32 %v2642, %v2717
      %v2738 = vadd.f32 %v2643, %v2720
      %v2739 = vadd.f32 %v2644, %v2722
      %v2740 = vld [vmem:[%s1951] sm:$0xe]
      %v2741 = vld [vmem:[%s1951 + $0xc] sm:$0xe]
      %v2742 = vld [vmem:[%s1951 + $0x18] sm:$0xe]
      %v2743 = vld [vmem:[%s1951 + $0x24] sm:$0xe]
      %v2744 = vld [vmem:[%s1951 + $0x30] sm:$0xe]
      %v2745 = vld [vmem:[%s1951 + $0x3c] sm:$0xe]
      %v2746 = vld [vmem:[%s1951 + $0x48] sm:$0xe]
      %v2747 = vld [vmem:[%s1951 + $0x54] sm:$0xe]
      %v2748 = vld [vmem:[%s1951 + $0x60] sm:$0xe]
      %v2749 = vld [vmem:[%s1951 + $0x6c] sm:$0xe]
      %v2774 = vrot.slane %v2740, 5
      %v2775 = vrot.slane %v2774, 4
      %v2776 = vrot.slane %v2216, 5
      %v2777 = vsel %vm1480, %v2775, %v2776
      %v2778 = vrot.slane %v2776, 4
      %v2779 = vrot.slane %v2217, 5
      %v2780 = vsel %vm1480, %v2778, %v2779
      %v2781 = vrot.slane %v2741, 5
      %v2782 = vrot.slane %v2781, 4
      %v2783 = vrot.slane %v2219, 5
      %v2784 = vsel %vm1480, %v2782, %v2783
      %v2785 = vrot.slane %v2783, 4
      %v2786 = vrot.slane %v2220, 5
      %v2787 = vsel %vm1480, %v2785, %v2786
      %v2788 = vrot.slane %v2742, 5
      %v2789 = vrot.slane %v2788, 4
      %v2790 = vrot.slane %v2222, 5
      %v2791 = vsel %vm1480, %v2789, %v2790
      %v2792 = vrot.slane %v2790, 4
      %v2793 = vrot.slane %v2223, 5
      %v2794 = vsel %vm1480, %v2792, %v2793
      %v2795 = vrot.slane %v2743, 5
      %v2796 = vrot.slane %v2795, 4
      %v2797 = vrot.slane %v2225, 5
      %v2798 = vsel %vm1480, %v2796, %v2797
      %v2799 = vrot.slane %v2797, 4
      %v2800 = vrot.slane %v2226, 5
      %v2801 = vsel %vm1480, %v2799, %v2800
      %v2802 = vrot.slane %v2744, 5
      %v2803 = vrot.slane %v2802, 4
      %v2804 = vrot.slane %v2228, 5
      %v2805 = vsel %vm1480, %v2803, %v2804
      %v2806 = vrot.slane %v2804, 4
      %v2807 = vrot.slane %v2229, 5
      %v2808 = vsel %vm1480, %v2806, %v2807
      %v2809 = vrot.slane %v2745, 5
      %v2810 = vrot.slane %v2809, 4
      %v2811 = vrot.slane %v2231, 5
      %v2812 = vsel %vm1480, %v2810, %v2811
      %v2813 = vrot.slane %v2811, 4
      %v2814 = vrot.slane %v2232, 5
      %v2815 = vsel %vm1480, %v2813, %v2814
      %v2816 = vrot.slane %v2746, 5
      %v2817 = vrot.slane %v2816, 4
      %v2818 = vrot.slane %v2234, 5
      %v2819 = vsel %vm1480, %v2817, %v2818
      %v2820 = vrot.slane %v2818, 4
      %v2821 = vrot.slane %v2235, 5
      %v2822 = vsel %vm1480, %v2820, %v2821
      %v2823 = vrot.slane %v2747, 5
      %v2824 = vrot.slane %v2823, 4
      %v2825 = vrot.slane %v2237, 5
      %v2826 = vsel %vm1480, %v2824, %v2825
      %v2827 = vrot.slane %v2825, 4
      %v2828 = vrot.slane %v2238, 5
      %v2829 = vsel %vm1480, %v2827, %v2828
      %v2830 = vunpack.c.l.b16 %v2777
      %v2831 = vunpack.c.l.b16 %v2780
      %v2832 = vunpack.c.l.b16 %v2784
      %v2833 = vunpack.c.l.b16 %v2787
      %v2834 = vunpack.c.l.b16 %v2791
      %v2835 = vunpack.c.l.b16 %v2794
      %v2836 = vunpack.c.l.b16 %v2798
      %v2837 = vunpack.c.l.b16 %v2801
      %v2838 = vunpack.c.l.b16 %v2805
      %v2839 = vunpack.c.l.b16 %v2808
      %v2840 = vunpack.c.l.b16 %v2812
      %v2841 = vunpack.c.l.b16 %v2815
      %v2842 = vunpack.c.l.b16 %v2819
      %v2843 = vunpack.c.l.b16 %v2822
      %v2844 = vunpack.c.l.b16 %v2826
      %v2845 = vunpack.c.l.b16 %v2829
      %v2846 = vpack.c.b16 %v2831, %v2830
      %v2847 = vpack.c.b16 %v2833, %v2832
      %v2848 = vpack.c.b16 %v2835, %v2834
      %v2849 = vpack.c.b16 %v2837, %v2836
      %v2850 = vpack.c.b16 %v2839, %v2838
      %v2851 = vpack.c.b16 %v2841, %v2840
      %v2852 = vpack.c.b16 %v2843, %v2842
      %v2853 = vpack.c.b16 %v2845, %v2844
      %v2855 = vsel %vm586, %v2846, 0
      %v2858 = vsel %vm586, %v2847, 0
      %v2861 = vsel %vm586, %v2848, 0
      %v2864 = vsel %vm586, %v2849, 0
      %v2867 = vsel %vm586, %v2850, 0
      %v2870 = vsel %vm586, %v2851, 0
      %v2873 = vsel %vm586, %v2852, 0
      %v2876 = vsel %vm586, %v2853, 0
      %2878 = vmatpush.bf16.msra.mxu0 0
      %2879 = vmatpush.bf16.msra.mxu0 0
      %2880 = vmatpush.bf16.msra.mxu0 0
      %2881 = vmatpush.bf16.msra.mxu0 0
      %2882 = vmatpush.bf16.msra.mxu0 %v1607
      %2883 = vmatpush.bf16.msra.mxu0 %v1577
      %2884 = vmatpush.bf16.msra.mxu0 %v1576
      %2885 = vmatpush.bf16.msra.mxu0 %v1575
      %2886 = vmatmul.bf16.gmra.mxu0 %v2855
      %v2887 = vpop.f32.mrf.mxu0
      %v2888 = vadd.f32 0.0, %v2887
      %v2889 = vpop.f32.mrf.mxu0
      %v2890 = vadd.f32 0.0, %v2889
      %2891 = vmatmul.bf16.gmra.mxu0 %v2858
      %v2892 = vpop.f32.mrf.mxu0
      %v2893 = vadd.f32 0.0, %v2892
      %v2894 = vpop.f32.mrf.mxu0
      %v2895 = vadd.f32 0.0, %v2894
      %2896 = vmatmul.bf16.gmra.mxu0 %v2861
      %v2897 = vpop.f32.mrf.mxu0
      %v2898 = vadd.f32 0.0, %v2897
      %v2899 = vpop.f32.mrf.mxu0
      %v2900 = vadd.f32 0.0, %v2899
      %2901 = vmatmul.bf16.gmra.mxu0 %v2864
      %v2902 = vpop.f32.mrf.mxu0
      %v2903 = vadd.f32 0.0, %v2902
      %v2904 = vpop.f32.mrf.mxu0
      %v2905 = vadd.f32 0.0, %v2904
      %2906 = vmatmul.bf16.gmra.mxu0 %v2867
      %v2907 = vpop.f32.mrf.mxu0
      %v2908 = vadd.f32 0.0, %v2907
      %v2909 = vpop.f32.mrf.mxu0
      %v2910 = vadd.f32 0.0, %v2909
      %2911 = vmatmul.bf16.gmra.mxu0 %v2870
      %v2912 = vpop.f32.mrf.mxu0
      %v2913 = vadd.f32 0.0, %v2912
      %v2914 = vpop.f32.mrf.mxu0
      %v2915 = vadd.f32 0.0, %v2914
      %2916 = vmatmul.bf16.gmra.mxu0 %v2873
      %v2917 = vpop.f32.mrf.mxu0
      %v2918 = vadd.f32 0.0, %v2917
      %v2919 = vpop.f32.mrf.mxu0
      %v2920 = vadd.f32 0.0, %v2919
      %2921 = vmatmul.bf16.gmra.mxu0 %v2876
      %v2922 = vpop.f32.mrf.mxu0
      %v2923 = vadd.f32 0.0, %v2922
      %v2924 = vpop.f32.mrf.mxu0
      %v2925 = vadd.f32 0.0, %v2924
      %2926 = vdwg.mxu0
      %v2927 = vadd.f32 %v2724, %v2888
      %v2928 = vadd.f32 %v2725, %v2890
      %v2929 = vadd.f32 %v2726, %v2893
      %v2930 = vadd.f32 %v2727, %v2895
      %v2931 = vadd.f32 %v2728, %v2898
      %v2932 = vadd.f32 %v2729, %v2900
      %v2933 = vadd.f32 %v2730, %v2903
      %v2934 = vadd.f32 %v2731, %v2905
      %v2935 = vadd.f32 %v2732, %v2908
      %v2936 = vadd.f32 %v2733, %v2910
      %v2937 = vadd.f32 %v2734, %v2913
      %v2938 = vadd.f32 %v2735, %v2915
      %v2939 = vadd.f32 %v2736, %v2918
      %v2940 = vadd.f32 %v2737, %v2920
      %v2941 = vadd.f32 %v2738, %v2923
      %v2942 = vadd.f32 %v2739, %v2925
      %v2946 = vrot.slane %v2748, 5
      %v2947 = vrot.slane %v2946, 4
      %v2948 = vrot.slane %v2240, 5
      %v2949 = vsel %vm1480, %v2947, %v2948
      %v2950 = vrot.slane %v2948, 4
      %v2951 = vrot.slane %v2241, 5
      %v2952 = vsel %vm1480, %v2950, %v2951
      %v2953 = vunpack.c.l.b16 %v2949
      %v2954 = vunpack.c.l.b16 %v2952
      %v2955 = vpack.c.b16 %v2954, %v2953
      %v2957 = vsel %vm586, %v2955, 0
      %2959 = vmatpush.bf16.msra.mxu0 0
      %2960 = vmatpush.bf16.msra.mxu0 0
      %2961 = vmatpush.bf16.msra.mxu0 0
      %2962 = vmatpush.bf16.msra.mxu0 0
      %2963 = vmatpush.bf16.msra.mxu0 %v1712
      %2964 = vmatpush.bf16.msra.mxu0 %v1703
      %2965 = vmatpush.bf16.msra.mxu0 %v1702
      %2966 = vmatpush.bf16.msra.mxu0 %v1701
      %2967 = vmatmul.bf16.gmra.mxu0 %v2858
      %v2968 = vpop.f32.mrf.mxu0
      %v2969 = vadd.f32 0.0, %v2968
      %v2970 = vpop.f32.mrf.mxu0
      %v2971 = vadd.f32 0.0, %v2970
      %2972 = vmatmul.bf16.gmra.mxu0 %v2861
      %v2973 = vpop.f32.mrf.mxu0
      %v2974 = vadd.f32 0.0, %v2973
      %v2975 = vpop.f32.mrf.mxu0
      %v2976 = vadd.f32 0.0, %v2975
      %2977 = vmatmul.bf16.gmra.mxu0 %v2864
      %v2978 = vpop.f32.mrf.mxu0
      %v2979 = vadd.f32 0.0, %v2978
      %v2980 = vpop.f32.mrf.mxu0
      %v2981 = vadd.f32 0.0, %v2980
      %2982 = vmatmul.bf16.gmra.mxu0 %v2867
      %v2983 = vpop.f32.mrf.mxu0
      %v2984 = vadd.f32 0.0, %v2983
      %v2985 = vpop.f32.mrf.mxu0
      %v2986 = vadd.f32 0.0, %v2985
      %2987 = vmatmul.bf16.gmra.mxu0 %v2870
      %v2988 = vpop.f32.mrf.mxu0
      %v2989 = vadd.f32 0.0, %v2988
      %v2990 = vpop.f32.mrf.mxu0
      %v2991 = vadd.f32 0.0, %v2990
      %2992 = vmatmul.bf16.gmra.mxu0 %v2873
      %v2993 = vpop.f32.mrf.mxu0
      %v2994 = vadd.f32 0.0, %v2993
      %v2995 = vpop.f32.mrf.mxu0
      %v2996 = vadd.f32 0.0, %v2995
      %2997 = vmatmul.bf16.gmra.mxu0 %v2876
      %v2998 = vpop.f32.mrf.mxu0
      %v2999 = vadd.f32 0.0, %v2998
      %v3000 = vpop.f32.mrf.mxu0
      %v3001 = vadd.f32 0.0, %v3000
      %3002 = vmatmul.bf16.gmra.mxu0 %v2957
      %v3003 = vpop.f32.mrf.mxu0
      %v3004 = vadd.f32 0.0, %v3003
      %v3005 = vpop.f32.mrf.mxu0
      %v3006 = vadd.f32 0.0, %v3005
      %3007 = vdwg.mxu0
      %v3008 = vadd.f32 %v2927, %v2969
      %v3009 = vadd.f32 %v2928, %v2971
      %v3010 = vadd.f32 %v2929, %v2974
      %v3011 = vadd.f32 %v2930, %v2976
      %v3012 = vadd.f32 %v2931, %v2979
      %v3013 = vadd.f32 %v2932, %v2981
      %v3014 = vadd.f32 %v2933, %v2984
      %v3015 = vadd.f32 %v2934, %v2986
      %v3016 = vadd.f32 %v2935, %v2989
      %v3017 = vadd.f32 %v2936, %v2991
      %v3018 = vadd.f32 %v2937, %v2994
      %v3019 = vadd.f32 %v2938, %v2996
      %v3020 = vadd.f32 %v2939, %v2999
      %v3021 = vadd.f32 %v2940, %v3001
      %v3022 = vadd.f32 %v2941, %v3004
      %v3023 = vadd.f32 %v2942, %v3006
      %v3027 = vrot.slane %v2749, 5
      %v3028 = vrot.slane %v3027, 4
      %v3029 = vrot.slane %v2243, 5
      %v3030 = vsel %vm1480, %v3028, %v3029
      %v3031 = vrot.slane %v3029, 4
      %v3032 = vrot.slane %v2244, 5
      %v3033 = vsel %vm1480, %v3031, %v3032
      %v3034 = vunpack.c.l.b16 %v3030
      %v3035 = vunpack.c.l.b16 %v3033
      %v3036 = vpack.c.b16 %v3035, %v3034
      %v3038 = vsel %vm586, %v3036, 0
      %3040 = vmatpush.bf16.msra.mxu0 0
      %3041 = vmatpush.bf16.msra.mxu0 0
      %3042 = vmatpush.bf16.msra.mxu0 0
      %3043 = vmatpush.bf16.msra.mxu0 0
      %3044 = vmatpush.bf16.msra.mxu0 %v1817
      %3045 = vmatpush.bf16.msra.mxu0 %v1808
      %3046 = vmatpush.bf16.msra.mxu0 %v1807
      %3047 = vmatpush.bf16.msra.mxu0 %v1806
      %3048 = vmatmul.bf16.gmra.mxu0 %v2861
      %v3049 = vpop.f32.mrf.mxu0
      %v3050 = vadd.f32 0.0, %v3049
      %v3051 = vpop.f32.mrf.mxu0
      %v3052 = vadd.f32 0.0, %v3051
      %3053 = vmatmul.bf16.gmra.mxu0 %v2864
      %v3054 = vpop.f32.mrf.mxu0
      %v3055 = vadd.f32 0.0, %v3054
      %v3056 = vpop.f32.mrf.mxu0
      %v3057 = vadd.f32 0.0, %v3056
      %3058 = vmatmul.bf16.gmra.mxu0 %v2867
      %v3059 = vpop.f32.mrf.mxu0
      %v3060 = vadd.f32 0.0, %v3059
      %v3061 = vpop.f32.mrf.mxu0
      %v3062 = vadd.f32 0.0, %v3061
      %3063 = vmatmul.bf16.gmra.mxu0 %v2870
      %v3064 = vpop.f32.mrf.mxu0
      %v3065 = vadd.f32 0.0, %v3064
      %v3066 = vpop.f32.mrf.mxu0
      %v3067 = vadd.f32 0.0, %v3066
      %3068 = vmatmul.bf16.gmra.mxu0 %v2873
      %v3069 = vpop.f32.mrf.mxu0
      %v3070 = vadd.f32 0.0, %v3069
      %v3071 = vpop.f32.mrf.mxu0
      %v3072 = vadd.f32 0.0, %v3071
      %3073 = vmatmul.bf16.gmra.mxu0 %v2876
      %v3074 = vpop.f32.mrf.mxu0
      %v3075 = vadd.f32 0.0, %v3074
      %v3076 = vpop.f32.mrf.mxu0
      %v3077 = vadd.f32 0.0, %v3076
      %3078 = vmatmul.bf16.gmra.mxu0 %v2957
      %v3079 = vpop.f32.mrf.mxu0
      %v3080 = vadd.f32 0.0, %v3079
      %v3081 = vpop.f32.mrf.mxu0
      %v3082 = vadd.f32 0.0, %v3081
      %3083 = vmatmul.bf16.gmra.mxu0 %v3038
      %v3084 = vpop.f32.mrf.mxu0
      %v3085 = vadd.f32 0.0, %v3084
      %v3086 = vpop.f32.mrf.mxu0
      %v3087 = vadd.f32 0.0, %v3086
      %3088 = vdwg.mxu0
      %v3089 = vadd.f32 %v3008, %v3050
      %v3090 = vadd.f32 %v3009, %v3052
      %v3091 = vadd.f32 %v3010, %v3055
      %v3092 = vadd.f32 %v3011, %v3057
      %v3093 = vadd.f32 %v3012, %v3060
      %v3094 = vadd.f32 %v3013, %v3062
      %v3095 = vadd.f32 %v3014, %v3065
      %v3096 = vadd.f32 %v3015, %v3067
      %v3097 = vadd.f32 %v3016, %v3070
      %v3098 = vadd.f32 %v3017, %v3072
      %v3099 = vadd.f32 %v3018, %v3075
      %v3100 = vadd.f32 %v3019, %v3077
      %v3101 = vadd.f32 %v3020, %v3080
      %v3102 = vadd.f32 %v3021, %v3082
      %v3103 = vadd.f32 %v3022, %v3085
      %v3104 = vadd.f32 %v3023, %v3087
      %v3105 = vadd.f32 %v3089, %v1885
      %v3106 = vadd.f32 %v3090, %v1885
      %v3107 = vadd.f32 %v3091, %v1885
      %v3108 = vadd.f32 %v3092, %v1885
      %v3109 = vadd.f32 %v3093, %v1885
      %v3110 = vadd.f32 %v3094, %v1885
      %v3111 = vadd.f32 %v3095, %v1885
      %v3112 = vadd.f32 %v3096, %v1885
      %v3113 = vadd.f32 %v3097, %v1885
      %v3114 = vadd.f32 %v3098, %v1885
      %v3115 = vadd.f32 %v3099, %v1885
      %v3116 = vadd.f32 %v3100, %v1885
      %v3117 = vadd.f32 %v3101, %v1885
      %v3118 = vadd.f32 %v3102, %v1885
      %v3119 = vadd.f32 %v3103, %v1885
      %v3120 = vadd.f32 %v3104, %v1885
      %v3121 = vmax.f32 %v3105, 0.0
      %v3122 = vmax.f32 %v3106, 0.0
      %v3123 = vmax.f32 %v3107, 0.0
      %v3124 = vmax.f32 %v3108, 0.0
      %v3125 = vmax.f32 %v3109, 0.0
      %v3126 = vmax.f32 %v3110, 0.0
      %v3127 = vmax.f32 %v3111, 0.0
      %v3128 = vmax.f32 %v3112, 0.0
      %v3129 = vmax.f32 %v3113, 0.0
      %v3130 = vmax.f32 %v3114, 0.0
      %v3131 = vmax.f32 %v3115, 0.0
      %v3132 = vmax.f32 %v3116, 0.0
      %v3133 = vmax.f32 %v3117, 0.0
      %v3134 = vmax.f32 %v3118, 0.0
      %v3135 = vmax.f32 %v3119, 0.0
      %v3136 = vmax.f32 %v3120, 0.0
      %v3137 = vpack.c.bf16 %v3121, %v3121
      %v3138 = vpack.c.bf16 %v3122, %v3122
      %v3139 = vpack.c.bf16 %v3123, %v3123
      %v3140 = vpack.c.bf16 %v3124, %v3124
      %v3141 = vpack.c.bf16 %v3125, %v3125
      %v3142 = vpack.c.bf16 %v3126, %v3126
      %v3143 = vpack.c.bf16 %v3127, %v3127
      %v3144 = vpack.c.bf16 %v3128, %v3128
      %v3145 = vpack.c.bf16 %v3129, %v3129
      %v3146 = vpack.c.bf16 %v3130, %v3130
      %v3147 = vpack.c.bf16 %v3131, %v3131
      %v3148 = vpack.c.bf16 %v3132, %v3132
      %v3149 = vpack.c.bf16 %v3133, %v3133
      %v3150 = vpack.c.bf16 %v3134, %v3134
      %v3151 = vpack.c.bf16 %v3135, %v3135
      %v3152 = vpack.c.bf16 %v3136, %v3136
      %s3153 = scalar_lea.vmem [#allocation2], 144
      %3154 = vst.msk [vmem:[%s3153 + $0x4] sm:$0xf] %vm280, %v3137
      %3155 = vst.msk [vmem:[%s3153 + $0x8] sm:$0xf] %vm280, %v3138
      %3156 = vst.msk [vmem:[%s3153 + $0x14] sm:$0xf] %vm280, %v3139
      %3157 = vst.msk [vmem:[%s3153 + $0x18] sm:$0xf] %vm280, %v3140
      %3158 = vst.msk [vmem:[%s3153 + $0x24] sm:$0xf] %vm280, %v3141
      %3159 = vst.msk [vmem:[%s3153 + $0x28] sm:$0xf] %vm280, %v3142
      %3160 = vst.msk [vmem:[%s3153 + $0x34] sm:$0xf] %vm280, %v3143
      %3161 = vst.msk [vmem:[%s3153 + $0x38] sm:$0xf] %vm280, %v3144
      %3162 = vst.msk [vmem:[%s3153 + $0x44] sm:$0xf] %vm280, %v3145
      %3163 = vst.msk [vmem:[%s3153 + $0x48] sm:$0xf] %vm280, %v3146
      %3164 = vst.msk [vmem:[%s3153 + $0x54] sm:$0xf] %vm280, %v3147
      %3165 = vst.msk [vmem:[%s3153 + $0x58] sm:$0xf] %vm280, %v3148
      %3166 = vst.msk [vmem:[%s3153 + $0x64] sm:$0xf] %vm280, %v3149
      %3167 = vst.msk [vmem:[%s3153 + $0x68] sm:$0xf] %vm280, %v3150
      %3168 = vst.msk [vmem:[%s3153 + $0x74] sm:$0xf] %vm280, %v3151
      %3169 = vst.msk [vmem:[%s3153 + $0x78] sm:$0xf] %vm280, %v3152
      %v3170 = vld [vmem:[#allocation2] sm:$0x8]
      %v3171 = vld [vmem:[#allocation2 + $0x4] sm:$0xf]
      %v3172 = vld [vmem:[#allocation2 + $0x8] sm:$0xf]
      %v3173 = vld [vmem:[#allocation2 + $0x10] sm:$0x8]
      %v3174 = vld [vmem:[#allocation2 + $0x14] sm:$0xf]
      %v3175 = vld [vmem:[#allocation2 + $0x18] sm:$0xf]
      %v3176 = vld [vmem:[#allocation2 + $0x20] sm:$0x8]
      %v3177 = vld [vmem:[#allocation2 + $0x24] sm:$0xf]
      %v3178 = vld [vmem:[#allocation2 + $0x28] sm:$0xf]
      %v3179 = vld [vmem:[#allocation2 + $0x30] sm:$0x8]
      %v3180 = vld [vmem:[#allocation2 + $0x34] sm:$0xf]
      %v3181 = vld [vmem:[#allocation2 + $0x38] sm:$0xf]
      %v3182 = vld [vmem:[#allocation2 + $0x40] sm:$0x8]
      %v3183 = vld [vmem:[#allocation2 + $0x44] sm:$0xf]
      %v3184 = vld [vmem:[#allocation2 + $0x48] sm:$0xf]
      %v3185 = vld [vmem:[#allocation2 + $0x50] sm:$0x8]
      %v3186 = vld [vmem:[#allocation2 + $0x54] sm:$0xf]
      %v3187 = vld [vmem:[#allocation2 + $0x58] sm:$0xf]
      %v3188 = vld [vmem:[#allocation2 + $0x60] sm:$0x8]
      %v3189 = vld [vmem:[#allocation2 + $0x64] sm:$0xf]
      %v3190 = vld [vmem:[#allocation2 + $0x68] sm:$0xf]
      %v3191 = vld [vmem:[#allocation2 + $0x70] sm:$0x8]
      %v3192 = vld [vmem:[#allocation2 + $0x74] sm:$0xf]
      %v3193 = vld [vmem:[#allocation2 + $0x78] sm:$0xf]
      %v3194 = vld [vmem:[#allocation2 + $0x80] sm:$0x8]
      %v3195 = vld [vmem:[#allocation2 + $0x84] sm:$0xf]
      %v3196 = vld [vmem:[#allocation2 + $0x88] sm:$0xf]
      %v3197 = vld [vmem:[#allocation2 + $0x90] sm:$0x8]
      %v3198 = vld [vmem:[#allocation2 + $0x94] sm:$0xf]
      %v3199 = vld [vmem:[#allocation2 + $0x98] sm:$0xf]
      %vm3200 = vsmask.f32 256
      %vm3201 = vsmask.f32 4368
      %vm3202 = vmor %vm3200, %vm3201
      %v3204 = vshrl.u32 %v3170, 16
      %v3206 = vrot.slane %v3204, 7
      %v3207 = vrot.slane %v3206, 4
      %v3209 = vshrl.u32 %v3171, 16
      %v3211 = vrot.slane %v3209, 7
      %v3212 = vshll.u32 %v3171, 16
      %v3214 = vor.u32 %v3211, %v3212
      %v3215 = vsel %vm3202, %v3207, %v3214
      %v3216 = vrot.slane %v3211, 4
      %v3218 = vshrl.u32 %v3172, 16
      %v3220 = vrot.slane %v3218, 7
      %v3221 = vshll.u32 %v3172, 16
      %v3223 = vor.u32 %v3220, %v3221
      %v3224 = vsel %vm3202, %v3216, %v3223
      %v3226 = vshrl.u32 %v3173, 16
      %v3228 = vrot.slane %v3226, 7
      %v3229 = vrot.slane %v3228, 4
      %v3231 = vshrl.u32 %v3174, 16
      %v3233 = vrot.slane %v3231, 7
      %v3234 = vshll.u32 %v3174, 16
      %v3236 = vor.u32 %v3233, %v3234
      %v3237 = vsel %vm3202, %v3229, %v3236
      %v3238 = vrot.slane %v3233, 4
      %v3240 = vshrl.u32 %v3175, 16
      %v3242 = vrot.slane %v3240, 7
      %v3243 = vshll.u32 %v3175, 16
      %v3245 = vor.u32 %v3242, %v3243
      %v3246 = vsel %vm3202, %v3238, %v3245
      %v3248 = vshrl.u32 %v3176, 16
      %v3250 = vrot.slane %v3248, 7
      %v3251 = vrot.slane %v3250, 4
      %v3253 = vshrl.u32 %v3177, 16
      %v3255 = vrot.slane %v3253, 7
      %v3256 = vshll.u32 %v3177, 16
      %v3258 = vor.u32 %v3255, %v3256
      %v3259 = vsel %vm3202, %v3251, %v3258
      %v3260 = vrot.slane %v3255, 4
      %v3262 = vshrl.u32 %v3178, 16
      %v3264 = vrot.slane %v3262, 7
      %v3265 = vshll.u32 %v3178, 16
      %v3267 = vor.u32 %v3264, %v3265
      %v3268 = vsel %vm3202, %v3260, %v3267
      %v3270 = vshrl.u32 %v3179, 16
      %v3272 = vrot.slane %v3270, 7
      %v3273 = vrot.slane %v3272, 4
      %v3275 = vshrl.u32 %v3180, 16
      %v3277 = vrot.slane %v3275, 7
      %v3278 = vshll.u32 %v3180, 16
      %v3280 = vor.u32 %v3277, %v3278
      %v3281 = vsel %vm3202, %v3273, %v3280
      %v3282 = vrot.slane %v3277, 4
      %v3284 = vshrl.u32 %v3181, 16
      %v3286 = vrot.slane %v3284, 7
      %v3287 = vshll.u32 %v3181, 16
      %v3289 = vor.u32 %v3286, %v3287
      %v3290 = vsel %vm3202, %v3282, %v3289
      %v3292 = vshrl.u32 %v3182, 16
      %v3294 = vrot.slane %v3292, 7
      %v3295 = vrot.slane %v3294, 4
      %v3297 = vshrl.u32 %v3183, 16
      %v3299 = vrot.slane %v3297, 7
      %v3300 = vshll.u32 %v3183, 16
      %v3302 = vor.u32 %v3299, %v3300
      %v3303 = vsel %vm3202, %v3295, %v3302
      %v3304 = vrot.slane %v3299, 4
      %v3306 = vshrl.u32 %v3184, 16
      %v3308 = vrot.slane %v3306, 7
      %v3309 = vshll.u32 %v3184, 16
      %v3311 = vor.u32 %v3308, %v3309
      %v3312 = vsel %vm3202, %v3304, %v3311
      %v3314 = vshrl.u32 %v3185, 16
      %v3316 = vrot.slane %v3314, 7
      %v3317 = vrot.slane %v3316, 4
      %v3319 = vshrl.u32 %v3186, 16
      %v3321 = vrot.slane %v3319, 7
      %v3322 = vshll.u32 %v3186, 16
      %v3324 = vor.u32 %v3321, %v3322
      %v3325 = vsel %vm3202, %v3317, %v3324
      %v3326 = vrot.slane %v3321, 4
      %v3328 = vshrl.u32 %v3187, 16
      %v3330 = vrot.slane %v3328, 7
      %v3331 = vshll.u32 %v3187, 16
      %v3333 = vor.u32 %v3330, %v3331
      %v3334 = vsel %vm3202, %v3326, %v3333
      %v3336 = vshrl.u32 %v3188, 16
      %v3338 = vrot.slane %v3336, 7
      %v3339 = vrot.slane %v3338, 4
      %v3341 = vshrl.u32 %v3189, 16
      %v3343 = vrot.slane %v3341, 7
      %v3344 = vshll.u32 %v3189, 16
      %v3346 = vor.u32 %v3343, %v3344
      %v3347 = vsel %vm3202, %v3339, %v3346
      %v3348 = vrot.slane %v3343, 4
      %v3350 = vshrl.u32 %v3190, 16
      %v3352 = vrot.slane %v3350, 7
      %v3353 = vshll.u32 %v3190, 16
      %v3355 = vor.u32 %v3352, %v3353
      %v3356 = vsel %vm3202, %v3348, %v3355
      %v3358 = vshrl.u32 %v3191, 16
      %v3360 = vrot.slane %v3358, 7
      %v3361 = vrot.slane %v3360, 4
      %v3363 = vshrl.u32 %v3192, 16
      %v3365 = vrot.slane %v3363, 7
      %v3366 = vshll.u32 %v3192, 16
      %v3368 = vor.u32 %v3365, %v3366
      %v3369 = vsel %vm3202, %v3361, %v3368
      %v3370 = vrot.slane %v3365, 4
      %v3372 = vshrl.u32 %v3193, 16
      %v3374 = vrot.slane %v3372, 7
      %v3375 = vshll.u32 %v3193, 16
      %v3377 = vor.u32 %v3374, %v3375
      %v3378 = vsel %vm3202, %v3370, %v3377
      %v3380 = vshrl.u32 %v3194, 16
      %v3382 = vrot.slane %v3380, 7
      %v3383 = vrot.slane %v3382, 4
      %v3385 = vshrl.u32 %v3195, 16
      %v3387 = vrot.slane %v3385, 7
      %v3388 = vshll.u32 %v3195, 16
      %v3390 = vor.u32 %v3387, %v3388
      %v3391 = vsel %vm3202, %v3383, %v3390
      %v3392 = vrot.slane %v3387, 4
      %v3394 = vshrl.u32 %v3196, 16
      %v3396 = vrot.slane %v3394, 7
      %v3397 = vshll.u32 %v3196, 16
      %v3399 = vor.u32 %v3396, %v3397
      %v3400 = vsel %vm3202, %v3392, %v3399
      %v3401 = vunpack.c.l.b16 %v3237
      %v3402 = vunpack.c.l.b16 %v3246
      %v3403 = vunpack.c.l.b16 %v3259
      %v3404 = vunpack.c.l.b16 %v3268
      %v3405 = vunpack.c.l.b16 %v3281
      %v3406 = vunpack.c.l.b16 %v3290
      %v3407 = vunpack.c.l.b16 %v3303
      %v3408 = vunpack.c.l.b16 %v3312
      %v3409 = vunpack.c.l.b16 %v3325
      %v3410 = vunpack.c.l.b16 %v3334
      %v3411 = vunpack.c.l.b16 %v3347
      %v3412 = vunpack.c.l.b16 %v3356
      %v3413 = vunpack.c.l.b16 %v3369
      %v3414 = vunpack.c.l.b16 %v3378
      %v3415 = vunpack.c.l.b16 %v3391
      %v3416 = vunpack.c.l.b16 %v3400
      %v3417 = vpack.c.b16 %v3402, %v3401
      %v3418 = vpack.c.b16 %v3404, %v3403
      %v3419 = vpack.c.b16 %v3406, %v3405
      %v3420 = vpack.c.b16 %v3408, %v3407
      %v3421 = vpack.c.b16 %v3410, %v3409
      %v3422 = vpack.c.b16 %v3412, %v3411
      %v3423 = vpack.c.b16 %v3414, %v3413
      %v3424 = vpack.c.b16 %v3416, %v3415
      %v3431 = vunpack.c.l.b16 %v458
      %v3432 = vunpack.c.l.b16 %v459
      %v3433 = vunpack.c.l.b16 %v460
      %v3434 = vunpack.c.l.b16 %v461
      %v3435 = vunpack.c.l.b16 %v462
      %v3436 = vunpack.c.l.b16 %v463
      %v3437 = vpack.c.b16 %v3432, %v3431
      %v3438 = vpack.c.b16 %v3434, %v3433
      %v3439 = vpack.c.b16 %v3436, %v3435
      %vm3443 = vcmask 392192
      %v3445 = vsel %vm3443, %v3417, 0
      %v3448 = vsel %vm3443, %v3418, 0
      %v3451 = vsel %vm3443, %v3419, 0
      %v3454 = vsel %vm3443, %v3420, 0
      %v3457 = vsel %vm3443, %v3421, 0
      %v3460 = vsel %vm3443, %v3422, 0
      %v3463 = vsel %vm3443, %v3423, 0
      %v3466 = vsel %vm3443, %v3424, 0
      %3468 = vmatpush.bf16.msra.mxu0 0
      %3469 = vmatpush.bf16.msra.mxu0 0
      %3470 = vmatpush.bf16.msra.mxu0 0
      %3471 = vmatpush.bf16.msra.mxu0 0
      %3472 = vmatpush.bf16.msra.mxu0 0
      %3473 = vmatpush.bf16.msra.mxu0 %v3439
      %3474 = vmatpush.bf16.msra.mxu0 %v3438
      %3475 = vmatpush.bf16.msra.mxu0 %v3437
      %3476 = vmatmul.bf16.gmra.mxu0 %v3445
      %v3477 = vpop.f32.mrf.mxu0
      %v3478 = vadd.f32 0.0, %v3477
      %v3479 = vpop.f32.mrf.mxu0
      %v3480 = vadd.f32 0.0, %v3479
      %3481 = vmatmul.bf16.gmra.mxu0 %v3448
      %v3482 = vpop.f32.mrf.mxu0
      %v3483 = vadd.f32 0.0, %v3482
      %v3484 = vpop.f32.mrf.mxu0
      %v3485 = vadd.f32 0.0, %v3484
      %3486 = vmatmul.bf16.gmra.mxu0 %v3451
      %v3487 = vpop.f32.mrf.mxu0
      %v3488 = vadd.f32 0.0, %v3487
      %v3489 = vpop.f32.mrf.mxu0
      %v3490 = vadd.f32 0.0, %v3489
      %3491 = vmatmul.bf16.gmra.mxu0 %v3454
      %v3492 = vpop.f32.mrf.mxu0
      %v3493 = vadd.f32 0.0, %v3492
      %v3494 = vpop.f32.mrf.mxu0
      %v3495 = vadd.f32 0.0, %v3494
      %3496 = vmatmul.bf16.gmra.mxu0 %v3457
      %v3497 = vpop.f32.mrf.mxu0
      %v3498 = vadd.f32 0.0, %v3497
      %v3499 = vpop.f32.mrf.mxu0
      %v3500 = vadd.f32 0.0, %v3499
      %3501 = vmatmul.bf16.gmra.mxu0 %v3460
      %v3502 = vpop.f32.mrf.mxu0
      %v3503 = vadd.f32 0.0, %v3502
      %v3504 = vpop.f32.mrf.mxu0
      %v3505 = vadd.f32 0.0, %v3504
      %3506 = vmatmul.bf16.gmra.mxu0 %v3463
      %v3507 = vpop.f32.mrf.mxu0
      %v3508 = vadd.f32 0.0, %v3507
      %v3509 = vpop.f32.mrf.mxu0
      %v3510 = vadd.f32 0.0, %v3509
      %3511 = vmatmul.bf16.gmra.mxu0 %v3466
      %v3512 = vpop.f32.mrf.mxu0
      %v3513 = vadd.f32 0.0, %v3512
      %v3514 = vpop.f32.mrf.mxu0
      %v3515 = vadd.f32 0.0, %v3514
      %3516 = vdwg.mxu0
      %v3517 = vunpack.c.l.b16 %v3215
      %v3518 = vunpack.c.l.b16 %v3224
      %v3519 = vpack.c.b16 %v3518, %v3517
      %v3526 = vunpack.c.l.b16 %v437
      %v3527 = vunpack.c.l.b16 %v438
      %v3528 = vunpack.c.l.b16 %v439
      %v3529 = vunpack.c.l.b16 %v440
      %v3530 = vunpack.c.l.b16 %v441
      %v3531 = vunpack.c.l.b16 %v442
      %v3532 = vpack.c.b16 %v3527, %v3526
      %v3533 = vpack.c.b16 %v3529, %v3528
      %v3534 = vpack.c.b16 %v3531, %v3530
      %v3539 = vsel %vm3443, %v3519, 0
      %3541 = vmatpush.bf16.msra.mxu0 0
      %3542 = vmatpush.bf16.msra.mxu0 0
      %3543 = vmatpush.bf16.msra.mxu0 0
      %3544 = vmatpush.bf16.msra.mxu0 0
      %3545 = vmatpush.bf16.msra.mxu0 0
      %3546 = vmatpush.bf16.msra.mxu0 %v3534
      %3547 = vmatpush.bf16.msra.mxu0 %v3533
      %3548 = vmatpush.bf16.msra.mxu0 %v3532
      %3549 = vmatmul.bf16.gmra.mxu0 %v3539
      %v3550 = vpop.f32.mrf.mxu0
      %v3551 = vadd.f32 %v3478, %v3550
      %v3552 = vpop.f32.mrf.mxu0
      %v3553 = vadd.f32 %v3480, %v3552
      %3554 = vmatmul.bf16.gmra.mxu0 %v3445
      %v3555 = vpop.f32.mrf.mxu0
      %v3556 = vadd.f32 %v3483, %v3555
      %v3557 = vpop.f32.mrf.mxu0
      %v3558 = vadd.f32 %v3485, %v3557
      %3559 = vmatmul.bf16.gmra.mxu0 %v3448
      %v3560 = vpop.f32.mrf.mxu0
      %v3561 = vadd.f32 %v3488, %v3560
      %v3562 = vpop.f32.mrf.mxu0
      %v3563 = vadd.f32 %v3490, %v3562
      %3564 = vmatmul.bf16.gmra.mxu0 %v3451
      %v3565 = vpop.f32.mrf.mxu0
      %v3566 = vadd.f32 %v3493, %v3565
      %v3567 = vpop.f32.mrf.mxu0
      %v3568 = vadd.f32 %v3495, %v3567
      %3569 = vmatmul.bf16.gmra.mxu0 %v3454
      %v3570 = vpop.f32.mrf.mxu0
      %v3571 = vadd.f32 %v3498, %v3570
      %v3572 = vpop.f32.mrf.mxu0
      %v3573 = vadd.f32 %v3500, %v3572
      %3574 = vmatmul.bf16.gmra.mxu0 %v3457
      %v3575 = vpop.f32.mrf.mxu0
      %v3576 = vadd.f32 %v3503, %v3575
      %v3577 = vpop.f32.mrf.mxu0
      %v3578 = vadd.f32 %v3505, %v3577
      %3579 = vmatmul.bf16.gmra.mxu0 %v3460
      %v3580 = vpop.f32.mrf.mxu0
      %v3581 = vadd.f32 %v3508, %v3580
      %v3582 = vpop.f32.mrf.mxu0
      %v3583 = vadd.f32 %v3510, %v3582
      %3584 = vmatmul.bf16.gmra.mxu0 %v3463
      %v3585 = vpop.f32.mrf.mxu0
      %v3586 = vadd.f32 %v3513, %v3585
      %v3587 = vpop.f32.mrf.mxu0
      %v3588 = vadd.f32 %v3515, %v3587
      %3589 = vdwg.mxu0
      %v3591 = vshrl.u32 %v3197, 16
      %v3593 = vrot.slane %v3591, 7
      %v3594 = vrot.slane %v3593, 4
      %v3596 = vshrl.u32 %v3198, 16
      %v3598 = vrot.slane %v3596, 7
      %v3599 = vshll.u32 %v3198, 16
      %v3601 = vor.u32 %v3598, %v3599
      %v3602 = vsel %vm3202, %v3594, %v3601
      %v3603 = vrot.slane %v3598, 4
      %v3605 = vshrl.u32 %v3199, 16
      %v3607 = vrot.slane %v3605, 7
      %v3608 = vshll.u32 %v3199, 16
      %v3610 = vor.u32 %v3607, %v3608
      %v3611 = vsel %vm3202, %v3603, %v3610
      %v3612 = vunpack.c.l.b16 %v3602
      %v3613 = vunpack.c.l.b16 %v3611
      %v3614 = vpack.c.b16 %v3613, %v3612
      %v3621 = vunpack.c.l.b16 %v479
      %v3622 = vunpack.c.l.b16 %v480
      %v3623 = vunpack.c.l.b16 %v481
      %v3624 = vunpack.c.l.b16 %v482
      %v3625 = vunpack.c.l.b16 %v483
      %v3626 = vunpack.c.l.b16 %v484
      %v3627 = vpack.c.b16 %v3622, %v3621
      %v3628 = vpack.c.b16 %v3624, %v3623
      %v3629 = vpack.c.b16 %v3626, %v3625
      %v3634 = vsel %vm3443, %v3614, 0
      %3636 = vmatpush.bf16.msra.mxu0 0
      %3637 = vmatpush.bf16.msra.mxu0 0
      %3638 = vmatpush.bf16.msra.mxu0 0
      %3639 = vmatpush.bf16.msra.mxu0 0
      %3640 = vmatpush.bf16.msra.mxu0 0
      %3641 = vmatpush.bf16.msra.mxu0 %v3629
      %3642 = vmatpush.bf16.msra.mxu0 %v3628
      %3643 = vmatpush.bf16.msra.mxu0 %v3627
      %3644 = vmatmul.bf16.gmra.mxu0 %v3448
      %v3645 = vpop.f32.mrf.mxu0
      %v3646 = vadd.f32 0.0, %v3645
      %v3647 = vpop.f32.mrf.mxu0
      %v3648 = vadd.f32 0.0, %v3647
      %3649 = vmatmul.bf16.gmra.mxu0 %v3451
      %v3650 = vpop.f32.mrf.mxu0
      %v3651 = vadd.f32 0.0, %v3650
      %v3652 = vpop.f32.mrf.mxu0
      %v3653 = vadd.f32 0.0, %v3652
      %3654 = vmatmul.bf16.gmra.mxu0 %v3454
      %v3655 = vpop.f32.mrf.mxu0
      %v3656 = vadd.f32 0.0, %v3655
      %v3657 = vpop.f32.mrf.mxu0
      %v3658 = vadd.f32 0.0, %v3657
      %3659 = vmatmul.bf16.gmra.mxu0 %v3457
      %v3660 = vpop.f32.mrf.mxu0
      %v3661 = vadd.f32 0.0, %v3660
      %v3662 = vpop.f32.mrf.mxu0
      %v3663 = vadd.f32 0.0, %v3662
      %3664 = vmatmul.bf16.gmra.mxu0 %v3460
      %v3665 = vpop.f32.mrf.mxu0
      %v3666 = vadd.f32 0.0, %v3665
      %v3667 = vpop.f32.mrf.mxu0
      %v3668 = vadd.f32 0.0, %v3667
      %3669 = vmatmul.bf16.gmra.mxu0 %v3463
      %v3670 = vpop.f32.mrf.mxu0
      %v3671 = vadd.f32 0.0, %v3670
      %v3672 = vpop.f32.mrf.mxu0
      %v3673 = vadd.f32 0.0, %v3672
      %3674 = vmatmul.bf16.gmra.mxu0 %v3466
      %v3675 = vpop.f32.mrf.mxu0
      %v3676 = vadd.f32 0.0, %v3675
      %v3677 = vpop.f32.mrf.mxu0
      %v3678 = vadd.f32 0.0, %v3677
      %3679 = vmatmul.bf16.gmra.mxu0 %v3634
      %v3680 = vpop.f32.mrf.mxu0
      %v3681 = vadd.f32 0.0, %v3680
      %v3682 = vpop.f32.mrf.mxu0
      %v3683 = vadd.f32 0.0, %v3682
      %3684 = vdwg.mxu0
      %v3685 = vadd.f32 %v3551, %v3646
      %v3686 = vadd.f32 %v3553, %v3648
      %v3687 = vadd.f32 %v3556, %v3651
      %v3688 = vadd.f32 %v3558, %v3653
      %v3689 = vadd.f32 %v3561, %v3656
      %v3690 = vadd.f32 %v3563, %v3658
      %v3691 = vadd.f32 %v3566, %v3661
      %v3692 = vadd.f32 %v3568, %v3663
      %v3693 = vadd.f32 %v3571, %v3666
      %v3694 = vadd.f32 %v3573, %v3668
      %v3695 = vadd.f32 %v3576, %v3671
      %v3696 = vadd.f32 %v3578, %v3673
      %v3697 = vadd.f32 %v3581, %v3676
      %v3698 = vadd.f32 %v3583, %v3678
      %v3699 = vadd.f32 %v3586, %v3681
      %v3700 = vadd.f32 %v3588, %v3683
      %v3717 = vunpack.c.l.b16 %v3171
      %v3718 = vunpack.c.l.b16 %v3172
      %v3719 = vunpack.c.l.b16 %v3174
      %v3720 = vunpack.c.l.b16 %v3175
      %v3721 = vunpack.c.l.b16 %v3177
      %v3722 = vunpack.c.l.b16 %v3178
      %v3723 = vunpack.c.l.b16 %v3180
      %v3724 = vunpack.c.l.b16 %v3181
      %v3725 = vunpack.c.l.b16 %v3183
      %v3726 = vunpack.c.l.b16 %v3184
      %v3727 = vunpack.c.l.b16 %v3186
      %v3728 = vunpack.c.l.b16 %v3187
      %v3729 = vunpack.c.l.b16 %v3189
      %v3730 = vunpack.c.l.b16 %v3190
      %v3731 = vunpack.c.l.b16 %v3192
      %v3732 = vunpack.c.l.b16 %v3193
      %v3733 = vpack.c.b16 %v3718, %v3717
      %v3734 = vpack.c.b16 %v3720, %v3719
      %v3735 = vpack.c.b16 %v3722, %v3721
      %v3736 = vpack.c.b16 %v3724, %v3723
      %v3737 = vpack.c.b16 %v3726, %v3725
      %v3738 = vpack.c.b16 %v3728, %v3727
      %v3739 = vpack.c.b16 %v3730, %v3729
      %v3740 = vpack.c.b16 %v3732, %v3731
      %v3747 = vunpack.c.l.b16 %v444
      %v3748 = vunpack.c.l.b16 %v445
      %v3749 = vunpack.c.l.b16 %v446
      %v3750 = vunpack.c.l.b16 %v447
      %v3751 = vunpack.c.l.b16 %v448
      %v3752 = vunpack.c.l.b16 %v449
      %v3753 = vpack.c.b16 %v3748, %v3747
      %v3754 = vpack.c.b16 %v3750, %v3749
      %v3755 = vpack.c.b16 %v3752, %v3751
      %v3760 = vsel %vm3443, %v3733, 0
      %v3763 = vsel %vm3443, %v3734, 0
      %v3766 = vsel %vm3443, %v3735, 0
      %v3769 = vsel %vm3443, %v3736, 0
      %v3772 = vsel %vm3443, %v3737, 0
      %v3775 = vsel %vm3443, %v3738, 0
      %v3778 = vsel %vm3443, %v3739, 0
      %v3781 = vsel %vm3443, %v3740, 0
      %3783 = vmatpush.bf16.msra.mxu0 0
      %3784 = vmatpush.bf16.msra.mxu0 0
      %3785 = vmatpush.bf16.msra.mxu0 0
      %3786 = vmatpush.bf16.msra.mxu0 0
      %3787 = vmatpush.bf16.msra.mxu0 0
      %3788 = vmatpush.bf16.msra.mxu0 %v3755
      %3789 = vmatpush.bf16.msra.mxu0 %v3754
      %3790 = vmatpush.bf16.msra.mxu0 %v3753
      %3791 = vmatmul.bf16.gmra.mxu0 %v3760
      %v3792 = vpop.f32.mrf.mxu0
      %v3793 = vadd.f32 0.0, %v3792
      %v3794 = vpop.f32.mrf.mxu0
      %v3795 = vadd.f32 0.0, %v3794
      %3796 = vmatmul.bf16.gmra.mxu0 %v3763
      %v3797 = vpop.f32.mrf.mxu0
      %v3798 = vadd.f32 0.0, %v3797
      %v3799 = vpop.f32.mrf.mxu0
      %v3800 = vadd.f32 0.0, %v3799
      %3801 = vmatmul.bf16.gmra.mxu0 %v3766
      %v3802 = vpop.f32.mrf.mxu0
      %v3803 = vadd.f32 0.0, %v3802
      %v3804 = vpop.f32.mrf.mxu0
      %v3805 = vadd.f32 0.0, %v3804
      %3806 = vmatmul.bf16.gmra.mxu0 %v3769
      %v3807 = vpop.f32.mrf.mxu0
      %v3808 = vadd.f32 0.0, %v3807
      %v3809 = vpop.f32.mrf.mxu0
      %v3810 = vadd.f32 0.0, %v3809
      %3811 = vmatmul.bf16.gmra.mxu0 %v3772
      %v3812 = vpop.f32.mrf.mxu0
      %v3813 = vadd.f32 0.0, %v3812
      %v3814 = vpop.f32.mrf.mxu0
      %v3815 = vadd.f32 0.0, %v3814
      %3816 = vmatmul.bf16.gmra.mxu0 %v3775
      %v3817 = vpop.f32.mrf.mxu0
      %v3818 = vadd.f32 0.0, %v3817
      %v3819 = vpop.f32.mrf.mxu0
      %v3820 = vadd.f32 0.0, %v3819
      %3821 = vmatmul.bf16.gmra.mxu0 %v3778
      %v3822 = vpop.f32.mrf.mxu0
      %v3823 = vadd.f32 0.0, %v3822
      %v3824 = vpop.f32.mrf.mxu0
      %v3825 = vadd.f32 0.0, %v3824
      %3826 = vmatmul.bf16.gmra.mxu0 %v3781
      %v3827 = vpop.f32.mrf.mxu0
      %v3828 = vadd.f32 0.0, %v3827
      %v3829 = vpop.f32.mrf.mxu0
      %v3830 = vadd.f32 0.0, %v3829
      %3831 = vdwg.mxu0
      %v3832 = vadd.f32 %v3685, %v3793
      %v3833 = vadd.f32 %v3686, %v3795
      %v3834 = vadd.f32 %v3687, %v3798
      %v3835 = vadd.f32 %v3688, %v3800
      %v3836 = vadd.f32 %v3689, %v3803
      %v3837 = vadd.f32 %v3690, %v3805
      %v3838 = vadd.f32 %v3691, %v3808
      %v3839 = vadd.f32 %v3692, %v3810
      %v3840 = vadd.f32 %v3693, %v3813
      %v3841 = vadd.f32 %v3694, %v3815
      %v3842 = vadd.f32 %v3695, %v3818
      %v3843 = vadd.f32 %v3696, %v3820
      %v3844 = vadd.f32 %v3697, %v3823
      %v3845 = vadd.f32 %v3698, %v3825
      %v3846 = vadd.f32 %v3699, %v3828
      %v3847 = vadd.f32 %v3700, %v3830
      %v3850 = vunpack.c.l.b16 %v3195
      %v3851 = vunpack.c.l.b16 %v3196
      %v3852 = vpack.c.b16 %v3851, %v3850
      %v3859 = vunpack.c.l.b16 %v465
      %v3860 = vunpack.c.l.b16 %v466
      %v3861 = vunpack.c.l.b16 %v467
      %v3862 = vunpack.c.l.b16 %v468
      %v3863 = vunpack.c.l.b16 %v469
      %v3864 = vunpack.c.l.b16 %v470
      %v3865 = vpack.c.b16 %v3860, %v3859
      %v3866 = vpack.c.b16 %v3862, %v3861
      %v3867 = vpack.c.b16 %v3864, %v3863
      %v3872 = vsel %vm3443, %v3852, 0
      %3874 = vmatpush.bf16.msra.mxu0 0
      %3875 = vmatpush.bf16.msra.mxu0 0
      %3876 = vmatpush.bf16.msra.mxu0 0
      %3877 = vmatpush.bf16.msra.mxu0 0
      %3878 = vmatpush.bf16.msra.mxu0 0
      %3879 = vmatpush.bf16.msra.mxu0 %v3867
      %3880 = vmatpush.bf16.msra.mxu0 %v3866
      %3881 = vmatpush.bf16.msra.mxu0 %v3865
      %3882 = vmatmul.bf16.gmra.mxu0 %v3763
      %v3883 = vpop.f32.mrf.mxu0
      %v3884 = vadd.f32 0.0, %v3883
      %v3885 = vpop.f32.mrf.mxu0
      %v3886 = vadd.f32 0.0, %v3885
      %3887 = vmatmul.bf16.gmra.mxu0 %v3766
      %v3888 = vpop.f32.mrf.mxu0
      %v3889 = vadd.f32 0.0, %v3888
      %v3890 = vpop.f32.mrf.mxu0
      %v3891 = vadd.f32 0.0, %v3890
      %3892 = vmatmul.bf16.gmra.mxu0 %v3769
      %v3893 = vpop.f32.mrf.mxu0
      %v3894 = vadd.f32 0.0, %v3893
      %v3895 = vpop.f32.mrf.mxu0
      %v3896 = vadd.f32 0.0, %v3895
      %3897 = vmatmul.bf16.gmra.mxu0 %v3772
      %v3898 = vpop.f32.mrf.mxu0
      %v3899 = vadd.f32 0.0, %v3898
      %v3900 = vpop.f32.mrf.mxu0
      %v3901 = vadd.f32 0.0, %v3900
      %3902 = vmatmul.bf16.gmra.mxu0 %v3775
      %v3903 = vpop.f32.mrf.mxu0
      %v3904 = vadd.f32 0.0, %v3903
      %v3905 = vpop.f32.mrf.mxu0
      %v3906 = vadd.f32 0.0, %v3905
      %3907 = vmatmul.bf16.gmra.mxu0 %v3778
      %v3908 = vpop.f32.mrf.mxu0
      %v3909 = vadd.f32 0.0, %v3908
      %v3910 = vpop.f32.mrf.mxu0
      %v3911 = vadd.f32 0.0, %v3910
      %3912 = vmatmul.bf16.gmra.mxu0 %v3781
      %v3913 = vpop.f32.mrf.mxu0
      %v3914 = vadd.f32 0.0, %v3913
      %v3915 = vpop.f32.mrf.mxu0
      %v3916 = vadd.f32 0.0, %v3915
      %3917 = vmatmul.bf16.gmra.mxu0 %v3872
      %v3918 = vpop.f32.mrf.mxu0
      %v3919 = vadd.f32 0.0, %v3918
      %v3920 = vpop.f32.mrf.mxu0
      %v3921 = vadd.f32 0.0, %v3920
      %3922 = vdwg.mxu0
      %v3923 = vadd.f32 %v3832, %v3884
      %v3924 = vadd.f32 %v3833, %v3886
      %v3925 = vadd.f32 %v3834, %v3889
      %v3926 = vadd.f32 %v3835, %v3891
      %v3927 = vadd.f32 %v3836, %v3894
      %v3928 = vadd.f32 %v3837, %v3896
      %v3929 = vadd.f32 %v3838, %v3899
      %v3930 = vadd.f32 %v3839, %v3901
      %v3931 = vadd.f32 %v3840, %v3904
      %v3932 = vadd.f32 %v3841, %v3906
      %v3933 = vadd.f32 %v3842, %v3909
      %v3934 = vadd.f32 %v3843, %v3911
      %v3935 = vadd.f32 %v3844, %v3914
      %v3936 = vadd.f32 %v3845, %v3916
      %v3937 = vadd.f32 %v3846, %v3919
      %v3938 = vadd.f32 %v3847, %v3921
      %v3941 = vunpack.c.l.b16 %v3198
      %v3942 = vunpack.c.l.b16 %v3199
      %v3943 = vpack.c.b16 %v3942, %v3941
      %v3950 = vunpack.c.l.b16 %v486
      %v3951 = vunpack.c.l.b16 %v487
      %v3952 = vunpack.c.l.b16 %v488
      %v3953 = vunpack.c.l.b16 %v489
      %v3954 = vunpack.c.l.b16 %v490
      %v3955 = vunpack.c.l.b16 %v491
      %v3956 = vpack.c.b16 %v3951, %v3950
      %v3957 = vpack.c.b16 %v3953, %v3952
      %v3958 = vpack.c.b16 %v3955, %v3954
      %v3963 = vsel %vm3443, %v3943, 0
      %3965 = vmatpush.bf16.msra.mxu0 0
      %3966 = vmatpush.bf16.msra.mxu0 0
      %3967 = vmatpush.bf16.msra.mxu0 0
      %3968 = vmatpush.bf16.msra.mxu0 0
      %3969 = vmatpush.bf16.msra.mxu0 0
      %3970 = vmatpush.bf16.msra.mxu0 %v3958
      %3971 = vmatpush.bf16.msra.mxu0 %v3957
      %3972 = vmatpush.bf16.msra.mxu0 %v3956
      %3973 = vmatmul.bf16.gmra.mxu0 %v3766
      %v3974 = vpop.f32.mrf.mxu0
      %v3975 = vadd.f32 0.0, %v3974
      %v3976 = vpop.f32.mrf.mxu0
      %v3977 = vadd.f32 0.0, %v3976
      %3978 = vmatmul.bf16.gmra.mxu0 %v3769
      %v3979 = vpop.f32.mrf.mxu0
      %v3980 = vadd.f32 0.0, %v3979
      %v3981 = vpop.f32.mrf.mxu0
      %v3982 = vadd.f32 0.0, %v3981
      %3983 = vmatmul.bf16.gmra.mxu0 %v3772
      %v3984 = vpop.f32.mrf.mxu0
      %v3985 = vadd.f32 0.0, %v3984
      %v3986 = vpop.f32.mrf.mxu0
      %v3987 = vadd.f32 0.0, %v3986
      %3988 = vmatmul.bf16.gmra.mxu0 %v3775
      %v3989 = vpop.f32.mrf.mxu0
      %v3990 = vadd.f32 0.0, %v3989
      %v3991 = vpop.f32.mrf.mxu0
      %v3992 = vadd.f32 0.0, %v3991
      %3993 = vmatmul.bf16.gmra.mxu0 %v3778
      %v3994 = vpop.f32.mrf.mxu0
      %v3995 = vadd.f32 0.0, %v3994
      %v3996 = vpop.f32.mrf.mxu0
      %v3997 = vadd.f32 0.0, %v3996
      %3998 = vmatmul.bf16.gmra.mxu0 %v3781
      %v3999 = vpop.f32.mrf.mxu0
      %v4000 = vadd.f32 0.0, %v3999
      %v4001 = vpop.f32.mrf.mxu0
      %v4002 = vadd.f32 0.0, %v4001
      %4003 = vmatmul.bf16.gmra.mxu0 %v3872
      %v4004 = vpop.f32.mrf.mxu0
      %v4005 = vadd.f32 0.0, %v4004
      %v4006 = vpop.f32.mrf.mxu0
      %v4007 = vadd.f32 0.0, %v4006
      %4008 = vmatmul.bf16.gmra.mxu0 %v3963
      %v4009 = vpop.f32.mrf.mxu0
      %v4010 = vadd.f32 0.0, %v4009
      %v4011 = vpop.f32.mrf.mxu0
      %v4012 = vadd.f32 0.0, %v4011
      %4013 = vdwg.mxu0
      %v4014 = vadd.f32 %v3923, %v3975
      %v4015 = vadd.f32 %v3924, %v3977
      %v4016 = vadd.f32 %v3925, %v3980
      %v4017 = vadd.f32 %v3926, %v3982
      %v4018 = vadd.f32 %v3927, %v3985
      %v4019 = vadd.f32 %v3928, %v3987
      %v4020 = vadd.f32 %v3929, %v3990
      %v4021 = vadd.f32 %v3930, %v3992
      %v4022 = vadd.f32 %v3931, %v3995
      %v4023 = vadd.f32 %v3932, %v3997
      %v4024 = vadd.f32 %v3933, %v4000
      %v4025 = vadd.f32 %v3934, %v4002
      %v4026 = vadd.f32 %v3935, %v4005
      %v4027 = vadd.f32 %v3936, %v4007
      %v4028 = vadd.f32 %v3937, %v4010
      %v4029 = vadd.f32 %v3938, %v4012
      %v4030 = vld [vmem:[#allocation2 + $0x4] sm:$0xf]
      %v4031 = vld [vmem:[#allocation2 + $0x8] sm:$0xf]
      %v4032 = vld [vmem:[#allocation2 + $0xc] sm:$0x1]
      %v4033 = vld [vmem:[#allocation2 + $0x14] sm:$0xf]
      %v4034 = vld [vmem:[#allocation2 + $0x18] sm:$0xf]
      %v4035 = vld [vmem:[#allocation2 + $0x1c] sm:$0x1]
      %v4036 = vld [vmem:[#allocation2 + $0x24] sm:$0xf]
      %v4037 = vld [vmem:[#allocation2 + $0x28] sm:$0xf]
      %v4038 = vld [vmem:[#allocation2 + $0x2c] sm:$0x1]
      %v4039 = vld [vmem:[#allocation2 + $0x34] sm:$0xf]
      %v4040 = vld [vmem:[#allocation2 + $0x38] sm:$0xf]
      %v4041 = vld [vmem:[#allocation2 + $0x3c] sm:$0x1]
      %v4042 = vld [vmem:[#allocation2 + $0x44] sm:$0xf]
      %v4043 = vld [vmem:[#allocation2 + $0x48] sm:$0xf]
      %v4044 = vld [vmem:[#allocation2 + $0x4c] sm:$0x1]
      %v4045 = vld [vmem:[#allocation2 + $0x54] sm:$0xf]
      %v4046 = vld [vmem:[#allocation2 + $0x58] sm:$0xf]
      %v4047 = vld [vmem:[#allocation2 + $0x5c] sm:$0x1]
      %v4048 = vld [vmem:[#allocation2 + $0x64] sm:$0xf]
      %v4049 = vld [vmem:[#allocation2 + $0x68] sm:$0xf]
      %v4050 = vld [vmem:[#allocation2 + $0x6c] sm:$0x1]
      %v4051 = vld [vmem:[#allocation2 + $0x74] sm:$0xf]
      %v4052 = vld [vmem:[#allocation2 + $0x78] sm:$0xf]
      %v4053 = vld [vmem:[#allocation2 + $0x7c] sm:$0x1]
      %v4054 = vld [vmem:[#allocation2 + $0x84] sm:$0xf]
      %v4055 = vld [vmem:[#allocation2 + $0x88] sm:$0xf]
      %v4056 = vld [vmem:[#allocation2 + $0x8c] sm:$0x1]
      %v4057 = vld [vmem:[#allocation2 + $0x94] sm:$0xf]
      %v4058 = vld [vmem:[#allocation2 + $0x98] sm:$0xf]
      %v4059 = vld [vmem:[#allocation2 + $0x9c] sm:$0x1]
      %v4061 = vshrl.u32 %v4030, 16
      %v4063 = vrot.slane %v4061, 4
      %v4064 = vshll.u32 %v4030, 16
      %v4066 = vrot.slane %v4064, 5
      %v4067 = vor.u32 %v4063, %v4066
      %v4068 = vrot.slane %v4067, 4
      %v4070 = vshll.u32 %v4031, 16
      %v4072 = vrot.slane %v4070, 5
      %v4073 = vsel %vm876, %v4068, %v4072
      %v4074 = vshrl.u32 %v4031, 16
      %v4076 = vrot.slane %v4074, 4
      %v4077 = vor.u32 %v4076, %v4072
      %v4078 = vrot.slane %v4077, 4
      %v4080 = vshll.u32 %v4032, 16
      %v4082 = vrot.slane %v4080, 5
      %v4083 = vsel %vm876, %v4078, %v4082
      %v4085 = vshrl.u32 %v4033, 16
      %v4087 = vrot.slane %v4085, 4
      %v4088 = vshll.u32 %v4033, 16
      %v4090 = vrot.slane %v4088, 5
      %v4091 = vor.u32 %v4087, %v4090
      %v4092 = vrot.slane %v4091, 4
      %v4094 = vshll.u32 %v4034, 16
      %v4096 = vrot.slane %v4094, 5
      %v4097 = vsel %vm876, %v4092, %v4096
      %v4098 = vshrl.u32 %v4034, 16
      %v4100 = vrot.slane %v4098, 4
      %v4101 = vor.u32 %v4100, %v4096
      %v4102 = vrot.slane %v4101, 4
      %v4104 = vshll.u32 %v4035, 16
      %v4106 = vrot.slane %v4104, 5
      %v4107 = vsel %vm876, %v4102, %v4106
      %v4109 = vshrl.u32 %v4036, 16
      %v4111 = vrot.slane %v4109, 4
      %v4112 = vshll.u32 %v4036, 16
      %v4114 = vrot.slane %v4112, 5
      %v4115 = vor.u32 %v4111, %v4114
      %v4116 = vrot.slane %v4115, 4
      %v4118 = vshll.u32 %v4037, 16
      %v4120 = vrot.slane %v4118, 5
      %v4121 = vsel %vm876, %v4116, %v4120
      %v4122 = vshrl.u32 %v4037, 16
      %v4124 = vrot.slane %v4122, 4
      %v4125 = vor.u32 %v4124, %v4120
      %v4126 = vrot.slane %v4125, 4
      %v4128 = vshll.u32 %v4038, 16
      %v4130 = vrot.slane %v4128, 5
      %v4131 = vsel %vm876, %v4126, %v4130
      %v4133 = vshrl.u32 %v4039, 16
      %v4135 = vrot.slane %v4133, 4
      %v4136 = vshll.u32 %v4039, 16
      %v4138 = vrot.slane %v4136, 5
      %v4139 = vor.u32 %v4135, %v4138
      %v4140 = vrot.slane %v4139, 4
      %v4142 = vshll.u32 %v4040, 16
      %v4144 = vrot.slane %v4142, 5
      %v4145 = vsel %vm876, %v4140, %v4144
      %v4146 = vshrl.u32 %v4040, 16
      %v4148 = vrot.slane %v4146, 4
      %v4149 = vor.u32 %v4148, %v4144
      %v4150 = vrot.slane %v4149, 4
      %v4152 = vshll.u32 %v4041, 16
      %v4154 = vrot.slane %v4152, 5
      %v4155 = vsel %vm876, %v4150, %v4154
      %v4157 = vshrl.u32 %v4042, 16
      %v4159 = vrot.slane %v4157, 4
      %v4160 = vshll.u32 %v4042, 16
      %v4162 = vrot.slane %v4160, 5
      %v4163 = vor.u32 %v4159, %v4162
      %v4164 = vrot.slane %v4163, 4
      %v4166 = vshll.u32 %v4043, 16
      %v4168 = vrot.slane %v4166, 5
      %v4169 = vsel %vm876, %v4164, %v4168
      %v4170 = vshrl.u32 %v4043, 16
      %v4172 = vrot.slane %v4170, 4
      %v4173 = vor.u32 %v4172, %v4168
      %v4174 = vrot.slane %v4173, 4
      %v4176 = vshll.u32 %v4044, 16
      %v4178 = vrot.slane %v4176, 5
      %v4179 = vsel %vm876, %v4174, %v4178
      %v4181 = vshrl.u32 %v4045, 16
      %v4183 = vrot.slane %v4181, 4
      %v4184 = vshll.u32 %v4045, 16
      %v4186 = vrot.slane %v4184, 5
      %v4187 = vor.u32 %v4183, %v4186
      %v4188 = vrot.slane %v4187, 4
      %v4190 = vshll.u32 %v4046, 16
      %v4192 = vrot.slane %v4190, 5
      %v4193 = vsel %vm876, %v4188, %v4192
      %v4194 = vshrl.u32 %v4046, 16
      %v4196 = vrot.slane %v4194, 4
      %v4197 = vor.u32 %v4196, %v4192
      %v4198 = vrot.slane %v4197, 4
      %v4200 = vshll.u32 %v4047, 16
      %v4202 = vrot.slane %v4200, 5
      %v4203 = vsel %vm876, %v4198, %v4202
      %v4205 = vshrl.u32 %v4048, 16
      %v4207 = vrot.slane %v4205, 4
      %v4208 = vshll.u32 %v4048, 16
      %v4210 = vrot.slane %v4208, 5
      %v4211 = vor.u32 %v4207, %v4210
      %v4212 = vrot.slane %v4211, 4
      %v4214 = vshll.u32 %v4049, 16
      %v4216 = vrot.slane %v4214, 5
      %v4217 = vsel %vm876, %v4212, %v4216
      %v4218 = vshrl.u32 %v4049, 16
      %v4220 = vrot.slane %v4218, 4
      %v4221 = vor.u32 %v4220, %v4216
      %v4222 = vrot.slane %v4221, 4
      %v4224 = vshll.u32 %v4050, 16
      %v4226 = vrot.slane %v4224, 5
      %v4227 = vsel %vm876, %v4222, %v4226
      %v4229 = vshrl.u32 %v4051, 16
      %v4231 = vrot.slane %v4229, 4
      %v4232 = vshll.u32 %v4051, 16
      %v4234 = vrot.slane %v4232, 5
      %v4235 = vor.u32 %v4231, %v4234
      %v4236 = vrot.slane %v4235, 4
      %v4238 = vshll.u32 %v4052, 16
      %v4240 = vrot.slane %v4238, 5
      %v4241 = vsel %vm876, %v4236, %v4240
      %v4242 = vshrl.u32 %v4052, 16
      %v4244 = vrot.slane %v4242, 4
      %v4245 = vor.u32 %v4244, %v4240
      %v4246 = vrot.slane %v4245, 4
      %v4248 = vshll.u32 %v4053, 16
      %v4250 = vrot.slane %v4248, 5
      %v4251 = vsel %vm876, %v4246, %v4250
      %v4252 = vunpack.c.l.b16 %v4073
      %v4253 = vunpack.c.l.b16 %v4083
      %v4254 = vunpack.c.l.b16 %v4097
      %v4255 = vunpack.c.l.b16 %v4107
      %v4256 = vunpack.c.l.b16 %v4121
      %v4257 = vunpack.c.l.b16 %v4131
      %v4258 = vunpack.c.l.b16 %v4145
      %v4259 = vunpack.c.l.b16 %v4155
      %v4260 = vunpack.c.l.b16 %v4169
      %v4261 = vunpack.c.l.b16 %v4179
      %v4262 = vunpack.c.l.b16 %v4193
      %v4263 = vunpack.c.l.b16 %v4203
      %v4264 = vunpack.c.l.b16 %v4217
      %v4265 = vunpack.c.l.b16 %v4227
      %v4266 = vunpack.c.l.b16 %v4241
      %v4267 = vunpack.c.l.b16 %v4251
      %v4268 = vpack.c.b16 %v4253, %v4252
      %v4269 = vpack.c.b16 %v4255, %v4254
      %v4270 = vpack.c.b16 %v4257, %v4256
      %v4271 = vpack.c.b16 %v4259, %v4258
      %v4272 = vpack.c.b16 %v4261, %v4260
      %v4273 = vpack.c.b16 %v4263, %v4262
      %v4274 = vpack.c.b16 %v4265, %v4264
      %v4275 = vpack.c.b16 %v4267, %v4266
      %v4282 = vunpack.c.l.b16 %v451
      %v4283 = vunpack.c.l.b16 %v452
      %v4284 = vunpack.c.l.b16 %v453
      %v4285 = vunpack.c.l.b16 %v454
      %v4286 = vunpack.c.l.b16 %v455
      %v4287 = vunpack.c.l.b16 %v456
      %v4288 = vpack.c.b16 %v4283, %v4282
      %v4289 = vpack.c.b16 %v4285, %v4284
      %v4290 = vpack.c.b16 %v4287, %v4286
      %v4295 = vsel %vm3443, %v4268, 0
      %v4298 = vsel %vm3443, %v4269, 0
      %v4301 = vsel %vm3443, %v4270, 0
      %v4304 = vsel %vm3443, %v4271, 0
      %v4307 = vsel %vm3443, %v4272, 0
      %v4310 = vsel %vm3443, %v4273, 0
      %v4313 = vsel %vm3443, %v4274, 0
      %v4316 = vsel %vm3443, %v4275, 0
      %4318 = vmatpush.bf16.msra.mxu0 0
      %4319 = vmatpush.bf16.msra.mxu0 0
      %4320 = vmatpush.bf16.msra.mxu0 0
      %4321 = vmatpush.bf16.msra.mxu0 0
      %4322 = vmatpush.bf16.msra.mxu0 0
      %4323 = vmatpush.bf16.msra.mxu0 %v4290
      %4324 = vmatpush.bf16.msra.mxu0 %v4289
      %4325 = vmatpush.bf16.msra.mxu0 %v4288
      %4326 = vmatmul.bf16.gmra.mxu0 %v4295
      %v4327 = vpop.f32.mrf.mxu0
      %v4328 = vadd.f32 0.0, %v4327
      %v4329 = vpop.f32.mrf.mxu0
      %v4330 = vadd.f32 0.0, %v4329
      %4331 = vmatmul.bf16.gmra.mxu0 %v4298
      %v4332 = vpop.f32.mrf.mxu0
      %v4333 = vadd.f32 0.0, %v4332
      %v4334 = vpop.f32.mrf.mxu0
      %v4335 = vadd.f32 0.0, %v4334
      %4336 = vmatmul.bf16.gmra.mxu0 %v4301
      %v4337 = vpop.f32.mrf.mxu0
      %v4338 = vadd.f32 0.0, %v4337
      %v4339 = vpop.f32.mrf.mxu0
      %v4340 = vadd.f32 0.0, %v4339
      %4341 = vmatmul.bf16.gmra.mxu0 %v4304
      %v4342 = vpop.f32.mrf.mxu0
      %v4343 = vadd.f32 0.0, %v4342
      %v4344 = vpop.f32.mrf.mxu0
      %v4345 = vadd.f32 0.0, %v4344
      %4346 = vmatmul.bf16.gmra.mxu0 %v4307
      %v4347 = vpop.f32.mrf.mxu0
      %v4348 = vadd.f32 0.0, %v4347
      %v4349 = vpop.f32.mrf.mxu0
      %v4350 = vadd.f32 0.0, %v4349
      %4351 = vmatmul.bf16.gmra.mxu0 %v4310
      %v4352 = vpop.f32.mrf.mxu0
      %v4353 = vadd.f32 0.0, %v4352
      %v4354 = vpop.f32.mrf.mxu0
      %v4355 = vadd.f32 0.0, %v4354
      %4356 = vmatmul.bf16.gmra.mxu0 %v4313
      %v4357 = vpop.f32.mrf.mxu0
      %v4358 = vadd.f32 0.0, %v4357
      %v4359 = vpop.f32.mrf.mxu0
      %v4360 = vadd.f32 0.0, %v4359
      %4361 = vmatmul.bf16.gmra.mxu0 %v4316
      %v4362 = vpop.f32.mrf.mxu0
      %v4363 = vadd.f32 0.0, %v4362
      %v4364 = vpop.f32.mrf.mxu0
      %v4365 = vadd.f32 0.0, %v4364
      %4366 = vdwg.mxu0
      %v4367 = vadd.f32 %v4014, %v4328
      %v4368 = vadd.f32 %v4015, %v4330
      %v4369 = vadd.f32 %v4016, %v4333
      %v4370 = vadd.f32 %v4017, %v4335
      %v4371 = vadd.f32 %v4018, %v4338
      %v4372 = vadd.f32 %v4019, %v4340
      %v4373 = vadd.f32 %v4020, %v4343
      %v4374 = vadd.f32 %v4021, %v4345
      %v4375 = vadd.f32 %v4022, %v4348
      %v4376 = vadd.f32 %v4023, %v4350
      %v4377 = vadd.f32 %v4024, %v4353
      %v4378 = vadd.f32 %v4025, %v4355
      %v4379 = vadd.f32 %v4026, %v4358
      %v4380 = vadd.f32 %v4027, %v4360
      %v4381 = vadd.f32 %v4028, %v4363
      %v4382 = vadd.f32 %v4029, %v4365
      %v4384 = vshrl.u32 %v4054, 16
      %v4386 = vrot.slane %v4384, 4
      %v4387 = vshll.u32 %v4054, 16
      %v4389 = vrot.slane %v4387, 5
      %v4390 = vor.u32 %v4386, %v4389
      %v4391 = vrot.slane %v4390, 4
      %v4393 = vshll.u32 %v4055, 16
      %v4395 = vrot.slane %v4393, 5
      %v4396 = vsel %vm876, %v4391, %v4395
      %v4397 = vshrl.u32 %v4055, 16
      %v4399 = vrot.slane %v4397, 4
      %v4400 = vor.u32 %v4399, %v4395
      %v4401 = vrot.slane %v4400, 4
      %v4403 = vshll.u32 %v4056, 16
      %v4405 = vrot.slane %v4403, 5
      %v4406 = vsel %vm876, %v4401, %v4405
      %v4407 = vunpack.c.l.b16 %v4396
      %v4408 = vunpack.c.l.b16 %v4406
      %v4409 = vpack.c.b16 %v4408, %v4407
      %v4416 = vunpack.c.l.b16 %v472
      %v4417 = vunpack.c.l.b16 %v473
      %v4418 = vunpack.c.l.b16 %v474
      %v4419 = vunpack.c.l.b16 %v475
      %v4420 = vunpack.c.l.b16 %v476
      %v4421 = vunpack.c.l.b16 %v477
      %v4422 = vpack.c.b16 %v4417, %v4416
      %v4423 = vpack.c.b16 %v4419, %v4418
      %v4424 = vpack.c.b16 %v4421, %v4420
      %v4429 = vsel %vm3443, %v4409, 0
      %4431 = vmatpush.bf16.msra.mxu0 0
      %4432 = vmatpush.bf16.msra.mxu0 0
      %4433 = vmatpush.bf16.msra.mxu0 0
      %4434 = vmatpush.bf16.msra.mxu0 0
      %4435 = vmatpush.bf16.msra.mxu0 0
      %4436 = vmatpush.bf16.msra.mxu0 %v4424
      %4437 = vmatpush.bf16.msra.mxu0 %v4423
      %4438 = vmatpush.bf16.msra.mxu0 %v4422
      %4439 = vmatmul.bf16.gmra.mxu0 %v4298
      %v4440 = vpop.f32.mrf.mxu0
      %v4441 = vadd.f32 0.0, %v4440
      %v4442 = vpop.f32.mrf.mxu0
      %v4443 = vadd.f32 0.0, %v4442
      %4444 = vmatmul.bf16.gmra.mxu0 %v4301
      %v4445 = vpop.f32.mrf.mxu0
      %v4446 = vadd.f32 0.0, %v4445
      %v4447 = vpop.f32.mrf.mxu0
      %v4448 = vadd.f32 0.0, %v4447
      %4449 = vmatmul.bf16.gmra.mxu0 %v4304
      %v4450 = vpop.f32.mrf.mxu0
      %v4451 = vadd.f32 0.0, %v4450
      %v4452 = vpop.f32.mrf.mxu0
      %v4453 = vadd.f32 0.0, %v4452
      %4454 = vmatmul.bf16.gmra.mxu0 %v4307
      %v4455 = vpop.f32.mrf.mxu0
      %v4456 = vadd.f32 0.0, %v4455
      %v4457 = vpop.f32.mrf.mxu0
      %v4458 = vadd.f32 0.0, %v4457
      %4459 = vmatmul.bf16.gmra.mxu0 %v4310
      %v4460 = vpop.f32.mrf.mxu0
      %v4461 = vadd.f32 0.0, %v4460
      %v4462 = vpop.f32.mrf.mxu0
      %v4463 = vadd.f32 0.0, %v4462
      %4464 = vmatmul.bf16.gmra.mxu0 %v4313
      %v4465 = vpop.f32.mrf.mxu0
      %v4466 = vadd.f32 0.0, %v4465
      %v4467 = vpop.f32.mrf.mxu0
      %v4468 = vadd.f32 0.0, %v4467
      %4469 = vmatmul.bf16.gmra.mxu0 %v4316
      %v4470 = vpop.f32.mrf.mxu0
      %v4471 = vadd.f32 0.0, %v4470
      %v4472 = vpop.f32.mrf.mxu0
      %v4473 = vadd.f32 0.0, %v4472
      %4474 = vmatmul.bf16.gmra.mxu0 %v4429
      %v4475 = vpop.f32.mrf.mxu0
      %v4476 = vadd.f32 0.0, %v4475
      %v4477 = vpop.f32.mrf.mxu0
      %v4478 = vadd.f32 0.0, %v4477
      %4479 = vdwg.mxu0
      %v4480 = vadd.f32 %v4367, %v4441
      %v4481 = vadd.f32 %v4368, %v4443
      %v4482 = vadd.f32 %v4369, %v4446
      %v4483 = vadd.f32 %v4370, %v4448
      %v4484 = vadd.f32 %v4371, %v4451
      %v4485 = vadd.f32 %v4372, %v4453
      %v4486 = vadd.f32 %v4373, %v4456
      %v4487 = vadd.f32 %v4374, %v4458
      %v4488 = vadd.f32 %v4375, %v4461
      %v4489 = vadd.f32 %v4376, %v4463
      %v4490 = vadd.f32 %v4377, %v4466
      %v4491 = vadd.f32 %v4378, %v4468
      %v4492 = vadd.f32 %v4379, %v4471
      %v4493 = vadd.f32 %v4380, %v4473
      %v4494 = vadd.f32 %v4381, %v4476
      %v4495 = vadd.f32 %v4382, %v4478
      %v4497 = vshrl.u32 %v4057, 16
      %v4499 = vrot.slane %v4497, 4
      %v4500 = vshll.u32 %v4057, 16
      %v4502 = vrot.slane %v4500, 5
      %v4503 = vor.u32 %v4499, %v4502
      %v4504 = vrot.slane %v4503, 4
      %v4506 = vshll.u32 %v4058, 16
      %v4508 = vrot.slane %v4506, 5
      %v4509 = vsel %vm876, %v4504, %v4508
      %v4510 = vshrl.u32 %v4058, 16
      %v4512 = vrot.slane %v4510, 4
      %v4513 = vor.u32 %v4512, %v4508
      %v4514 = vrot.slane %v4513, 4
      %v4516 = vshll.u32 %v4059, 16
      %v4518 = vrot.slane %v4516, 5
      %v4519 = vsel %vm876, %v4514, %v4518
      %v4520 = vunpack.c.l.b16 %v4509
      %v4521 = vunpack.c.l.b16 %v4519
      %v4522 = vpack.c.b16 %v4521, %v4520
      %v4529 = vunpack.c.l.b16 %v493
      %v4530 = vunpack.c.l.b16 %v494
      %v4531 = vunpack.c.l.b16 %v495
      %v4532 = vunpack.c.l.b16 %v496
      %v4533 = vunpack.c.l.b16 %v497
      %v4534 = vunpack.c.l.b16 %v498
      %v4535 = vpack.c.b16 %v4530, %v4529
      %v4536 = vpack.c.b16 %v4532, %v4531
      %v4537 = vpack.c.b16 %v4534, %v4533
      %v4542 = vsel %vm3443, %v4522, 0
      %4544 = vmatpush.bf16.msra.mxu0 0
      %4545 = vmatpush.bf16.msra.mxu0 0
      %4546 = vmatpush.bf16.msra.mxu0 0
      %4547 = vmatpush.bf16.msra.mxu0 0
      %4548 = vmatpush.bf16.msra.mxu0 0
      %4549 = vmatpush.bf16.msra.mxu0 %v4537
      %4550 = vmatpush.bf16.msra.mxu0 %v4536
      %4551 = vmatpush.bf16.msra.mxu0 %v4535
      %4552 = vmatmul.bf16.gmra.mxu0 %v4301
      %v4553 = vpop.f32.mrf.mxu0
      %v4554 = vadd.f32 0.0, %v4553
      %v4555 = vpop.f32.mrf.mxu0
      %v4556 = vadd.f32 0.0, %v4555
      %4557 = vmatmul.bf16.gmra.mxu0 %v4304
      %v4558 = vpop.f32.mrf.mxu0
      %v4559 = vadd.f32 0.0, %v4558
      %v4560 = vpop.f32.mrf.mxu0
      %v4561 = vadd.f32 0.0, %v4560
      %4562 = vmatmul.bf16.gmra.mxu0 %v4307
      %v4563 = vpop.f32.mrf.mxu0
      %v4564 = vadd.f32 0.0, %v4563
      %v4565 = vpop.f32.mrf.mxu0
      %v4566 = vadd.f32 0.0, %v4565
      %4567 = vmatmul.bf16.gmra.mxu0 %v4310
      %v4568 = vpop.f32.mrf.mxu0
      %v4569 = vadd.f32 0.0, %v4568
      %v4570 = vpop.f32.mrf.mxu0
      %v4571 = vadd.f32 0.0, %v4570
      %4572 = vmatmul.bf16.gmra.mxu0 %v4313
      %v4573 = vpop.f32.mrf.mxu0
      %v4574 = vadd.f32 0.0, %v4573
      %v4575 = vpop.f32.mrf.mxu0
      %v4576 = vadd.f32 0.0, %v4575
      %4577 = vmatmul.bf16.gmra.mxu0 %v4316
      %v4578 = vpop.f32.mrf.mxu0
      %v4579 = vadd.f32 0.0, %v4578
      %v4580 = vpop.f32.mrf.mxu0
      %v4581 = vadd.f32 0.0, %v4580
      %4582 = vmatmul.bf16.gmra.mxu0 %v4429
      %v4583 = vpop.f32.mrf.mxu0
      %v4584 = vadd.f32 0.0, %v4583
      %v4585 = vpop.f32.mrf.mxu0
      %v4586 = vadd.f32 0.0, %v4585
      %4587 = vmatmul.bf16.gmra.mxu0 %v4542
      %v4588 = vpop.f32.mrf.mxu0
      %v4589 = vadd.f32 0.0, %v4588
      %v4590 = vpop.f32.mrf.mxu0
      %v4591 = vadd.f32 0.0, %v4590
      %4592 = vdwg.mxu0
      %v4593 = vadd.f32 %v4480, %v4554
      %v4594 = vadd.f32 %v4481, %v4556
      %v4595 = vadd.f32 %v4482, %v4559
      %v4596 = vadd.f32 %v4483, %v4561
      %v4597 = vadd.f32 %v4484, %v4564
      %v4598 = vadd.f32 %v4485, %v4566
      %v4599 = vadd.f32 %v4486, %v4569
      %v4600 = vadd.f32 %v4487, %v4571
      %v4601 = vadd.f32 %v4488, %v4574
      %v4602 = vadd.f32 %v4489, %v4576
      %v4603 = vadd.f32 %v4490, %v4579
      %v4604 = vadd.f32 %v4491, %v4581
      %v4605 = vadd.f32 %v4492, %v4584
      %v4606 = vadd.f32 %v4493, %v4586
      %v4607 = vadd.f32 %v4494, %v4589
      %v4608 = vadd.f32 %v4495, %v4591
      %v4610 = vperm.slane %v503, 0
      %v4612 = vadd.f32 %v4593, %v4610
      %v4613 = vadd.f32 %v4594, %v4610
      %v4614 = vadd.f32 %v4595, %v4610
      %v4615 = vadd.f32 %v4596, %v4610
      %v4616 = vadd.f32 %v4597, %v4610
      %v4617 = vadd.f32 %v4598, %v4610
      %v4618 = vadd.f32 %v4599, %v4610
      %v4619 = vadd.f32 %v4600, %v4610
      %v4620 = vadd.f32 %v4601, %v4610
      %v4621 = vadd.f32 %v4602, %v4610
      %v4622 = vadd.f32 %v4603, %v4610
      %v4623 = vadd.f32 %v4604, %v4610
      %v4624 = vadd.f32 %v4605, %v4610
      %v4625 = vadd.f32 %v4606, %v4610
      %v4626 = vadd.f32 %v4607, %v4610
      %v4627 = vadd.f32 %v4608, %v4610
      %v4628 = vmax.f32 %v4612, 0.0
      %v4629 = vmax.f32 %v4613, 0.0
      %v4630 = vmax.f32 %v4614, 0.0
      %v4631 = vmax.f32 %v4615, 0.0
      %v4632 = vmax.f32 %v4616, 0.0
      %v4633 = vmax.f32 %v4617, 0.0
      %v4634 = vmax.f32 %v4618, 0.0
      %v4635 = vmax.f32 %v4619, 0.0
      %v4636 = vmax.f32 %v4620, 0.0
      %v4637 = vmax.f32 %v4621, 0.0
      %v4638 = vmax.f32 %v4622, 0.0
      %v4639 = vmax.f32 %v4623, 0.0
      %v4640 = vmax.f32 %v4624, 0.0
      %v4641 = vmax.f32 %v4625, 0.0
      %v4642 = vmax.f32 %v4626, 0.0
      %v4643 = vmax.f32 %v4627, 0.0
      %4644 = vst.msk [vmem:[%s333 + $0x8] sm:$0xff] %vm323, %v4628
      %4645 = vst.msk [vmem:[%s333 + $0x10] sm:$0xff] %vm323, %v4629
      %4646 = vst.msk [vmem:[%s333 + $0x28] sm:$0xff] %vm323, %v4630
      %4647 = vst.msk [vmem:[%s333 + $0x30] sm:$0xff] %vm323, %v4631
      %4648 = vst.msk [vmem:[%s333 + $0x48] sm:$0xff] %vm323, %v4632
      %4649 = vst.msk [vmem:[%s333 + $0x50] sm:$0xff] %vm323, %v4633
      %4650 = vst.msk [vmem:[%s333 + $0x68] sm:$0xff] %vm323, %v4634
      %4651 = vst.msk [vmem:[%s333 + $0x70] sm:$0xff] %vm323, %v4635
      %4652 = vst.msk [vmem:[%s333 + $0x88] sm:$0xff] %vm323, %v4636
      %4653 = vst.msk [vmem:[%s333 + $0x90] sm:$0xff] %vm323, %v4637
      %4654 = vst.msk [vmem:[%s333 + $0xa8] sm:$0xff] %vm323, %v4638
      %4655 = vst.msk [vmem:[%s333 + $0xb0] sm:$0xff] %vm323, %v4639
      %4656 = vst.msk [vmem:[%s333 + $0xc8] sm:$0xff] %vm323, %v4640
      %4657 = vst.msk [vmem:[%s333 + $0xd0] sm:$0xff] %vm323, %v4641
      %4658 = vst.msk [vmem:[%s333 + $0xe8] sm:$0xff] %vm323, %v4642
      %4659 = vst.msk [vmem:[%s333 + $0xf0] sm:$0xff] %vm323, %v4643
      %s4660 = scalar_lea.vmem [#allocation2], 128
      %v4661 = vld [vmem:[%s4660] sm:$0x8]
      %v4662 = vld [vmem:[%s4660 + $0x4] sm:$0xf]
      %v4663 = vld [vmem:[%s4660 + $0x8] sm:$0xf]
      %v4664 = vld [vmem:[%s4660 + $0x10] sm:$0x8]
      %v4665 = vld [vmem:[%s4660 + $0x14] sm:$0xf]
      %v4666 = vld [vmem:[%s4660 + $0x18] sm:$0xf]
      %v4667 = vld [vmem:[%s4660 + $0x20] sm:$0x8]
      %v4668 = vld [vmem:[%s4660 + $0x24] sm:$0xf]
      %v4669 = vld [vmem:[%s4660 + $0x28] sm:$0xf]
      %v4670 = vld [vmem:[%s4660 + $0x30] sm:$0x8]
      %v4671 = vld [vmem:[%s4660 + $0x34] sm:$0xf]
      %v4672 = vld [vmem:[%s4660 + $0x38] sm:$0xf]
      %v4673 = vld [vmem:[%s4660 + $0x40] sm:$0x8]
      %v4674 = vld [vmem:[%s4660 + $0x44] sm:$0xf]
      %v4675 = vld [vmem:[%s4660 + $0x48] sm:$0xf]
      %v4676 = vld [vmem:[%s4660 + $0x50] sm:$0x8]
      %v4677 = vld [vmem:[%s4660 + $0x54] sm:$0xf]
      %v4678 = vld [vmem:[%s4660 + $0x58] sm:$0xf]
      %v4679 = vld [vmem:[%s4660 + $0x60] sm:$0x8]
      %v4680 = vld [vmem:[%s4660 + $0x64] sm:$0xf]
      %v4681 = vld [vmem:[%s4660 + $0x68] sm:$0xf]
      %v4682 = vld [vmem:[%s4660 + $0x70] sm:$0x8]
      %v4683 = vld [vmem:[%s4660 + $0x74] sm:$0xf]
      %v4684 = vld [vmem:[%s4660 + $0x78] sm:$0xf]
      %v4685 = vld [vmem:[%s4660 + $0x80] sm:$0x8]
      %v4686 = vld [vmem:[%s4660 + $0x84] sm:$0xf]
      %v4687 = vld [vmem:[%s4660 + $0x88] sm:$0xf]
      %v4688 = vld [vmem:[%s4660 + $0x90] sm:$0x8]
      %v4689 = vld [vmem:[%s4660 + $0x94] sm:$0xf]
      %v4690 = vld [vmem:[%s4660 + $0x98] sm:$0xf]
      %v4692 = vshrl.u32 %v4661, 16
      %v4694 = vrot.slane %v4692, 7
      %v4695 = vrot.slane %v4694, 4
      %v4697 = vshrl.u32 %v4662, 16
      %v4699 = vrot.slane %v4697, 7
      %v4700 = vshll.u32 %v4662, 16
      %v4702 = vor.u32 %v4699, %v4700
      %v4703 = vsel %vm3202, %v4695, %v4702
      %v4704 = vrot.slane %v4699, 4
      %v4706 = vshrl.u32 %v4663, 16
      %v4708 = vrot.slane %v4706, 7
      %v4709 = vshll.u32 %v4663, 16
      %v4711 = vor.u32 %v4708, %v4709
      %v4712 = vsel %vm3202, %v4704, %v4711
      %v4714 = vshrl.u32 %v4664, 16
      %v4716 = vrot.slane %v4714, 7
      %v4717 = vrot.slane %v4716, 4
      %v4719 = vshrl.u32 %v4665, 16
      %v4721 = vrot.slane %v4719, 7
      %v4722 = vshll.u32 %v4665, 16
      %v4724 = vor.u32 %v4721, %v4722
      %v4725 = vsel %vm3202, %v4717, %v4724
      %v4726 = vrot.slane %v4721, 4
      %v4728 = vshrl.u32 %v4666, 16
      %v4730 = vrot.slane %v4728, 7
      %v4731 = vshll.u32 %v4666, 16
      %v4733 = vor.u32 %v4730, %v4731
      %v4734 = vsel %vm3202, %v4726, %v4733
      %v4736 = vshrl.u32 %v4667, 16
      %v4738 = vrot.slane %v4736, 7
      %v4739 = vrot.slane %v4738, 4
      %v4741 = vshrl.u32 %v4668, 16
      %v4743 = vrot.slane %v4741, 7
      %v4744 = vshll.u32 %v4668, 16
      %v4746 = vor.u32 %v4743, %v4744
      %v4747 = vsel %vm3202, %v4739, %v4746
      %v4748 = vrot.slane %v4743, 4
      %v4750 = vshrl.u32 %v4669, 16
      %v4752 = vrot.slane %v4750, 7
      %v4753 = vshll.u32 %v4669, 16
      %v4755 = vor.u32 %v4752, %v4753
      %v4756 = vsel %vm3202, %v4748, %v4755
      %v4758 = vshrl.u32 %v4670, 16
      %v4760 = vrot.slane %v4758, 7
      %v4761 = vrot.slane %v4760, 4
      %v4763 = vshrl.u32 %v4671, 16
      %v4765 = vrot.slane %v4763, 7
      %v4766 = vshll.u32 %v4671, 16
      %v4768 = vor.u32 %v4765, %v4766
      %v4769 = vsel %vm3202, %v4761, %v4768
      %v4770 = vrot.slane %v4765, 4
      %v4772 = vshrl.u32 %v4672, 16
      %v4774 = vrot.slane %v4772, 7
      %v4775 = vshll.u32 %v4672, 16
      %v4777 = vor.u32 %v4774, %v4775
      %v4778 = vsel %vm3202, %v4770, %v4777
      %v4780 = vshrl.u32 %v4673, 16
      %v4782 = vrot.slane %v4780, 7
      %v4783 = vrot.slane %v4782, 4
      %v4785 = vshrl.u32 %v4674, 16
      %v4787 = vrot.slane %v4785, 7
      %v4788 = vshll.u32 %v4674, 16
      %v4790 = vor.u32 %v4787, %v4788
      %v4791 = vsel %vm3202, %v4783, %v4790
      %v4792 = vrot.slane %v4787, 4
      %v4794 = vshrl.u32 %v4675, 16
      %v4796 = vrot.slane %v4794, 7
      %v4797 = vshll.u32 %v4675, 16
      %v4799 = vor.u32 %v4796, %v4797
      %v4800 = vsel %vm3202, %v4792, %v4799
      %v4802 = vshrl.u32 %v4676, 16
      %v4804 = vrot.slane %v4802, 7
      %v4805 = vrot.slane %v4804, 4
      %v4807 = vshrl.u32 %v4677, 16
      %v4809 = vrot.slane %v4807, 7
      %v4810 = vshll.u32 %v4677, 16
      %v4812 = vor.u32 %v4809, %v4810
      %v4813 = vsel %vm3202, %v4805, %v4812
      %v4814 = vrot.slane %v4809, 4
      %v4816 = vshrl.u32 %v4678, 16
      %v4818 = vrot.slane %v4816, 7
      %v4819 = vshll.u32 %v4678, 16
      %v4821 = vor.u32 %v4818, %v4819
      %v4822 = vsel %vm3202, %v4814, %v4821
      %v4824 = vshrl.u32 %v4679, 16
      %v4826 = vrot.slane %v4824, 7
      %v4827 = vrot.slane %v4826, 4
      %v4829 = vshrl.u32 %v4680, 16
      %v4831 = vrot.slane %v4829, 7
      %v4832 = vshll.u32 %v4680, 16
      %v4834 = vor.u32 %v4831, %v4832
      %v4835 = vsel %vm3202, %v4827, %v4834
      %v4836 = vrot.slane %v4831, 4
      %v4838 = vshrl.u32 %v4681, 16
      %v4840 = vrot.slane %v4838, 7
      %v4841 = vshll.u32 %v4681, 16
      %v4843 = vor.u32 %v4840, %v4841
      %v4844 = vsel %vm3202, %v4836, %v4843
      %v4846 = vshrl.u32 %v4682, 16
      %v4848 = vrot.slane %v4846, 7
      %v4849 = vrot.slane %v4848, 4
      %v4851 = vshrl.u32 %v4683, 16
      %v4853 = vrot.slane %v4851, 7
      %v4854 = vshll.u32 %v4683, 16
      %v4856 = vor.u32 %v4853, %v4854
      %v4857 = vsel %vm3202, %v4849, %v4856
      %v4858 = vrot.slane %v4853, 4
      %v4860 = vshrl.u32 %v4684, 16
      %v4862 = vrot.slane %v4860, 7
      %v4863 = vshll.u32 %v4684, 16
      %v4865 = vor.u32 %v4862, %v4863
      %v4866 = vsel %vm3202, %v4858, %v4865
      %v4868 = vshrl.u32 %v4685, 16
      %v4870 = vrot.slane %v4868, 7
      %v4871 = vrot.slane %v4870, 4
      %v4873 = vshrl.u32 %v4686, 16
      %v4875 = vrot.slane %v4873, 7
      %v4876 = vshll.u32 %v4686, 16
      %v4878 = vor.u32 %v4875, %v4876
      %v4879 = vsel %vm3202, %v4871, %v4878
      %v4880 = vrot.slane %v4875, 4
      %v4882 = vshrl.u32 %v4687, 16
      %v4884 = vrot.slane %v4882, 7
      %v4885 = vshll.u32 %v4687, 16
      %v4887 = vor.u32 %v4884, %v4885
      %v4888 = vsel %vm3202, %v4880, %v4887
      %v4889 = vunpack.c.l.b16 %v4725
      %v4890 = vunpack.c.l.b16 %v4734
      %v4891 = vunpack.c.l.b16 %v4747
      %v4892 = vunpack.c.l.b16 %v4756
      %v4893 = vunpack.c.l.b16 %v4769
      %v4894 = vunpack.c.l.b16 %v4778
      %v4895 = vunpack.c.l.b16 %v4791
      %v4896 = vunpack.c.l.b16 %v4800
      %v4897 = vunpack.c.l.b16 %v4813
      %v4898 = vunpack.c.l.b16 %v4822
      %v4899 = vunpack.c.l.b16 %v4835
      %v4900 = vunpack.c.l.b16 %v4844
      %v4901 = vunpack.c.l.b16 %v4857
      %v4902 = vunpack.c.l.b16 %v4866
      %v4903 = vunpack.c.l.b16 %v4879
      %v4904 = vunpack.c.l.b16 %v4888
      %v4905 = vpack.c.b16 %v4890, %v4889
      %v4906 = vpack.c.b16 %v4892, %v4891
      %v4907 = vpack.c.b16 %v4894, %v4893
      %v4908 = vpack.c.b16 %v4896, %v4895
      %v4909 = vpack.c.b16 %v4898, %v4897
      %v4910 = vpack.c.b16 %v4900, %v4899
      %v4911 = vpack.c.b16 %v4902, %v4901
      %v4912 = vpack.c.b16 %v4904, %v4903
      %v4914 = vsel %vm3443, %v4905, 0
      %v4917 = vsel %vm3443, %v4906, 0
      %v4920 = vsel %vm3443, %v4907, 0
      %v4923 = vsel %vm3443, %v4908, 0
      %v4926 = vsel %vm3443, %v4909, 0
      %v4929 = vsel %vm3443, %v4910, 0
      %v4932 = vsel %vm3443, %v4911, 0
      %v4935 = vsel %vm3443, %v4912, 0
      %4937 = vmatpush.bf16.msra.mxu0 0
      %4938 = vmatpush.bf16.msra.mxu0 0
      %4939 = vmatpush.bf16.msra.mxu0 0
      %4940 = vmatpush.bf16.msra.mxu0 0
      %4941 = vmatpush.bf16.msra.mxu0 0
      %4942 = vmatpush.bf16.msra.mxu0 %v3439
      %4943 = vmatpush.bf16.msra.mxu0 %v3438
      %4944 = vmatpush.bf16.msra.mxu0 %v3437
      %4945 = vmatmul.bf16.gmra.mxu0 %v4914
      %v4946 = vpop.f32.mrf.mxu0
      %v4947 = vadd.f32 0.0, %v4946
      %v4948 = vpop.f32.mrf.mxu0
      %v4949 = vadd.f32 0.0, %v4948
      %4950 = vmatmul.bf16.gmra.mxu0 %v4917
      %v4951 = vpop.f32.mrf.mxu0
      %v4952 = vadd.f32 0.0, %v4951
      %v4953 = vpop.f32.mrf.mxu0
      %v4954 = vadd.f32 0.0, %v4953
      %4955 = vmatmul.bf16.gmra.mxu0 %v4920
      %v4956 = vpop.f32.mrf.mxu0
      %v4957 = vadd.f32 0.0, %v4956
      %v4958 = vpop.f32.mrf.mxu0
      %v4959 = vadd.f32 0.0, %v4958
      %4960 = vmatmul.bf16.gmra.mxu0 %v4923
      %v4961 = vpop.f32.mrf.mxu0
      %v4962 = vadd.f32 0.0, %v4961
      %v4963 = vpop.f32.mrf.mxu0
      %v4964 = vadd.f32 0.0, %v4963
      %4965 = vmatmul.bf16.gmra.mxu0 %v4926
      %v4966 = vpop.f32.mrf.mxu0
      %v4967 = vadd.f32 0.0, %v4966
      %v4968 = vpop.f32.mrf.mxu0
      %v4969 = vadd.f32 0.0, %v4968
      %4970 = vmatmul.bf16.gmra.mxu0 %v4929
      %v4971 = vpop.f32.mrf.mxu0
      %v4972 = vadd.f32 0.0, %v4971
      %v4973 = vpop.f32.mrf.mxu0
      %v4974 = vadd.f32 0.0, %v4973
      %4975 = vmatmul.bf16.gmra.mxu0 %v4932
      %v4976 = vpop.f32.mrf.mxu0
      %v4977 = vadd.f32 0.0, %v4976
      %v4978 = vpop.f32.mrf.mxu0
      %v4979 = vadd.f32 0.0, %v4978
      %4980 = vmatmul.bf16.gmra.mxu0 %v4935
      %v4981 = vpop.f32.mrf.mxu0
      %v4982 = vadd.f32 0.0, %v4981
      %v4983 = vpop.f32.mrf.mxu0
      %v4984 = vadd.f32 0.0, %v4983
      %4985 = vdwg.mxu0
      %v4986 = vunpack.c.l.b16 %v4703
      %v4987 = vunpack.c.l.b16 %v4712
      %v4988 = vpack.c.b16 %v4987, %v4986
      %v4990 = vsel %vm3443, %v4988, 0
      %4992 = vmatpush.bf16.msra.mxu0 0
      %4993 = vmatpush.bf16.msra.mxu0 0
      %4994 = vmatpush.bf16.msra.mxu0 0
      %4995 = vmatpush.bf16.msra.mxu0 0
      %4996 = vmatpush.bf16.msra.mxu0 0
      %4997 = vmatpush.bf16.msra.mxu0 %v3534
      %4998 = vmatpush.bf16.msra.mxu0 %v3533
      %4999 = vmatpush.bf16.msra.mxu0 %v3532
      %5000 = vmatmul.bf16.gmra.mxu0 %v4990
      %v5001 = vpop.f32.mrf.mxu0
      %v5002 = vadd.f32 %v4947, %v5001
      %v5003 = vpop.f32.mrf.mxu0
      %v5004 = vadd.f32 %v4949, %v5003
      %5005 = vmatmul.bf16.gmra.mxu0 %v4914
      %v5006 = vpop.f32.mrf.mxu0
      %v5007 = vadd.f32 %v4952, %v5006
      %v5008 = vpop.f32.mrf.mxu0
      %v5009 = vadd.f32 %v4954, %v5008
      %5010 = vmatmul.bf16.gmra.mxu0 %v4917
      %v5011 = vpop.f32.mrf.mxu0
      %v5012 = vadd.f32 %v4957, %v5011
      %v5013 = vpop.f32.mrf.mxu0
      %v5014 = vadd.f32 %v4959, %v5013
      %5015 = vmatmul.bf16.gmra.mxu0 %v4920
      %v5016 = vpop.f32.mrf.mxu0
      %v5017 = vadd.f32 %v4962, %v5016
      %v5018 = vpop.f32.mrf.mxu0
      %v5019 = vadd.f32 %v4964, %v5018
      %5020 = vmatmul.bf16.gmra.mxu0 %v4923
      %v5021 = vpop.f32.mrf.mxu0
      %v5022 = vadd.f32 %v4967, %v5021
      %v5023 = vpop.f32.mrf.mxu0
      %v5024 = vadd.f32 %v4969, %v5023
      %5025 = vmatmul.bf16.gmra.mxu0 %v4926
      %v5026 = vpop.f32.mrf.mxu0
      %v5027 = vadd.f32 %v4972, %v5026
      %v5028 = vpop.f32.mrf.mxu0
      %v5029 = vadd.f32 %v4974, %v5028
      %5030 = vmatmul.bf16.gmra.mxu0 %v4929
      %v5031 = vpop.f32.mrf.mxu0
      %v5032 = vadd.f32 %v4977, %v5031
      %v5033 = vpop.f32.mrf.mxu0
      %v5034 = vadd.f32 %v4979, %v5033
      %5035 = vmatmul.bf16.gmra.mxu0 %v4932
      %v5036 = vpop.f32.mrf.mxu0
      %v5037 = vadd.f32 %v4982, %v5036
      %v5038 = vpop.f32.mrf.mxu0
      %v5039 = vadd.f32 %v4984, %v5038
      %5040 = vdwg.mxu0
      %v5042 = vshrl.u32 %v4688, 16
      %v5044 = vrot.slane %v5042, 7
      %v5045 = vrot.slane %v5044, 4
      %v5047 = vshrl.u32 %v4689, 16
      %v5049 = vrot.slane %v5047, 7
      %v5050 = vshll.u32 %v4689, 16
      %v5052 = vor.u32 %v5049, %v5050
      %v5053 = vsel %vm3202, %v5045, %v5052
      %v5054 = vrot.slane %v5049, 4
      %v5056 = vshrl.u32 %v4690, 16
      %v5058 = vrot.slane %v5056, 7
      %v5059 = vshll.u32 %v4690, 16
      %v5061 = vor.u32 %v5058, %v5059
      %v5062 = vsel %vm3202, %v5054, %v5061
      %v5063 = vunpack.c.l.b16 %v5053
      %v5064 = vunpack.c.l.b16 %v5062
      %v5065 = vpack.c.b16 %v5064, %v5063
      %v5067 = vsel %vm3443, %v5065, 0
      %5069 = vmatpush.bf16.msra.mxu0 0
      %5070 = vmatpush.bf16.msra.mxu0 0
      %5071 = vmatpush.bf16.msra.mxu0 0
      %5072 = vmatpush.bf16.msra.mxu0 0
      %5073 = vmatpush.bf16.msra.mxu0 0
      %5074 = vmatpush.bf16.msra.mxu0 %v3629
      %5075 = vmatpush.bf16.msra.mxu0 %v3628
      %5076 = vmatpush.bf16.msra.mxu0 %v3627
      %5077 = vmatmul.bf16.gmra.mxu0 %v4917
      %v5078 = vpop.f32.mrf.mxu0
      %v5079 = vadd.f32 0.0, %v5078
      %v5080 = vpop.f32.mrf.mxu0
      %v5081 = vadd.f32 0.0, %v5080
      %5082 = vmatmul.bf16.gmra.mxu0 %v4920
      %v5083 = vpop.f32.mrf.mxu0
      %v5084 = vadd.f32 0.0, %v5083
      %v5085 = vpop.f32.mrf.mxu0
      %v5086 = vadd.f32 0.0, %v5085
      %5087 = vmatmul.bf16.gmra.mxu0 %v4923
      %v5088 = vpop.f32.mrf.mxu0
      %v5089 = vadd.f32 0.0, %v5088
      %v5090 = vpop.f32.mrf.mxu0
      %v5091 = vadd.f32 0.0, %v5090
      %5092 = vmatmul.bf16.gmra.mxu0 %v4926
      %v5093 = vpop.f32.mrf.mxu0
      %v5094 = vadd.f32 0.0, %v5093
      %v5095 = vpop.f32.mrf.mxu0
      %v5096 = vadd.f32 0.0, %v5095
      %5097 = vmatmul.bf16.gmra.mxu0 %v4929
      %v5098 = vpop.f32.mrf.mxu0
      %v5099 = vadd.f32 0.0, %v5098
      %v5100 = vpop.f32.mrf.mxu0
      %v5101 = vadd.f32 0.0, %v5100
      %5102 = vmatmul.bf16.gmra.mxu0 %v4932
      %v5103 = vpop.f32.mrf.mxu0
      %v5104 = vadd.f32 0.0, %v5103
      %v5105 = vpop.f32.mrf.mxu0
      %v5106 = vadd.f32 0.0, %v5105
      %5107 = vmatmul.bf16.gmra.mxu0 %v4935
      %v5108 = vpop.f32.mrf.mxu0
      %v5109 = vadd.f32 0.0, %v5108
      %v5110 = vpop.f32.mrf.mxu0
      %v5111 = vadd.f32 0.0, %v5110
      %5112 = vmatmul.bf16.gmra.mxu0 %v5067
      %v5113 = vpop.f32.mrf.mxu0
      %v5114 = vadd.f32 0.0, %v5113
      %v5115 = vpop.f32.mrf.mxu0
      %v5116 = vadd.f32 0.0, %v5115
      %5117 = vdwg.mxu0
      %v5118 = vadd.f32 %v5002, %v5079
      %v5119 = vadd.f32 %v5004, %v5081
      %v5120 = vadd.f32 %v5007, %v5084
      %v5121 = vadd.f32 %v5009, %v5086
      %v5122 = vadd.f32 %v5012, %v5089
      %v5123 = vadd.f32 %v5014, %v5091
      %v5124 = vadd.f32 %v5017, %v5094
      %v5125 = vadd.f32 %v5019, %v5096
      %v5126 = vadd.f32 %v5022, %v5099
      %v5127 = vadd.f32 %v5024, %v5101
      %v5128 = vadd.f32 %v5027, %v5104
      %v5129 = vadd.f32 %v5029, %v5106
      %v5130 = vadd.f32 %v5032, %v5109
      %v5131 = vadd.f32 %v5034, %v5111
      %v5132 = vadd.f32 %v5037, %v5114
      %v5133 = vadd.f32 %v5039, %v5116
      %v5150 = vunpack.c.l.b16 %v4662
      %v5151 = vunpack.c.l.b16 %v4663
      %v5152 = vunpack.c.l.b16 %v4665
      %v5153 = vunpack.c.l.b16 %v4666
      %v5154 = vunpack.c.l.b16 %v4668
      %v5155 = vunpack.c.l.b16 %v4669
      %v5156 = vunpack.c.l.b16 %v4671
      %v5157 = vunpack.c.l.b16 %v4672
      %v5158 = vunpack.c.l.b16 %v4674
      %v5159 = vunpack.c.l.b16 %v4675
      %v5160 = vunpack.c.l.b16 %v4677
      %v5161 = vunpack.c.l.b16 %v4678
      %v5162 = vunpack.c.l.b16 %v4680
      %v5163 = vunpack.c.l.b16 %v4681
      %v5164 = vunpack.c.l.b16 %v4683
      %v5165 = vunpack.c.l.b16 %v4684
      %v5166 = vpack.c.b16 %v5151, %v5150
      %v5167 = vpack.c.b16 %v5153, %v5152
      %v5168 = vpack.c.b16 %v5155, %v5154
      %v5169 = vpack.c.b16 %v5157, %v5156
      %v5170 = vpack.c.b16 %v5159, %v5158
      %v5171 = vpack.c.b16 %v5161, %v5160
      %v5172 = vpack.c.b16 %v5163, %v5162
      %v5173 = vpack.c.b16 %v5165, %v5164
      %v5175 = vsel %vm3443, %v5166, 0
      %v5178 = vsel %vm3443, %v5167, 0
      %v5181 = vsel %vm3443, %v5168, 0
      %v5184 = vsel %vm3443, %v5169, 0
      %v5187 = vsel %vm3443, %v5170, 0
      %v5190 = vsel %vm3443, %v5171, 0
      %v5193 = vsel %vm3443, %v5172, 0
      %v5196 = vsel %vm3443, %v5173, 0
      %5198 = vmatpush.bf16.msra.mxu0 0
      %5199 = vmatpush.bf16.msra.mxu0 0
      %5200 = vmatpush.bf16.msra.mxu0 0
      %5201 = vmatpush.bf16.msra.mxu0 0
      %5202 = vmatpush.bf16.msra.mxu0 0
      %5203 = vmatpush.bf16.msra.mxu0 %v3755
      %5204 = vmatpush.bf16.msra.mxu0 %v3754
      %5205 = vmatpush.bf16.msra.mxu0 %v3753
      %5206 = vmatmul.bf16.gmra.mxu0 %v5175
      %v5207 = vpop.f32.mrf.mxu0
      %v5208 = vadd.f32 0.0, %v5207
      %v5209 = vpop.f32.mrf.mxu0
      %v5210 = vadd.f32 0.0, %v5209
      %5211 = vmatmul.bf16.gmra.mxu0 %v5178
      %v5212 = vpop.f32.mrf.mxu0
      %v5213 = vadd.f32 0.0, %v5212
      %v5214 = vpop.f32.mrf.mxu0
      %v5215 = vadd.f32 0.0, %v5214
      %5216 = vmatmul.bf16.gmra.mxu0 %v5181
      %v5217 = vpop.f32.mrf.mxu0
      %v5218 = vadd.f32 0.0, %v5217
      %v5219 = vpop.f32.mrf.mxu0
      %v5220 = vadd.f32 0.0, %v5219
      %5221 = vmatmul.bf16.gmra.mxu0 %v5184
      %v5222 = vpop.f32.mrf.mxu0
      %v5223 = vadd.f32 0.0, %v5222
      %v5224 = vpop.f32.mrf.mxu0
      %v5225 = vadd.f32 0.0, %v5224
      %5226 = vmatmul.bf16.gmra.mxu0 %v5187
      %v5227 = vpop.f32.mrf.mxu0
      %v5228 = vadd.f32 0.0, %v5227
      %v5229 = vpop.f32.mrf.mxu0
      %v5230 = vadd.f32 0.0, %v5229
      %5231 = vmatmul.bf16.gmra.mxu0 %v5190
      %v5232 = vpop.f32.mrf.mxu0
      %v5233 = vadd.f32 0.0, %v5232
      %v5234 = vpop.f32.mrf.mxu0
      %v5235 = vadd.f32 0.0, %v5234
      %5236 = vmatmul.bf16.gmra.mxu0 %v5193
      %v5237 = vpop.f32.mrf.mxu0
      %v5238 = vadd.f32 0.0, %v5237
      %v5239 = vpop.f32.mrf.mxu0
      %v5240 = vadd.f32 0.0, %v5239
      %5241 = vmatmul.bf16.gmra.mxu0 %v5196
      %v5242 = vpop.f32.mrf.mxu0
      %v5243 = vadd.f32 0.0, %v5242
      %v5244 = vpop.f32.mrf.mxu0
      %v5245 = vadd.f32 0.0, %v5244
      %5246 = vdwg.mxu0
      %v5247 = vadd.f32 %v5118, %v5208
      %v5248 = vadd.f32 %v5119, %v5210
      %v5249 = vadd.f32 %v5120, %v5213
      %v5250 = vadd.f32 %v5121, %v5215
      %v5251 = vadd.f32 %v5122, %v5218
      %v5252 = vadd.f32 %v5123, %v5220
      %v5253 = vadd.f32 %v5124, %v5223
      %v5254 = vadd.f32 %v5125, %v5225
      %v5255 = vadd.f32 %v5126, %v5228
      %v5256 = vadd.f32 %v5127, %v5230
      %v5257 = vadd.f32 %v5128, %v5233
      %v5258 = vadd.f32 %v5129, %v5235
      %v5259 = vadd.f32 %v5130, %v5238
      %v5260 = vadd.f32 %v5131, %v5240
      %v5261 = vadd.f32 %v5132, %v5243
      %v5262 = vadd.f32 %v5133, %v5245
      %v5265 = vunpack.c.l.b16 %v4686
      %v5266 = vunpack.c.l.b16 %v4687
      %v5267 = vpack.c.b16 %v5266, %v5265
      %v5269 = vsel %vm3443, %v5267, 0
      %5271 = vmatpush.bf16.msra.mxu0 0
      %5272 = vmatpush.bf16.msra.mxu0 0
      %5273 = vmatpush.bf16.msra.mxu0 0
      %5274 = vmatpush.bf16.msra.mxu0 0
      %5275 = vmatpush.bf16.msra.mxu0 0
      %5276 = vmatpush.bf16.msra.mxu0 %v3867
      %5277 = vmatpush.bf16.msra.mxu0 %v3866
      %5278 = vmatpush.bf16.msra.mxu0 %v3865
      %5279 = vmatmul.bf16.gmra.mxu0 %v5178
      %v5280 = vpop.f32.mrf.mxu0
      %v5281 = vadd.f32 0.0, %v5280
      %v5282 = vpop.f32.mrf.mxu0
      %v5283 = vadd.f32 0.0, %v5282
      %5284 = vmatmul.bf16.gmra.mxu0 %v5181
      %v5285 = vpop.f32.mrf.mxu0
      %v5286 = vadd.f32 0.0, %v5285
      %v5287 = vpop.f32.mrf.mxu0
      %v5288 = vadd.f32 0.0, %v5287
      %5289 = vmatmul.bf16.gmra.mxu0 %v5184
      %v5290 = vpop.f32.mrf.mxu0
      %v5291 = vadd.f32 0.0, %v5290
      %v5292 = vpop.f32.mrf.mxu0
      %v5293 = vadd.f32 0.0, %v5292
      %5294 = vmatmul.bf16.gmra.mxu0 %v5187
      %v5295 = vpop.f32.mrf.mxu0
      %v5296 = vadd.f32 0.0, %v5295
      %v5297 = vpop.f32.mrf.mxu0
      %v5298 = vadd.f32 0.0, %v5297
      %5299 = vmatmul.bf16.gmra.mxu0 %v5190
      %v5300 = vpop.f32.mrf.mxu0
      %v5301 = vadd.f32 0.0, %v5300
      %v5302 = vpop.f32.mrf.mxu0
      %v5303 = vadd.f32 0.0, %v5302
      %5304 = vmatmul.bf16.gmra.mxu0 %v5193
      %v5305 = vpop.f32.mrf.mxu0
      %v5306 = vadd.f32 0.0, %v5305
      %v5307 = vpop.f32.mrf.mxu0
      %v5308 = vadd.f32 0.0, %v5307
      %5309 = vmatmul.bf16.gmra.mxu0 %v5196
      %v5310 = vpop.f32.mrf.mxu0
      %v5311 = vadd.f32 0.0, %v5310
      %v5312 = vpop.f32.mrf.mxu0
      %v5313 = vadd.f32 0.0, %v5312
      %5314 = vmatmul.bf16.gmra.mxu0 %v5269
      %v5315 = vpop.f32.mrf.mxu0
      %v5316 = vadd.f32 0.0, %v5315
      %v5317 = vpop.f32.mrf.mxu0
      %v5318 = vadd.f32 0.0, %v5317
      %5319 = vdwg.mxu0
      %v5320 = vadd.f32 %v5247, %v5281
      %v5321 = vadd.f32 %v5248, %v5283
      %v5322 = vadd.f32 %v5249, %v5286
      %v5323 = vadd.f32 %v5250, %v5288
      %v5324 = vadd.f32 %v5251, %v5291
      %v5325 = vadd.f32 %v5252, %v5293
      %v5326 = vadd.f32 %v5253, %v5296
      %v5327 = vadd.f32 %v5254, %v5298
      %v5328 = vadd.f32 %v5255, %v5301
      %v5329 = vadd.f32 %v5256, %v5303
      %v5330 = vadd.f32 %v5257, %v5306
      %v5331 = vadd.f32 %v5258, %v5308
      %v5332 = vadd.f32 %v5259, %v5311
      %v5333 = vadd.f32 %v5260, %v5313
      %v5334 = vadd.f32 %v5261, %v5316
      %v5335 = vadd.f32 %v5262, %v5318
      %v5338 = vunpack.c.l.b16 %v4689
      %v5339 = vunpack.c.l.b16 %v4690
      %v5340 = vpack.c.b16 %v5339, %v5338
      %v5342 = vsel %vm3443, %v5340, 0
      %5344 = vmatpush.bf16.msra.mxu0 0
      %5345 = vmatpush.bf16.msra.mxu0 0
      %5346 = vmatpush.bf16.msra.mxu0 0
      %5347 = vmatpush.bf16.msra.mxu0 0
      %5348 = vmatpush.bf16.msra.mxu0 0
      %5349 = vmatpush.bf16.msra.mxu0 %v3958
      %5350 = vmatpush.bf16.msra.mxu0 %v3957
      %5351 = vmatpush.bf16.msra.mxu0 %v3956
      %5352 = vmatmul.bf16.gmra.mxu0 %v5181
      %v5353 = vpop.f32.mrf.mxu0
      %v5354 = vadd.f32 0.0, %v5353
      %v5355 = vpop.f32.mrf.mxu0
      %v5356 = vadd.f32 0.0, %v5355
      %5357 = vmatmul.bf16.gmra.mxu0 %v5184
      %v5358 = vpop.f32.mrf.mxu0
      %v5359 = vadd.f32 0.0, %v5358
      %v5360 = vpop.f32.mrf.mxu0
      %v5361 = vadd.f32 0.0, %v5360
      %5362 = vmatmul.bf16.gmra.mxu0 %v5187
      %v5363 = vpop.f32.mrf.mxu0
      %v5364 = vadd.f32 0.0, %v5363
      %v5365 = vpop.f32.mrf.mxu0
      %v5366 = vadd.f32 0.0, %v5365
      %5367 = vmatmul.bf16.gmra.mxu0 %v5190
      %v5368 = vpop.f32.mrf.mxu0
      %v5369 = vadd.f32 0.0, %v5368
      %v5370 = vpop.f32.mrf.mxu0
      %v5371 = vadd.f32 0.0, %v5370
      %5372 = vmatmul.bf16.gmra.mxu0 %v5193
      %v5373 = vpop.f32.mrf.mxu0
      %v5374 = vadd.f32 0.0, %v5373
      %v5375 = vpop.f32.mrf.mxu0
      %v5376 = vadd.f32 0.0, %v5375
      %5377 = vmatmul.bf16.gmra.mxu0 %v5196
      %v5378 = vpop.f32.mrf.mxu0
      %v5379 = vadd.f32 0.0, %v5378
      %v5380 = vpop.f32.mrf.mxu0
      %v5381 = vadd.f32 0.0, %v5380
      %5382 = vmatmul.bf16.gmra.mxu0 %v5269
      %v5383 = vpop.f32.mrf.mxu0
      %v5384 = vadd.f32 0.0, %v5383
      %v5385 = vpop.f32.mrf.mxu0
      %v5386 = vadd.f32 0.0, %v5385
      %5387 = vmatmul.bf16.gmra.mxu0 %v5342
      %v5388 = vpop.f32.mrf.mxu0
      %v5389 = vadd.f32 0.0, %v5388
      %v5390 = vpop.f32.mrf.mxu0
      %v5391 = vadd.f32 0.0, %v5390
      %5392 = vdwg.mxu0
      %v5393 = vadd.f32 %v5320, %v5354
      %v5394 = vadd.f32 %v5321, %v5356
      %v5395 = vadd.f32 %v5322, %v5359
      %v5396 = vadd.f32 %v5323, %v5361
      %v5397 = vadd.f32 %v5324, %v5364
      %v5398 = vadd.f32 %v5325, %v5366
      %v5399 = vadd.f32 %v5326, %v5369
      %v5400 = vadd.f32 %v5327, %v5371
      %v5401 = vadd.f32 %v5328, %v5374
      %v5402 = vadd.f32 %v5329, %v5376
      %v5403 = vadd.f32 %v5330, %v5379
      %v5404 = vadd.f32 %v5331, %v5381
      %v5405 = vadd.f32 %v5332, %v5384
      %v5406 = vadd.f32 %v5333, %v5386
      %v5407 = vadd.f32 %v5334, %v5389
      %v5408 = vadd.f32 %v5335, %v5391
      %v5409 = vld [vmem:[%s4660 + $0x4] sm:$0xf]
      %v5410 = vld [vmem:[%s4660 + $0x8] sm:$0xf]
      %v5411 = vld [vmem:[%s4660 + $0xc] sm:$0x1]
      %v5412 = vld [vmem:[%s4660 + $0x14] sm:$0xf]
      %v5413 = vld [vmem:[%s4660 + $0x18] sm:$0xf]
      %v5414 = vld [vmem:[%s4660 + $0x1c] sm:$0x1]
      %v5415 = vld [vmem:[%s4660 + $0x24] sm:$0xf]
      %v5416 = vld [vmem:[%s4660 + $0x28] sm:$0xf]
      %v5417 = vld [vmem:[%s4660 + $0x2c] sm:$0x1]
      %v5418 = vld [vmem:[%s4660 + $0x34] sm:$0xf]
      %v5419 = vld [vmem:[%s4660 + $0x38] sm:$0xf]
      %v5420 = vld [vmem:[%s4660 + $0x3c] sm:$0x1]
      %v5421 = vld [vmem:[%s4660 + $0x44] sm:$0xf]
      %v5422 = vld [vmem:[%s4660 + $0x48] sm:$0xf]
      %v5423 = vld [vmem:[%s4660 + $0x4c] sm:$0x1]
      %v5424 = vld [vmem:[%s4660 + $0x54] sm:$0xf]
      %v5425 = vld [vmem:[%s4660 + $0x58] sm:$0xf]
      %v5426 = vld [vmem:[%s4660 + $0x5c] sm:$0x1]
      %v5427 = vld [vmem:[%s4660 + $0x64] sm:$0xf]
      %v5428 = vld [vmem:[%s4660 + $0x68] sm:$0xf]
      %v5429 = vld [vmem:[%s4660 + $0x6c] sm:$0x1]
      %v5430 = vld [vmem:[%s4660 + $0x74] sm:$0xf]
      %v5431 = vld [vmem:[%s4660 + $0x78] sm:$0xf]
      %v5432 = vld [vmem:[%s4660 + $0x7c] sm:$0x1]
      %v5433 = vld [vmem:[%s4660 + $0x84] sm:$0xf]
      %v5434 = vld [vmem:[%s4660 + $0x88] sm:$0xf]
      %v5435 = vld [vmem:[%s4660 + $0x8c] sm:$0x1]
      %v5436 = vld [vmem:[%s4660 + $0x94] sm:$0xf]
      %v5437 = vld [vmem:[%s4660 + $0x98] sm:$0xf]
      %v5438 = vld [vmem:[%s4660 + $0x9c] sm:$0x1]
      %v5440 = vshrl.u32 %v5409, 16
      %v5442 = vrot.slane %v5440, 4
      %v5443 = vshll.u32 %v5409, 16
      %v5445 = vrot.slane %v5443, 5
      %v5446 = vor.u32 %v5442, %v5445
      %v5447 = vrot.slane %v5446, 4
      %v5449 = vshll.u32 %v5410, 16
      %v5451 = vrot.slane %v5449, 5
      %v5452 = vsel %vm876, %v5447, %v5451
      %v5453 = vshrl.u32 %v5410, 16
      %v5455 = vrot.slane %v5453, 4
      %v5456 = vor.u32 %v5455, %v5451
      %v5457 = vrot.slane %v5456, 4
      %v5459 = vshll.u32 %v5411, 16
      %v5461 = vrot.slane %v5459, 5
      %v5462 = vsel %vm876, %v5457, %v5461
      %v5464 = vshrl.u32 %v5412, 16
      %v5466 = vrot.slane %v5464, 4
      %v5467 = vshll.u32 %v5412, 16
      %v5469 = vrot.slane %v5467, 5
      %v5470 = vor.u32 %v5466, %v5469
      %v5471 = vrot.slane %v5470, 4
      %v5473 = vshll.u32 %v5413, 16
      %v5475 = vrot.slane %v5473, 5
      %v5476 = vsel %vm876, %v5471, %v5475
      %v5477 = vshrl.u32 %v5413, 16
      %v5479 = vrot.slane %v5477, 4
      %v5480 = vor.u32 %v5479, %v5475
      %v5481 = vrot.slane %v5480, 4
      %v5483 = vshll.u32 %v5414, 16
      %v5485 = vrot.slane %v5483, 5
      %v5486 = vsel %vm876, %v5481, %v5485
      %v5488 = vshrl.u32 %v5415, 16
      %v5490 = vrot.slane %v5488, 4
      %v5491 = vshll.u32 %v5415, 16
      %v5493 = vrot.slane %v5491, 5
      %v5494 = vor.u32 %v5490, %v5493
      %v5495 = vrot.slane %v5494, 4
      %v5497 = vshll.u32 %v5416, 16
      %v5499 = vrot.slane %v5497, 5
      %v5500 = vsel %vm876, %v5495, %v5499
      %v5501 = vshrl.u32 %v5416, 16
      %v5503 = vrot.slane %v5501, 4
      %v5504 = vor.u32 %v5503, %v5499
      %v5505 = vrot.slane %v5504, 4
      %v5507 = vshll.u32 %v5417, 16
      %v5509 = vrot.slane %v5507, 5
      %v5510 = vsel %vm876, %v5505, %v5509
      %v5512 = vshrl.u32 %v5418, 16
      %v5514 = vrot.slane %v5512, 4
      %v5515 = vshll.u32 %v5418, 16
      %v5517 = vrot.slane %v5515, 5
      %v5518 = vor.u32 %v5514, %v5517
      %v5519 = vrot.slane %v5518, 4
      %v5521 = vshll.u32 %v5419, 16
      %v5523 = vrot.slane %v5521, 5
      %v5524 = vsel %vm876, %v5519, %v5523
      %v5525 = vshrl.u32 %v5419, 16
      %v5527 = vrot.slane %v5525, 4
      %v5528 = vor.u32 %v5527, %v5523
      %v5529 = vrot.slane %v5528, 4
      %v5531 = vshll.u32 %v5420, 16
      %v5533 = vrot.slane %v5531, 5
      %v5534 = vsel %vm876, %v5529, %v5533
      %v5536 = vshrl.u32 %v5421, 16
      %v5538 = vrot.slane %v5536, 4
      %v5539 = vshll.u32 %v5421, 16
      %v5541 = vrot.slane %v5539, 5
      %v5542 = vor.u32 %v5538, %v5541
      %v5543 = vrot.slane %v5542, 4
      %v5545 = vshll.u32 %v5422, 16
      %v5547 = vrot.slane %v5545, 5
      %v5548 = vsel %vm876, %v5543, %v5547
      %v5549 = vshrl.u32 %v5422, 16
      %v5551 = vrot.slane %v5549, 4
      %v5552 = vor.u32 %v5551, %v5547
      %v5553 = vrot.slane %v5552, 4
      %v5555 = vshll.u32 %v5423, 16
      %v5557 = vrot.slane %v5555, 5
      %v5558 = vsel %vm876, %v5553, %v5557
      %v5560 = vshrl.u32 %v5424, 16
      %v5562 = vrot.slane %v5560, 4
      %v5563 = vshll.u32 %v5424, 16
      %v5565 = vrot.slane %v5563, 5
      %v5566 = vor.u32 %v5562, %v5565
      %v5567 = vrot.slane %v5566, 4
      %v5569 = vshll.u32 %v5425, 16
      %v5571 = vrot.slane %v5569, 5
      %v5572 = vsel %vm876, %v5567, %v5571
      %v5573 = vshrl.u32 %v5425, 16
      %v5575 = vrot.slane %v5573, 4
      %v5576 = vor.u32 %v5575, %v5571
      %v5577 = vrot.slane %v5576, 4
      %v5579 = vshll.u32 %v5426, 16
      %v5581 = vrot.slane %v5579, 5
      %v5582 = vsel %vm876, %v5577, %v5581
      %v5584 = vshrl.u32 %v5427, 16
      %v5586 = vrot.slane %v5584, 4
      %v5587 = vshll.u32 %v5427, 16
      %v5589 = vrot.slane %v5587, 5
      %v5590 = vor.u32 %v5586, %v5589
      %v5591 = vrot.slane %v5590, 4
      %v5593 = vshll.u32 %v5428, 16
      %v5595 = vrot.slane %v5593, 5
      %v5596 = vsel %vm876, %v5591, %v5595
      %v5597 = vshrl.u32 %v5428, 16
      %v5599 = vrot.slane %v5597, 4
      %v5600 = vor.u32 %v5599, %v5595
      %v5601 = vrot.slane %v5600, 4
      %v5603 = vshll.u32 %v5429, 16
      %v5605 = vrot.slane %v5603, 5
      %v5606 = vsel %vm876, %v5601, %v5605
      %v5608 = vshrl.u32 %v5430, 16
      %v5610 = vrot.slane %v5608, 4
      %v5611 = vshll.u32 %v5430, 16
      %v5613 = vrot.slane %v5611, 5
      %v5614 = vor.u32 %v5610, %v5613
      %v5615 = vrot.slane %v5614, 4
      %v5617 = vshll.u32 %v5431, 16
      %v5619 = vrot.slane %v5617, 5
      %v5620 = vsel %vm876, %v5615, %v5619
      %v5621 = vshrl.u32 %v5431, 16
      %v5623 = vrot.slane %v5621, 4
      %v5624 = vor.u32 %v5623, %v5619
      %v5625 = vrot.slane %v5624, 4
      %v5627 = vshll.u32 %v5432, 16
      %v5629 = vrot.slane %v5627, 5
      %v5630 = vsel %vm876, %v5625, %v5629
      %v5631 = vunpack.c.l.b16 %v5452
      %v5632 = vunpack.c.l.b16 %v5462
      %v5633 = vunpack.c.l.b16 %v5476
      %v5634 = vunpack.c.l.b16 %v5486
      %v5635 = vunpack.c.l.b16 %v5500
      %v5636 = vunpack.c.l.b16 %v5510
      %v5637 = vunpack.c.l.b16 %v5524
      %v5638 = vunpack.c.l.b16 %v5534
      %v5639 = vunpack.c.l.b16 %v5548
      %v5640 = vunpack.c.l.b16 %v5558
      %v5641 = vunpack.c.l.b16 %v5572
      %v5642 = vunpack.c.l.b16 %v5582
      %v5643 = vunpack.c.l.b16 %v5596
      %v5644 = vunpack.c.l.b16 %v5606
      %v5645 = vunpack.c.l.b16 %v5620
      %v5646 = vunpack.c.l.b16 %v5630
      %v5647 = vpack.c.b16 %v5632, %v5631
      %v5648 = vpack.c.b16 %v5634, %v5633
      %v5649 = vpack.c.b16 %v5636, %v5635
      %v5650 = vpack.c.b16 %v5638, %v5637
      %v5651 = vpack.c.b16 %v5640, %v5639
      %v5652 = vpack.c.b16 %v5642, %v5641
      %v5653 = vpack.c.b16 %v5644, %v5643
      %v5654 = vpack.c.b16 %v5646, %v5645
      %v5656 = vsel %vm3443, %v5647, 0
      %v5659 = vsel %vm3443, %v5648, 0
      %v5662 = vsel %vm3443, %v5649, 0
      %v5665 = vsel %vm3443, %v5650, 0
      %v5668 = vsel %vm3443, %v5651, 0
      %v5671 = vsel %vm3443, %v5652, 0
      %v5674 = vsel %vm3443, %v5653, 0
      %v5677 = vsel %vm3443, %v5654, 0
      %5679 = vmatpush.bf16.msra.mxu0 0
      %5680 = vmatpush.bf16.msra.mxu0 0
      %5681 = vmatpush.bf16.msra.mxu0 0
      %5682 = vmatpush.bf16.msra.mxu0 0
      %5683 = vmatpush.bf16.msra.mxu0 0
      %5684 = vmatpush.bf16.msra.mxu0 %v4290
      %5685 = vmatpush.bf16.msra.mxu0 %v4289
      %5686 = vmatpush.bf16.msra.mxu0 %v4288
      %5687 = vmatmul.bf16.gmra.mxu0 %v5656
      %v5688 = vpop.f32.mrf.mxu0
      %v5689 = vadd.f32 0.0, %v5688
      %v5690 = vpop.f32.mrf.mxu0
      %v5691 = vadd.f32 0.0, %v5690
      %5692 = vmatmul.bf16.gmra.mxu0 %v5659
      %v5693 = vpop.f32.mrf.mxu0
      %v5694 = vadd.f32 0.0, %v5693
      %v5695 = vpop.f32.mrf.mxu0
      %v5696 = vadd.f32 0.0, %v5695
      %5697 = vmatmul.bf16.gmra.mxu0 %v5662
      %v5698 = vpop.f32.mrf.mxu0
      %v5699 = vadd.f32 0.0, %v5698
      %v5700 = vpop.f32.mrf.mxu0
      %v5701 = vadd.f32 0.0, %v5700
      %5702 = vmatmul.bf16.gmra.mxu0 %v5665
      %v5703 = vpop.f32.mrf.mxu0
      %v5704 = vadd.f32 0.0, %v5703
      %v5705 = vpop.f32.mrf.mxu0
      %v5706 = vadd.f32 0.0, %v5705
      %5707 = vmatmul.bf16.gmra.mxu0 %v5668
      %v5708 = vpop.f32.mrf.mxu0
      %v5709 = vadd.f32 0.0, %v5708
      %v5710 = vpop.f32.mrf.mxu0
      %v5711 = vadd.f32 0.0, %v5710
      %5712 = vmatmul.bf16.gmra.mxu0 %v5671
      %v5713 = vpop.f32.mrf.mxu0
      %v5714 = vadd.f32 0.0, %v5713
      %v5715 = vpop.f32.mrf.mxu0
      %v5716 = vadd.f32 0.0, %v5715
      %5717 = vmatmul.bf16.gmra.mxu0 %v5674
      %v5718 = vpop.f32.mrf.mxu0
      %v5719 = vadd.f32 0.0, %v5718
      %v5720 = vpop.f32.mrf.mxu0
      %v5721 = vadd.f32 0.0, %v5720
      %5722 = vmatmul.bf16.gmra.mxu0 %v5677
      %v5723 = vpop.f32.mrf.mxu0
      %v5724 = vadd.f32 0.0, %v5723
      %v5725 = vpop.f32.mrf.mxu0
      %v5726 = vadd.f32 0.0, %v5725
      %5727 = vdwg.mxu0
      %v5728 = vadd.f32 %v5393, %v5689
      %v5729 = vadd.f32 %v5394, %v5691
      %v5730 = vadd.f32 %v5395, %v5694
      %v5731 = vadd.f32 %v5396, %v5696
      %v5732 = vadd.f32 %v5397, %v5699
      %v5733 = vadd.f32 %v5398, %v5701
      %v5734 = vadd.f32 %v5399, %v5704
      %v5735 = vadd.f32 %v5400, %v5706
      %v5736 = vadd.f32 %v5401, %v5709
      %v5737 = vadd.f32 %v5402, %v5711
      %v5738 = vadd.f32 %v5403, %v5714
      %v5739 = vadd.f32 %v5404, %v5716
      %v5740 = vadd.f32 %v5405, %v5719
      %v5741 = vadd.f32 %v5406, %v5721
      %v5742 = vadd.f32 %v5407, %v5724
      %v5743 = vadd.f32 %v5408, %v5726
      %v5745 = vshrl.u32 %v5433, 16
      %v5747 = vrot.slane %v5745, 4
      %v5748 = vshll.u32 %v5433, 16
      %v5750 = vrot.slane %v5748, 5
      %v5751 = vor.u32 %v5747, %v5750
      %v5752 = vrot.slane %v5751, 4
      %v5754 = vshll.u32 %v5434, 16
      %v5756 = vrot.slane %v5754, 5
      %v5757 = vsel %vm876, %v5752, %v5756
      %v5758 = vshrl.u32 %v5434, 16
      %v5760 = vrot.slane %v5758, 4
      %v5761 = vor.u32 %v5760, %v5756
      %v5762 = vrot.slane %v5761, 4
      %v5764 = vshll.u32 %v5435, 16
      %v5766 = vrot.slane %v5764, 5
      %v5767 = vsel %vm876, %v5762, %v5766
      %v5768 = vunpack.c.l.b16 %v5757
      %v5769 = vunpack.c.l.b16 %v5767
      %v5770 = vpack.c.b16 %v5769, %v5768
      %v5772 = vsel %vm3443, %v5770, 0
      %5774 = vmatpush.bf16.msra.mxu0 0
      %5775 = vmatpush.bf16.msra.mxu0 0
      %5776 = vmatpush.bf16.msra.mxu0 0
      %5777 = vmatpush.bf16.msra.mxu0 0
      %5778 = vmatpush.bf16.msra.mxu0 0
      %5779 = vmatpush.bf16.msra.mxu0 %v4424
      %5780 = vmatpush.bf16.msra.mxu0 %v4423
      %5781 = vmatpush.bf16.msra.mxu0 %v4422
      %5782 = vmatmul.bf16.gmra.mxu0 %v5659
      %v5783 = vpop.f32.mrf.mxu0
      %v5784 = vadd.f32 0.0, %v5783
      %v5785 = vpop.f32.mrf.mxu0
      %v5786 = vadd.f32 0.0, %v5785
      %5787 = vmatmul.bf16.gmra.mxu0 %v5662
      %v5788 = vpop.f32.mrf.mxu0
      %v5789 = vadd.f32 0.0, %v5788
      %v5790 = vpop.f32.mrf.mxu0
      %v5791 = vadd.f32 0.0, %v5790
      %5792 = vmatmul.bf16.gmra.mxu0 %v5665
      %v5793 = vpop.f32.mrf.mxu0
      %v5794 = vadd.f32 0.0, %v5793
      %v5795 = vpop.f32.mrf.mxu0
      %v5796 = vadd.f32 0.0, %v5795
      %5797 = vmatmul.bf16.gmra.mxu0 %v5668
      %v5798 = vpop.f32.mrf.mxu0
      %v5799 = vadd.f32 0.0, %v5798
      %v5800 = vpop.f32.mrf.mxu0
      %v5801 = vadd.f32 0.0, %v5800
      %5802 = vmatmul.bf16.gmra.mxu0 %v5671
      %v5803 = vpop.f32.mrf.mxu0
      %v5804 = vadd.f32 0.0, %v5803
      %v5805 = vpop.f32.mrf.mxu0
      %v5806 = vadd.f32 0.0, %v5805
      %5807 = vmatmul.bf16.gmra.mxu0 %v5674
      %v5808 = vpop.f32.mrf.mxu0
      %v5809 = vadd.f32 0.0, %v5808
      %v5810 = vpop.f32.mrf.mxu0
      %v5811 = vadd.f32 0.0, %v5810
      %5812 = vmatmul.bf16.gmra.mxu0 %v5677
      %v5813 = vpop.f32.mrf.mxu0
      %v5814 = vadd.f32 0.0, %v5813
      %v5815 = vpop.f32.mrf.mxu0
      %v5816 = vadd.f32 0.0, %v5815
      %5817 = vmatmul.bf16.gmra.mxu0 %v5772
      %v5818 = vpop.f32.mrf.mxu0
      %v5819 = vadd.f32 0.0, %v5818
      %v5820 = vpop.f32.mrf.mxu0
      %v5821 = vadd.f32 0.0, %v5820
      %5822 = vdwg.mxu0
      %v5823 = vadd.f32 %v5728, %v5784
      %v5824 = vadd.f32 %v5729, %v5786
      %v5825 = vadd.f32 %v5730, %v5789
      %v5826 = vadd.f32 %v5731, %v5791
      %v5827 = vadd.f32 %v5732, %v5794
      %v5828 = vadd.f32 %v5733, %v5796
      %v5829 = vadd.f32 %v5734, %v5799
      %v5830 = vadd.f32 %v5735, %v5801
      %v5831 = vadd.f32 %v5736, %v5804
      %v5832 = vadd.f32 %v5737, %v5806
      %v5833 = vadd.f32 %v5738, %v5809
      %v5834 = vadd.f32 %v5739, %v5811
      %v5835 = vadd.f32 %v5740, %v5814
      %v5836 = vadd.f32 %v5741, %v5816
      %v5837 = vadd.f32 %v5742, %v5819
      %v5838 = vadd.f32 %v5743, %v5821
      %v5840 = vshrl.u32 %v5436, 16
      %v5842 = vrot.slane %v5840, 4
      %v5843 = vshll.u32 %v5436, 16
      %v5845 = vrot.slane %v5843, 5
      %v5846 = vor.u32 %v5842, %v5845
      %v5847 = vrot.slane %v5846, 4
      %v5849 = vshll.u32 %v5437, 16
      %v5851 = vrot.slane %v5849, 5
      %v5852 = vsel %vm876, %v5847, %v5851
      %v5853 = vshrl.u32 %v5437, 16
      %v5855 = vrot.slane %v5853, 4
      %v5856 = vor.u32 %v5855, %v5851
      %v5857 = vrot.slane %v5856, 4
      %v5859 = vshll.u32 %v5438, 16
      %v5861 = vrot.slane %v5859, 5
      %v5862 = vsel %vm876, %v5857, %v5861
      %v5863 = vunpack.c.l.b16 %v5852
      %v5864 = vunpack.c.l.b16 %v5862
      %v5865 = vpack.c.b16 %v5864, %v5863
      %v5867 = vsel %vm3443, %v5865, 0
      %5869 = vmatpush.bf16.msra.mxu0 0
      %5870 = vmatpush.bf16.msra.mxu0 0
      %5871 = vmatpush.bf16.msra.mxu0 0
      %5872 = vmatpush.bf16.msra.mxu0 0
      %5873 = vmatpush.bf16.msra.mxu0 0
      %5874 = vmatpush.bf16.msra.mxu0 %v4537
      %5875 = vmatpush.bf16.msra.mxu0 %v4536
      %5876 = vmatpush.bf16.msra.mxu0 %v4535
      %5877 = vmatmul.bf16.gmra.mxu0 %v5662
      %v5878 = vpop.f32.mrf.mxu0
      %v5879 = vadd.f32 0.0, %v5878
      %v5880 = vpop.f32.mrf.mxu0
      %v5881 = vadd.f32 0.0, %v5880
      %5882 = vmatmul.bf16.gmra.mxu0 %v5665
      %v5883 = vpop.f32.mrf.mxu0
      %v5884 = vadd.f32 0.0, %v5883
      %v5885 = vpop.f32.mrf.mxu0
      %v5886 = vadd.f32 0.0, %v5885
      %5887 = vmatmul.bf16.gmra.mxu0 %v5668
      %v5888 = vpop.f32.mrf.mxu0
      %v5889 = vadd.f32 0.0, %v5888
      %v5890 = vpop.f32.mrf.mxu0
      %v5891 = vadd.f32 0.0, %v5890
      %5892 = vmatmul.bf16.gmra.mxu0 %v5671
      %v5893 = vpop.f32.mrf.mxu0
      %v5894 = vadd.f32 0.0, %v5893
      %v5895 = vpop.f32.mrf.mxu0
      %v5896 = vadd.f32 0.0, %v5895
      %5897 = vmatmul.bf16.gmra.mxu0 %v5674
      %v5898 = vpop.f32.mrf.mxu0
      %v5899 = vadd.f32 0.0, %v5898
      %v5900 = vpop.f32.mrf.mxu0
      %v5901 = vadd.f32 0.0, %v5900
      %5902 = vmatmul.bf16.gmra.mxu0 %v5677
      %v5903 = vpop.f32.mrf.mxu0
      %v5904 = vadd.f32 0.0, %v5903
      %v5905 = vpop.f32.mrf.mxu0
      %v5906 = vadd.f32 0.0, %v5905
      %5907 = vmatmul.bf16.gmra.mxu0 %v5772
      %v5908 = vpop.f32.mrf.mxu0
      %v5909 = vadd.f32 0.0, %v5908
      %v5910 = vpop.f32.mrf.mxu0
      %v5911 = vadd.f32 0.0, %v5910
      %5912 = vmatmul.bf16.gmra.mxu0 %v5867
      %v5913 = vpop.f32.mrf.mxu0
      %v5914 = vadd.f32 0.0, %v5913
      %v5915 = vpop.f32.mrf.mxu0
      %v5916 = vadd.f32 0.0, %v5915
      %5917 = vdwg.mxu0
      %v5918 = vadd.f32 %v5823, %v5879
      %v5919 = vadd.f32 %v5824, %v5881
      %v5920 = vadd.f32 %v5825, %v5884
      %v5921 = vadd.f32 %v5826, %v5886
      %v5922 = vadd.f32 %v5827, %v5889
      %v5923 = vadd.f32 %v5828, %v5891
      %v5924 = vadd.f32 %v5829, %v5894
      %v5925 = vadd.f32 %v5830, %v5896
      %v5926 = vadd.f32 %v5831, %v5899
      %v5927 = vadd.f32 %v5832, %v5901
      %v5928 = vadd.f32 %v5833, %v5904
      %v5929 = vadd.f32 %v5834, %v5906
      %v5930 = vadd.f32 %v5835, %v5909
      %v5931 = vadd.f32 %v5836, %v5911
      %v5932 = vadd.f32 %v5837, %v5914
      %v5933 = vadd.f32 %v5838, %v5916
      %v5934 = vadd.f32 %v5918, %v4610
      %v5935 = vadd.f32 %v5919, %v4610
      %v5936 = vadd.f32 %v5920, %v4610
      %v5937 = vadd.f32 %v5921, %v4610
      %v5938 = vadd.f32 %v5922, %v4610
      %v5939 = vadd.f32 %v5923, %v4610
      %v5940 = vadd.f32 %v5924, %v4610
      %v5941 = vadd.f32 %v5925, %v4610
      %v5942 = vadd.f32 %v5926, %v4610
      %v5943 = vadd.f32 %v5927, %v4610
      %v5944 = vadd.f32 %v5928, %v4610
      %v5945 = vadd.f32 %v5929, %v4610
      %v5946 = vadd.f32 %v5930, %v4610
      %v5947 = vadd.f32 %v5931, %v4610
      %v5948 = vadd.f32 %v5932, %v4610
      %v5949 = vadd.f32 %v5933, %v4610
      %v5950 = vmax.f32 %v5934, 0.0
      %v5951 = vmax.f32 %v5935, 0.0
      %v5952 = vmax.f32 %v5936, 0.0
      %v5953 = vmax.f32 %v5937, 0.0
      %v5954 = vmax.f32 %v5938, 0.0
      %v5955 = vmax.f32 %v5939, 0.0
      %v5956 = vmax.f32 %v5940, 0.0
      %v5957 = vmax.f32 %v5941, 0.0
      %v5958 = vmax.f32 %v5942, 0.0
      %v5959 = vmax.f32 %v5943, 0.0
      %v5960 = vmax.f32 %v5944, 0.0
      %v5961 = vmax.f32 %v5945, 0.0
      %v5962 = vmax.f32 %v5946, 0.0
      %v5963 = vmax.f32 %v5947, 0.0
      %v5964 = vmax.f32 %v5948, 0.0
      %v5965 = vmax.f32 %v5949, 0.0
      %s5966 = scalar_lea.vmem [#allocation3], 288
      %5967 = vst.msk [vmem:[%s5966 + $0x8] sm:$0xff] %vm323, %v5950
      %5968 = vst.msk [vmem:[%s5966 + $0x10] sm:$0xff] %vm323, %v5951
      %5969 = vst.msk [vmem:[%s5966 + $0x28] sm:$0xff] %vm323, %v5952
      %5970 = vst.msk [vmem:[%s5966 + $0x30] sm:$0xff] %vm323, %v5953
      %5971 = vst.msk [vmem:[%s5966 + $0x48] sm:$0xff] %vm323, %v5954
      %5972 = vst.msk [vmem:[%s5966 + $0x50] sm:$0xff] %vm323, %v5955
      %5973 = vst.msk [vmem:[%s5966 + $0x68] sm:$0xff] %vm323, %v5956
      %5974 = vst.msk [vmem:[%s5966 + $0x70] sm:$0xff] %vm323, %v5957
      %5975 = vst.msk [vmem:[%s5966 + $0x88] sm:$0xff] %vm323, %v5958
      %5976 = vst.msk [vmem:[%s5966 + $0x90] sm:$0xff] %vm323, %v5959
      %5977 = vst.msk [vmem:[%s5966 + $0xa8] sm:$0xff] %vm323, %v5960
      %5978 = vst.msk [vmem:[%s5966 + $0xb0] sm:$0xff] %vm323, %v5961
      %5979 = vst.msk [vmem:[%s5966 + $0xc8] sm:$0xff] %vm323, %v5962
      %5980 = vst.msk [vmem:[%s5966 + $0xd0] sm:$0xff] %vm323, %v5963
      %5981 = vst.msk [vmem:[%s5966 + $0xe8] sm:$0xff] %vm323, %v5964
      %5982 = vst.msk [vmem:[%s5966 + $0xf0] sm:$0xff] %vm323, %v5965
      %v5983 = vld [vmem:[#allocation3 + $0x7] sm:$0xff]
      %v5984 = vld [vmem:[#allocation3 + $0xf] sm:$0xff]
      %v5985 = vld [vmem:[#allocation3 + $0x27] sm:$0xff]
      %v5986 = vld [vmem:[#allocation3 + $0x2f] sm:$0xff]
      %v5987 = vld [vmem:[#allocation3 + $0x47] sm:$0xff]
      %v5988 = vld [vmem:[#allocation3 + $0x4f] sm:$0xff]
      %v5989 = vld [vmem:[#allocation3 + $0x67] sm:$0xff]
      %v5990 = vld [vmem:[#allocation3 + $0x6f] sm:$0xff]
      %v5991 = vld [vmem:[#allocation3 + $0x87] sm:$0xff]
      %v5992 = vld [vmem:[#allocation3 + $0x8f] sm:$0xff]
      %v5993 = vld [vmem:[#allocation3 + $0xa7] sm:$0xff]
      %v5994 = vld [vmem:[#allocation3 + $0xaf] sm:$0xff]
      %v5995 = vld [vmem:[#allocation3 + $0xc7] sm:$0xff]
      %v5996 = vld [vmem:[#allocation3 + $0xcf] sm:$0xff]
      %v5997 = vld [vmem:[#allocation3 + $0xe7] sm:$0xff]
      %v5998 = vld [vmem:[#allocation3 + $0xef] sm:$0xff]
      %v5999 = vld [vmem:[#allocation3 + $0x107] sm:$0xff]
      %v6000 = vld [vmem:[#allocation3 + $0x10f] sm:$0xff]
      %v6001 = vld [vmem:[#allocation3 + $0x127] sm:$0xff]
      %v6002 = vld [vmem:[#allocation3 + $0x12f] sm:$0xff]
      %v6003 = vperm.slane %v499, 0
      %v6004 = vmul.f32 %v5983, %v6003
      %v6005 = vmul.f32 %v5984, %v6003
      %v6006 = vmul.f32 %v5985, %v6003
      %v6007 = vmul.f32 %v5986, %v6003
      %v6008 = vmul.f32 %v5987, %v6003
      %v6009 = vmul.f32 %v5988, %v6003
      %v6010 = vmul.f32 %v5989, %v6003
      %v6011 = vmul.f32 %v5990, %v6003
      %v6012 = vmul.f32 %v5991, %v6003
      %v6013 = vmul.f32 %v5992, %v6003
      %v6014 = vmul.f32 %v5993, %v6003
      %v6015 = vmul.f32 %v5994, %v6003
      %v6016 = vmul.f32 %v5995, %v6003
      %v6017 = vmul.f32 %v5996, %v6003
      %v6018 = vmul.f32 %v5997, %v6003
      %v6019 = vmul.f32 %v5998, %v6003
      %v6020 = vadd.f32 %v6004, 0.0
      %v6021 = vadd.f32 %v6005, 0.0
      %v6022 = vadd.f32 %v6006, 0.0
      %v6023 = vadd.f32 %v6007, 0.0
      %v6024 = vadd.f32 %v6008, 0.0
      %v6025 = vadd.f32 %v6009, 0.0
      %v6026 = vadd.f32 %v6010, 0.0
      %v6027 = vadd.f32 %v6011, 0.0
      %v6028 = vadd.f32 %v6012, 0.0
      %v6029 = vadd.f32 %v6013, 0.0
      %v6030 = vadd.f32 %v6014, 0.0
      %v6031 = vadd.f32 %v6015, 0.0
      %v6032 = vadd.f32 %v6016, 0.0
      %v6033 = vadd.f32 %v6017, 0.0
      %v6034 = vadd.f32 %v6018, 0.0
      %v6035 = vadd.f32 %v6019, 0.0
      %v6036 = vperm.slane %v500, 0
      %v6037 = vmul.f32 %v5985, %v6036
      %v6038 = vmul.f32 %v5986, %v6036
      %v6039 = vmul.f32 %v5987, %v6036
      %v6040 = vmul.f32 %v5988, %v6036
      %v6041 = vmul.f32 %v5989, %v6036
      %v6042 = vmul.f32 %v5990, %v6036
      %v6043 = vmul.f32 %v5991, %v6036
      %v6044 = vmul.f32 %v5992, %v6036
      %v6045 = vmul.f32 %v5993, %v6036
      %v6046 = vmul.f32 %v5994, %v6036
      %v6047 = vmul.f32 %v5995, %v6036
      %v6048 = vmul.f32 %v5996, %v6036
      %v6049 = vmul.f32 %v5997, %v6036
      %v6050 = vmul.f32 %v5998, %v6036
      %v6051 = vmul.f32 %v5999, %v6036
      %v6052 = vmul.f32 %v6000, %v6036
      %v6053 = vadd.f32 %v6020, %v6037
      %v6054 = vadd.f32 %v6021, %v6038
      %v6055 = vadd.f32 %v6022, %v6039
      %v6056 = vadd.f32 %v6023, %v6040
      %v6057 = vadd.f32 %v6024, %v6041
      %v6058 = vadd.f32 %v6025, %v6042
      %v6059 = vadd.f32 %v6026, %v6043
      %v6060 = vadd.f32 %v6027, %v6044
      %v6061 = vadd.f32 %v6028, %v6045
      %v6062 = vadd.f32 %v6029, %v6046
      %v6063 = vadd.f32 %v6030, %v6047
      %v6064 = vadd.f32 %v6031, %v6048
      %v6065 = vadd.f32 %v6032, %v6049
      %v6066 = vadd.f32 %v6033, %v6050
      %v6067 = vadd.f32 %v6034, %v6051
      %v6068 = vadd.f32 %v6035, %v6052
      %v6069 = vperm.slane %v501, 0
      %v6070 = vmul.f32 %v5987, %v6069
      %v6071 = vmul.f32 %v5988, %v6069
      %v6072 = vmul.f32 %v5989, %v6069
      %v6073 = vmul.f32 %v5990, %v6069
      %v6074 = vmul.f32 %v5991, %v6069
      %v6075 = vmul.f32 %v5992, %v6069
      %v6076 = vmul.f32 %v5993, %v6069
      %v6077 = vmul.f32 %v5994, %v6069
      %v6078 = vmul.f32 %v5995, %v6069
      %v6079 = vmul.f32 %v5996, %v6069
      %v6080 = vmul.f32 %v5997, %v6069
      %v6081 = vmul.f32 %v5998, %v6069
      %v6082 = vmul.f32 %v5999, %v6069
      %v6083 = vmul.f32 %v6000, %v6069
      %v6084 = vmul.f32 %v6001, %v6069
      %v6085 = vmul.f32 %v6002, %v6069
      %v6086 = vadd.f32 %v6053, %v6070
      %v6087 = vadd.f32 %v6054, %v6071
      %v6088 = vadd.f32 %v6055, %v6072
      %v6089 = vadd.f32 %v6056, %v6073
      %v6090 = vadd.f32 %v6057, %v6074
      %v6091 = vadd.f32 %v6058, %v6075
      %v6092 = vadd.f32 %v6059, %v6076
      %v6093 = vadd.f32 %v6060, %v6077
      %v6094 = vadd.f32 %v6061, %v6078
      %v6095 = vadd.f32 %v6062, %v6079
      %v6096 = vadd.f32 %v6063, %v6080
      %v6097 = vadd.f32 %v6064, %v6081
      %v6098 = vadd.f32 %v6065, %v6082
      %v6099 = vadd.f32 %v6066, %v6083
      %v6100 = vadd.f32 %v6067, %v6084
      %v6101 = vadd.f32 %v6068, %v6085
      %v6102 = vld [vmem:[#allocation3 + $0x8] sm:$0xff]
      %v6103 = vld [vmem:[#allocation3 + $0x10] sm:$0xff]
      %v6104 = vld [vmem:[#allocation3 + $0x28] sm:$0xff]
      %v6105 = vld [vmem:[#allocation3 + $0x30] sm:$0xff]
      %v6106 = vld [vmem:[#allocation3 + $0x48] sm:$0xff]
      %v6107 = vld [vmem:[#allocation3 + $0x50] sm:$0xff]
      %v6108 = vld [vmem:[#allocation3 + $0x68] sm:$0xff]
      %v6109 = vld [vmem:[#allocation3 + $0x70] sm:$0xff]
      %v6110 = vld [vmem:[#allocation3 + $0x88] sm:$0xff]
      %v6111 = vld [vmem:[#allocation3 + $0x90] sm:$0xff]
      %v6112 = vld [vmem:[#allocation3 + $0xa8] sm:$0xff]
      %v6113 = vld [vmem:[#allocation3 + $0xb0] sm:$0xff]
      %v6114 = vld [vmem:[#allocation3 + $0xc8] sm:$0xff]
      %v6115 = vld [vmem:[#allocation3 + $0xd0] sm:$0xff]
      %v6116 = vld [vmem:[#allocation3 + $0xe8] sm:$0xff]
      %v6117 = vld [vmem:[#allocation3 + $0xf0] sm:$0xff]
      %v6118 = vld [vmem:[#allocation3 + $0x108] sm:$0xff]
      %v6119 = vld [vmem:[#allocation3 + $0x110] sm:$0xff]
      %v6120 = vld [vmem:[#allocation3 + $0x128] sm:$0xff]
      %v6121 = vld [vmem:[#allocation3 + $0x130] sm:$0xff]
      %v6122 = vperm.slane %v499, 1
      %v6123 = vmul.f32 %v6102, %v6122
      %v6124 = vmul.f32 %v6103, %v6122
      %v6125 = vmul.f32 %v6104, %v6122
      %v6126 = vmul.f32 %v6105, %v6122
      %v6127 = vmul.f32 %v6106, %v6122
      %v6128 = vmul.f32 %v6107, %v6122
      %v6129 = vmul.f32 %v6108, %v6122
      %v6130 = vmul.f32 %v6109, %v6122
      %v6131 = vmul.f32 %v6110, %v6122
      %v6132 = vmul.f32 %v6111, %v6122
      %v6133 = vmul.f32 %v6112, %v6122
      %v6134 = vmul.f32 %v6113, %v6122
      %v6135 = vmul.f32 %v6114, %v6122
      %v6136 = vmul.f32 %v6115, %v6122
      %v6137 = vmul.f32 %v6116, %v6122
      %v6138 = vmul.f32 %v6117, %v6122
      %v6139 = vadd.f32 %v6086, %v6123
      %v6140 = vadd.f32 %v6087, %v6124
      %v6141 = vadd.f32 %v6088, %v6125
      %v6142 = vadd.f32 %v6089, %v6126
      %v6143 = vadd.f32 %v6090, %v6127
      %v6144 = vadd.f32 %v6091, %v6128
      %v6145 = vadd.f32 %v6092, %v6129
      %v6146 = vadd.f32 %v6093, %v6130
      %v6147 = vadd.f32 %v6094, %v6131
      %v6148 = vadd.f32 %v6095, %v6132
      %v6149 = vadd.f32 %v6096, %v6133
      %v6150 = vadd.f32 %v6097, %v6134
      %v6151 = vadd.f32 %v6098, %v6135
      %v6152 = vadd.f32 %v6099, %v6136
      %v6153 = vadd.f32 %v6100, %v6137
      %v6154 = vadd.f32 %v6101, %v6138
      %v6155 = vperm.slane %v500, 1
      %v6156 = vmul.f32 %v6104, %v6155
      %v6157 = vmul.f32 %v6105, %v6155
      %v6158 = vmul.f32 %v6106, %v6155
      %v6159 = vmul.f32 %v6107, %v6155
      %v6160 = vmul.f32 %v6108, %v6155
      %v6161 = vmul.f32 %v6109, %v6155
      %v6162 = vmul.f32 %v6110, %v6155
      %v6163 = vmul.f32 %v6111, %v6155
      %v6164 = vmul.f32 %v6112, %v6155
      %v6165 = vmul.f32 %v6113, %v6155
      %v6166 = vmul.f32 %v6114, %v6155
      %v6167 = vmul.f32 %v6115, %v6155
      %v6168 = vmul.f32 %v6116, %v6155
      %v6169 = vmul.f32 %v6117, %v6155
      %v6170 = vmul.f32 %v6118, %v6155
      %v6171 = vmul.f32 %v6119, %v6155
      %v6172 = vadd.f32 %v6139, %v6156
      %v6173 = vadd.f32 %v6140, %v6157
      %v6174 = vadd.f32 %v6141, %v6158
      %v6175 = vadd.f32 %v6142, %v6159
      %v6176 = vadd.f32 %v6143, %v6160
      %v6177 = vadd.f32 %v6144, %v6161
      %v6178 = vadd.f32 %v6145, %v6162
      %v6179 = vadd.f32 %v6146, %v6163
      %v6180 = vadd.f32 %v6147, %v6164
      %v6181 = vadd.f32 %v6148, %v6165
      %v6182 = vadd.f32 %v6149, %v6166
      %v6183 = vadd.f32 %v6150, %v6167
      %v6184 = vadd.f32 %v6151, %v6168
      %v6185 = vadd.f32 %v6152, %v6169
      %v6186 = vadd.f32 %v6153, %v6170
      %v6187 = vadd.f32 %v6154, %v6171
      %v6188 = vperm.slane %v501, 1
      %v6189 = vmul.f32 %v6106, %v6188
      %v6190 = vmul.f32 %v6107, %v6188
      %v6191 = vmul.f32 %v6108, %v6188
      %v6192 = vmul.f32 %v6109, %v6188
      %v6193 = vmul.f32 %v6110, %v6188
      %v6194 = vmul.f32 %v6111, %v6188
      %v6195 = vmul.f32 %v6112, %v6188
      %v6196 = vmul.f32 %v6113, %v6188
      %v6197 = vmul.f32 %v6114, %v6188
      %v6198 = vmul.f32 %v6115, %v6188
      %v6199 = vmul.f32 %v6116, %v6188
      %v6200 = vmul.f32 %v6117, %v6188
      %v6201 = vmul.f32 %v6118, %v6188
      %v6202 = vmul.f32 %v6119, %v6188
      %v6203 = vmul.f32 %v6120, %v6188
      %v6204 = vmul.f32 %v6121, %v6188
      %v6205 = vadd.f32 %v6172, %v6189
      %v6206 = vadd.f32 %v6173, %v6190
      %v6207 = vadd.f32 %v6174, %v6191
      %v6208 = vadd.f32 %v6175, %v6192
      %v6209 = vadd.f32 %v6176, %v6193
      %v6210 = vadd.f32 %v6177, %v6194
      %v6211 = vadd.f32 %v6178, %v6195
      %v6212 = vadd.f32 %v6179, %v6196
      %v6213 = vadd.f32 %v6180, %v6197
      %v6214 = vadd.f32 %v6181, %v6198
      %v6215 = vadd.f32 %v6182, %v6199
      %v6216 = vadd.f32 %v6183, %v6200
      %v6217 = vadd.f32 %v6184, %v6201
      %v6218 = vadd.f32 %v6185, %v6202
      %v6219 = vadd.f32 %v6186, %v6203
      %v6220 = vadd.f32 %v6187, %v6204
      %v6221 = vld [vmem:[#allocation3 + $0x9] sm:$0xff]
      %v6222 = vld [vmem:[#allocation3 + $0x11] sm:$0xff]
      %v6223 = vld [vmem:[#allocation3 + $0x29] sm:$0xff]
      %v6224 = vld [vmem:[#allocation3 + $0x31] sm:$0xff]
      %v6225 = vld [vmem:[#allocation3 + $0x49] sm:$0xff]
      %v6226 = vld [vmem:[#allocation3 + $0x51] sm:$0xff]
      %v6227 = vld [vmem:[#allocation3 + $0x69] sm:$0xff]
      %v6228 = vld [vmem:[#allocation3 + $0x71] sm:$0xff]
      %v6229 = vld [vmem:[#allocation3 + $0x89] sm:$0xff]
      %v6230 = vld [vmem:[#allocation3 + $0x91] sm:$0xff]
      %v6231 = vld [vmem:[#allocation3 + $0xa9] sm:$0xff]
      %v6232 = vld [vmem:[#allocation3 + $0xb1] sm:$0xff]
      %v6233 = vld [vmem:[#allocation3 + $0xc9] sm:$0xff]
      %v6234 = vld [vmem:[#allocation3 + $0xd1] sm:$0xff]
      %v6235 = vld [vmem:[#allocation3 + $0xe9] sm:$0xff]
      %v6236 = vld [vmem:[#allocation3 + $0xf1] sm:$0xff]
      %v6237 = vld [vmem:[#allocation3 + $0x109] sm:$0xff]
      %v6238 = vld [vmem:[#allocation3 + $0x111] sm:$0xff]
      %v6239 = vld [vmem:[#allocation3 + $0x129] sm:$0xff]
      %v6240 = vld [vmem:[#allocation3 + $0x131] sm:$0xff]
      %v6241 = vperm.slane %v499, 2
      %v6242 = vmul.f32 %v6221, %v6241
      %v6243 = vmul.f32 %v6222, %v6241
      %v6244 = vmul.f32 %v6223, %v6241
      %v6245 = vmul.f32 %v6224, %v6241
      %v6246 = vmul.f32 %v6225, %v6241
      %v6247 = vmul.f32 %v6226, %v6241
      %v6248 = vmul.f32 %v6227, %v6241
      %v6249 = vmul.f32 %v6228, %v6241
      %v6250 = vmul.f32 %v6229, %v6241
      %v6251 = vmul.f32 %v6230, %v6241
      %v6252 = vmul.f32 %v6231, %v6241
      %v6253 = vmul.f32 %v6232, %v6241
      %v6254 = vmul.f32 %v6233, %v6241
      %v6255 = vmul.f32 %v6234, %v6241
      %v6256 = vmul.f32 %v6235, %v6241
      %v6257 = vmul.f32 %v6236, %v6241
      %v6258 = vadd.f32 %v6205, %v6242
      %v6259 = vadd.f32 %v6206, %v6243
      %v6260 = vadd.f32 %v6207, %v6244
      %v6261 = vadd.f32 %v6208, %v6245
      %v6262 = vadd.f32 %v6209, %v6246
      %v6263 = vadd.f32 %v6210, %v6247
      %v6264 = vadd.f32 %v6211, %v6248
      %v6265 = vadd.f32 %v6212, %v6249
      %v6266 = vadd.f32 %v6213, %v6250
      %v6267 = vadd.f32 %v6214, %v6251
      %v6268 = vadd.f32 %v6215, %v6252
      %v6269 = vadd.f32 %v6216, %v6253
      %v6270 = vadd.f32 %v6217, %v6254
      %v6271 = vadd.f32 %v6218, %v6255
      %v6272 = vadd.f32 %v6219, %v6256
      %v6273 = vadd.f32 %v6220, %v6257
      %v6274 = vperm.slane %v500, 2
      %v6275 = vmul.f32 %v6223, %v6274
      %v6276 = vmul.f32 %v6224, %v6274
      %v6277 = vmul.f32 %v6225, %v6274
      %v6278 = vmul.f32 %v6226, %v6274
      %v6279 = vmul.f32 %v6227, %v6274
      %v6280 = vmul.f32 %v6228, %v6274
      %v6281 = vmul.f32 %v6229, %v6274
      %v6282 = vmul.f32 %v6230, %v6274
      %v6283 = vmul.f32 %v6231, %v6274
      %v6284 = vmul.f32 %v6232, %v6274
      %v6285 = vmul.f32 %v6233, %v6274
      %v6286 = vmul.f32 %v6234, %v6274
      %v6287 = vmul.f32 %v6235, %v6274
      %v6288 = vmul.f32 %v6236, %v6274
      %v6289 = vmul.f32 %v6237, %v6274
      %v6290 = vmul.f32 %v6238, %v6274
      %v6291 = vadd.f32 %v6258, %v6275
      %v6292 = vadd.f32 %v6259, %v6276
      %v6293 = vadd.f32 %v6260, %v6277
      %v6294 = vadd.f32 %v6261, %v6278
      %v6295 = vadd.f32 %v6262, %v6279
      %v6296 = vadd.f32 %v6263, %v6280
      %v6297 = vadd.f32 %v6264, %v6281
      %v6298 = vadd.f32 %v6265, %v6282
      %v6299 = vadd.f32 %v6266, %v6283
      %v6300 = vadd.f32 %v6267, %v6284
      %v6301 = vadd.f32 %v6268, %v6285
      %v6302 = vadd.f32 %v6269, %v6286
      %v6303 = vadd.f32 %v6270, %v6287
      %v6304 = vadd.f32 %v6271, %v6288
      %v6305 = vadd.f32 %v6272, %v6289
      %v6306 = vadd.f32 %v6273, %v6290
      %v6307 = vperm.slane %v501, 2
      %v6308 = vmul.f32 %v6225, %v6307
      %v6309 = vmul.f32 %v6226, %v6307
      %v6310 = vmul.f32 %v6227, %v6307
      %v6311 = vmul.f32 %v6228, %v6307
      %v6312 = vmul.f32 %v6229, %v6307
      %v6313 = vmul.f32 %v6230, %v6307
      %v6314 = vmul.f32 %v6231, %v6307
      %v6315 = vmul.f32 %v6232, %v6307
      %v6316 = vmul.f32 %v6233, %v6307
      %v6317 = vmul.f32 %v6234, %v6307
      %v6318 = vmul.f32 %v6235, %v6307
      %v6319 = vmul.f32 %v6236, %v6307
      %v6320 = vmul.f32 %v6237, %v6307
      %v6321 = vmul.f32 %v6238, %v6307
      %v6322 = vmul.f32 %v6239, %v6307
      %v6323 = vmul.f32 %v6240, %v6307
      %v6324 = vadd.f32 %v6291, %v6308
      %v6325 = vadd.f32 %v6292, %v6309
      %v6326 = vadd.f32 %v6293, %v6310
      %v6327 = vadd.f32 %v6294, %v6311
      %v6328 = vadd.f32 %v6295, %v6312
      %v6329 = vadd.f32 %v6296, %v6313
      %v6330 = vadd.f32 %v6297, %v6314
      %v6331 = vadd.f32 %v6298, %v6315
      %v6332 = vadd.f32 %v6299, %v6316
      %v6333 = vadd.f32 %v6300, %v6317
      %v6334 = vadd.f32 %v6301, %v6318
      %v6335 = vadd.f32 %v6302, %v6319
      %v6336 = vadd.f32 %v6303, %v6320
      %v6337 = vadd.f32 %v6304, %v6321
      %v6338 = vadd.f32 %v6305, %v6322
      %v6339 = vadd.f32 %v6306, %v6323
      %v6340 = vsel %vm323, %v6324, 0.0
      %6341 = vadd.xlane.f32.xlu0 %v6340
      %v6342 = vpop.xlane.xlu0 %6341
      %v6343 = vsel %vm323, %v6325, 0.0
      %6344 = vadd.xlane.f32.xlu0 %v6343
      %v6345 = vpop.xlane.xlu0 %6344
      %v6346 = vsel %vm323, %v6326, 0.0
      %6347 = vadd.xlane.f32.xlu0 %v6346
      %v6348 = vpop.xlane.xlu0 %6347
      %v6349 = vsel %vm323, %v6327, 0.0
      %6350 = vadd.xlane.f32.xlu0 %v6349
      %v6351 = vpop.xlane.xlu0 %6350
      %v6352 = vsel %vm323, %v6328, 0.0
      %6353 = vadd.xlane.f32.xlu0 %v6352
      %v6354 = vpop.xlane.xlu0 %6353
      %v6355 = vsel %vm323, %v6329, 0.0
      %6356 = vadd.xlane.f32.xlu0 %v6355
      %v6357 = vpop.xlane.xlu0 %6356
      %v6358 = vsel %vm323, %v6330, 0.0
      %6359 = vadd.xlane.f32.xlu0 %v6358
      %v6360 = vpop.xlane.xlu0 %6359
      %v6361 = vsel %vm323, %v6331, 0.0
      %6362 = vadd.xlane.f32.xlu0 %v6361
      %v6363 = vpop.xlane.xlu0 %6362
      %v6364 = vsel %vm323, %v6332, 0.0
      %6365 = vadd.xlane.f32.xlu0 %v6364
      %v6366 = vpop.xlane.xlu0 %6365
      %v6367 = vsel %vm323, %v6333, 0.0
      %6368 = vadd.xlane.f32.xlu0 %v6367
      %v6369 = vpop.xlane.xlu0 %6368
      %v6370 = vsel %vm323, %v6334, 0.0
      %6371 = vadd.xlane.f32.xlu0 %v6370
      %v6372 = vpop.xlane.xlu0 %6371
      %v6373 = vsel %vm323, %v6335, 0.0
      %6374 = vadd.xlane.f32.xlu0 %v6373
      %v6375 = vpop.xlane.xlu0 %6374
      %v6376 = vsel %vm323, %v6336, 0.0
      %6377 = vadd.xlane.f32.xlu0 %v6376
      %v6378 = vpop.xlane.xlu0 %6377
      %v6379 = vsel %vm323, %v6337, 0.0
      %6380 = vadd.xlane.f32.xlu0 %v6379
      %v6381 = vpop.xlane.xlu0 %6380
      %v6382 = vsel %vm323, %v6338, 0.0
      %6383 = vadd.xlane.f32.xlu0 %v6382
      %v6384 = vpop.xlane.xlu0 %6383
      %v6385 = vsel %vm323, %v6339, 0.0
      %6386 = vadd.xlane.f32.xlu0 %v6385
      %v6387 = vpop.xlane.xlu0 %6386
      %v6389 = vperm.slane %v504, 0
      %6390 = vset.pattern.permute.xlu0 0
      %6391 = vperm.xlu0 %6390, %v6389
      %v6392 = vpop.permute.xlu0 %6391
      %v6394 = vadd.f32 %v6342, %v6392
      %v6395 = vadd.f32 %v6345, %v6392
      %v6396 = vadd.f32 %v6348, %v6392
      %v6397 = vadd.f32 %v6351, %v6392
      %v6398 = vadd.f32 %v6354, %v6392
      %v6399 = vadd.f32 %v6357, %v6392
      %v6400 = vadd.f32 %v6360, %v6392
      %v6401 = vadd.f32 %v6363, %v6392
      %v6402 = vadd.f32 %v6366, %v6392
      %v6403 = vadd.f32 %v6369, %v6392
      %v6404 = vadd.f32 %v6372, %v6392
      %v6405 = vadd.f32 %v6375, %v6392
      %v6406 = vadd.f32 %v6378, %v6392
      %v6407 = vadd.f32 %v6381, %v6392
      %v6408 = vadd.f32 %v6384, %v6392
      %v6409 = vadd.f32 %v6387, %v6392
      %v6410 = vtanh.pop %v6394
      %v6411 = vtanh.pop %v6395
      %v6412 = vtanh.pop %v6396
      %v6413 = vtanh.pop %v6397
      %v6414 = vtanh.pop %v6398
      %v6415 = vtanh.pop %v6399
      %v6416 = vtanh.pop %v6400
      %v6417 = vtanh.pop %v6401
      %v6418 = vtanh.pop %v6402
      %v6419 = vtanh.pop %v6403
      %v6420 = vtanh.pop %v6404
      %v6421 = vtanh.pop %v6405
      %v6422 = vtanh.pop %v6406
      %v6423 = vtanh.pop %v6407
      %v6424 = vtanh.pop %v6408
      %v6425 = vtanh.pop %v6409
      %v6442 = vlaneseq
      %v6443 = vand.u32 %v6442, 127
      %v6444 = vperm.slane %v6410, %v6443
      %v6445 = vadd.s32 %v6443, 4294967288
      %v6446 = vperm.slane %v6411, %v6445
      %vm6447 = vcmask 130112
      %v6448 = vsel %vm6447, %v6446, %v6444
      %v6449 = vadd.s32 %v6443, 4294967280
      %v6450 = vperm.slane %v6412, %v6449
      %vm6451 = vcmask 195712
      %v6452 = vsel %vm6451, %v6450, %v6448
      %v6453 = vadd.s32 %v6443, 4294967272
      %v6454 = vperm.slane %v6413, %v6453
      %vm6455 = vcmask 261312
      %v6456 = vsel %vm6455, %v6454, %v6452
      %v6457 = vadd.s32 %v6443, 4294967264
      %v6458 = vperm.slane %v6414, %v6457
      %vm6459 = vcmask 326912
      %v6460 = vsel %vm6459, %v6458, %v6456
      %v6461 = vadd.s32 %v6443, 4294967256
      %v6462 = vperm.slane %v6415, %v6461
      %vm6463 = vcmask 392512
      %v6464 = vsel %vm6463, %v6462, %v6460
      %v6465 = vadd.s32 %v6443, 4294967248
      %v6466 = vperm.slane %v6416, %v6465
      %vm6467 = vcmask 458112
      %v6468 = vsel %vm6467, %v6466, %v6464
      %v6469 = vadd.s32 %v6443, 4294967240
      %v6470 = vperm.slane %v6417, %v6469
      %vm6471 = vcmask 523712
      %v6472 = vsel %vm6471, %v6470, %v6468
      %v6473 = vadd.s32 %v6443, 4294967232
      %v6474 = vperm.slane %v6418, %v6473
      %vm6475 = vcmask 589312
      %v6476 = vsel %vm6475, %v6474, %v6472
      %v6477 = vadd.s32 %v6443, 4294967224
      %v6478 = vperm.slane %v6419, %v6477
      %vm6479 = vcmask 654912
      %v6480 = vsel %vm6479, %v6478, %v6476
      %v6481 = vadd.s32 %v6443, 4294967216
      %v6482 = vperm.slane %v6420, %v6481
      %vm6483 = vcmask 720512
      %v6484 = vsel %vm6483, %v6482, %v6480
      %v6485 = vadd.s32 %v6443, 4294967208
      %v6486 = vperm.slane %v6421, %v6485
      %vm6487 = vcmask 786112
      %v6488 = vsel %vm6487, %v6486, %v6484
      %v6489 = vadd.s32 %v6443, 4294967200
      %v6490 = vperm.slane %v6422, %v6489
      %vm6491 = vcmask 851712
      %v6492 = vsel %vm6491, %v6490, %v6488
      %v6493 = vadd.s32 %v6443, 4294967192
      %v6494 = vperm.slane %v6423, %v6493
      %vm6495 = vcmask 917312
      %v6496 = vsel %vm6495, %v6494, %v6492
      %v6497 = vadd.s32 %v6443, 4294967184
      %v6498 = vperm.slane %v6424, %v6497
      %vm6499 = vcmask 982912
      %v6500 = vsel %vm6499, %v6498, %v6496
      %v6501 = vadd.s32 %v6443, 4294967176
      %v6502 = vperm.slane %v6425, %v6501
      %vm6503 = vcmask 1048512
      %v6504 = vsel %vm6503, %v6502, %v6500
      %6506 = vst [vmem:[%s278] sm:$0x1] %v6504
      %s6507 = scalar_lea.vmem [#allocation3], 256
      %v6508 = vld [vmem:[%s6507 + $0x7] sm:$0xff]
      %v6509 = vld [vmem:[%s6507 + $0xf] sm:$0xff]
      %v6510 = vld [vmem:[%s6507 + $0x27] sm:$0xff]
      %v6511 = vld [vmem:[%s6507 + $0x2f] sm:$0xff]
      %v6512 = vld [vmem:[%s6507 + $0x47] sm:$0xff]
      %v6513 = vld [vmem:[%s6507 + $0x4f] sm:$0xff]
      %v6514 = vld [vmem:[%s6507 + $0x67] sm:$0xff]
      %v6515 = vld [vmem:[%s6507 + $0x6f] sm:$0xff]
      %v6516 = vld [vmem:[%s6507 + $0x87] sm:$0xff]
      %v6517 = vld [vmem:[%s6507 + $0x8f] sm:$0xff]
      %v6518 = vld [vmem:[%s6507 + $0xa7] sm:$0xff]
      %v6519 = vld [vmem:[%s6507 + $0xaf] sm:$0xff]
      %v6520 = vld [vmem:[%s6507 + $0xc7] sm:$0xff]
      %v6521 = vld [vmem:[%s6507 + $0xcf] sm:$0xff]
      %v6522 = vld [vmem:[%s6507 + $0xe7] sm:$0xff]
      %v6523 = vld [vmem:[%s6507 + $0xef] sm:$0xff]
      %v6524 = vld [vmem:[%s6507 + $0x107] sm:$0xff]
      %v6525 = vld [vmem:[%s6507 + $0x10f] sm:$0xff]
      %v6526 = vld [vmem:[%s6507 + $0x127] sm:$0xff]
      %v6527 = vld [vmem:[%s6507 + $0x12f] sm:$0xff]
      %v6528 = vmul.f32 %v6508, %v6003
      %v6529 = vmul.f32 %v6509, %v6003
      %v6530 = vmul.f32 %v6510, %v6003
      %v6531 = vmul.f32 %v6511, %v6003
      %v6532 = vmul.f32 %v6512, %v6003
      %v6533 = vmul.f32 %v6513, %v6003
      %v6534 = vmul.f32 %v6514, %v6003
      %v6535 = vmul.f32 %v6515, %v6003
      %v6536 = vmul.f32 %v6516, %v6003
      %v6537 = vmul.f32 %v6517, %v6003
      %v6538 = vmul.f32 %v6518, %v6003
      %v6539 = vmul.f32 %v6519, %v6003
      %v6540 = vmul.f32 %v6520, %v6003
      %v6541 = vmul.f32 %v6521, %v6003
      %v6542 = vmul.f32 %v6522, %v6003
      %v6543 = vmul.f32 %v6523, %v6003
      %v6544 = vadd.f32 %v6528, 0.0
      %v6545 = vadd.f32 %v6529, 0.0
      %v6546 = vadd.f32 %v6530, 0.0
      %v6547 = vadd.f32 %v6531, 0.0
      %v6548 = vadd.f32 %v6532, 0.0
      %v6549 = vadd.f32 %v6533, 0.0
      %v6550 = vadd.f32 %v6534, 0.0
      %v6551 = vadd.f32 %v6535, 0.0
      %v6552 = vadd.f32 %v6536, 0.0
      %v6553 = vadd.f32 %v6537, 0.0
      %v6554 = vadd.f32 %v6538, 0.0
      %v6555 = vadd.f32 %v6539, 0.0
      %v6556 = vadd.f32 %v6540, 0.0
      %v6557 = vadd.f32 %v6541, 0.0
      %v6558 = vadd.f32 %v6542, 0.0
      %v6559 = vadd.f32 %v6543, 0.0
      %v6560 = vmul.f32 %v6510, %v6036
      %v6561 = vmul.f32 %v6511, %v6036
      %v6562 = vmul.f32 %v6512, %v6036
      %v6563 = vmul.f32 %v6513, %v6036
      %v6564 = vmul.f32 %v6514, %v6036
      %v6565 = vmul.f32 %v6515, %v6036
      %v6566 = vmul.f32 %v6516, %v6036
      %v6567 = vmul.f32 %v6517, %v6036
      %v6568 = vmul.f32 %v6518, %v6036
      %v6569 = vmul.f32 %v6519, %v6036
      %v6570 = vmul.f32 %v6520, %v6036
      %v6571 = vmul.f32 %v6521, %v6036
      %v6572 = vmul.f32 %v6522, %v6036
      %v6573 = vmul.f32 %v6523, %v6036
      %v6574 = vmul.f32 %v6524, %v6036
      %v6575 = vmul.f32 %v6525, %v6036
      %v6576 = vadd.f32 %v6544, %v6560
      %v6577 = vadd.f32 %v6545, %v6561
      %v6578 = vadd.f32 %v6546, %v6562
      %v6579 = vadd.f32 %v6547, %v6563
      %v6580 = vadd.f32 %v6548, %v6564
      %v6581 = vadd.f32 %v6549, %v6565
      %v6582 = vadd.f32 %v6550, %v6566
      %v6583 = vadd.f32 %v6551, %v6567
      %v6584 = vadd.f32 %v6552, %v6568
      %v6585 = vadd.f32 %v6553, %v6569
      %v6586 = vadd.f32 %v6554, %v6570
      %v6587 = vadd.f32 %v6555, %v6571
      %v6588 = vadd.f32 %v6556, %v6572
      %v6589 = vadd.f32 %v6557, %v6573
      %v6590 = vadd.f32 %v6558, %v6574
      %v6591 = vadd.f32 %v6559, %v6575
      %v6592 = vmul.f32 %v6512, %v6069
      %v6593 = vmul.f32 %v6513, %v6069
      %v6594 = vmul.f32 %v6514, %v6069
      %v6595 = vmul.f32 %v6515, %v6069
      %v6596 = vmul.f32 %v6516, %v6069
      %v6597 = vmul.f32 %v6517, %v6069
      %v6598 = vmul.f32 %v6518, %v6069
      %v6599 = vmul.f32 %v6519, %v6069
      %v6600 = vmul.f32 %v6520, %v6069
      %v6601 = vmul.f32 %v6521, %v6069
      %v6602 = vmul.f32 %v6522, %v6069
      %v6603 = vmul.f32 %v6523, %v6069
      %v6604 = vmul.f32 %v6524, %v6069
      %v6605 = vmul.f32 %v6525, %v6069
      %v6606 = vmul.f32 %v6526, %v6069
      %v6607 = vmul.f32 %v6527, %v6069
      %v6608 = vadd.f32 %v6576, %v6592
      %v6609 = vadd.f32 %v6577, %v6593
      %v6610 = vadd.f32 %v6578, %v6594
      %v6611 = vadd.f32 %v6579, %v6595
      %v6612 = vadd.f32 %v6580, %v6596
      %v6613 = vadd.f32 %v6581, %v6597
      %v6614 = vadd.f32 %v6582, %v6598
      %v6615 = vadd.f32 %v6583, %v6599
      %v6616 = vadd.f32 %v6584, %v6600
      %v6617 = vadd.f32 %v6585, %v6601
      %v6618 = vadd.f32 %v6586, %v6602
      %v6619 = vadd.f32 %v6587, %v6603
      %v6620 = vadd.f32 %v6588, %v6604
      %v6621 = vadd.f32 %v6589, %v6605
      %v6622 = vadd.f32 %v6590, %v6606
      %v6623 = vadd.f32 %v6591, %v6607
      %v6624 = vld [vmem:[%s6507 + $0x8] sm:$0xff]
      %v6625 = vld [vmem:[%s6507 + $0x10] sm:$0xff]
      %v6626 = vld [vmem:[%s6507 + $0x28] sm:$0xff]
      %v6627 = vld [vmem:[%s6507 + $0x30] sm:$0xff]
      %v6628 = vld [vmem:[%s6507 + $0x48] sm:$0xff]
      %v6629 = vld [vmem:[%s6507 + $0x50] sm:$0xff]
      %v6630 = vld [vmem:[%s6507 + $0x68] sm:$0xff]
      %v6631 = vld [vmem:[%s6507 + $0x70] sm:$0xff]
      %v6632 = vld [vmem:[%s6507 + $0x88] sm:$0xff]
      %v6633 = vld [vmem:[%s6507 + $0x90] sm:$0xff]
      %v6634 = vld [vmem:[%s6507 + $0xa8] sm:$0xff]
      %v6635 = vld [vmem:[%s6507 + $0xb0] sm:$0xff]
      %v6636 = vld [vmem:[%s6507 + $0xc8] sm:$0xff]
      %v6637 = vld [vmem:[%s6507 + $0xd0] sm:$0xff]
      %v6638 = vld [vmem:[%s6507 + $0xe8] sm:$0xff]
      %v6639 = vld [vmem:[%s6507 + $0xf0] sm:$0xff]
      %v6640 = vld [vmem:[%s6507 + $0x108] sm:$0xff]
      %v6641 = vld [vmem:[%s6507 + $0x110] sm:$0xff]
      %v6642 = vld [vmem:[%s6507 + $0x128] sm:$0xff]
      %v6643 = vld [vmem:[%s6507 + $0x130] sm:$0xff]
      %v6644 = vmul.f32 %v6624, %v6122
      %v6645 = vmul.f32 %v6625, %v6122
      %v6646 = vmul.f32 %v6626, %v6122
      %v6647 = vmul.f32 %v6627, %v6122
      %v6648 = vmul.f32 %v6628, %v6122
      %v6649 = vmul.f32 %v6629, %v6122
      %v6650 = vmul.f32 %v6630, %v6122
      %v6651 = vmul.f32 %v6631, %v6122
      %v6652 = vmul.f32 %v6632, %v6122
      %v6653 = vmul.f32 %v6633, %v6122
      %v6654 = vmul.f32 %v6634, %v6122
      %v6655 = vmul.f32 %v6635, %v6122
      %v6656 = vmul.f32 %v6636, %v6122
      %v6657 = vmul.f32 %v6637, %v6122
      %v6658 = vmul.f32 %v6638, %v6122
      %v6659 = vmul.f32 %v6639, %v6122
      %v6660 = vadd.f32 %v6608, %v6644
      %v6661 = vadd.f32 %v6609, %v6645
      %v6662 = vadd.f32 %v6610, %v6646
      %v6663 = vadd.f32 %v6611, %v6647
      %v6664 = vadd.f32 %v6612, %v6648
      %v6665 = vadd.f32 %v6613, %v6649
      %v6666 = vadd.f32 %v6614, %v6650
      %v6667 = vadd.f32 %v6615, %v6651
      %v6668 = vadd.f32 %v6616, %v6652
      %v6669 = vadd.f32 %v6617, %v6653
      %v6670 = vadd.f32 %v6618, %v6654
      %v6671 = vadd.f32 %v6619, %v6655
      %v6672 = vadd.f32 %v6620, %v6656
      %v6673 = vadd.f32 %v6621, %v6657
      %v6674 = vadd.f32 %v6622, %v6658
      %v6675 = vadd.f32 %v6623, %v6659
      %v6676 = vmul.f32 %v6626, %v6155
      %v6677 = vmul.f32 %v6627, %v6155
      %v6678 = vmul.f32 %v6628, %v6155
      %v6679 = vmul.f32 %v6629, %v6155
      %v6680 = vmul.f32 %v6630, %v6155
      %v6681 = vmul.f32 %v6631, %v6155
      %v6682 = vmul.f32 %v6632, %v6155
      %v6683 = vmul.f32 %v6633, %v6155
      %v6684 = vmul.f32 %v6634, %v6155
      %v6685 = vmul.f32 %v6635, %v6155
      %v6686 = vmul.f32 %v6636, %v6155
      %v6687 = vmul.f32 %v6637, %v6155
      %v6688 = vmul.f32 %v6638, %v6155
      %v6689 = vmul.f32 %v6639, %v6155
      %v6690 = vmul.f32 %v6640, %v6155
      %v6691 = vmul.f32 %v6641, %v6155
      %v6692 = vadd.f32 %v6660, %v6676
      %v6693 = vadd.f32 %v6661, %v6677
      %v6694 = vadd.f32 %v6662, %v6678
      %v6695 = vadd.f32 %v6663, %v6679
      %v6696 = vadd.f32 %v6664, %v6680
      %v6697 = vadd.f32 %v6665, %v6681
      %v6698 = vadd.f32 %v6666, %v6682
      %v6699 = vadd.f32 %v6667, %v6683
      %v6700 = vadd.f32 %v6668, %v6684
      %v6701 = vadd.f32 %v6669, %v6685
      %v6702 = vadd.f32 %v6670, %v6686
      %v6703 = vadd.f32 %v6671, %v6687
      %v6704 = vadd.f32 %v6672, %v6688
      %v6705 = vadd.f32 %v6673, %v6689
      %v6706 = vadd.f32 %v6674, %v6690
      %v6707 = vadd.f32 %v6675, %v6691
      %v6708 = vmul.f32 %v6628, %v6188
      %v6709 = vmul.f32 %v6629, %v6188
      %v6710 = vmul.f32 %v6630, %v6188
      %v6711 = vmul.f32 %v6631, %v6188
      %v6712 = vmul.f32 %v6632, %v6188
      %v6713 = vmul.f32 %v6633, %v6188
      %v6714 = vmul.f32 %v6634, %v6188
      %v6715 = vmul.f32 %v6635, %v6188
      %v6716 = vmul.f32 %v6636, %v6188
      %v6717 = vmul.f32 %v6637, %v6188
      %v6718 = vmul.f32 %v6638, %v6188
      %v6719 = vmul.f32 %v6639, %v6188
      %v6720 = vmul.f32 %v6640, %v6188
      %v6721 = vmul.f32 %v6641, %v6188
      %v6722 = vmul.f32 %v6642, %v6188
      %v6723 = vmul.f32 %v6643, %v6188
      %v6724 = vadd.f32 %v6692, %v6708
      %v6725 = vadd.f32 %v6693, %v6709
      %v6726 = vadd.f32 %v6694, %v6710
      %v6727 = vadd.f32 %v6695, %v6711
      %v6728 = vadd.f32 %v6696, %v6712
      %v6729 = vadd.f32 %v6697, %v6713
      %v6730 = vadd.f32 %v6698, %v6714
      %v6731 = vadd.f32 %v6699, %v6715
      %v6732 = vadd.f32 %v6700, %v6716
      %v6733 = vadd.f32 %v6701, %v6717
      %v6734 = vadd.f32 %v6702, %v6718
      %v6735 = vadd.f32 %v6703, %v6719
      %v6736 = vadd.f32 %v6704, %v6720
      %v6737 = vadd.f32 %v6705, %v6721
      %v6738 = vadd.f32 %v6706, %v6722
      %v6739 = vadd.f32 %v6707, %v6723
      %v6740 = vld [vmem:[%s6507 + $0x9] sm:$0xff]
      %v6741 = vld [vmem:[%s6507 + $0x11] sm:$0xff]
      %v6742 = vld [vmem:[%s6507 + $0x29] sm:$0xff]
      %v6743 = vld [vmem:[%s6507 + $0x31] sm:$0xff]
      %v6744 = vld [vmem:[%s6507 + $0x49] sm:$0xff]
      %v6745 = vld [vmem:[%s6507 + $0x51] sm:$0xff]
      %v6746 = vld [vmem:[%s6507 + $0x69] sm:$0xff]
      %v6747 = vld [vmem:[%s6507 + $0x71] sm:$0xff]
      %v6748 = vld [vmem:[%s6507 + $0x89] sm:$0xff]
      %v6749 = vld [vmem:[%s6507 + $0x91] sm:$0xff]
      %v6750 = vld [vmem:[%s6507 + $0xa9] sm:$0xff]
      %v6751 = vld [vmem:[%s6507 + $0xb1] sm:$0xff]
      %v6752 = vld [vmem:[%s6507 + $0xc9] sm:$0xff]
      %v6753 = vld [vmem:[%s6507 + $0xd1] sm:$0xff]
      %v6754 = vld [vmem:[%s6507 + $0xe9] sm:$0xff]
      %v6755 = vld [vmem:[%s6507 + $0xf1] sm:$0xff]
      %v6756 = vld [vmem:[%s6507 + $0x109] sm:$0xff]
      %v6757 = vld [vmem:[%s6507 + $0x111] sm:$0xff]
      %v6758 = vld [vmem:[%s6507 + $0x129] sm:$0xff]
      %v6759 = vld [vmem:[%s6507 + $0x131] sm:$0xff]
      %v6760 = vmul.f32 %v6740, %v6241
      %v6761 = vmul.f32 %v6741, %v6241
      %v6762 = vmul.f32 %v6742, %v6241
      %v6763 = vmul.f32 %v6743, %v6241
      %v6764 = vmul.f32 %v6744, %v6241
      %v6765 = vmul.f32 %v6745, %v6241
      %v6766 = vmul.f32 %v6746, %v6241
      %v6767 = vmul.f32 %v6747, %v6241
      %v6768 = vmul.f32 %v6748, %v6241
      %v6769 = vmul.f32 %v6749, %v6241
      %v6770 = vmul.f32 %v6750, %v6241
      %v6771 = vmul.f32 %v6751, %v6241
      %v6772 = vmul.f32 %v6752, %v6241
      %v6773 = vmul.f32 %v6753, %v6241
      %v6774 = vmul.f32 %v6754, %v6241
      %v6775 = vmul.f32 %v6755, %v6241
      %v6776 = vadd.f32 %v6724, %v6760
      %v6777 = vadd.f32 %v6725, %v6761
      %v6778 = vadd.f32 %v6726, %v6762
      %v6779 = vadd.f32 %v6727, %v6763
      %v6780 = vadd.f32 %v6728, %v6764
      %v6781 = vadd.f32 %v6729, %v6765
      %v6782 = vadd.f32 %v6730, %v6766
      %v6783 = vadd.f32 %v6731, %v6767
      %v6784 = vadd.f32 %v6732, %v6768
      %v6785 = vadd.f32 %v6733, %v6769
      %v6786 = vadd.f32 %v6734, %v6770
      %v6787 = vadd.f32 %v6735, %v6771
      %v6788 = vadd.f32 %v6736, %v6772
      %v6789 = vadd.f32 %v6737, %v6773
      %v6790 = vadd.f32 %v6738, %v6774
      %v6791 = vadd.f32 %v6739, %v6775
      %v6792 = vmul.f32 %v6742, %v6274
      %v6793 = vmul.f32 %v6743, %v6274
      %v6794 = vmul.f32 %v6744, %v6274
      %v6795 = vmul.f32 %v6745, %v6274
      %v6796 = vmul.f32 %v6746, %v6274
      %v6797 = vmul.f32 %v6747, %v6274
      %v6798 = vmul.f32 %v6748, %v6274
      %v6799 = vmul.f32 %v6749, %v6274
      %v6800 = vmul.f32 %v6750, %v6274
      %v6801 = vmul.f32 %v6751, %v6274
      %v6802 = vmul.f32 %v6752, %v6274
      %v6803 = vmul.f32 %v6753, %v6274
      %v6804 = vmul.f32 %v6754, %v6274
      %v6805 = vmul.f32 %v6755, %v6274
      %v6806 = vmul.f32 %v6756, %v6274
      %v6807 = vmul.f32 %v6757, %v6274
      %v6808 = vadd.f32 %v6776, %v6792
      %v6809 = vadd.f32 %v6777, %v6793
      %v6810 = vadd.f32 %v6778, %v6794
      %v6811 = vadd.f32 %v6779, %v6795
      %v6812 = vadd.f32 %v6780, %v6796
      %v6813 = vadd.f32 %v6781, %v6797
      %v6814 = vadd.f32 %v6782, %v6798
      %v6815 = vadd.f32 %v6783, %v6799
      %v6816 = vadd.f32 %v6784, %v6800
      %v6817 = vadd.f32 %v6785, %v6801
      %v6818 = vadd.f32 %v6786, %v6802
      %v6819 = vadd.f32 %v6787, %v6803
      %v6820 = vadd.f32 %v6788, %v6804
      %v6821 = vadd.f32 %v6789, %v6805
      %v6822 = vadd.f32 %v6790, %v6806
      %v6823 = vadd.f32 %v6791, %v6807
      %v6824 = vmul.f32 %v6744, %v6307
      %v6825 = vmul.f32 %v6745, %v6307
      %v6826 = vmul.f32 %v6746, %v6307
      %v6827 = vmul.f32 %v6747, %v6307
      %v6828 = vmul.f32 %v6748, %v6307
      %v6829 = vmul.f32 %v6749, %v6307
      %v6830 = vmul.f32 %v6750, %v6307
      %v6831 = vmul.f32 %v6751, %v6307
      %v6832 = vmul.f32 %v6752, %v6307
      %v6833 = vmul.f32 %v6753, %v6307
      %v6834 = vmul.f32 %v6754, %v6307
      %v6835 = vmul.f32 %v6755, %v6307
      %v6836 = vmul.f32 %v6756, %v6307
      %v6837 = vmul.f32 %v6757, %v6307
      %v6838 = vmul.f32 %v6758, %v6307
      %v6839 = vmul.f32 %v6759, %v6307
      %v6840 = vadd.f32 %v6808, %v6824
      %v6841 = vadd.f32 %v6809, %v6825
      %v6842 = vadd.f32 %v6810, %v6826
      %v6843 = vadd.f32 %v6811, %v6827
      %v6844 = vadd.f32 %v6812, %v6828
      %v6845 = vadd.f32 %v6813, %v6829
      %v6846 = vadd.f32 %v6814, %v6830
      %v6847 = vadd.f32 %v6815, %v6831
      %v6848 = vadd.f32 %v6816, %v6832
      %v6849 = vadd.f32 %v6817, %v6833
      %v6850 = vadd.f32 %v6818, %v6834
      %v6851 = vadd.f32 %v6819, %v6835
      %v6852 = vadd.f32 %v6820, %v6836
      %v6853 = vadd.f32 %v6821, %v6837
      %v6854 = vadd.f32 %v6822, %v6838
      %v6855 = vadd.f32 %v6823, %v6839
      %v6856 = vsel %vm323, %v6840, 0.0
      %6857 = vadd.xlane.f32.xlu0 %v6856
      %v6858 = vpop.xlane.xlu0 %6857
      %v6859 = vsel %vm323, %v6841, 0.0
      %6860 = vadd.xlane.f32.xlu0 %v6859
      %v6861 = vpop.xlane.xlu0 %6860
      %v6862 = vsel %vm323, %v6842, 0.0
      %6863 = vadd.xlane.f32.xlu0 %v6862
      %v6864 = vpop.xlane.xlu0 %6863
      %v6865 = vsel %vm323, %v6843, 0.0
      %6866 = vadd.xlane.f32.xlu0 %v6865
      %v6867 = vpop.xlane.xlu0 %6866
      %v6868 = vsel %vm323, %v6844, 0.0
      %6869 = vadd.xlane.f32.xlu0 %v6868
      %v6870 = vpop.xlane.xlu0 %6869
      %v6871 = vsel %vm323, %v6845, 0.0
      %6872 = vadd.xlane.f32.xlu0 %v6871
      %v6873 = vpop.xlane.xlu0 %6872
      %v6874 = vsel %vm323, %v6846, 0.0
      %6875 = vadd.xlane.f32.xlu0 %v6874
      %v6876 = vpop.xlane.xlu0 %6875
      %v6877 = vsel %vm323, %v6847, 0.0
      %6878 = vadd.xlane.f32.xlu0 %v6877
      %v6879 = vpop.xlane.xlu0 %6878
      %v6880 = vsel %vm323, %v6848, 0.0
      %6881 = vadd.xlane.f32.xlu0 %v6880
      %v6882 = vpop.xlane.xlu0 %6881
      %v6883 = vsel %vm323, %v6849, 0.0
      %6884 = vadd.xlane.f32.xlu0 %v6883
      %v6885 = vpop.xlane.xlu0 %6884
      %v6886 = vsel %vm323, %v6850, 0.0
      %6887 = vadd.xlane.f32.xlu0 %v6886
      %v6888 = vpop.xlane.xlu0 %6887
      %v6889 = vsel %vm323, %v6851, 0.0
      %6890 = vadd.xlane.f32.xlu0 %v6889
      %v6891 = vpop.xlane.xlu0 %6890
      %v6892 = vsel %vm323, %v6852, 0.0
      %6893 = vadd.xlane.f32.xlu0 %v6892
      %v6894 = vpop.xlane.xlu0 %6893
      %v6895 = vsel %vm323, %v6853, 0.0
      %6896 = vadd.xlane.f32.xlu0 %v6895
      %v6897 = vpop.xlane.xlu0 %6896
      %v6898 = vsel %vm323, %v6854, 0.0
      %6899 = vadd.xlane.f32.xlu0 %v6898
      %v6900 = vpop.xlane.xlu0 %6899
      %v6901 = vsel %vm323, %v6855, 0.0
      %6902 = vadd.xlane.f32.xlu0 %v6901
      %v6903 = vpop.xlane.xlu0 %6902
      %v6904 = vadd.f32 %v6858, %v6392
      %v6905 = vadd.f32 %v6861, %v6392
      %v6906 = vadd.f32 %v6864, %v6392
      %v6907 = vadd.f32 %v6867, %v6392
      %v6908 = vadd.f32 %v6870, %v6392
      %v6909 = vadd.f32 %v6873, %v6392
      %v6910 = vadd.f32 %v6876, %v6392
      %v6911 = vadd.f32 %v6879, %v6392
      %v6912 = vadd.f32 %v6882, %v6392
      %v6913 = vadd.f32 %v6885, %v6392
      %v6914 = vadd.f32 %v6888, %v6392
      %v6915 = vadd.f32 %v6891, %v6392
      %v6916 = vadd.f32 %v6894, %v6392
      %v6917 = vadd.f32 %v6897, %v6392
      %v6918 = vadd.f32 %v6900, %v6392
      %v6919 = vadd.f32 %v6903, %v6392
      %v6920 = vtanh.pop %v6904
      %v6921 = vtanh.pop %v6905
      %v6922 = vtanh.pop %v6906
      %v6923 = vtanh.pop %v6907
      %v6924 = vtanh.pop %v6908
      %v6925 = vtanh.pop %v6909
      %v6926 = vtanh.pop %v6910
      %v6927 = vtanh.pop %v6911
      %v6928 = vtanh.pop %v6912
      %v6929 = vtanh.pop %v6913
      %v6930 = vtanh.pop %v6914
      %v6931 = vtanh.pop %v6915
      %v6932 = vtanh.pop %v6916
      %v6933 = vtanh.pop %v6917
      %v6934 = vtanh.pop %v6918
      %v6935 = vtanh.pop %v6919
      %v6952 = vperm.slane %v6920, %v6443
      %v6953 = vperm.slane %v6921, %v6445
      %v6954 = vsel %vm6447, %v6953, %v6952
      %v6955 = vperm.slane %v6922, %v6449
      %v6956 = vsel %vm6451, %v6955, %v6954
      %v6957 = vperm.slane %v6923, %v6453
      %v6958 = vsel %vm6455, %v6957, %v6956
      %v6959 = vperm.slane %v6924, %v6457
      %v6960 = vsel %vm6459, %v6959, %v6958
      %v6961 = vperm.slane %v6925, %v6461
      %v6962 = vsel %vm6463, %v6961, %v6960
      %v6963 = vperm.slane %v6926, %v6465
      %v6964 = vsel %vm6467, %v6963, %v6962
      %v6965 = vperm.slane %v6927, %v6469
      %v6966 = vsel %vm6471, %v6965, %v6964
      %v6967 = vperm.slane %v6928, %v6473
      %v6968 = vsel %vm6475, %v6967, %v6966
      %v6969 = vperm.slane %v6929, %v6477
      %v6970 = vsel %vm6479, %v6969, %v6968
      %v6971 = vperm.slane %v6930, %v6481
      %v6972 = vsel %vm6483, %v6971, %v6970
      %v6973 = vperm.slane %v6931, %v6485
      %v6974 = vsel %vm6487, %v6973, %v6972
      %v6975 = vperm.slane %v6932, %v6489
      %v6976 = vsel %vm6491, %v6975, %v6974
      %v6977 = vperm.slane %v6933, %v6493
      %v6978 = vsel %vm6495, %v6977, %v6976
      %v6979 = vperm.slane %v6934, %v6497
      %v6980 = vsel %vm6499, %v6979, %v6978
      %v6981 = vperm.slane %v6935, %v6501
      %v6982 = vsel %vm6503, %v6981, %v6980
      %6984 = vst [vmem:[%s278 + $0x1] sm:$0x1] %v6982
      %p6985 = scmp.lt.s32.totalorder %s20, 1
      %s6986 = scalar_select %p6985, %s20, 1
      %s6987 = smul.addr %s6986, 2
      %s6988 = scalar_lea.vmem %s7, %s6987
      // Predicated region
      $region49: #{ec_forward.1} parent=47 // pred_check
        %p6989 = pneg %p190
      $region50: #{ec_forward.1} parent=47 // pred_check_branch
        %6991 = sbr.rel (%p6989) target = $region52
      $region51: #{ec_forward.1} parent=47 // pred_region
        _
      $region52: #{ec_forward.1} parent=47 // pred_fallthru
        _
    $region48: #{ec_forward.1} parent=5 // pred_fallthru
      _
    %p6992 = scmp.le.s32.totalorder 2, %s15
    // Predicated region
    $region53: #{ec_forward.1} parent=5 // pred_check
      %p6993 = pneg %p6992
    $region54: #{ec_forward.1} parent=5 // pred_check_branch
      %6995 = sbr.rel (%p6993) target = $region56
    $region55: #{ec_forward.1} parent=5 // pred_region
      %s6996 = ssub.s32 %s15, 2
      // Predicated region
      $region57: #{ec_forward.1} parent=55 // pred_check
        %p6997 = pneg %p196
      $region58: #{ec_forward.1} parent=55 // pred_check_branch
        %6999 = sbr.rel (%p6997) target = $region60
      $region59: #{ec_forward.1} parent=55 // pred_region
        %p7000 = scmp.lt.s32.totalorder %s21, 1
        %s7001 = scalar_select %p7000, %s21, 1
        %s7002 = smul.addr %s7001, 2
        %s7003 = scalar_lea.vmem %s7, %s7002
      $region60: #{ec_forward.1} parent=55 // pred_fallthru
        _
    $region56: #{ec_forward.1} parent=5 // pred_fallthru
      _
  $region6: #{ec_forward.1} parent=0 // loop_footer
    %s19 = sadd.s32 1, %s15
  $region7: #{ec_forward.1} parent=0 // loop_footer_branch
    %14 = sbr.rel target = $region3
  $region8: #{ec_forward.1} parent=0 // loop_exit
    _

</llo_original>
